<compile_context>
chip_gen: v5e
topology: v5e:2x2
jax: 0.10.0
libtpu: 0.0.40
codegen_flags: <defaults>
</compile_context>

<pallas_src>
import functools

import jax
import jax.numpy as jnp
import numpy as np
from jax.experimental import pallas as pl
from jax.experimental.pallas import tpu as pltpu


# For output row oh = 2j + a the contributing (kernel-row, padded-input-row-offset)
# pairs are fixed:  a=0 -> (kh=1, j+1), (kh=3, j)   ;   a=1 -> (kh=0, j+2), (kh=2, j+1)
# (same table along the width axis for b / kw / column offset).
_TAPS = {0: ((1, 1), (3, 0)), 1: ((0, 2), (2, 1))}


def _unet_up_kernel(xp_ref, w_ref, out_ref, *, H, W, eps, slope):
    # xp_ref : (1, H+2, W+2, Cin)   zero-padded NHWC input (bf16), one batch element
    # w_ref  : (4, 4, Cin, Ct)      ConvTranspose2d weight tile, (kh, kw, Cin, Ct) (bf16)
    # out_ref: (1, 4, H*W, Ct)      parity-major conv+IN+LeakyReLU output (f32)
    HW = H * W
    Cin = xp_ref.shape[-1]
    Ct = out_ref.shape[-1]
    inv_count = 1.0 / (4.0 * HW)

    s = jnp.zeros((1, Ct), jnp.float32)
    ss = jnp.zeros((1, Ct), jnp.float32)

    # ---- Pass 1: transposed conv, one (H*W, Cin) x (Cin, Ct) matmul per tap ----------
    p = 0
    for a in (0, 1):
        for b in (0, 1):
            acc = jnp.zeros((HW, Ct), jnp.float32)
            for kh, dr in _TAPS[a]:
                for kw, dc in _TAPS[b]:
                    xs = xp_ref[0, dr:dr + H, dc:dc + W, :].reshape(HW, Cin)
                    acc = acc + jnp.dot(xs, w_ref[kh, kw],
                                        preferred_element_type=jnp.float32)
            out_ref[0, p] = acc                       # raw conv output, normalized later
            s = s + jnp.sum(acc, axis=0, keepdims=True)
            ss = ss + jnp.sum(acc * acc, axis=0, keepdims=True)
            p += 1

    # ---- Pass 2: InstanceNorm2d (affine=False, biased var over 2H x 2W) + LeakyReLU ---
    mean = s * inv_count
    var = jnp.maximum(ss * inv_count - mean * mean, 0.0)
    inv_std = jax.lax.rsqrt(var + eps)
    for p in range(4):
        v = (out_ref[0, p] - mean) * inv_std
        out_ref[0, p] = jnp.where(v >= 0, v, slope * v)


def unet_up_forward(x_nchw, skip_nchw, weight, *, eps=1e-5, slope=0.01,
                    compute_dtype=jnp.bfloat16):
    """Forward pass of UnetUp.  `weight` has PyTorch shape (Cin, Cout, 4, 4)."""
    N, Cin, H, W = x_nchw.shape
    Cout = weight.shape[1]

    # Glue (single XLA pass, fused): NCHW -> NHWC, 1-px zero halo, cast matmul operands.
    x = jnp.transpose(x_nchw, (0, 2, 3, 1)).astype(compute_dtype)
    xp = jnp.pad(x, ((0, 0), (1, 1), (1, 1), (0, 0)))
    wt = jnp.transpose(weight, (2, 3, 0, 1)).astype(compute_dtype)

    # Cout tiling: per-channel InstanceNorm stats make channel tiles independent.
    if Cout > 128 and Cout % 128 == 0:
        ct = 128
    else:
        ct = Cout
    n_ct = Cout // ct

    kernel = functools.partial(_unet_up_kernel, H=H, W=W, eps=eps, slope=slope)

    flops = 2 * N * 16 * H * W * Cin * Cout          # 4 parities * 4 taps
    bytes_accessed = (xp.size * xp.dtype.itemsize
                      + n_ct * wt.size * wt.dtype.itemsize
                      + N * 4 * H * W * Cout * 4)

    y = pl.pallas_call(
        kernel,
        out_shape=jax.ShapeDtypeStruct((N, 4, H * W, Cout), jnp.float32),
        grid=(N, n_ct),
        in_specs=[
            pl.BlockSpec((1, H + 2, W + 2, Cin), lambda n, c: (n, 0, 0, 0)),
            pl.BlockSpec((4, 4, Cin, ct), lambda n, c: (0, 0, 0, c)),
        ],
        out_specs=pl.BlockSpec((1, 4, H * W, ct), lambda n, c: (n, 0, 0, c)),
        compiler_params=pltpu.CompilerParams(
            dimension_semantics=("parallel", "parallel"),
            vmem_limit_bytes=48 * 1024 * 1024),
        cost_estimate=pl.CostEstimate(
            flops=flops, transcendentals=N * Cout, bytes_accessed=bytes_accessed),
    )(xp, wt)

    # Glue: parity-major (n, a, b, j, i, c) -> interleaved NCHW (n, c, 2j+a, 2i+b) in ONE
    # transpose (the NHWC->NCHW transpose is required anyway for the torch-facing layout).
    y = y.reshape(N, 2, 2, H, W, Cout)
    y = jnp.transpose(y, (0, 5, 3, 1, 4, 2)).reshape(N, Cout, 2 * H, 2 * W)

    # torch.cat((up(x), skip), dim=1)
    return jnp.concatenate([y, skip_nchw.astype(y.dtype)], axis=1)


def unet_up_reference(x_nchw, skip_nchw, weight, *, eps=1e-5, slope=0.01):
    """Pure-JAX f32 reference (ConvTranspose2d via lhs-dilated conv)."""
    wf = jnp.transpose(weight, (1, 0, 2, 3))[:, :, ::-1, ::-1]
    y = jax.lax.conv_general_dilated(
        x_nchw.astype(jnp.float32), wf.astype(jnp.float32),
        window_strides=(1, 1), padding=((2, 2), (2, 2)),
        lhs_dilation=(2, 2),
        dimension_numbers=("NCHW", "OIHW", "NCHW"),
        precision=jax.lax.Precision.HIGHEST)
    mean = jnp.mean(y, axis=(2, 3), keepdims=True)
    var = jnp.mean(jnp.square(y - mean), axis=(2, 3), keepdims=True)
    y = (y - mean) / jnp.sqrt(var + eps)
    y = jnp.where(y >= 0, y, slope * y)
    return jnp.concatenate([y, skip_nchw.astype(jnp.float32)], axis=1)


if __name__ == "__main__":
    # small deterministic shapes: batch=2, in_ch=8, out_ch=16, spatial 16x16 -> 32x32
    N, Cin, Cout, H, W = 2, 8, 16, 16, 16
    key = jax.random.PRNGKey(0)
    kx, ks, kw = jax.random.split(key, 3)

    x = jax.random.normal(kx, (N, Cin, H, W), dtype=jnp.float32)
    skip = jax.random.normal(ks, (N, Cout, 2 * H, 2 * W), dtype=jnp.float32)
    # ConvTranspose2d weight shape in PyTorch: (in_channels, out_channels, kH, kW)
    weight = 0.1 * jax.random.normal(kw, (Cin, Cout, 4, 4), dtype=jnp.float32)

    out = jax.block_until_ready(unet_up_forward(x, skip, weight))
    ref = jax.block_until_ready(unet_up_reference(x, skip, weight))

    # bf16 matmul operands (f32 accumulation) vs f32 reference -> relaxed tolerance.
    np.testing.assert_allclose(np.asarray(out), np.asarray(ref), rtol=2e-2, atol=2e-2)
    assert out.shape == (N, 2 * Cout, 2 * H, 2 * W)

    print("KERNEL_OK")
</pallas_src>

<mosaic_0001>
module attributes {stable_mosaic.version = 11 : i64} {
  func.func @_unet_up_kernel(%arg0: i32, %arg1: i32, %arg2: memref<1x18x18x8xbf16, #tpu.memory_space<vmem>>, %arg3: memref<4x4x8x16xbf16, #tpu.memory_space<vmem>>, %arg4: memref<1x4x256x16xf32, #tpu.memory_space<vmem>>) attributes {dimension_semantics = [#tpu.dimension_semantics<parallel>, #tpu.dimension_semantics<parallel>], iteration_bounds = array<i64: 2, 1>, scalar_prefetch = 0 : i64, scratch_operands = 0 : i64, tpu.core_type = #tpu.core_type<tc>, window_params = [{transform_indices = @transform_0, window_bounds = array<i64: 1, 18, 18, 8>}, {transform_indices = @transform_1, window_bounds = array<i64: 4, 4, 8, 16>}, {transform_indices = @transform_2, window_bounds = array<i64: 1, 4, 256, 16>}]} {
    %cst = arith.constant 0.000000e+00 : f32
    %0 = vector.broadcast %cst : f32 to vector<1x16xf32>
    %cst_0 = arith.constant 0.000000e+00 : f32
    %1 = vector.broadcast %cst_0 : f32 to vector<1x16xf32>
    %cst_1 = arith.constant 0.000000e+00 : f32
    %2 = vector.broadcast %cst_1 : f32 to vector<256x16xf32>
    %c0 = arith.constant 0 : index
    %c1 = arith.constant 1 : index
    %c1_2 = arith.constant 1 : index
    %c0_3 = arith.constant 0 : index
    %3 = vector.load %arg2[%c0, %c1, %c1_2, %c0_3] : memref<1x18x18x8xbf16, #tpu.memory_space<vmem>>, vector<1x16x16x8xbf16>
    %4 = vector.shape_cast %3 : vector<1x16x16x8xbf16> to vector<16x16x8xbf16>
    %5 = vector.shape_cast %4 : vector<16x16x8xbf16> to vector<256x8xbf16>
    %c1_4 = arith.constant 1 : index
    %c1_5 = arith.constant 1 : index
    %c0_6 = arith.constant 0 : index
    %c0_7 = arith.constant 0 : index
    %6 = vector.load %arg3[%c1_4, %c1_5, %c0_6, %c0_7] : memref<4x4x8x16xbf16, #tpu.memory_space<vmem>>, vector<1x1x8x16xbf16>
    %7 = vector.shape_cast %6 : vector<1x1x8x16xbf16> to vector<8x16xbf16>
    %cst_8 = arith.constant dense<0.000000e+00> : vector<256x16xf32>
    %8 = tpu.matmul %5, %7, %cst_8 {dimension_numbers = #tpu.dot_dimension_numbers<[1], [0], [0], [1], [0, 0, 1, 1], [], []>} : vector<256x8xbf16>, vector<8x16xbf16>, vector<256x16xf32> -> vector<256x16xf32>
    %9 = arith.addf %2, %8 : vector<256x16xf32>
    %c0_9 = arith.constant 0 : index
    %c1_10 = arith.constant 1 : index
    %c0_11 = arith.constant 0 : index
    %c0_12 = arith.constant 0 : index
    %10 = vector.load %arg2[%c0_9, %c1_10, %c0_11, %c0_12] : memref<1x18x18x8xbf16, #tpu.memory_space<vmem>>, vector<1x16x16x8xbf16>
    %11 = vector.shape_cast %10 : vector<1x16x16x8xbf16> to vector<16x16x8xbf16>
    %12 = vector.shape_cast %11 : vector<16x16x8xbf16> to vector<256x8xbf16>
    %c1_13 = arith.constant 1 : index
    %c3 = arith.constant 3 : index
    %c0_14 = arith.constant 0 : index
    %c0_15 = arith.constant 0 : index
    %13 = vector.load %arg3[%c1_13, %c3, %c0_14, %c0_15] : memref<4x4x8x16xbf16, #tpu.memory_space<vmem>>, vector<1x1x8x16xbf16>
    %14 = vector.shape_cast %13 : vector<1x1x8x16xbf16> to vector<8x16xbf16>
    %cst_16 = arith.constant dense<0.000000e+00> : vector<256x16xf32>
    %15 = tpu.matmul %12, %14, %cst_16 {dimension_numbers = #tpu.dot_dimension_numbers<[1], [0], [0], [1], [0, 0, 1, 1], [], []>} : vector<256x8xbf16>, vector<8x16xbf16>, vector<256x16xf32> -> vector<256x16xf32>
    %16 = arith.addf %9, %15 : vector<256x16xf32>
    %c0_17 = arith.constant 0 : index
    %c0_18 = arith.constant 0 : index
    %c1_19 = arith.constant 1 : index
    %c0_20 = arith.constant 0 : index
    %17 = vector.load %arg2[%c0_17, %c0_18, %c1_19, %c0_20] : memref<1x18x18x8xbf16, #tpu.memory_space<vmem>>, vector<1x16x16x8xbf16>
    %18 = vector.shape_cast %17 : vector<1x16x16x8xbf16> to vector<16x16x8xbf16>
    %19 = vector.shape_cast %18 : vector<16x16x8xbf16> to vector<256x8xbf16>
    %c3_21 = arith.constant 3 : index
    %c1_22 = arith.constant 1 : index
    %c0_23 = arith.constant 0 : index
    %c0_24 = arith.constant 0 : index
    %20 = vector.load %arg3[%c3_21, %c1_22, %c0_23, %c0_24] : memref<4x4x8x16xbf16, #tpu.memory_space<vmem>>, vector<1x1x8x16xbf16>
    %21 = vector.shape_cast %20 : vector<1x1x8x16xbf16> to vector<8x16xbf16>
    %cst_25 = arith.constant dense<0.000000e+00> : vector<256x16xf32>
    %22 = tpu.matmul %19, %21, %cst_25 {dimension_numbers = #tpu.dot_dimension_numbers<[1], [0], [0], [1], [0, 0, 1, 1], [], []>} : vector<256x8xbf16>, vector<8x16xbf16>, vector<256x16xf32> -> vector<256x16xf32>
    %23 = arith.addf %16, %22 : vector<256x16xf32>
    %c0_26 = arith.constant 0 : index
    %c0_27 = arith.constant 0 : index
    %c0_28 = arith.constant 0 : index
    %c0_29 = arith.constant 0 : index
    %24 = vector.load %arg2[%c0_26, %c0_27, %c0_28, %c0_29] : memref<1x18x18x8xbf16, #tpu.memory_space<vmem>>, vector<1x16x16x8xbf16>
    %25 = vector.shape_cast %24 : vector<1x16x16x8xbf16> to vector<16x16x8xbf16>
    %26 = vector.shape_cast %25 : vector<16x16x8xbf16> to vector<256x8xbf16>
    %c3_30 = arith.constant 3 : index
    %c3_31 = arith.constant 3 : index
    %c0_32 = arith.constant 0 : index
    %c0_33 = arith.constant 0 : index
    %27 = vector.load %arg3[%c3_30, %c3_31, %c0_32, %c0_33] : memref<4x4x8x16xbf16, #tpu.memory_space<vmem>>, vector<1x1x8x16xbf16>
    %28 = vector.shape_cast %27 : vector<1x1x8x16xbf16> to vector<8x16xbf16>
    %cst_34 = arith.constant dense<0.000000e+00> : vector<256x16xf32>
    %29 = tpu.matmul %26, %28, %cst_34 {dimension_numbers = #tpu.dot_dimension_numbers<[1], [0], [0], [1], [0, 0, 1, 1], [], []>} : vector<256x8xbf16>, vector<8x16xbf16>, vector<256x16xf32> -> vector<256x16xf32>
    %30 = arith.addf %23, %29 : vector<256x16xf32>
    %c0_35 = arith.constant 0 : index
    %c0_36 = arith.constant 0 : index
    %c0_37 = arith.constant 0 : index
    %c0_38 = arith.constant 0 : index
    %31 = vector.load %arg4[%c0_35, %c0_36, %c0_37, %c0_38] : memref<1x4x256x16xf32, #tpu.memory_space<vmem>>, vector<1x1x256x16xf32>
    %32 = vector.shape_cast %31 : vector<1x1x256x16xf32> to vector<256x16xf32>
    %33 = vector.shape_cast %30 : vector<256x16xf32> to vector<1x1x256x16xf32>
    tpu.vector_store %arg4[%c0_35, %c0_36, %c0_37, %c0_38], %33 {strides = array<i32>} : memref<1x4x256x16xf32, #tpu.memory_space<vmem>>, vector<1x1x256x16xf32>,
    %cst_39 = arith.constant dense<0.000000e+00> : vector<16xf32>
    %34 = vector.multi_reduction <add>, %30, %cst_39 [0] : vector<256x16xf32> to vector<16xf32>
    %35 = vector.shape_cast %34 : vector<16xf32> to vector<1x16xf32>
    %36 = arith.addf %0, %35 : vector<1x16xf32>
    %37 = arith.mulf %30, %30 : vector<256x16xf32>
    %cst_40 = arith.constant dense<0.000000e+00> : vector<16xf32>
    %38 = vector.multi_reduction <add>, %37, %cst_40 [0] : vector<256x16xf32> to vector<16xf32>
    %39 = vector.shape_cast %38 : vector<16xf32> to vector<1x16xf32>
    %40 = arith.addf %1, %39 : vector<1x16xf32>
    %cst_41 = arith.constant 0.000000e+00 : f32
    %41 = vector.broadcast %cst_41 : f32 to vector<256x16xf32>
    %c0_42 = arith.constant 0 : index
    %c1_43 = arith.constant 1 : index
    %c2 = arith.constant 2 : index
    %c0_44 = arith.constant 0 : index
    %42 = vector.load %arg2[%c0_42, %c1_43, %c2, %c0_44] : memref<1x18x18x8xbf16, #tpu.memory_space<vmem>>, vector<1x16x16x8xbf16>
    %43 = vector.shape_cast %42 : vector<1x16x16x8xbf16> to vector<16x16x8xbf16>
    %44 = vector.shape_cast %43 : vector<16x16x8xbf16> to vector<256x8xbf16>
    %c1_45 = arith.constant 1 : index
    %c0_46 = arith.constant 0 : index
    %c0_47 = arith.constant 0 : index
    %c0_48 = arith.constant 0 : index
    %45 = vector.load %arg3[%c1_45, %c0_46, %c0_47, %c0_48] : memref<4x4x8x16xbf16, #tpu.memory_space<vmem>>, vector<1x1x8x16xbf16>
    %46 = vector.shape_cast %45 : vector<1x1x8x16xbf16> to vector<8x16xbf16>
    %cst_49 = arith.constant dense<0.000000e+00> : vector<256x16xf32>
    %47 = tpu.matmul %44, %46, %cst_49 {dimension_numbers = #tpu.dot_dimension_numbers<[1], [0], [0], [1], [0, 0, 1, 1], [], []>} : vector<256x8xbf16>, vector<8x16xbf16>, vector<256x16xf32> -> vector<256x16xf32>
    %48 = arith.addf %41, %47 : vector<256x16xf32>
    %c0_50 = arith.constant 0 : index
    %c1_51 = arith.constant 1 : index
    %c1_52 = arith.constant 1 : index
    %c0_53 = arith.constant 0 : index
    %49 = vector.load %arg2[%c0_50, %c1_51, %c1_52, %c0_53] : memref<1x18x18x8xbf16, #tpu.memory_space<vmem>>, vector<1x16x16x8xbf16>
    %50 = vector.shape_cast %49 : vector<1x16x16x8xbf16> to vector<16x16x8xbf16>
    %51 = vector.shape_cast %50 : vector<16x16x8xbf16> to vector<256x8xbf16>
    %c1_54 = arith.constant 1 : index
    %c2_55 = arith.constant 2 : index
    %c0_56 = arith.constant 0 : index
    %c0_57 = arith.constant 0 : index
    %52 = vector.load %arg3[%c1_54, %c2_55, %c0_56, %c0_57] : memref<4x4x8x16xbf16, #tpu.memory_space<vmem>>, vector<1x1x8x16xbf16>
    %53 = vector.shape_cast %52 : vector<1x1x8x16xbf16> to vector<8x16xbf16>
    %cst_58 = arith.constant dense<0.000000e+00> : vector<256x16xf32>
    %54 = tpu.matmul %51, %53, %cst_58 {dimension_numbers = #tpu.dot_dimension_numbers<[1], [0], [0], [1], [0, 0, 1, 1], [], []>} : vector<256x8xbf16>, vector<8x16xbf16>, vector<256x16xf32> -> vector<256x16xf32>
    %55 = arith.addf %48, %54 : vector<256x16xf32>
    %c0_59 = arith.constant 0 : index
    %c0_60 = arith.constant 0 : index
    %c2_61 = arith.constant 2 : index
    %c0_62 = arith.constant 0 : index
    %56 = vector.load %arg2[%c0_59, %c0_60, %c2_61, %c0_62] : memref<1x18x18x8xbf16, #tpu.memory_space<vmem>>, vector<1x16x16x8xbf16>
    %57 = vector.shape_cast %56 : vector<1x16x16x8xbf16> to vector<16x16x8xbf16>
    %58 = vector.shape_cast %57 : vector<16x16x8xbf16> to vector<256x8xbf16>
    %c3_63 = arith.constant 3 : index
    %c0_64 = arith.constant 0 : index
    %c0_65 = arith.constant 0 : index
    %c0_66 = arith.constant 0 : index
    %59 = vector.load %arg3[%c3_63, %c0_64, %c0_65, %c0_66] : memref<4x4x8x16xbf16, #tpu.memory_space<vmem>>, vector<1x1x8x16xbf16>
    %60 = vector.shape_cast %59 : vector<1x1x8x16xbf16> to vector<8x16xbf16>
    %cst_67 = arith.constant dense<0.000000e+00> : vector<256x16xf32>
    %61 = tpu.matmul %58, %60, %cst_67 {dimension_numbers = #tpu.dot_dimension_numbers<[1], [0], [0], [1], [0, 0, 1, 1], [], []>} : vector<256x8xbf16>, vector<8x16xbf16>, vector<256x16xf32> -> vector<256x16xf32>
    %62 = arith.addf %55, %61 : vector<256x16xf32>
    %c0_68 = arith.constant 0 : index
    %c0_69 = arith.constant 0 : index
    %c1_70 = arith.constant 1 : index
    %c0_71 = arith.constant 0 : index
    %63 = vector.load %arg2[%c0_68, %c0_69, %c1_70, %c0_71] : memref<1x18x18x8xbf16, #tpu.memory_space<vmem>>, vector<1x16x16x8xbf16>
    %64 = vector.shape_cast %63 : vector<1x16x16x8xbf16> to vector<16x16x8xbf16>
    %65 = vector.shape_cast %64 : vector<16x16x8xbf16> to vector<256x8xbf16>
    %c3_72 = arith.constant 3 : index
    %c2_73 = arith.constant 2 : index
    %c0_74 = arith.constant 0 : index
    %c0_75 = arith.constant 0 : index
    %66 = vector.load %arg3[%c3_72, %c2_73, %c0_74, %c0_75] : memref<4x4x8x16xbf16, #tpu.memory_space<vmem>>, vector<1x1x8x16xbf16>
    %67 = vector.shape_cast %66 : vector<1x1x8x16xbf16> to vector<8x16xbf16>
    %cst_76 = arith.constant dense<0.000000e+00> : vector<256x16xf32>
    %68 = tpu.matmul %65, %67, %cst_76 {dimension_numbers = #tpu.dot_dimension_numbers<[1], [0], [0], [1], [0, 0, 1, 1], [], []>} : vector<256x8xbf16>, vector<8x16xbf16>, vector<256x16xf32> -> vector<256x16xf32>
    %69 = arith.addf %62, %68 : vector<256x16xf32>
    %c0_77 = arith.constant 0 : index
    %c1_78 = arith.constant 1 : index
    %c0_79 = arith.constant 0 : index
    %c0_80 = arith.constant 0 : index
    %70 = vector.load %arg4[%c0_77, %c1_78, %c0_79, %c0_80] : memref<1x4x256x16xf32, #tpu.memory_space<vmem>>, vector<1x1x256x16xf32>
    %71 = vector.shape_cast %70 : vector<1x1x256x16xf32> to vector<256x16xf32>
    %72 = vector.shape_cast %69 : vector<256x16xf32> to vector<1x1x256x16xf32>
    tpu.vector_store %arg4[%c0_77, %c1_78, %c0_79, %c0_80], %72 {strides = array<i32>} : memref<1x4x256x16xf32, #tpu.memory_space<vmem>>, vector<1x1x256x16xf32>,
    %cst_81 = arith.constant dense<0.000000e+00> : vector<16xf32>
    %73 = vector.multi_reduction <add>, %69, %cst_81 [0] : vector<256x16xf32> to vector<16xf32>
    %74 = vector.shape_cast %73 : vector<16xf32> to vector<1x16xf32>
    %75 = arith.addf %36, %74 : vector<1x16xf32>
    %76 = arith.mulf %69, %69 : vector<256x16xf32>
    %cst_82 = arith.constant dense<0.000000e+00> : vector<16xf32>
    %77 = vector.multi_reduction <add>, %76, %cst_82 [0] : vector<256x16xf32> to vector<16xf32>
    %78 = vector.shape_cast %77 : vector<16xf32> to vector<1x16xf32>
    %79 = arith.addf %40, %78 : vector<1x16xf32>
    %cst_83 = arith.constant 0.000000e+00 : f32
    %80 = vector.broadcast %cst_83 : f32 to vector<256x16xf32>
    %c0_84 = arith.constant 0 : index
    %c2_85 = arith.constant 2 : index
    %c1_86 = arith.constant 1 : index
    %c0_87 = arith.constant 0 : index
    %81 = vector.load %arg2[%c0_84, %c2_85, %c1_86, %c0_87] : memref<1x18x18x8xbf16, #tpu.memory_space<vmem>>, vector<1x16x16x8xbf16>
    %82 = vector.shape_cast %81 : vector<1x16x16x8xbf16> to vector<16x16x8xbf16>
    %83 = vector.shape_cast %82 : vector<16x16x8xbf16> to vector<256x8xbf16>
    %c0_88 = arith.constant 0 : index
    %c1_89 = arith.constant 1 : index
    %c0_90 = arith.constant 0 : index
    %c0_91 = arith.constant 0 : index
    %84 = vector.load %arg3[%c0_88, %c1_89, %c0_90, %c0_91] : memref<4x4x8x16xbf16, #tpu.memory_space<vmem>>, vector<1x1x8x16xbf16>
    %85 = vector.shape_cast %84 : vector<1x1x8x16xbf16> to vector<8x16xbf16>
    %cst_92 = arith.constant dense<0.000000e+00> : vector<256x16xf32>
    %86 = tpu.matmul %83, %85, %cst_92 {dimension_numbers = #tpu.dot_dimension_numbers<[1], [0], [0], [1], [0, 0, 1, 1], [], []>} : vector<256x8xbf16>, vector<8x16xbf16>, vector<256x16xf32> -> vector<256x16xf32>
    %87 = arith.addf %80, %86 : vector<256x16xf32>
    %c0_93 = arith.constant 0 : index
    %c2_94 = arith.constant 2 : index
    %c0_95 = arith.constant 0 : index
    %c0_96 = arith.constant 0 : index
    %88 = vector.load %arg2[%c0_93, %c2_94, %c0_95, %c0_96] : memref<1x18x18x8xbf16, #tpu.memory_space<vmem>>, vector<1x16x16x8xbf16>
    %89 = vector.shape_cast %88 : vector<1x16x16x8xbf16> to vector<16x16x8xbf16>
    %90 = vector.shape_cast %89 : vector<16x16x8xbf16> to vector<256x8xbf16>
    %c0_97 = arith.constant 0 : index
    %c3_98 = arith.constant 3 : index
    %c0_99 = arith.constant 0 : index
    %c0_100 = arith.constant 0 : index
    %91 = vector.load %arg3[%c0_97, %c3_98, %c0_99, %c0_100] : memref<4x4x8x16xbf16, #tpu.memory_space<vmem>>, vector<1x1x8x16xbf16>
    %92 = vector.shape_cast %91 : vector<1x1x8x16xbf16> to vector<8x16xbf16>
    %cst_101 = arith.constant dense<0.000000e+00> : vector<256x16xf32>
    %93 = tpu.matmul %90, %92, %cst_101 {dimension_numbers = #tpu.dot_dimension_numbers<[1], [0], [0], [1], [0, 0, 1, 1], [], []>} : vector<256x8xbf16>, vector<8x16xbf16>, vector<256x16xf32> -> vector<256x16xf32>
    %94 = arith.addf %87, %93 : vector<256x16xf32>
    %c0_102 = arith.constant 0 : index
    %c1_103 = arith.constant 1 : index
    %c1_104 = arith.constant 1 : index
    %c0_105 = arith.constant 0 : index
    %95 = vector.load %arg2[%c0_102, %c1_103, %c1_104, %c0_105] : memref<1x18x18x8xbf16, #tpu.memory_space<vmem>>, vector<1x16x16x8xbf16>
    %96 = vector.shape_cast %95 : vector<1x16x16x8xbf16> to vector<16x16x8xbf16>
    %97 = vector.shape_cast %96 : vector<16x16x8xbf16> to vector<256x8xbf16>
    %c2_106 = arith.constant 2 : index
    %c1_107 = arith.constant 1 : index
    %c0_108 = arith.constant 0 : index
    %c0_109 = arith.constant 0 : index
    %98 = vector.load %arg3[%c2_106, %c1_107, %c0_108, %c0_109] : memref<4x4x8x16xbf16, #tpu.memory_space<vmem>>, vector<1x1x8x16xbf16>
    %99 = vector.shape_cast %98 : vector<1x1x8x16xbf16> to vector<8x16xbf16>
    %cst_110 = arith.constant dense<0.000000e+00> : vector<256x16xf32>
    %100 = tpu.matmul %97, %99, %cst_110 {dimension_numbers = #tpu.dot_dimension_numbers<[1], [0], [0], [1], [0, 0, 1, 1], [], []>} : vector<256x8xbf16>, vector<8x16xbf16>, vector<256x16xf32> -> vector<256x16xf32>
    %101 = arith.addf %94, %100 : vector<256x16xf32>
    %c0_111 = arith.constant 0 : index
    %c1_112 = arith.constant 1 : index
    %c0_113 = arith.constant 0 : index
    %c0_114 = arith.constant 0 : index
    %102 = vector.load %arg2[%c0_111, %c1_112, %c0_113, %c0_114] : memref<1x18x18x8xbf16, #tpu.memory_space<vmem>>, vector<1x16x16x8xbf16>
    %103 = vector.shape_cast %102 : vector<1x16x16x8xbf16> to vector<16x16x8xbf16>
    %104 = vector.shape_cast %103 : vector<16x16x8xbf16> to vector<256x8xbf16>
    %c2_115 = arith.constant 2 : index
    %c3_116 = arith.constant 3 : index
    %c0_117 = arith.constant 0 : index
    %c0_118 = arith.constant 0 : index
    %105 = vector.load %arg3[%c2_115, %c3_116, %c0_117, %c0_118] : memref<4x4x8x16xbf16, #tpu.memory_space<vmem>>, vector<1x1x8x16xbf16>
    %106 = vector.shape_cast %105 : vector<1x1x8x16xbf16> to vector<8x16xbf16>
    %cst_119 = arith.constant dense<0.000000e+00> : vector<256x16xf32>
    %107 = tpu.matmul %104, %106, %cst_119 {dimension_numbers = #tpu.dot_dimension_numbers<[1], [0], [0], [1], [0, 0, 1, 1], [], []>} : vector<256x8xbf16>, vector<8x16xbf16>, vector<256x16xf32> -> vector<256x16xf32>
    %108 = arith.addf %101, %107 : vector<256x16xf32>
    %c0_120 = arith.constant 0 : index
    %c2_121 = arith.constant 2 : index
    %c0_122 = arith.constant 0 : index
    %c0_123 = arith.constant 0 : index
    %109 = vector.load %arg4[%c0_120, %c2_121, %c0_122, %c0_123] : memref<1x4x256x16xf32, #tpu.memory_space<vmem>>, vector<1x1x256x16xf32>
    %110 = vector.shape_cast %109 : vector<1x1x256x16xf32> to vector<256x16xf32>
    %111 = vector.shape_cast %108 : vector<256x16xf32> to vector<1x1x256x16xf32>
    tpu.vector_store %arg4[%c0_120, %c2_121, %c0_122, %c0_123], %111 {strides = array<i32>} : memref<1x4x256x16xf32, #tpu.memory_space<vmem>>, vector<1x1x256x16xf32>,
    %cst_124 = arith.constant dense<0.000000e+00> : vector<16xf32>
    %112 = vector.multi_reduction <add>, %108, %cst_124 [0] : vector<256x16xf32> to vector<16xf32>
    %113 = vector.shape_cast %112 : vector<16xf32> to vector<1x16xf32>
    %114 = arith.addf %75, %113 : vector<1x16xf32>
    %115 = arith.mulf %108, %108 : vector<256x16xf32>
    %cst_125 = arith.constant dense<0.000000e+00> : vector<16xf32>
    %116 = vector.multi_reduction <add>, %115, %cst_125 [0] : vector<256x16xf32> to vector<16xf32>
    %117 = vector.shape_cast %116 : vector<16xf32> to vector<1x16xf32>
    %118 = arith.addf %79, %117 : vector<1x16xf32>
    %cst_126 = arith.constant 0.000000e+00 : f32
    %119 = vector.broadcast %cst_126 : f32 to vector<256x16xf32>
    %c0_127 = arith.constant 0 : index
    %c2_128 = arith.constant 2 : index
    %c2_129 = arith.constant 2 : index
    %c0_130 = arith.constant 0 : index
    %120 = vector.load %arg2[%c0_127, %c2_128, %c2_129, %c0_130] : memref<1x18x18x8xbf16, #tpu.memory_space<vmem>>, vector<1x16x16x8xbf16>
    %121 = vector.shape_cast %120 : vector<1x16x16x8xbf16> to vector<16x16x8xbf16>
    %122 = vector.shape_cast %121 : vector<16x16x8xbf16> to vector<256x8xbf16>
    %c0_131 = arith.constant 0 : index
    %c0_132 = arith.constant 0 : index
    %c0_133 = arith.constant 0 : index
    %c0_134 = arith.constant 0 : index
    %123 = vector.load %arg3[%c0_131, %c0_132, %c0_133, %c0_134] : memref<4x4x8x16xbf16, #tpu.memory_space<vmem>>, vector<1x1x8x16xbf16>
    %124 = vector.shape_cast %123 : vector<1x1x8x16xbf16> to vector<8x16xbf16>
    %cst_135 = arith.constant dense<0.000000e+00> : vector<256x16xf32>
    %125 = tpu.matmul %122, %124, %cst_135 {dimension_numbers = #tpu.dot_dimension_numbers<[1], [0], [0], [1], [0, 0, 1, 1], [], []>} : vector<256x8xbf16>, vector<8x16xbf16>, vector<256x16xf32> -> vector<256x16xf32>
    %126 = arith.addf %119, %125 : vector<256x16xf32>
    %c0_136 = arith.constant 0 : index
    %c2_137 = arith.constant 2 : index
    %c1_138 = arith.constant 1 : index
    %c0_139 = arith.constant 0 : index
    %127 = vector.load %arg2[%c0_136, %c2_137, %c1_138, %c0_139] : memref<1x18x18x8xbf16, #tpu.memory_space<vmem>>, vector<1x16x16x8xbf16>
    %128 = vector.shape_cast %127 : vector<1x16x16x8xbf16> to vector<16x16x8xbf16>
    %129 = vector.shape_cast %128 : vector<16x16x8xbf16> to vector<256x8xbf16>
    %c0_140 = arith.constant 0 : index
    %c2_141 = arith.constant 2 : index
    %c0_142 = arith.constant 0 : index
    %c0_143 = arith.constant 0 : index
    %130 = vector.load %arg3[%c0_140, %c2_141, %c0_142, %c0_143] : memref<4x4x8x16xbf16, #tpu.memory_space<vmem>>, vector<1x1x8x16xbf16>
    %131 = vector.shape_cast %130 : vector<1x1x8x16xbf16> to vector<8x16xbf16>
    %cst_144 = arith.constant dense<0.000000e+00> : vector<256x16xf32>
    %132 = tpu.matmul %129, %131, %cst_144 {dimension_numbers = #tpu.dot_dimension_numbers<[1], [0], [0], [1], [0, 0, 1, 1], [], []>} : vector<256x8xbf16>, vector<8x16xbf16>, vector<256x16xf32> -> vector<256x16xf32>
    %133 = arith.addf %126, %132 : vector<256x16xf32>
    %c0_145 = arith.constant 0 : index
    %c1_146 = arith.constant 1 : index
    %c2_147 = arith.constant 2 : index
    %c0_148 = arith.constant 0 : index
    %134 = vector.load %arg2[%c0_145, %c1_146, %c2_147, %c0_148] : memref<1x18x18x8xbf16, #tpu.memory_space<vmem>>, vector<1x16x16x8xbf16>
    %135 = vector.shape_cast %134 : vector<1x16x16x8xbf16> to vector<16x16x8xbf16>
    %136 = vector.shape_cast %135 : vector<16x16x8xbf16> to vector<256x8xbf16>
    %c2_149 = arith.constant 2 : index
    %c0_150 = arith.constant 0 : index
    %c0_151 = arith.constant 0 : index
    %c0_152 = arith.constant 0 : index
    %137 = vector.load %arg3[%c2_149, %c0_150, %c0_151, %c0_152] : memref<4x4x8x16xbf16, #tpu.memory_space<vmem>>, vector<1x1x8x16xbf16>
    %138 = vector.shape_cast %137 : vector<1x1x8x16xbf16> to vector<8x16xbf16>
    %cst_153 = arith.constant dense<0.000000e+00> : vector<256x16xf32>
    %139 = tpu.matmul %136, %138, %cst_153 {dimension_numbers = #tpu.dot_dimension_numbers<[1], [0], [0], [1], [0, 0, 1, 1], [], []>} : vector<256x8xbf16>, vector<8x16xbf16>, vector<256x16xf32> -> vector<256x16xf32>
    %140 = arith.addf %133, %139 : vector<256x16xf32>
    %c0_154 = arith.constant 0 : index
    %c1_155 = arith.constant 1 : index
    %c1_156 = arith.constant 1 : index
    %c0_157 = arith.constant 0 : index
    %141 = vector.load %arg2[%c0_154, %c1_155, %c1_156, %c0_157] : memref<1x18x18x8xbf16, #tpu.memory_space<vmem>>, vector<1x16x16x8xbf16>
    %142 = vector.shape_cast %141 : vector<1x16x16x8xbf16> to vector<16x16x8xbf16>
    %143 = vector.shape_cast %142 : vector<16x16x8xbf16> to vector<256x8xbf16>
    %c2_158 = arith.constant 2 : index
    %c2_159 = arith.constant 2 : index
    %c0_160 = arith.constant 0 : index
    %c0_161 = arith.constant 0 : index
    %144 = vector.load %arg3[%c2_158, %c2_159, %c0_160, %c0_161] : memref<4x4x8x16xbf16, #tpu.memory_space<vmem>>, vector<1x1x8x16xbf16>
    %145 = vector.shape_cast %144 : vector<1x1x8x16xbf16> to vector<8x16xbf16>
    %cst_162 = arith.constant dense<0.000000e+00> : vector<256x16xf32>
    %146 = tpu.matmul %143, %145, %cst_162 {dimension_numbers = #tpu.dot_dimension_numbers<[1], [0], [0], [1], [0, 0, 1, 1], [], []>} : vector<256x8xbf16>, vector<8x16xbf16>, vector<256x16xf32> -> vector<256x16xf32>
    %147 = arith.addf %140, %146 : vector<256x16xf32>
    %c0_163 = arith.constant 0 : index
    %c3_164 = arith.constant 3 : index
    %c0_165 = arith.constant 0 : index
    %c0_166 = arith.constant 0 : index
    %148 = vector.load %arg4[%c0_163, %c3_164, %c0_165, %c0_166] : memref<1x4x256x16xf32, #tpu.memory_space<vmem>>, vector<1x1x256x16xf32>
    %149 = vector.shape_cast %148 : vector<1x1x256x16xf32> to vector<256x16xf32>
    %150 = vector.shape_cast %147 : vector<256x16xf32> to vector<1x1x256x16xf32>
    tpu.vector_store %arg4[%c0_163, %c3_164, %c0_165, %c0_166], %150 {strides = array<i32>} : memref<1x4x256x16xf32, #tpu.memory_space<vmem>>, vector<1x1x256x16xf32>,
    %cst_167 = arith.constant dense<0.000000e+00> : vector<16xf32>
    %151 = vector.multi_reduction <add>, %147, %cst_167 [0] : vector<256x16xf32> to vector<16xf32>
    %152 = vector.shape_cast %151 : vector<16xf32> to vector<1x16xf32>
    %153 = arith.addf %114, %152 : vector<1x16xf32>
    %154 = arith.mulf %147, %147 : vector<256x16xf32>
    %cst_168 = arith.constant dense<0.000000e+00> : vector<16xf32>
    %155 = vector.multi_reduction <add>, %154, %cst_168 [0] : vector<256x16xf32> to vector<16xf32>
    %156 = vector.shape_cast %155 : vector<16xf32> to vector<1x16xf32>
    %157 = arith.addf %118, %156 : vector<1x16xf32>
    %cst_169 = arith.constant 9.765625E-4 : f32
    %158 = vector.broadcast %cst_169 : f32 to vector<1x16xf32>
    %159 = arith.mulf %153, %158 : vector<1x16xf32>
    %cst_170 = arith.constant 9.765625E-4 : f32
    %160 = vector.broadcast %cst_170 : f32 to vector<1x16xf32>
    %161 = arith.mulf %157, %160 : vector<1x16xf32>
    %162 = arith.mulf %159, %159 : vector<1x16xf32>
    %163 = arith.subf %161, %162 : vector<1x16xf32>
    %cst_171 = arith.constant 0.000000e+00 : f32
    %164 = vector.broadcast %cst_171 : f32 to vector<1x16xf32>
    %165 = arith.maximumf %163, %164 : vector<1x16xf32>
    %cst_172 = arith.constant 9.99999974E-6 : f32
    %166 = vector.broadcast %cst_172 : f32 to vector<1x16xf32>
    %167 = arith.addf %165, %166 : vector<1x16xf32>
    %168 = math.rsqrt %167 : vector<1x16xf32>
    %c0_173 = arith.constant 0 : index
    %c0_174 = arith.constant 0 : index
    %c0_175 = arith.constant 0 : index
    %c0_176 = arith.constant 0 : index
    %169 = vector.load %arg4[%c0_173, %c0_174, %c0_175, %c0_176] : memref<1x4x256x16xf32, #tpu.memory_space<vmem>>, vector<1x1x256x16xf32>
    %170 = vector.shape_cast %169 : vector<1x1x256x16xf32> to vector<256x16xf32>
    %171 = vector.broadcast %159 : vector<1x16xf32> to vector<256x16xf32>
    %172 = arith.subf %170, %171 : vector<256x16xf32>
    %173 = vector.broadcast %168 : vector<1x16xf32> to vector<256x16xf32>
    %174 = arith.mulf %172, %173 : vector<256x16xf32>
    %cst_177 = arith.constant 0.000000e+00 : f32
    %175 = vector.broadcast %cst_177 : f32 to vector<256x16xf32>
    %176 = arith.cmpf oge, %174, %175 : vector<256x16xf32>
    %cst_178 = arith.constant 0.00999999977 : f32
    %177 = vector.broadcast %cst_178 : f32 to vector<256x16xf32>
    %178 = arith.mulf %177, %174 : vector<256x16xf32>
    %179 = arith.select %176, %174, %178 : vector<256x16xi1>, vector<256x16xf32>
    %c0_179 = arith.constant 0 : index
    %c0_180 = arith.constant 0 : index
    %c0_181 = arith.constant 0 : index
    %c0_182 = arith.constant 0 : index
    %180 = vector.load %arg4[%c0_179, %c0_180, %c0_181, %c0_182] : memref<1x4x256x16xf32, #tpu.memory_space<vmem>>, vector<1x1x256x16xf32>
    %181 = vector.shape_cast %180 : vector<1x1x256x16xf32> to vector<256x16xf32>
    %182 = vector.shape_cast %179 : vector<256x16xf32> to vector<1x1x256x16xf32>
    tpu.vector_store %arg4[%c0_179, %c0_180, %c0_181, %c0_182], %182 {strides = array<i32>} : memref<1x4x256x16xf32, #tpu.memory_space<vmem>>, vector<1x1x256x16xf32>,
    %c0_183 = arith.constant 0 : index
    %c1_184 = arith.constant 1 : index
    %c0_185 = arith.constant 0 : index
    %c0_186 = arith.constant 0 : index
    %183 = vector.load %arg4[%c0_183, %c1_184, %c0_185, %c0_186] : memref<1x4x256x16xf32, #tpu.memory_space<vmem>>, vector<1x1x256x16xf32>
    %184 = vector.shape_cast %183 : vector<1x1x256x16xf32> to vector<256x16xf32>
    %185 = vector.broadcast %159 : vector<1x16xf32> to vector<256x16xf32>
    %186 = arith.subf %184, %185 : vector<256x16xf32>
    %187 = vector.broadcast %168 : vector<1x16xf32> to vector<256x16xf32>
    %188 = arith.mulf %186, %187 : vector<256x16xf32>
    %cst_187 = arith.constant 0.000000e+00 : f32
    %189 = vector.broadcast %cst_187 : f32 to vector<256x16xf32>
    %190 = arith.cmpf oge, %188, %189 : vector<256x16xf32>
    %cst_188 = arith.constant 0.00999999977 : f32
    %191 = vector.broadcast %cst_188 : f32 to vector<256x16xf32>
    %192 = arith.mulf %191, %188 : vector<256x16xf32>
    %193 = arith.select %190, %188, %192 : vector<256x16xi1>, vector<256x16xf32>
    %c0_189 = arith.constant 0 : index
    %c1_190 = arith.constant 1 : index
    %c0_191 = arith.constant 0 : index
    %c0_192 = arith.constant 0 : index
    %194 = vector.load %arg4[%c0_189, %c1_190, %c0_191, %c0_192] : memref<1x4x256x16xf32, #tpu.memory_space<vmem>>, vector<1x1x256x16xf32>
    %195 = vector.shape_cast %194 : vector<1x1x256x16xf32> to vector<256x16xf32>
    %196 = vector.shape_cast %193 : vector<256x16xf32> to vector<1x1x256x16xf32>
    tpu.vector_store %arg4[%c0_189, %c1_190, %c0_191, %c0_192], %196 {strides = array<i32>} : memref<1x4x256x16xf32, #tpu.memory_space<vmem>>, vector<1x1x256x16xf32>,
    %c0_193 = arith.constant 0 : index
    %c2_194 = arith.constant 2 : index
    %c0_195 = arith.constant 0 : index
    %c0_196 = arith.constant 0 : index
    %197 = vector.load %arg4[%c0_193, %c2_194, %c0_195, %c0_196] : memref<1x4x256x16xf32, #tpu.memory_space<vmem>>, vector<1x1x256x16xf32>
    %198 = vector.shape_cast %197 : vector<1x1x256x16xf32> to vector<256x16xf32>
    %199 = vector.broadcast %159 : vector<1x16xf32> to vector<256x16xf32>
    %200 = arith.subf %198, %199 : vector<256x16xf32>
    %201 = vector.broadcast %168 : vector<1x16xf32> to vector<256x16xf32>
    %202 = arith.mulf %200, %201 : vector<256x16xf32>
    %cst_197 = arith.constant 0.000000e+00 : f32
    %203 = vector.broadcast %cst_197 : f32 to vector<256x16xf32>
    %204 = arith.cmpf oge, %202, %203 : vector<256x16xf32>
    %cst_198 = arith.constant 0.00999999977 : f32
    %205 = vector.broadcast %cst_198 : f32 to vector<256x16xf32>
    %206 = arith.mulf %205, %202 : vector<256x16xf32>
    %207 = arith.select %204, %202, %206 : vector<256x16xi1>, vector<256x16xf32>
    %c0_199 = arith.constant 0 : index
    %c2_200 = arith.constant 2 : index
    %c0_201 = arith.constant 0 : index
    %c0_202 = arith.constant 0 : index
    %208 = vector.load %arg4[%c0_199, %c2_200, %c0_201, %c0_202] : memref<1x4x256x16xf32, #tpu.memory_space<vmem>>, vector<1x1x256x16xf32>
    %209 = vector.shape_cast %208 : vector<1x1x256x16xf32> to vector<256x16xf32>
    %210 = vector.shape_cast %207 : vector<256x16xf32> to vector<1x1x256x16xf32>
    tpu.vector_store %arg4[%c0_199, %c2_200, %c0_201, %c0_202], %210 {strides = array<i32>} : memref<1x4x256x16xf32, #tpu.memory_space<vmem>>, vector<1x1x256x16xf32>,
    %c0_203 = arith.constant 0 : index
    %c3_204 = arith.constant 3 : index
    %c0_205 = arith.constant 0 : index
    %c0_206 = arith.constant 0 : index
    %211 = vector.load %arg4[%c0_203, %c3_204, %c0_205, %c0_206] : memref<1x4x256x16xf32, #tpu.memory_space<vmem>>, vector<1x1x256x16xf32>
    %212 = vector.shape_cast %211 : vector<1x1x256x16xf32> to vector<256x16xf32>
    %213 = vector.broadcast %159 : vector<1x16xf32> to vector<256x16xf32>
    %214 = arith.subf %212, %213 : vector<256x16xf32>
    %215 = vector.broadcast %168 : vector<1x16xf32> to vector<256x16xf32>
    %216 = arith.mulf %214, %215 : vector<256x16xf32>
    %cst_207 = arith.constant 0.000000e+00 : f32
    %217 = vector.broadcast %cst_207 : f32 to vector<256x16xf32>
    %218 = arith.cmpf oge, %216, %217 : vector<256x16xf32>
    %cst_208 = arith.constant 0.00999999977 : f32
    %219 = vector.broadcast %cst_208 : f32 to vector<256x16xf32>
    %220 = arith.mulf %219, %216 : vector<256x16xf32>
    %221 = arith.select %218, %216, %220 : vector<256x16xi1>, vector<256x16xf32>
    %c0_209 = arith.constant 0 : index
    %c3_210 = arith.constant 3 : index
    %c0_211 = arith.constant 0 : index
    %c0_212 = arith.constant 0 : index
    %222 = vector.load %arg4[%c0_209, %c3_210, %c0_211, %c0_212] : memref<1x4x256x16xf32, #tpu.memory_space<vmem>>, vector<1x1x256x16xf32>
    %223 = vector.shape_cast %222 : vector<1x1x256x16xf32> to vector<256x16xf32>
    %224 = vector.shape_cast %221 : vector<256x16xf32> to vector<1x1x256x16xf32>
    tpu.vector_store %arg4[%c0_209, %c3_210, %c0_211, %c0_212], %224 {strides = array<i32>} : memref<1x4x256x16xf32, #tpu.memory_space<vmem>>, vector<1x1x256x16xf32>,
    return
  }
  func.func @transform_0(%arg0: i32, %arg1: i32) -> (i32, i32, i32, i32) {
    %c0_i32 = arith.constant 0 : i32
    %c0_i32_0 = arith.constant 0 : i32
    %c0_i32_1 = arith.constant 0 : i32
    %c0_i32_2 = arith.constant 0 : i32
    return %arg0, %c0_i32, %c0_i32_0, %c0_i32_1 : i32, i32, i32, i32
  }
  func.func @transform_1(%arg0: i32, %arg1: i32) -> (i32, i32, i32, i32) {
    %c0_i32 = arith.constant 0 : i32
    %c0_i32_0 = arith.constant 0 : i32
    %c0_i32_1 = arith.constant 0 : i32
    %c0_i32_2 = arith.constant 0 : i32
    return %c0_i32, %c0_i32_0, %c0_i32_1, %arg1 : i32, i32, i32, i32
  }
  func.func @transform_2(%arg0: i32, %arg1: i32) -> (i32, i32, i32, i32) {
    %c0_i32 = arith.constant 0 : i32
    %c0_i32_0 = arith.constant 0 : i32
    %c0_i32_1 = arith.constant 0 : i32
    return %arg0, %c0_i32, %c0_i32_0, %arg1 : i32, i32, i32, i32
  }
}

</mosaic_0001>

<llo_original>
// kernel: tpu_custom_call.1
$region0: #{tpu_custom_call.1}
  #allocation0 [shape = 'u32[]', space=smem, size = 0x4, offset = 0x4, fixed_abs, tag = 'smem constant byte address 0x4 - core index']
  #allocation1 [shape = 'u32[72,128]{1,0:T(1,128)}', space=vmem, size = 0x9000, scoped, tag = 'internal scratch']
  %s0 = inlined_call_operand.vmem [shape: bf16[2,18,18,8], index: 0, kind: input, shape index: {}]
  %s1 = inlined_call_operand.vmem [shape: bf16[4,4,8,16], index: 1, kind: input, shape index: {}]
  %s2 = inlined_call_operand.vmem [shape: f32[2,4,256,16], index: 2, kind: output, shape index: {}]
  %s3 = sld [smem:[#allocation0]]
  $region41: #{tpu_custom_call.1} parent=0
    _
  %s5 = ssub.s32 1, %s3
  %s6 = scalar_select 0, %s5, %s3
  loop: start=0, step=1, limit=4
  $region2: #{tpu_custom_call.1} parent=0 // loop_pre_header
    _
  $region3: #{tpu_custom_call.1} parent=0 // loop_header
    %s8 = sphi 0, %s12
    %p9 = scmp.ge.s32.totalorder %s8, 4
    %s15 = sphi 0, %s27
    %s16 = sphi 0, %s23
    %s17 = sphi 0, %s15
    %s18 = sphi 0, %s16
    %s19 = sphi 0, %s17
    %s20 = sphi 0, %s18
    %s30 = sphi 0, %s32
    %s33 = sphi 0, %s30
    %s34 = sphi 0, %s33
    %s50 = sphi 0, %s34
    %s56 = sphi 0, %s58
    %s59 = sphi 0, %s56
    %s60 = sphi 0, %s59
    %s76 = sphi 0, %s60
    %s84 = sphi 0, %s86
    %s87 = sphi 0, %s84
    %s88 = sphi 0, %s87
    %s104 = sphi 0, %s88
  $region4: #{tpu_custom_call.1} parent=0 // loop_header_branch
    %11 = sbr.rel (%p9) target = $region8
  $region5: #{tpu_custom_call.1} parent=0 // loop_body
    %s13 = ssub.s32 %s8, 1
    %s14 = ssub.s32 %s8, 2
    %s21 = sadd.s32 1, %s16
    %p22 = scmp.ge.s32.totalorder %s21, 1
    %s23 = scalar_select %p22, 0, %s21
    %s24 = sadd.s32 1, %s15
    %s25 = scalar_select %p22, %s24, %s15
    %p26 = scmp.ge.s32.totalorder %s25, 2
    %s27 = scalar_select %p26, 0, %s25
    %s28 = ssub.s32 %s15, %s27
    %p29 = scmp.eq.s32.totalorder %s28, 0
    %s31 = sadd.s32 %s30, 1
    %s32 = scalar_select %p29, %s30, %s31
    %p35 = pneg %p29
    %p36 = scmp.eq.s32.totalorder %s8, 1
    %p37 = por %p35, %p36
    %p38 = scmp.ne.s32.totalorder %s30, %s33
    %p39 = scmp.eq.s32.totalorder %s8, 0
    %p40 = por %p38, %p39
    %p41 = scmp.ne.s32.totalorder %s30, %s33
    %p42 = scmp.eq.s32.totalorder %s13, 1
    %p43 = por %p41, %p42
    %p44 = scmp.ne.s32.totalorder %s33, %s34
    %p45 = scmp.eq.s32.totalorder %s13, 0
    %p46 = por %p44, %p45
    %p47 = scmp.ne.s32.totalorder %s33, %s34
    %p48 = scmp.eq.s32.totalorder %s14, 1
    %p49 = por %p47, %p48
    %p51 = scmp.ne.s32.totalorder %s34, %s50
    %p52 = scmp.eq.s32.totalorder %s14, 0
    %p53 = por %p51, %p52
    %s54 = ssub.s32 %s16, %s23
    %p55 = scmp.eq.s32.totalorder %s54, 0
    %s57 = sadd.s32 %s56, 1
    %s58 = scalar_select %p55, %s56, %s57
    %p61 = pneg %p55
    %p62 = scmp.eq.s32.totalorder %s8, 1
    %p63 = por %p61, %p62
    %p64 = scmp.ne.s32.totalorder %s56, %s59
    %p65 = scmp.eq.s32.totalorder %s8, 0
    %p66 = por %p64, %p65
    %p67 = scmp.ne.s32.totalorder %s56, %s59
    %p68 = scmp.eq.s32.totalorder %s13, 1
    %p69 = por %p67, %p68
    %p70 = scmp.ne.s32.totalorder %s59, %s60
    %p71 = scmp.eq.s32.totalorder %s13, 0
    %p72 = por %p70, %p71
    %p73 = scmp.ne.s32.totalorder %s59, %s60
    %p74 = scmp.eq.s32.totalorder %s14, 1
    %p75 = por %p73, %p74
    %p77 = scmp.ne.s32.totalorder %s60, %s76
    %p78 = scmp.eq.s32.totalorder %s14, 0
    %p79 = por %p77, %p78
    %s80 = ssub.s32 %s15, %s27
    %s81 = ssub.s32 %s16, %s23
    %s82 = sor.u32 %s80, %s81
    %p83 = scmp.eq.s32.totalorder %s82, 0
    %s85 = sadd.s32 %s84, 1
    %s86 = scalar_select %p83, %s84, %s85
    %p89 = pneg %p83
    %p90 = scmp.eq.s32.totalorder %s8, 1
    %p91 = por %p89, %p90
    %p92 = scmp.ne.s32.totalorder %s84, %s87
    %p93 = scmp.eq.s32.totalorder %s8, 0
    %p94 = por %p92, %p93
    %p95 = scmp.ne.s32.totalorder %s84, %s87
    %p96 = scmp.eq.s32.totalorder %s13, 1
    %p97 = por %p95, %p96
    %p98 = scmp.ne.s32.totalorder %s87, %s88
    %p99 = scmp.eq.s32.totalorder %s13, 0
    %p100 = por %p98, %p99
    %p101 = scmp.ne.s32.totalorder %s87, %s88
    %p102 = scmp.eq.s32.totalorder %s14, 1
    %p103 = por %p101, %p102
    %p105 = scmp.ne.s32.totalorder %s88, %s104
    %p106 = scmp.eq.s32.totalorder %s14, 0
    %p107 = por %p105, %p106
    %p108 = scmp.le.s32.totalorder 1, %s8
    %p109 = scmp.lt.s32.totalorder %s8, 3
    %p110 = pnand %p108, %p109
    %p111 = pneg %p110
    // Predicated region
    $region9: #{tpu_custom_call.1} parent=5 // pred_check
      _
    $region10: #{tpu_custom_call.1} parent=5 // pred_check_branch
      %113 = sbr.rel (%p110) target = $region12
    $region11: #{tpu_custom_call.1} parent=5 // pred_region
      %s114 = ssub.s32 %s8, 1
      // Predicated region
      $region13: #{tpu_custom_call.1} parent=11 // pred_check
        %p115 = pneg %p72
      $region14: #{tpu_custom_call.1} parent=11 // pred_check_branch
        %117 = sbr.rel (%p115) target = $region16
      $region15: #{tpu_custom_call.1} parent=11 // pred_region
        %p118 = scmp.lt.s32.totalorder %s18, 0
        %s119 = scalar_select %p118, %s18, 0
        %s120 = smul.addr %s119, 4
        %s121 = scalar_lea.vmem %s1, %s120
      $region16: #{tpu_custom_call.1} parent=11 // pred_fallthru
        _
    $region12: #{tpu_custom_call.1} parent=5 // pred_fallthru
      _
    %p122 = scmp.lt.s32.totalorder %s8, 2
    // Predicated region
    $region17: #{tpu_custom_call.1} parent=5 // pred_check
      %p123 = pneg %p122
    $region18: #{tpu_custom_call.1} parent=5 // pred_check_branch
      %125 = sbr.rel (%p123) target = $region20
    $region19: #{tpu_custom_call.1} parent=5 // pred_region
      // Predicated region
      $region21: #{tpu_custom_call.1} parent=19 // pred_check
        %p126 = pneg %p40
      $region22: #{tpu_custom_call.1} parent=19 // pred_check_branch
        %128 = sbr.rel (%p126) target = $region24
      $region23: #{tpu_custom_call.1} parent=19 // pred_region
        %p129 = scmp.lt.s32.totalorder %s15, 1
        %s130 = scalar_select %p129, %s15, 1
        %s131 = smul.addr %s130, 54
        %s132 = smul.addr %s131, 4
        %s133 = scalar_lea.vmem %s0, %s132
      $region24: #{tpu_custom_call.1} parent=19 // pred_fallthru
        _
    $region20: #{tpu_custom_call.1} parent=5 // pred_fallthru
      _
    %p134 = scmp.le.s32.totalorder 1, %s8
    %p135 = scmp.lt.s32.totalorder %s8, 3
    %p136 = pnand %p134, %p135
    %p137 = pneg %p136
    // Predicated region
    $region25: #{tpu_custom_call.1} parent=5 // pred_check
      _
    $region26: #{tpu_custom_call.1} parent=5 // pred_check_branch
      %139 = sbr.rel (%p136) target = $region28
    $region27: #{tpu_custom_call.1} parent=5 // pred_region
      %s140 = ssub.s32 %s8, 1
      %p141 = scmp.lt.s32.totalorder %s17, 1
      %s142 = scalar_select %p141, %s17, 1
      %s143 = smul.addr %s142, 54
      %s144 = smul.addr %s143, 4
      %s145 = scalar_lea.vmem %s0, %s144
      %p146 = pneg %p46
      %p147 = pneg %p43
      %p148 = scmp.lt.s32.totalorder %s18, 0
      %s149 = scalar_select %p148, %s18, 0
      %s150 = smul.addr %s149, 4
      %s151 = scalar_lea.vmem %s1, %s150
      %p152 = pneg %p72
      %p153 = pneg %p69
      %p154 = pneg %p100
      %p155 = pneg %p97
      %p156 = scmp.lt.s32.totalorder %s17, 1
      %s157 = scalar_select %p156, %s17, 1
      %p158 = scmp.lt.s32.totalorder %s18, 0
      %s159 = scalar_select %p158, %s18, 0
      %s160 = smul.addr %s157, 128
      %s161 = sadd.s32 %s159, %s160
      %s162 = smul.addr %s161, 8
      %s163 = scalar_lea.vmem %s2, %s162
      %p164 = scmp.lt.s32.totalorder %s17, 1
      %s165 = scalar_select %p164, %s17, 1
      %s166 = smul.addr %s165, 54
      %s167 = smul.addr %s166, 4
      %s168 = scalar_lea.vmem %s0, %s167
      %p169 = scmp.lt.s32.totalorder %s18, 0
      %s170 = scalar_select %p169, %s18, 0
      %s171 = smul.addr %s170, 4
      %s172 = scalar_lea.vmem %s1, %s171
      %p173 = scmp.lt.s32.totalorder %s17, 1
      %s174 = scalar_select %p173, %s17, 1
      %p175 = scmp.lt.s32.totalorder %s18, 0
      %s176 = scalar_select %p175, %s18, 0
      %s177 = smul.addr %s174, 128
      %s178 = sadd.s32 %s176, %s177
      %s179 = smul.addr %s178, 8
      %s180 = scalar_lea.vmem %s2, %s179
      %s182 = scalar_lea.vmem %s168, 12
      %v183 = vld [vmem:[%s182] sm:$0xf]
      %v184 = vld [vmem:[%s182 + $0x4] sm:$0xf]
      %v185 = vld [vmem:[%s182 + $0x8] sm:$0x1]
      %v186 = vld [vmem:[%s182 + $0xc] sm:$0xf]
      %v187 = vld [vmem:[%s182 + $0x10] sm:$0xf]
      %v188 = vld [vmem:[%s182 + $0x14] sm:$0x1]
      %v189 = vld [vmem:[%s182 + $0x18] sm:$0xf]
      %v190 = vld [vmem:[%s182 + $0x1c] sm:$0xf]
      %v191 = vld [vmem:[%s182 + $0x20] sm:$0x1]
      %v192 = vld [vmem:[%s182 + $0x24] sm:$0xf]
      %v193 = vld [vmem:[%s182 + $0x28] sm:$0xf]
      %v194 = vld [vmem:[%s182 + $0x2c] sm:$0x1]
      %v195 = vld [vmem:[%s182 + $0x30] sm:$0xf]
      %v196 = vld [vmem:[%s182 + $0x34] sm:$0xf]
      %v197 = vld [vmem:[%s182 + $0x38] sm:$0x1]
      %v198 = vld [vmem:[%s182 + $0x3c] sm:$0xf]
      %v199 = vld [vmem:[%s182 + $0x40] sm:$0xf]
      %v200 = vld [vmem:[%s182 + $0x44] sm:$0x1]
      %v201 = vld [vmem:[%s182 + $0x48] sm:$0xf]
      %v202 = vld [vmem:[%s182 + $0x4c] sm:$0xf]
      %v203 = vld [vmem:[%s182 + $0x50] sm:$0x1]
      %v204 = vld [vmem:[%s182 + $0x54] sm:$0xf]
      %v205 = vld [vmem:[%s182 + $0x58] sm:$0xf]
      %v206 = vld [vmem:[%s182 + $0x5c] sm:$0x1]
      %v207 = vld [vmem:[%s182 + $0x60] sm:$0xf]
      %v208 = vld [vmem:[%s182 + $0x64] sm:$0xf]
      %v209 = vld [vmem:[%s182 + $0x68] sm:$0x1]
      %v210 = vld [vmem:[%s182 + $0x6c] sm:$0xf]
      %v211 = vld [vmem:[%s182 + $0x70] sm:$0xf]
      %v212 = vld [vmem:[%s182 + $0x74] sm:$0x1]
      %v213 = vld [vmem:[%s182 + $0x78] sm:$0xf]
      %v214 = vld [vmem:[%s182 + $0x7c] sm:$0xf]
      %v215 = vld [vmem:[%s182 + $0x80] sm:$0x1]
      %v216 = vld [vmem:[%s182 + $0x84] sm:$0xf]
      %v217 = vld [vmem:[%s182 + $0x88] sm:$0xf]
      %v218 = vld [vmem:[%s182 + $0x8c] sm:$0x1]
      %v219 = vld [vmem:[%s182 + $0x90] sm:$0xf]
      %v220 = vld [vmem:[%s182 + $0x94] sm:$0xf]
      %v221 = vld [vmem:[%s182 + $0x98] sm:$0x1]
      %v222 = vld [vmem:[%s182 + $0x9c] sm:$0xf]
      %v223 = vld [vmem:[%s182 + $0xa0] sm:$0xf]
      %v224 = vld [vmem:[%s182 + $0xa4] sm:$0x1]
      %v225 = vld [vmem:[%s182 + $0xa8] sm:$0xf]
      %v226 = vld [vmem:[%s182 + $0xac] sm:$0xf]
      %v227 = vld [vmem:[%s182 + $0xb0] sm:$0x1]
      %v228 = vld [vmem:[%s182 + $0xb4] sm:$0xf]
      %v229 = vld [vmem:[%s182 + $0xb8] sm:$0xf]
      %v230 = vld [vmem:[%s182 + $0xbc] sm:$0x1]
      %vm231 = vsmask.f32 3328
      %vm232 = vsmask.f32 7440
      %vm233 = vmor %vm231, %vm232
      %v235 = vshrl.u32 %v183, 16
      %v237 = vrot.slane %v235, 4
      %v238 = vshll.u32 %v183, 16
      %v240 = vrot.slane %v238, 5
      %v241 = vor.u32 %v237, %v240
      %v242 = vrot.slane %v241, 4
      %v244 = vshll.u32 %v184, 16
      %v246 = vrot.slane %v244, 5
      %v247 = vsel %vm233, %v242, %v246
      %v248 = vshrl.u32 %v184, 16
      %v250 = vrot.slane %v248, 4
      %v251 = vor.u32 %v250, %v246
      %v252 = vrot.slane %v251, 4
      %v254 = vshll.u32 %v185, 16
      %v256 = vrot.slane %v254, 5
      %v257 = vsel %vm233, %v252, %v256
      %v259 = vshrl.u32 %v186, 16
      %v261 = vrot.slane %v259, 4
      %v262 = vshll.u32 %v186, 16
      %v264 = vrot.slane %v262, 5
      %v265 = vor.u32 %v261, %v264
      %v266 = vrot.slane %v265, 4
      %v268 = vshll.u32 %v187, 16
      %v270 = vrot.slane %v268, 5
      %v271 = vsel %vm233, %v266, %v270
      %v272 = vshrl.u32 %v187, 16
      %v274 = vrot.slane %v272, 4
      %v275 = vor.u32 %v274, %v270
      %v276 = vrot.slane %v275, 4
      %v278 = vshll.u32 %v188, 16
      %v280 = vrot.slane %v278, 5
      %v281 = vsel %vm233, %v276, %v280
      %v283 = vshrl.u32 %v189, 16
      %v285 = vrot.slane %v283, 4
      %v286 = vshll.u32 %v189, 16
      %v288 = vrot.slane %v286, 5
      %v289 = vor.u32 %v285, %v288
      %v290 = vrot.slane %v289, 4
      %v292 = vshll.u32 %v190, 16
      %v294 = vrot.slane %v292, 5
      %v295 = vsel %vm233, %v290, %v294
      %v296 = vshrl.u32 %v190, 16
      %v298 = vrot.slane %v296, 4
      %v299 = vor.u32 %v298, %v294
      %v300 = vrot.slane %v299, 4
      %v302 = vshll.u32 %v191, 16
      %v304 = vrot.slane %v302, 5
      %v305 = vsel %vm233, %v300, %v304
      %v307 = vshrl.u32 %v192, 16
      %v309 = vrot.slane %v307, 4
      %v310 = vshll.u32 %v192, 16
      %v312 = vrot.slane %v310, 5
      %v313 = vor.u32 %v309, %v312
      %v314 = vrot.slane %v313, 4
      %v316 = vshll.u32 %v193, 16
      %v318 = vrot.slane %v316, 5
      %v319 = vsel %vm233, %v314, %v318
      %v320 = vshrl.u32 %v193, 16
      %v322 = vrot.slane %v320, 4
      %v323 = vor.u32 %v322, %v318
      %v324 = vrot.slane %v323, 4
      %v326 = vshll.u32 %v194, 16
      %v328 = vrot.slane %v326, 5
      %v329 = vsel %vm233, %v324, %v328
      %v331 = vshrl.u32 %v195, 16
      %v333 = vrot.slane %v331, 4
      %v334 = vshll.u32 %v195, 16
      %v336 = vrot.slane %v334, 5
      %v337 = vor.u32 %v333, %v336
      %v338 = vrot.slane %v337, 4
      %v340 = vshll.u32 %v196, 16
      %v342 = vrot.slane %v340, 5
      %v343 = vsel %vm233, %v338, %v342
      %v344 = vshrl.u32 %v196, 16
      %v346 = vrot.slane %v344, 4
      %v347 = vor.u32 %v346, %v342
      %v348 = vrot.slane %v347, 4
      %v350 = vshll.u32 %v197, 16
      %v352 = vrot.slane %v350, 5
      %v353 = vsel %vm233, %v348, %v352
      %v355 = vshrl.u32 %v198, 16
      %v357 = vrot.slane %v355, 4
      %v358 = vshll.u32 %v198, 16
      %v360 = vrot.slane %v358, 5
      %v361 = vor.u32 %v357, %v360
      %v362 = vrot.slane %v361, 4
      %v364 = vshll.u32 %v199, 16
      %v366 = vrot.slane %v364, 5
      %v367 = vsel %vm233, %v362, %v366
      %v368 = vshrl.u32 %v199, 16
      %v370 = vrot.slane %v368, 4
      %v371 = vor.u32 %v370, %v366
      %v372 = vrot.slane %v371, 4
      %v374 = vshll.u32 %v200, 16
      %v376 = vrot.slane %v374, 5
      %v377 = vsel %vm233, %v372, %v376
      %v379 = vshrl.u32 %v201, 16
      %v381 = vrot.slane %v379, 4
      %v382 = vshll.u32 %v201, 16
      %v384 = vrot.slane %v382, 5
      %v385 = vor.u32 %v381, %v384
      %v386 = vrot.slane %v385, 4
      %v388 = vshll.u32 %v202, 16
      %v390 = vrot.slane %v388, 5
      %v391 = vsel %vm233, %v386, %v390
      %v392 = vshrl.u32 %v202, 16
      %v394 = vrot.slane %v392, 4
      %v395 = vor.u32 %v394, %v390
      %v396 = vrot.slane %v395, 4
      %v398 = vshll.u32 %v203, 16
      %v400 = vrot.slane %v398, 5
      %v401 = vsel %vm233, %v396, %v400
      %v403 = vshrl.u32 %v204, 16
      %v405 = vrot.slane %v403, 4
      %v406 = vshll.u32 %v204, 16
      %v408 = vrot.slane %v406, 5
      %v409 = vor.u32 %v405, %v408
      %v410 = vrot.slane %v409, 4
      %v412 = vshll.u32 %v205, 16
      %v414 = vrot.slane %v412, 5
      %v415 = vsel %vm233, %v410, %v414
      %v416 = vshrl.u32 %v205, 16
      %v418 = vrot.slane %v416, 4
      %v419 = vor.u32 %v418, %v414
      %v420 = vrot.slane %v419, 4
      %v422 = vshll.u32 %v206, 16
      %v424 = vrot.slane %v422, 5
      %v425 = vsel %vm233, %v420, %v424
      %v427 = vshrl.u32 %v207, 16
      %v429 = vrot.slane %v427, 4
      %v430 = vshll.u32 %v207, 16
      %v432 = vrot.slane %v430, 5
      %v433 = vor.u32 %v429, %v432
      %v434 = vrot.slane %v433, 4
      %v436 = vshll.u32 %v208, 16
      %v438 = vrot.slane %v436, 5
      %v439 = vsel %vm233, %v434, %v438
      %v440 = vshrl.u32 %v208, 16
      %v442 = vrot.slane %v440, 4
      %v443 = vor.u32 %v442, %v438
      %v444 = vrot.slane %v443, 4
      %v446 = vshll.u32 %v209, 16
      %v448 = vrot.slane %v446, 5
      %v449 = vsel %vm233, %v444, %v448
      %v451 = vshrl.u32 %v210, 16
      %v453 = vrot.slane %v451, 4
      %v454 = vshll.u32 %v210, 16
      %v456 = vrot.slane %v454, 5
      %v457 = vor.u32 %v453, %v456
      %v458 = vrot.slane %v457, 4
      %v460 = vshll.u32 %v211, 16
      %v462 = vrot.slane %v460, 5
      %v463 = vsel %vm233, %v458, %v462
      %v464 = vshrl.u32 %v211, 16
      %v466 = vrot.slane %v464, 4
      %v467 = vor.u32 %v466, %v462
      %v468 = vrot.slane %v467, 4
      %v470 = vshll.u32 %v212, 16
      %v472 = vrot.slane %v470, 5
      %v473 = vsel %vm233, %v468, %v472
      %v475 = vshrl.u32 %v213, 16
      %v477 = vrot.slane %v475, 4
      %v478 = vshll.u32 %v213, 16
      %v480 = vrot.slane %v478, 5
      %v481 = vor.u32 %v477, %v480
      %v482 = vrot.slane %v481, 4
      %v484 = vshll.u32 %v214, 16
      %v486 = vrot.slane %v484, 5
      %v487 = vsel %vm233, %v482, %v486
      %v488 = vshrl.u32 %v214, 16
      %v490 = vrot.slane %v488, 4
      %v491 = vor.u32 %v490, %v486
      %v492 = vrot.slane %v491, 4
      %v494 = vshll.u32 %v215, 16
      %v496 = vrot.slane %v494, 5
      %v497 = vsel %vm233, %v492, %v496
      %v499 = vshrl.u32 %v216, 16
      %v501 = vrot.slane %v499, 4
      %v502 = vshll.u32 %v216, 16
      %v504 = vrot.slane %v502, 5
      %v505 = vor.u32 %v501, %v504
      %v506 = vrot.slane %v505, 4
      %v508 = vshll.u32 %v217, 16
      %v510 = vrot.slane %v508, 5
      %v511 = vsel %vm233, %v506, %v510
      %v512 = vshrl.u32 %v217, 16
      %v514 = vrot.slane %v512, 4
      %v515 = vor.u32 %v514, %v510
      %v516 = vrot.slane %v515, 4
      %v518 = vshll.u32 %v218, 16
      %v520 = vrot.slane %v518, 5
      %v521 = vsel %vm233, %v516, %v520
      %v523 = vshrl.u32 %v219, 16
      %v525 = vrot.slane %v523, 4
      %v526 = vshll.u32 %v219, 16
      %v528 = vrot.slane %v526, 5
      %v529 = vor.u32 %v525, %v528
      %v530 = vrot.slane %v529, 4
      %v532 = vshll.u32 %v220, 16
      %v534 = vrot.slane %v532, 5
      %v535 = vsel %vm233, %v530, %v534
      %v536 = vshrl.u32 %v220, 16
      %v538 = vrot.slane %v536, 4
      %v539 = vor.u32 %v538, %v534
      %v540 = vrot.slane %v539, 4
      %v542 = vshll.u32 %v221, 16
      %v544 = vrot.slane %v542, 5
      %v545 = vsel %vm233, %v540, %v544
      %v547 = vshrl.u32 %v222, 16
      %v549 = vrot.slane %v547, 4
      %v550 = vshll.u32 %v222, 16
      %v552 = vrot.slane %v550, 5
      %v553 = vor.u32 %v549, %v552
      %v554 = vrot.slane %v553, 4
      %v556 = vshll.u32 %v223, 16
      %v558 = vrot.slane %v556, 5
      %v559 = vsel %vm233, %v554, %v558
      %v560 = vshrl.u32 %v223, 16
      %v562 = vrot.slane %v560, 4
      %v563 = vor.u32 %v562, %v558
      %v564 = vrot.slane %v563, 4
      %v566 = vshll.u32 %v224, 16
      %v568 = vrot.slane %v566, 5
      %v569 = vsel %vm233, %v564, %v568
      %v571 = vshrl.u32 %v225, 16
      %v573 = vrot.slane %v571, 4
      %v574 = vshll.u32 %v225, 16
      %v576 = vrot.slane %v574, 5
      %v577 = vor.u32 %v573, %v576
      %v578 = vrot.slane %v577, 4
      %v580 = vshll.u32 %v226, 16
      %v582 = vrot.slane %v580, 5
      %v583 = vsel %vm233, %v578, %v582
      %v584 = vshrl.u32 %v226, 16
      %v586 = vrot.slane %v584, 4
      %v587 = vor.u32 %v586, %v582
      %v588 = vrot.slane %v587, 4
      %v590 = vshll.u32 %v227, 16
      %v592 = vrot.slane %v590, 5
      %v593 = vsel %vm233, %v588, %v592
      %v595 = vshrl.u32 %v228, 16
      %v597 = vrot.slane %v595, 4
      %v598 = vshll.u32 %v228, 16
      %v600 = vrot.slane %v598, 5
      %v601 = vor.u32 %v597, %v600
      %v602 = vrot.slane %v601, 4
      %v604 = vshll.u32 %v229, 16
      %v606 = vrot.slane %v604, 5
      %v607 = vsel %vm233, %v602, %v606
      %v608 = vshrl.u32 %v229, 16
      %v610 = vrot.slane %v608, 4
      %v611 = vor.u32 %v610, %v606
      %v612 = vrot.slane %v611, 4
      %v614 = vshll.u32 %v230, 16
      %v616 = vrot.slane %v614, 5
      %v617 = vsel %vm233, %v612, %v616
      %s618 = scalar_lea.vmem %s172, 20
      %v619 = vld [vmem:[%s618] sm:$0xf]
      %s620 = scalar_lea.vmem %s172, 28
      %v621 = vld [vmem:[%s620] sm:$0xf]
      %v654 = vunpack.c.l.b16 %v183
      %v655 = vunpack.c.l.b16 %v184
      %v656 = vunpack.c.l.b16 %v186
      %v657 = vunpack.c.l.b16 %v187
      %v658 = vunpack.c.l.b16 %v189
      %v659 = vunpack.c.l.b16 %v190
      %v660 = vunpack.c.l.b16 %v192
      %v661 = vunpack.c.l.b16 %v193
      %v662 = vunpack.c.l.b16 %v195
      %v663 = vunpack.c.l.b16 %v196
      %v664 = vunpack.c.l.b16 %v198
      %v665 = vunpack.c.l.b16 %v199
      %v666 = vunpack.c.l.b16 %v201
      %v667 = vunpack.c.l.b16 %v202
      %v668 = vunpack.c.l.b16 %v204
      %v669 = vunpack.c.l.b16 %v205
      %v670 = vunpack.c.l.b16 %v207
      %v671 = vunpack.c.l.b16 %v208
      %v672 = vunpack.c.l.b16 %v210
      %v673 = vunpack.c.l.b16 %v211
      %v674 = vunpack.c.l.b16 %v213
      %v675 = vunpack.c.l.b16 %v214
      %v676 = vunpack.c.l.b16 %v216
      %v677 = vunpack.c.l.b16 %v217
      %v678 = vunpack.c.l.b16 %v219
      %v679 = vunpack.c.l.b16 %v220
      %v680 = vunpack.c.l.b16 %v222
      %v681 = vunpack.c.l.b16 %v223
      %v682 = vunpack.c.l.b16 %v225
      %v683 = vunpack.c.l.b16 %v226
      %v684 = vunpack.c.l.b16 %v228
      %v685 = vunpack.c.l.b16 %v229
      %v686 = vpack.c.b16 %v655, %v654
      %v687 = vpack.c.b16 %v657, %v656
      %v688 = vpack.c.b16 %v659, %v658
      %v689 = vpack.c.b16 %v661, %v660
      %v690 = vpack.c.b16 %v663, %v662
      %v691 = vpack.c.b16 %v665, %v664
      %v692 = vpack.c.b16 %v667, %v666
      %v693 = vpack.c.b16 %v669, %v668
      %v694 = vpack.c.b16 %v671, %v670
      %v695 = vpack.c.b16 %v673, %v672
      %v696 = vpack.c.b16 %v675, %v674
      %v697 = vpack.c.b16 %v677, %v676
      %v698 = vpack.c.b16 %v679, %v678
      %v699 = vpack.c.b16 %v681, %v680
      %v700 = vpack.c.b16 %v683, %v682
      %v701 = vpack.c.b16 %v685, %v684
      %vm702 = vcmask 64512
      %v704 = vsel %vm702, %v686, 0
      %v707 = vsel %vm702, %v687, 0
      %v710 = vsel %vm702, %v688, 0
      %v713 = vsel %vm702, %v689, 0
      %v716 = vsel %vm702, %v690, 0
      %v719 = vsel %vm702, %v691, 0
      %v722 = vsel %vm702, %v692, 0
      %v725 = vsel %vm702, %v693, 0
      %v728 = vsel %vm702, %v694, 0
      %v731 = vsel %vm702, %v695, 0
      %v734 = vsel %vm702, %v696, 0
      %v737 = vsel %vm702, %v697, 0
      %v740 = vsel %vm702, %v698, 0
      %v743 = vsel %vm702, %v699, 0
      %v746 = vsel %vm702, %v700, 0
      %v749 = vsel %vm702, %v701, 0
      %vm751 = vcmask 1043456
      %v753 = vsel %vm751, %v621, 0
      %755 = vmatpush.bf16.msra.mxu0 0
      %756 = vmatpush.bf16.msra.mxu0 0
      %757 = vmatpush.bf16.msra.mxu0 0
      %758 = vmatpush.bf16.msra.mxu0 0
      %759 = vmatpush.bf16.msra.mxu0 0
      %760 = vmatpush.bf16.msra.mxu0 0
      %761 = vmatpush.bf16.msra.mxu0 0
      %762 = vmatpush.bf16.msra.mxu0 %v753
      %763 = vmatmul.bf16.gmra.mxu0 %v704
      %v764 = vpop.f32.mrf.mxu0
      %v765 = vadd.f32 0.0, %v764
      %v766 = vpop.f32.mrf.mxu0
      %v767 = vadd.f32 0.0, %v766
      %768 = vmatmul.bf16.gmra.mxu0 %v707
      %v769 = vpop.f32.mrf.mxu0
      %v770 = vadd.f32 0.0, %v769
      %v771 = vpop.f32.mrf.mxu0
      %v772 = vadd.f32 0.0, %v771
      %773 = vmatmul.bf16.gmra.mxu0 %v710
      %v774 = vpop.f32.mrf.mxu0
      %v775 = vadd.f32 0.0, %v774
      %v776 = vpop.f32.mrf.mxu0
      %v777 = vadd.f32 0.0, %v776
      %778 = vmatmul.bf16.gmra.mxu0 %v713
      %v779 = vpop.f32.mrf.mxu0
      %v780 = vadd.f32 0.0, %v779
      %v781 = vpop.f32.mrf.mxu0
      %v782 = vadd.f32 0.0, %v781
      %783 = vmatmul.bf16.gmra.mxu0 %v716
      %v784 = vpop.f32.mrf.mxu0
      %v785 = vadd.f32 0.0, %v784
      %v786 = vpop.f32.mrf.mxu0
      %v787 = vadd.f32 0.0, %v786
      %788 = vmatmul.bf16.gmra.mxu0 %v719
      %v789 = vpop.f32.mrf.mxu0
      %v790 = vadd.f32 0.0, %v789
      %v791 = vpop.f32.mrf.mxu0
      %v792 = vadd.f32 0.0, %v791
      %793 = vmatmul.bf16.gmra.mxu0 %v722
      %v794 = vpop.f32.mrf.mxu0
      %v795 = vadd.f32 0.0, %v794
      %v796 = vpop.f32.mrf.mxu0
      %v797 = vadd.f32 0.0, %v796
      %798 = vmatmul.bf16.gmra.mxu0 %v725
      %v799 = vpop.f32.mrf.mxu0
      %v800 = vadd.f32 0.0, %v799
      %v801 = vpop.f32.mrf.mxu0
      %v802 = vadd.f32 0.0, %v801
      %803 = vmatmul.bf16.gmra.mxu0 %v728
      %v804 = vpop.f32.mrf.mxu0
      %v805 = vadd.f32 0.0, %v804
      %v806 = vpop.f32.mrf.mxu0
      %v807 = vadd.f32 0.0, %v806
      %808 = vmatmul.bf16.gmra.mxu0 %v731
      %v809 = vpop.f32.mrf.mxu0
      %v810 = vadd.f32 0.0, %v809
      %v811 = vpop.f32.mrf.mxu0
      %v812 = vadd.f32 0.0, %v811
      %813 = vmatmul.bf16.gmra.mxu0 %v734
      %v814 = vpop.f32.mrf.mxu0
      %v815 = vadd.f32 0.0, %v814
      %v816 = vpop.f32.mrf.mxu0
      %v817 = vadd.f32 0.0, %v816
      %818 = vmatmul.bf16.gmra.mxu0 %v737
      %v819 = vpop.f32.mrf.mxu0
      %v820 = vadd.f32 0.0, %v819
      %v821 = vpop.f32.mrf.mxu0
      %v822 = vadd.f32 0.0, %v821
      %823 = vmatmul.bf16.gmra.mxu0 %v740
      %v824 = vpop.f32.mrf.mxu0
      %v825 = vadd.f32 0.0, %v824
      %v826 = vpop.f32.mrf.mxu0
      %v827 = vadd.f32 0.0, %v826
      %828 = vmatmul.bf16.gmra.mxu0 %v743
      %v829 = vpop.f32.mrf.mxu0
      %v830 = vadd.f32 0.0, %v829
      %v831 = vpop.f32.mrf.mxu0
      %v832 = vadd.f32 0.0, %v831
      %833 = vmatmul.bf16.gmra.mxu0 %v746
      %v834 = vpop.f32.mrf.mxu0
      %v835 = vadd.f32 0.0, %v834
      %v836 = vpop.f32.mrf.mxu0
      %v837 = vadd.f32 0.0, %v836
      %838 = vmatmul.bf16.gmra.mxu0 %v749
      %v839 = vpop.f32.mrf.mxu0
      %v840 = vadd.f32 0.0, %v839
      %v841 = vpop.f32.mrf.mxu0
      %v842 = vadd.f32 0.0, %v841
      %843 = vdwg.mxu0
      %v844 = vunpack.c.l.b16 %v247
      %v845 = vunpack.c.l.b16 %v257
      %v846 = vunpack.c.l.b16 %v271
      %v847 = vunpack.c.l.b16 %v281
      %v848 = vunpack.c.l.b16 %v295
      %v849 = vunpack.c.l.b16 %v305
      %v850 = vunpack.c.l.b16 %v319
      %v851 = vunpack.c.l.b16 %v329
      %v852 = vunpack.c.l.b16 %v343
      %v853 = vunpack.c.l.b16 %v353
      %v854 = vunpack.c.l.b16 %v367
      %v855 = vunpack.c.l.b16 %v377
      %v856 = vunpack.c.l.b16 %v391
      %v857 = vunpack.c.l.b16 %v401
      %v858 = vunpack.c.l.b16 %v415
      %v859 = vunpack.c.l.b16 %v425
      %v860 = vunpack.c.l.b16 %v439
      %v861 = vunpack.c.l.b16 %v449
      %v862 = vunpack.c.l.b16 %v463
      %v863 = vunpack.c.l.b16 %v473
      %v864 = vunpack.c.l.b16 %v487
      %v865 = vunpack.c.l.b16 %v497
      %v866 = vunpack.c.l.b16 %v511
      %v867 = vunpack.c.l.b16 %v521
      %v868 = vunpack.c.l.b16 %v535
      %v869 = vunpack.c.l.b16 %v545
      %v870 = vunpack.c.l.b16 %v559
      %v871 = vunpack.c.l.b16 %v569
      %v872 = vunpack.c.l.b16 %v583
      %v873 = vunpack.c.l.b16 %v593
      %v874 = vunpack.c.l.b16 %v607
      %v875 = vunpack.c.l.b16 %v617
      %v876 = vpack.c.b16 %v845, %v844
      %v877 = vpack.c.b16 %v847, %v846
      %v878 = vpack.c.b16 %v849, %v848
      %v879 = vpack.c.b16 %v851, %v850
      %v880 = vpack.c.b16 %v853, %v852
      %v881 = vpack.c.b16 %v855, %v854
      %v882 = vpack.c.b16 %v857, %v856
      %v883 = vpack.c.b16 %v859, %v858
      %v884 = vpack.c.b16 %v861, %v860
      %v885 = vpack.c.b16 %v863, %v862
      %v886 = vpack.c.b16 %v865, %v864
      %v887 = vpack.c.b16 %v867, %v866
      %v888 = vpack.c.b16 %v869, %v868
      %v889 = vpack.c.b16 %v871, %v870
      %v890 = vpack.c.b16 %v873, %v872
      %v891 = vpack.c.b16 %v875, %v874
      %v893 = vsel %vm702, %v876, 0
      %v896 = vsel %vm702, %v877, 0
      %v899 = vsel %vm702, %v878, 0
      %v902 = vsel %vm702, %v879, 0
      %v905 = vsel %vm702, %v880, 0
      %v908 = vsel %vm702, %v881, 0
      %v911 = vsel %vm702, %v882, 0
      %v914 = vsel %vm702, %v883, 0
      %v917 = vsel %vm702, %v884, 0
      %v920 = vsel %vm702, %v885, 0
      %v923 = vsel %vm702, %v886, 0
      %v926 = vsel %vm702, %v887, 0
      %v929 = vsel %vm702, %v888, 0
      %v932 = vsel %vm702, %v889, 0
      %v935 = vsel %vm702, %v890, 0
      %v938 = vsel %vm702, %v891, 0
      %v941 = vsel %vm751, %v619, 0
      %943 = vmatpush.bf16.msra.mxu0 0
      %944 = vmatpush.bf16.msra.mxu0 0
      %945 = vmatpush.bf16.msra.mxu0 0
      %946 = vmatpush.bf16.msra.mxu0 0
      %947 = vmatpush.bf16.msra.mxu0 0
      %948 = vmatpush.bf16.msra.mxu0 0
      %949 = vmatpush.bf16.msra.mxu0 0
      %950 = vmatpush.bf16.msra.mxu0 %v941
      %951 = vmatmul.bf16.gmra.mxu0 %v893
      %v952 = vpop.f32.mrf.mxu0
      %v953 = vadd.f32 %v765, %v952
      %v954 = vpop.f32.mrf.mxu0
      %v955 = vadd.f32 %v767, %v954
      %956 = vmatmul.bf16.gmra.mxu0 %v896
      %v957 = vpop.f32.mrf.mxu0
      %v958 = vadd.f32 %v770, %v957
      %v959 = vpop.f32.mrf.mxu0
      %v960 = vadd.f32 %v772, %v959
      %961 = vmatmul.bf16.gmra.mxu0 %v899
      %v962 = vpop.f32.mrf.mxu0
      %v963 = vadd.f32 %v775, %v962
      %v964 = vpop.f32.mrf.mxu0
      %v965 = vadd.f32 %v777, %v964
      %966 = vmatmul.bf16.gmra.mxu0 %v902
      %v967 = vpop.f32.mrf.mxu0
      %v968 = vadd.f32 %v780, %v967
      %v969 = vpop.f32.mrf.mxu0
      %v970 = vadd.f32 %v782, %v969
      %971 = vmatmul.bf16.gmra.mxu0 %v905
      %v972 = vpop.f32.mrf.mxu0
      %v973 = vadd.f32 %v785, %v972
      %v974 = vpop.f32.mrf.mxu0
      %v975 = vadd.f32 %v787, %v974
      %976 = vmatmul.bf16.gmra.mxu0 %v908
      %v977 = vpop.f32.mrf.mxu0
      %v978 = vadd.f32 %v790, %v977
      %v979 = vpop.f32.mrf.mxu0
      %v980 = vadd.f32 %v792, %v979
      %981 = vmatmul.bf16.gmra.mxu0 %v911
      %v982 = vpop.f32.mrf.mxu0
      %v983 = vadd.f32 %v795, %v982
      %v984 = vpop.f32.mrf.mxu0
      %v985 = vadd.f32 %v797, %v984
      %986 = vmatmul.bf16.gmra.mxu0 %v914
      %v987 = vpop.f32.mrf.mxu0
      %v988 = vadd.f32 %v800, %v987
      %v989 = vpop.f32.mrf.mxu0
      %v990 = vadd.f32 %v802, %v989
      %991 = vmatmul.bf16.gmra.mxu0 %v917
      %v992 = vpop.f32.mrf.mxu0
      %v993 = vadd.f32 %v805, %v992
      %v994 = vpop.f32.mrf.mxu0
      %v995 = vadd.f32 %v807, %v994
      %996 = vmatmul.bf16.gmra.mxu0 %v920
      %v997 = vpop.f32.mrf.mxu0
      %v998 = vadd.f32 %v810, %v997
      %v999 = vpop.f32.mrf.mxu0
      %v1000 = vadd.f32 %v812, %v999
      %1001 = vmatmul.bf16.gmra.mxu0 %v923
      %v1002 = vpop.f32.mrf.mxu0
      %v1003 = vadd.f32 %v815, %v1002
      %v1004 = vpop.f32.mrf.mxu0
      %v1005 = vadd.f32 %v817, %v1004
      %1006 = vmatmul.bf16.gmra.mxu0 %v926
      %v1007 = vpop.f32.mrf.mxu0
      %v1008 = vadd.f32 %v820, %v1007
      %v1009 = vpop.f32.mrf.mxu0
      %v1010 = vadd.f32 %v822, %v1009
      %1011 = vmatmul.bf16.gmra.mxu0 %v929
      %v1012 = vpop.f32.mrf.mxu0
      %v1013 = vadd.f32 %v825, %v1012
      %v1014 = vpop.f32.mrf.mxu0
      %v1015 = vadd.f32 %v827, %v1014
      %1016 = vmatmul.bf16.gmra.mxu0 %v932
      %v1017 = vpop.f32.mrf.mxu0
      %v1018 = vadd.f32 %v830, %v1017
      %v1019 = vpop.f32.mrf.mxu0
      %v1020 = vadd.f32 %v832, %v1019
      %1021 = vmatmul.bf16.gmra.mxu0 %v935
      %v1022 = vpop.f32.mrf.mxu0
      %v1023 = vadd.f32 %v835, %v1022
      %v1024 = vpop.f32.mrf.mxu0
      %v1025 = vadd.f32 %v837, %v1024
      %1026 = vmatmul.bf16.gmra.mxu0 %v938
      %v1027 = vpop.f32.mrf.mxu0
      %v1028 = vadd.f32 %v840, %v1027
      %v1029 = vpop.f32.mrf.mxu0
      %v1030 = vadd.f32 %v842, %v1029
      %1031 = vdwg.mxu0
      %v1032 = vld [vmem:[%s168] sm:$0xf]
      %v1033 = vld [vmem:[%s168 + $0x4] sm:$0xf]
      %v1034 = vld [vmem:[%s168 + $0x8] sm:$0x1]
      %v1035 = vld [vmem:[%s168 + $0xc] sm:$0xf]
      %v1036 = vld [vmem:[%s168 + $0x10] sm:$0xf]
      %v1037 = vld [vmem:[%s168 + $0x14] sm:$0x1]
      %v1038 = vld [vmem:[%s168 + $0x18] sm:$0xf]
      %v1039 = vld [vmem:[%s168 + $0x1c] sm:$0xf]
      %v1040 = vld [vmem:[%s168 + $0x20] sm:$0x1]
      %v1041 = vld [vmem:[%s168 + $0x24] sm:$0xf]
      %v1042 = vld [vmem:[%s168 + $0x28] sm:$0xf]
      %v1043 = vld [vmem:[%s168 + $0x2c] sm:$0x1]
      %v1044 = vld [vmem:[%s168 + $0x30] sm:$0xf]
      %v1045 = vld [vmem:[%s168 + $0x34] sm:$0xf]
      %v1046 = vld [vmem:[%s168 + $0x38] sm:$0x1]
      %v1047 = vld [vmem:[%s168 + $0x3c] sm:$0xf]
      %v1048 = vld [vmem:[%s168 + $0x40] sm:$0xf]
      %v1049 = vld [vmem:[%s168 + $0x44] sm:$0x1]
      %v1050 = vld [vmem:[%s168 + $0x48] sm:$0xf]
      %v1051 = vld [vmem:[%s168 + $0x4c] sm:$0xf]
      %v1052 = vld [vmem:[%s168 + $0x50] sm:$0x1]
      %v1053 = vld [vmem:[%s168 + $0x54] sm:$0xf]
      %v1054 = vld [vmem:[%s168 + $0x58] sm:$0xf]
      %v1055 = vld [vmem:[%s168 + $0x5c] sm:$0x1]
      %v1056 = vld [vmem:[%s168 + $0x60] sm:$0xf]
      %v1057 = vld [vmem:[%s168 + $0x64] sm:$0xf]
      %v1058 = vld [vmem:[%s168 + $0x68] sm:$0x1]
      %v1059 = vld [vmem:[%s168 + $0x6c] sm:$0xf]
      %v1060 = vld [vmem:[%s168 + $0x70] sm:$0xf]
      %v1061 = vld [vmem:[%s168 + $0x74] sm:$0x1]
      %v1062 = vld [vmem:[%s168 + $0x78] sm:$0xf]
      %v1063 = vld [vmem:[%s168 + $0x7c] sm:$0xf]
      %v1064 = vld [vmem:[%s168 + $0x80] sm:$0x1]
      %v1065 = vld [vmem:[%s168 + $0x84] sm:$0xf]
      %v1066 = vld [vmem:[%s168 + $0x88] sm:$0xf]
      %v1067 = vld [vmem:[%s168 + $0x8c] sm:$0x1]
      %v1068 = vld [vmem:[%s168 + $0x90] sm:$0xf]
      %v1069 = vld [vmem:[%s168 + $0x94] sm:$0xf]
      %v1070 = vld [vmem:[%s168 + $0x98] sm:$0x1]
      %v1071 = vld [vmem:[%s168 + $0x9c] sm:$0xf]
      %v1072 = vld [vmem:[%s168 + $0xa0] sm:$0xf]
      %v1073 = vld [vmem:[%s168 + $0xa4] sm:$0x1]
      %v1074 = vld [vmem:[%s168 + $0xa8] sm:$0xf]
      %v1075 = vld [vmem:[%s168 + $0xac] sm:$0xf]
      %v1076 = vld [vmem:[%s168 + $0xb0] sm:$0x1]
      %v1077 = vld [vmem:[%s168 + $0xb4] sm:$0xf]
      %v1078 = vld [vmem:[%s168 + $0xb8] sm:$0xf]
      %v1079 = vld [vmem:[%s168 + $0xbc] sm:$0x1]
      %v1081 = vshrl.u32 %v1032, 16
      %v1083 = vrot.slane %v1081, 4
      %v1084 = vshll.u32 %v1032, 16
      %v1086 = vrot.slane %v1084, 5
      %v1087 = vor.u32 %v1083, %v1086
      %v1088 = vrot.slane %v1087, 4
      %v1090 = vshll.u32 %v1033, 16
      %v1092 = vrot.slane %v1090, 5
      %v1093 = vsel %vm233, %v1088, %v1092
      %v1094 = vshrl.u32 %v1033, 16
      %v1096 = vrot.slane %v1094, 4
      %v1097 = vor.u32 %v1096, %v1092
      %v1098 = vrot.slane %v1097, 4
      %v1100 = vshll.u32 %v1034, 16
      %v1102 = vrot.slane %v1100, 5
      %v1103 = vsel %vm233, %v1098, %v1102
      %v1105 = vshrl.u32 %v1035, 16
      %v1107 = vrot.slane %v1105, 4
      %v1108 = vshll.u32 %v1035, 16
      %v1110 = vrot.slane %v1108, 5
      %v1111 = vor.u32 %v1107, %v1110
      %v1112 = vrot.slane %v1111, 4
      %v1114 = vshll.u32 %v1036, 16
      %v1116 = vrot.slane %v1114, 5
      %v1117 = vsel %vm233, %v1112, %v1116
      %v1118 = vshrl.u32 %v1036, 16
      %v1120 = vrot.slane %v1118, 4
      %v1121 = vor.u32 %v1120, %v1116
      %v1122 = vrot.slane %v1121, 4
      %v1124 = vshll.u32 %v1037, 16
      %v1126 = vrot.slane %v1124, 5
      %v1127 = vsel %vm233, %v1122, %v1126
      %v1129 = vshrl.u32 %v1038, 16
      %v1131 = vrot.slane %v1129, 4
      %v1132 = vshll.u32 %v1038, 16
      %v1134 = vrot.slane %v1132, 5
      %v1135 = vor.u32 %v1131, %v1134
      %v1136 = vrot.slane %v1135, 4
      %v1138 = vshll.u32 %v1039, 16
      %v1140 = vrot.slane %v1138, 5
      %v1141 = vsel %vm233, %v1136, %v1140
      %v1142 = vshrl.u32 %v1039, 16
      %v1144 = vrot.slane %v1142, 4
      %v1145 = vor.u32 %v1144, %v1140
      %v1146 = vrot.slane %v1145, 4
      %v1148 = vshll.u32 %v1040, 16
      %v1150 = vrot.slane %v1148, 5
      %v1151 = vsel %vm233, %v1146, %v1150
      %v1153 = vshrl.u32 %v1041, 16
      %v1155 = vrot.slane %v1153, 4
      %v1156 = vshll.u32 %v1041, 16
      %v1158 = vrot.slane %v1156, 5
      %v1159 = vor.u32 %v1155, %v1158
      %v1160 = vrot.slane %v1159, 4
      %v1162 = vshll.u32 %v1042, 16
      %v1164 = vrot.slane %v1162, 5
      %v1165 = vsel %vm233, %v1160, %v1164
      %v1166 = vshrl.u32 %v1042, 16
      %v1168 = vrot.slane %v1166, 4
      %v1169 = vor.u32 %v1168, %v1164
      %v1170 = vrot.slane %v1169, 4
      %v1172 = vshll.u32 %v1043, 16
      %v1174 = vrot.slane %v1172, 5
      %v1175 = vsel %vm233, %v1170, %v1174
      %v1177 = vshrl.u32 %v1044, 16
      %v1179 = vrot.slane %v1177, 4
      %v1180 = vshll.u32 %v1044, 16
      %v1182 = vrot.slane %v1180, 5
      %v1183 = vor.u32 %v1179, %v1182
      %v1184 = vrot.slane %v1183, 4
      %v1186 = vshll.u32 %v1045, 16
      %v1188 = vrot.slane %v1186, 5
      %v1189 = vsel %vm233, %v1184, %v1188
      %v1190 = vshrl.u32 %v1045, 16
      %v1192 = vrot.slane %v1190, 4
      %v1193 = vor.u32 %v1192, %v1188
      %v1194 = vrot.slane %v1193, 4
      %v1196 = vshll.u32 %v1046, 16
      %v1198 = vrot.slane %v1196, 5
      %v1199 = vsel %vm233, %v1194, %v1198
      %v1201 = vshrl.u32 %v1047, 16
      %v1203 = vrot.slane %v1201, 4
      %v1204 = vshll.u32 %v1047, 16
      %v1206 = vrot.slane %v1204, 5
      %v1207 = vor.u32 %v1203, %v1206
      %v1208 = vrot.slane %v1207, 4
      %v1210 = vshll.u32 %v1048, 16
      %v1212 = vrot.slane %v1210, 5
      %v1213 = vsel %vm233, %v1208, %v1212
      %v1214 = vshrl.u32 %v1048, 16
      %v1216 = vrot.slane %v1214, 4
      %v1217 = vor.u32 %v1216, %v1212
      %v1218 = vrot.slane %v1217, 4
      %v1220 = vshll.u32 %v1049, 16
      %v1222 = vrot.slane %v1220, 5
      %v1223 = vsel %vm233, %v1218, %v1222
      %v1225 = vshrl.u32 %v1050, 16
      %v1227 = vrot.slane %v1225, 4
      %v1228 = vshll.u32 %v1050, 16
      %v1230 = vrot.slane %v1228, 5
      %v1231 = vor.u32 %v1227, %v1230
      %v1232 = vrot.slane %v1231, 4
      %v1234 = vshll.u32 %v1051, 16
      %v1236 = vrot.slane %v1234, 5
      %v1237 = vsel %vm233, %v1232, %v1236
      %v1238 = vshrl.u32 %v1051, 16
      %v1240 = vrot.slane %v1238, 4
      %v1241 = vor.u32 %v1240, %v1236
      %v1242 = vrot.slane %v1241, 4
      %v1244 = vshll.u32 %v1052, 16
      %v1246 = vrot.slane %v1244, 5
      %v1247 = vsel %vm233, %v1242, %v1246
      %v1249 = vshrl.u32 %v1053, 16
      %v1251 = vrot.slane %v1249, 4
      %v1252 = vshll.u32 %v1053, 16
      %v1254 = vrot.slane %v1252, 5
      %v1255 = vor.u32 %v1251, %v1254
      %v1256 = vrot.slane %v1255, 4
      %v1258 = vshll.u32 %v1054, 16
      %v1260 = vrot.slane %v1258, 5
      %v1261 = vsel %vm233, %v1256, %v1260
      %v1262 = vshrl.u32 %v1054, 16
      %v1264 = vrot.slane %v1262, 4
      %v1265 = vor.u32 %v1264, %v1260
      %v1266 = vrot.slane %v1265, 4
      %v1268 = vshll.u32 %v1055, 16
      %v1270 = vrot.slane %v1268, 5
      %v1271 = vsel %vm233, %v1266, %v1270
      %v1273 = vshrl.u32 %v1056, 16
      %v1275 = vrot.slane %v1273, 4
      %v1276 = vshll.u32 %v1056, 16
      %v1278 = vrot.slane %v1276, 5
      %v1279 = vor.u32 %v1275, %v1278
      %v1280 = vrot.slane %v1279, 4
      %v1282 = vshll.u32 %v1057, 16
      %v1284 = vrot.slane %v1282, 5
      %v1285 = vsel %vm233, %v1280, %v1284
      %v1286 = vshrl.u32 %v1057, 16
      %v1288 = vrot.slane %v1286, 4
      %v1289 = vor.u32 %v1288, %v1284
      %v1290 = vrot.slane %v1289, 4
      %v1292 = vshll.u32 %v1058, 16
      %v1294 = vrot.slane %v1292, 5
      %v1295 = vsel %vm233, %v1290, %v1294
      %v1297 = vshrl.u32 %v1059, 16
      %v1299 = vrot.slane %v1297, 4
      %v1300 = vshll.u32 %v1059, 16
      %v1302 = vrot.slane %v1300, 5
      %v1303 = vor.u32 %v1299, %v1302
      %v1304 = vrot.slane %v1303, 4
      %v1306 = vshll.u32 %v1060, 16
      %v1308 = vrot.slane %v1306, 5
      %v1309 = vsel %vm233, %v1304, %v1308
      %v1310 = vshrl.u32 %v1060, 16
      %v1312 = vrot.slane %v1310, 4
      %v1313 = vor.u32 %v1312, %v1308
      %v1314 = vrot.slane %v1313, 4
      %v1316 = vshll.u32 %v1061, 16
      %v1318 = vrot.slane %v1316, 5
      %v1319 = vsel %vm233, %v1314, %v1318
      %v1321 = vshrl.u32 %v1062, 16
      %v1323 = vrot.slane %v1321, 4
      %v1324 = vshll.u32 %v1062, 16
      %v1326 = vrot.slane %v1324, 5
      %v1327 = vor.u32 %v1323, %v1326
      %v1328 = vrot.slane %v1327, 4
      %v1330 = vshll.u32 %v1063, 16
      %v1332 = vrot.slane %v1330, 5
      %v1333 = vsel %vm233, %v1328, %v1332
      %v1334 = vshrl.u32 %v1063, 16
      %v1336 = vrot.slane %v1334, 4
      %v1337 = vor.u32 %v1336, %v1332
      %v1338 = vrot.slane %v1337, 4
      %v1340 = vshll.u32 %v1064, 16
      %v1342 = vrot.slane %v1340, 5
      %v1343 = vsel %vm233, %v1338, %v1342
      %v1345 = vshrl.u32 %v1065, 16
      %v1347 = vrot.slane %v1345, 4
      %v1348 = vshll.u32 %v1065, 16
      %v1350 = vrot.slane %v1348, 5
      %v1351 = vor.u32 %v1347, %v1350
      %v1352 = vrot.slane %v1351, 4
      %v1354 = vshll.u32 %v1066, 16
      %v1356 = vrot.slane %v1354, 5
      %v1357 = vsel %vm233, %v1352, %v1356
      %v1358 = vshrl.u32 %v1066, 16
      %v1360 = vrot.slane %v1358, 4
      %v1361 = vor.u32 %v1360, %v1356
      %v1362 = vrot.slane %v1361, 4
      %v1364 = vshll.u32 %v1067, 16
      %v1366 = vrot.slane %v1364, 5
      %v1367 = vsel %vm233, %v1362, %v1366
      %v1369 = vshrl.u32 %v1068, 16
      %v1371 = vrot.slane %v1369, 4
      %v1372 = vshll.u32 %v1068, 16
      %v1374 = vrot.slane %v1372, 5
      %v1375 = vor.u32 %v1371, %v1374
      %v1376 = vrot.slane %v1375, 4
      %v1378 = vshll.u32 %v1069, 16
      %v1380 = vrot.slane %v1378, 5
      %v1381 = vsel %vm233, %v1376, %v1380
      %v1382 = vshrl.u32 %v1069, 16
      %v1384 = vrot.slane %v1382, 4
      %v1385 = vor.u32 %v1384, %v1380
      %v1386 = vrot.slane %v1385, 4
      %v1388 = vshll.u32 %v1070, 16
      %v1390 = vrot.slane %v1388, 5
      %v1391 = vsel %vm233, %v1386, %v1390
      %v1393 = vshrl.u32 %v1071, 16
      %v1395 = vrot.slane %v1393, 4
      %v1396 = vshll.u32 %v1071, 16
      %v1398 = vrot.slane %v1396, 5
      %v1399 = vor.u32 %v1395, %v1398
      %v1400 = vrot.slane %v1399, 4
      %v1402 = vshll.u32 %v1072, 16
      %v1404 = vrot.slane %v1402, 5
      %v1405 = vsel %vm233, %v1400, %v1404
      %v1406 = vshrl.u32 %v1072, 16
      %v1408 = vrot.slane %v1406, 4
      %v1409 = vor.u32 %v1408, %v1404
      %v1410 = vrot.slane %v1409, 4
      %v1412 = vshll.u32 %v1073, 16
      %v1414 = vrot.slane %v1412, 5
      %v1415 = vsel %vm233, %v1410, %v1414
      %v1417 = vshrl.u32 %v1074, 16
      %v1419 = vrot.slane %v1417, 4
      %v1420 = vshll.u32 %v1074, 16
      %v1422 = vrot.slane %v1420, 5
      %v1423 = vor.u32 %v1419, %v1422
      %v1424 = vrot.slane %v1423, 4
      %v1426 = vshll.u32 %v1075, 16
      %v1428 = vrot.slane %v1426, 5
      %v1429 = vsel %vm233, %v1424, %v1428
      %v1430 = vshrl.u32 %v1075, 16
      %v1432 = vrot.slane %v1430, 4
      %v1433 = vor.u32 %v1432, %v1428
      %v1434 = vrot.slane %v1433, 4
      %v1436 = vshll.u32 %v1076, 16
      %v1438 = vrot.slane %v1436, 5
      %v1439 = vsel %vm233, %v1434, %v1438
      %v1441 = vshrl.u32 %v1077, 16
      %v1443 = vrot.slane %v1441, 4
      %v1444 = vshll.u32 %v1077, 16
      %v1446 = vrot.slane %v1444, 5
      %v1447 = vor.u32 %v1443, %v1446
      %v1448 = vrot.slane %v1447, 4
      %v1450 = vshll.u32 %v1078, 16
      %v1452 = vrot.slane %v1450, 5
      %v1453 = vsel %vm233, %v1448, %v1452
      %v1454 = vshrl.u32 %v1078, 16
      %v1456 = vrot.slane %v1454, 4
      %v1457 = vor.u32 %v1456, %v1452
      %v1458 = vrot.slane %v1457, 4
      %v1460 = vshll.u32 %v1079, 16
      %v1462 = vrot.slane %v1460, 5
      %v1463 = vsel %vm233, %v1458, %v1462
      %s1464 = scalar_lea.vmem %s172, 52
      %v1465 = vld [vmem:[%s1464] sm:$0xf]
      %v1466 = vunpack.c.l.b16 %v1093
      %v1467 = vunpack.c.l.b16 %v1103
      %v1468 = vunpack.c.l.b16 %v1117
      %v1469 = vunpack.c.l.b16 %v1127
      %v1470 = vunpack.c.l.b16 %v1141
      %v1471 = vunpack.c.l.b16 %v1151
      %v1472 = vunpack.c.l.b16 %v1165
      %v1473 = vunpack.c.l.b16 %v1175
      %v1474 = vunpack.c.l.b16 %v1189
      %v1475 = vunpack.c.l.b16 %v1199
      %v1476 = vunpack.c.l.b16 %v1213
      %v1477 = vunpack.c.l.b16 %v1223
      %v1478 = vunpack.c.l.b16 %v1237
      %v1479 = vunpack.c.l.b16 %v1247
      %v1480 = vunpack.c.l.b16 %v1261
      %v1481 = vunpack.c.l.b16 %v1271
      %v1482 = vunpack.c.l.b16 %v1285
      %v1483 = vunpack.c.l.b16 %v1295
      %v1484 = vunpack.c.l.b16 %v1309
      %v1485 = vunpack.c.l.b16 %v1319
      %v1486 = vunpack.c.l.b16 %v1333
      %v1487 = vunpack.c.l.b16 %v1343
      %v1488 = vunpack.c.l.b16 %v1357
      %v1489 = vunpack.c.l.b16 %v1367
      %v1490 = vunpack.c.l.b16 %v1381
      %v1491 = vunpack.c.l.b16 %v1391
      %v1492 = vunpack.c.l.b16 %v1405
      %v1493 = vunpack.c.l.b16 %v1415
      %v1494 = vunpack.c.l.b16 %v1429
      %v1495 = vunpack.c.l.b16 %v1439
      %v1496 = vunpack.c.l.b16 %v1453
      %v1497 = vunpack.c.l.b16 %v1463
      %v1498 = vpack.c.b16 %v1467, %v1466
      %v1499 = vpack.c.b16 %v1469, %v1468
      %v1500 = vpack.c.b16 %v1471, %v1470
      %v1501 = vpack.c.b16 %v1473, %v1472
      %v1502 = vpack.c.b16 %v1475, %v1474
      %v1503 = vpack.c.b16 %v1477, %v1476
      %v1504 = vpack.c.b16 %v1479, %v1478
      %v1505 = vpack.c.b16 %v1481, %v1480
      %v1506 = vpack.c.b16 %v1483, %v1482
      %v1507 = vpack.c.b16 %v1485, %v1484
      %v1508 = vpack.c.b16 %v1487, %v1486
      %v1509 = vpack.c.b16 %v1489, %v1488
      %v1510 = vpack.c.b16 %v1491, %v1490
      %v1511 = vpack.c.b16 %v1493, %v1492
      %v1512 = vpack.c.b16 %v1495, %v1494
      %v1513 = vpack.c.b16 %v1497, %v1496
      %v1515 = vsel %vm702, %v1498, 0
      %v1518 = vsel %vm702, %v1499, 0
      %v1521 = vsel %vm702, %v1500, 0
      %v1524 = vsel %vm702, %v1501, 0
      %v1527 = vsel %vm702, %v1502, 0
      %v1530 = vsel %vm702, %v1503, 0
      %v1533 = vsel %vm702, %v1504, 0
      %v1536 = vsel %vm702, %v1505, 0
      %v1539 = vsel %vm702, %v1506, 0
      %v1542 = vsel %vm702, %v1507, 0
      %v1545 = vsel %vm702, %v1508, 0
      %v1548 = vsel %vm702, %v1509, 0
      %v1551 = vsel %vm702, %v1510, 0
      %v1554 = vsel %vm702, %v1511, 0
      %v1557 = vsel %vm702, %v1512, 0
      %v1560 = vsel %vm702, %v1513, 0
      %v1563 = vsel %vm751, %v1465, 0
      %1565 = vmatpush.bf16.msra.mxu0 0
      %1566 = vmatpush.bf16.msra.mxu0 0
      %1567 = vmatpush.bf16.msra.mxu0 0
      %1568 = vmatpush.bf16.msra.mxu0 0
      %1569 = vmatpush.bf16.msra.mxu0 0
      %1570 = vmatpush.bf16.msra.mxu0 0
      %1571 = vmatpush.bf16.msra.mxu0 0
      %1572 = vmatpush.bf16.msra.mxu0 %v1563
      %1573 = vmatmul.bf16.gmra.mxu0 %v1515
      %v1574 = vpop.f32.mrf.mxu0
      %v1575 = vadd.f32 0.0, %v1574
      %v1576 = vpop.f32.mrf.mxu0
      %v1577 = vadd.f32 0.0, %v1576
      %1578 = vmatmul.bf16.gmra.mxu0 %v1518
      %v1579 = vpop.f32.mrf.mxu0
      %v1580 = vadd.f32 0.0, %v1579
      %v1581 = vpop.f32.mrf.mxu0
      %v1582 = vadd.f32 0.0, %v1581
      %1583 = vmatmul.bf16.gmra.mxu0 %v1521
      %v1584 = vpop.f32.mrf.mxu0
      %v1585 = vadd.f32 0.0, %v1584
      %v1586 = vpop.f32.mrf.mxu0
      %v1587 = vadd.f32 0.0, %v1586
      %1588 = vmatmul.bf16.gmra.mxu0 %v1524
      %v1589 = vpop.f32.mrf.mxu0
      %v1590 = vadd.f32 0.0, %v1589
      %v1591 = vpop.f32.mrf.mxu0
      %v1592 = vadd.f32 0.0, %v1591
      %1593 = vmatmul.bf16.gmra.mxu0 %v1527
      %v1594 = vpop.f32.mrf.mxu0
      %v1595 = vadd.f32 0.0, %v1594
      %v1596 = vpop.f32.mrf.mxu0
      %v1597 = vadd.f32 0.0, %v1596
      %1598 = vmatmul.bf16.gmra.mxu0 %v1530
      %v1599 = vpop.f32.mrf.mxu0
      %v1600 = vadd.f32 0.0, %v1599
      %v1601 = vpop.f32.mrf.mxu0
      %v1602 = vadd.f32 0.0, %v1601
      %1603 = vmatmul.bf16.gmra.mxu0 %v1533
      %v1604 = vpop.f32.mrf.mxu0
      %v1605 = vadd.f32 0.0, %v1604
      %v1606 = vpop.f32.mrf.mxu0
      %v1607 = vadd.f32 0.0, %v1606
      %1608 = vmatmul.bf16.gmra.mxu0 %v1536
      %v1609 = vpop.f32.mrf.mxu0
      %v1610 = vadd.f32 0.0, %v1609
      %v1611 = vpop.f32.mrf.mxu0
      %v1612 = vadd.f32 0.0, %v1611
      %1613 = vmatmul.bf16.gmra.mxu0 %v1539
      %v1614 = vpop.f32.mrf.mxu0
      %v1615 = vadd.f32 0.0, %v1614
      %v1616 = vpop.f32.mrf.mxu0
      %v1617 = vadd.f32 0.0, %v1616
      %1618 = vmatmul.bf16.gmra.mxu0 %v1542
      %v1619 = vpop.f32.mrf.mxu0
      %v1620 = vadd.f32 0.0, %v1619
      %v1621 = vpop.f32.mrf.mxu0
      %v1622 = vadd.f32 0.0, %v1621
      %1623 = vmatmul.bf16.gmra.mxu0 %v1545
      %v1624 = vpop.f32.mrf.mxu0
      %v1625 = vadd.f32 0.0, %v1624
      %v1626 = vpop.f32.mrf.mxu0
      %v1627 = vadd.f32 0.0, %v1626
      %1628 = vmatmul.bf16.gmra.mxu0 %v1548
      %v1629 = vpop.f32.mrf.mxu0
      %v1630 = vadd.f32 0.0, %v1629
      %v1631 = vpop.f32.mrf.mxu0
      %v1632 = vadd.f32 0.0, %v1631
      %1633 = vmatmul.bf16.gmra.mxu0 %v1551
      %v1634 = vpop.f32.mrf.mxu0
      %v1635 = vadd.f32 0.0, %v1634
      %v1636 = vpop.f32.mrf.mxu0
      %v1637 = vadd.f32 0.0, %v1636
      %1638 = vmatmul.bf16.gmra.mxu0 %v1554
      %v1639 = vpop.f32.mrf.mxu0
      %v1640 = vadd.f32 0.0, %v1639
      %v1641 = vpop.f32.mrf.mxu0
      %v1642 = vadd.f32 0.0, %v1641
      %1643 = vmatmul.bf16.gmra.mxu0 %v1557
      %v1644 = vpop.f32.mrf.mxu0
      %v1645 = vadd.f32 0.0, %v1644
      %v1646 = vpop.f32.mrf.mxu0
      %v1647 = vadd.f32 0.0, %v1646
      %1648 = vmatmul.bf16.gmra.mxu0 %v1560
      %v1649 = vpop.f32.mrf.mxu0
      %v1650 = vadd.f32 0.0, %v1649
      %v1651 = vpop.f32.mrf.mxu0
      %v1652 = vadd.f32 0.0, %v1651
      %1653 = vdwg.mxu0
      %v1654 = vadd.f32 %v953, %v1575
      %v1655 = vadd.f32 %v955, %v1577
      %v1656 = vadd.f32 %v958, %v1580
      %v1657 = vadd.f32 %v960, %v1582
      %v1658 = vadd.f32 %v963, %v1585
      %v1659 = vadd.f32 %v965, %v1587
      %v1660 = vadd.f32 %v968, %v1590
      %v1661 = vadd.f32 %v970, %v1592
      %v1662 = vadd.f32 %v973, %v1595
      %v1663 = vadd.f32 %v975, %v1597
      %v1664 = vadd.f32 %v978, %v1600
      %v1665 = vadd.f32 %v980, %v1602
      %v1666 = vadd.f32 %v983, %v1605
      %v1667 = vadd.f32 %v985, %v1607
      %v1668 = vadd.f32 %v988, %v1610
      %v1669 = vadd.f32 %v990, %v1612
      %v1670 = vadd.f32 %v993, %v1615
      %v1671 = vadd.f32 %v995, %v1617
      %v1672 = vadd.f32 %v998, %v1620
      %v1673 = vadd.f32 %v1000, %v1622
      %v1674 = vadd.f32 %v1003, %v1625
      %v1675 = vadd.f32 %v1005, %v1627
      %v1676 = vadd.f32 %v1008, %v1630
      %v1677 = vadd.f32 %v1010, %v1632
      %v1678 = vadd.f32 %v1013, %v1635
      %v1679 = vadd.f32 %v1015, %v1637
      %v1680 = vadd.f32 %v1018, %v1640
      %v1681 = vadd.f32 %v1020, %v1642
      %v1682 = vadd.f32 %v1023, %v1645
      %v1683 = vadd.f32 %v1025, %v1647
      %v1684 = vadd.f32 %v1028, %v1650
      %v1685 = vadd.f32 %v1030, %v1652
      %v1686 = vld [vmem:[%s168] sm:$0xf]
      %v1687 = vld [vmem:[%s168 + $0x4] sm:$0xf]
      %v1688 = vld [vmem:[%s168 + $0xc] sm:$0xf]
      %v1689 = vld [vmem:[%s168 + $0x10] sm:$0xf]
      %v1690 = vld [vmem:[%s168 + $0x18] sm:$0xf]
      %v1691 = vld [vmem:[%s168 + $0x1c] sm:$0xf]
      %v1692 = vld [vmem:[%s168 + $0x24] sm:$0xf]
      %v1693 = vld [vmem:[%s168 + $0x28] sm:$0xf]
      %v1694 = vld [vmem:[%s168 + $0x30] sm:$0xf]
      %v1695 = vld [vmem:[%s168 + $0x34] sm:$0xf]
      %v1696 = vld [vmem:[%s168 + $0x3c] sm:$0xf]
      %v1697 = vld [vmem:[%s168 + $0x40] sm:$0xf]
      %v1698 = vld [vmem:[%s168 + $0x48] sm:$0xf]
      %v1699 = vld [vmem:[%s168 + $0x4c] sm:$0xf]
      %v1700 = vld [vmem:[%s168 + $0x54] sm:$0xf]
      %v1701 = vld [vmem:[%s168 + $0x58] sm:$0xf]
      %v1702 = vld [vmem:[%s168 + $0x60] sm:$0xf]
      %v1703 = vld [vmem:[%s168 + $0x64] sm:$0xf]
      %v1704 = vld [vmem:[%s168 + $0x6c] sm:$0xf]
      %v1705 = vld [vmem:[%s168 + $0x70] sm:$0xf]
      %v1706 = vld [vmem:[%s168 + $0x78] sm:$0xf]
      %v1707 = vld [vmem:[%s168 + $0x7c] sm:$0xf]
      %v1708 = vld [vmem:[%s168 + $0x84] sm:$0xf]
      %v1709 = vld [vmem:[%s168 + $0x88] sm:$0xf]
      %v1710 = vld [vmem:[%s168 + $0x90] sm:$0xf]
      %v1711 = vld [vmem:[%s168 + $0x94] sm:$0xf]
      %v1712 = vld [vmem:[%s168 + $0x9c] sm:$0xf]
      %v1713 = vld [vmem:[%s168 + $0xa0] sm:$0xf]
      %v1714 = vld [vmem:[%s168 + $0xa8] sm:$0xf]
      %v1715 = vld [vmem:[%s168 + $0xac] sm:$0xf]
      %v1716 = vld [vmem:[%s168 + $0xb4] sm:$0xf]
      %v1717 = vld [vmem:[%s168 + $0xb8] sm:$0xf]
      %s1718 = scalar_lea.vmem %s172, 60
      %v1719 = vld [vmem:[%s1718] sm:$0xf]
      %v1752 = vunpack.c.l.b16 %v1686
      %v1753 = vunpack.c.l.b16 %v1687
      %v1754 = vunpack.c.l.b16 %v1688
      %v1755 = vunpack.c.l.b16 %v1689
      %v1756 = vunpack.c.l.b16 %v1690
      %v1757 = vunpack.c.l.b16 %v1691
      %v1758 = vunpack.c.l.b16 %v1692
      %v1759 = vunpack.c.l.b16 %v1693
      %v1760 = vunpack.c.l.b16 %v1694
      %v1761 = vunpack.c.l.b16 %v1695
      %v1762 = vunpack.c.l.b16 %v1696
      %v1763 = vunpack.c.l.b16 %v1697
      %v1764 = vunpack.c.l.b16 %v1698
      %v1765 = vunpack.c.l.b16 %v1699
      %v1766 = vunpack.c.l.b16 %v1700
      %v1767 = vunpack.c.l.b16 %v1701
      %v1768 = vunpack.c.l.b16 %v1702
      %v1769 = vunpack.c.l.b16 %v1703
      %v1770 = vunpack.c.l.b16 %v1704
      %v1771 = vunpack.c.l.b16 %v1705
      %v1772 = vunpack.c.l.b16 %v1706
      %v1773 = vunpack.c.l.b16 %v1707
      %v1774 = vunpack.c.l.b16 %v1708
      %v1775 = vunpack.c.l.b16 %v1709
      %v1776 = vunpack.c.l.b16 %v1710
      %v1777 = vunpack.c.l.b16 %v1711
      %v1778 = vunpack.c.l.b16 %v1712
      %v1779 = vunpack.c.l.b16 %v1713
      %v1780 = vunpack.c.l.b16 %v1714
      %v1781 = vunpack.c.l.b16 %v1715
      %v1782 = vunpack.c.l.b16 %v1716
      %v1783 = vunpack.c.l.b16 %v1717
      %v1784 = vpack.c.b16 %v1753, %v1752
      %v1785 = vpack.c.b16 %v1755, %v1754
      %v1786 = vpack.c.b16 %v1757, %v1756
      %v1787 = vpack.c.b16 %v1759, %v1758
      %v1788 = vpack.c.b16 %v1761, %v1760
      %v1789 = vpack.c.b16 %v1763, %v1762
      %v1790 = vpack.c.b16 %v1765, %v1764
      %v1791 = vpack.c.b16 %v1767, %v1766
      %v1792 = vpack.c.b16 %v1769, %v1768
      %v1793 = vpack.c.b16 %v1771, %v1770
      %v1794 = vpack.c.b16 %v1773, %v1772
      %v1795 = vpack.c.b16 %v1775, %v1774
      %v1796 = vpack.c.b16 %v1777, %v1776
      %v1797 = vpack.c.b16 %v1779, %v1778
      %v1798 = vpack.c.b16 %v1781, %v1780
      %v1799 = vpack.c.b16 %v1783, %v1782
      %v1801 = vsel %vm702, %v1784, 0
      %v1804 = vsel %vm702, %v1785, 0
      %v1807 = vsel %vm702, %v1786, 0
      %v1810 = vsel %vm702, %v1787, 0
      %v1813 = vsel %vm702, %v1788, 0
      %v1816 = vsel %vm702, %v1789, 0
      %v1819 = vsel %vm702, %v1790, 0
      %v1822 = vsel %vm702, %v1791, 0
      %v1825 = vsel %vm702, %v1792, 0
      %v1828 = vsel %vm702, %v1793, 0
      %v1831 = vsel %vm702, %v1794, 0
      %v1834 = vsel %vm702, %v1795, 0
      %v1837 = vsel %vm702, %v1796, 0
      %v1840 = vsel %vm702, %v1797, 0
      %v1843 = vsel %vm702, %v1798, 0
      %v1846 = vsel %vm702, %v1799, 0
      %v1849 = vsel %vm751, %v1719, 0
      %1851 = vmatpush.bf16.msra.mxu0 0
      %1852 = vmatpush.bf16.msra.mxu0 0
      %1853 = vmatpush.bf16.msra.mxu0 0
      %1854 = vmatpush.bf16.msra.mxu0 0
      %1855 = vmatpush.bf16.msra.mxu0 0
      %1856 = vmatpush.bf16.msra.mxu0 0
      %1857 = vmatpush.bf16.msra.mxu0 0
      %1858 = vmatpush.bf16.msra.mxu0 %v1849
      %1859 = vmatmul.bf16.gmra.mxu0 %v1801
      %v1860 = vpop.f32.mrf.mxu0
      %v1861 = vadd.f32 0.0, %v1860
      %v1862 = vpop.f32.mrf.mxu0
      %v1863 = vadd.f32 0.0, %v1862
      %1864 = vmatmul.bf16.gmra.mxu0 %v1804
      %v1865 = vpop.f32.mrf.mxu0
      %v1866 = vadd.f32 0.0, %v1865
      %v1867 = vpop.f32.mrf.mxu0
      %v1868 = vadd.f32 0.0, %v1867
      %1869 = vmatmul.bf16.gmra.mxu0 %v1807
      %v1870 = vpop.f32.mrf.mxu0
      %v1871 = vadd.f32 0.0, %v1870
      %v1872 = vpop.f32.mrf.mxu0
      %v1873 = vadd.f32 0.0, %v1872
      %1874 = vmatmul.bf16.gmra.mxu0 %v1810
      %v1875 = vpop.f32.mrf.mxu0
      %v1876 = vadd.f32 0.0, %v1875
      %v1877 = vpop.f32.mrf.mxu0
      %v1878 = vadd.f32 0.0, %v1877
      %1879 = vmatmul.bf16.gmra.mxu0 %v1813
      %v1880 = vpop.f32.mrf.mxu0
      %v1881 = vadd.f32 0.0, %v1880
      %v1882 = vpop.f32.mrf.mxu0
      %v1883 = vadd.f32 0.0, %v1882
      %1884 = vmatmul.bf16.gmra.mxu0 %v1816
      %v1885 = vpop.f32.mrf.mxu0
      %v1886 = vadd.f32 0.0, %v1885
      %v1887 = vpop.f32.mrf.mxu0
      %v1888 = vadd.f32 0.0, %v1887
      %1889 = vmatmul.bf16.gmra.mxu0 %v1819
      %v1890 = vpop.f32.mrf.mxu0
      %v1891 = vadd.f32 0.0, %v1890
      %v1892 = vpop.f32.mrf.mxu0
      %v1893 = vadd.f32 0.0, %v1892
      %1894 = vmatmul.bf16.gmra.mxu0 %v1822
      %v1895 = vpop.f32.mrf.mxu0
      %v1896 = vadd.f32 0.0, %v1895
      %v1897 = vpop.f32.mrf.mxu0
      %v1898 = vadd.f32 0.0, %v1897
      %1899 = vmatmul.bf16.gmra.mxu0 %v1825
      %v1900 = vpop.f32.mrf.mxu0
      %v1901 = vadd.f32 0.0, %v1900
      %v1902 = vpop.f32.mrf.mxu0
      %v1903 = vadd.f32 0.0, %v1902
      %1904 = vmatmul.bf16.gmra.mxu0 %v1828
      %v1905 = vpop.f32.mrf.mxu0
      %v1906 = vadd.f32 0.0, %v1905
      %v1907 = vpop.f32.mrf.mxu0
      %v1908 = vadd.f32 0.0, %v1907
      %1909 = vmatmul.bf16.gmra.mxu0 %v1831
      %v1910 = vpop.f32.mrf.mxu0
      %v1911 = vadd.f32 0.0, %v1910
      %v1912 = vpop.f32.mrf.mxu0
      %v1913 = vadd.f32 0.0, %v1912
      %1914 = vmatmul.bf16.gmra.mxu0 %v1834
      %v1915 = vpop.f32.mrf.mxu0
      %v1916 = vadd.f32 0.0, %v1915
      %v1917 = vpop.f32.mrf.mxu0
      %v1918 = vadd.f32 0.0, %v1917
      %1919 = vmatmul.bf16.gmra.mxu0 %v1837
      %v1920 = vpop.f32.mrf.mxu0
      %v1921 = vadd.f32 0.0, %v1920
      %v1922 = vpop.f32.mrf.mxu0
      %v1923 = vadd.f32 0.0, %v1922
      %1924 = vmatmul.bf16.gmra.mxu0 %v1840
      %v1925 = vpop.f32.mrf.mxu0
      %v1926 = vadd.f32 0.0, %v1925
      %v1927 = vpop.f32.mrf.mxu0
      %v1928 = vadd.f32 0.0, %v1927
      %1929 = vmatmul.bf16.gmra.mxu0 %v1843
      %v1930 = vpop.f32.mrf.mxu0
      %v1931 = vadd.f32 0.0, %v1930
      %v1932 = vpop.f32.mrf.mxu0
      %v1933 = vadd.f32 0.0, %v1932
      %1934 = vmatmul.bf16.gmra.mxu0 %v1846
      %v1935 = vpop.f32.mrf.mxu0
      %v1936 = vadd.f32 0.0, %v1935
      %v1937 = vpop.f32.mrf.mxu0
      %v1938 = vadd.f32 0.0, %v1937
      %1939 = vdwg.mxu0
      %v1940 = vadd.f32 %v1654, %v1861
      %v1941 = vadd.f32 %v1655, %v1863
      %v1942 = vadd.f32 %v1656, %v1866
      %v1943 = vadd.f32 %v1657, %v1868
      %v1944 = vadd.f32 %v1658, %v1871
      %v1945 = vadd.f32 %v1659, %v1873
      %v1946 = vadd.f32 %v1660, %v1876
      %v1947 = vadd.f32 %v1661, %v1878
      %v1948 = vadd.f32 %v1662, %v1881
      %v1949 = vadd.f32 %v1663, %v1883
      %v1950 = vadd.f32 %v1664, %v1886
      %v1951 = vadd.f32 %v1665, %v1888
      %v1952 = vadd.f32 %v1666, %v1891
      %v1953 = vadd.f32 %v1667, %v1893
      %v1954 = vadd.f32 %v1668, %v1896
      %v1955 = vadd.f32 %v1669, %v1898
      %v1956 = vadd.f32 %v1670, %v1901
      %v1957 = vadd.f32 %v1671, %v1903
      %v1958 = vadd.f32 %v1672, %v1906
      %v1959 = vadd.f32 %v1673, %v1908
      %v1960 = vadd.f32 %v1674, %v1911
      %v1961 = vadd.f32 %v1675, %v1913
      %v1962 = vadd.f32 %v1676, %v1916
      %v1963 = vadd.f32 %v1677, %v1918
      %v1964 = vadd.f32 %v1678, %v1921
      %v1965 = vadd.f32 %v1679, %v1923
      %v1966 = vadd.f32 %v1680, %v1926
      %v1967 = vadd.f32 %v1681, %v1928
      %v1968 = vadd.f32 %v1682, %v1931
      %v1969 = vadd.f32 %v1683, %v1933
      %v1970 = vadd.f32 %v1684, %v1936
      %v1971 = vadd.f32 %v1685, %v1938
      %vm1972 = vcmask 130048
      %1973 = vst.msk [vmem:[%s180] sm:$0xff] %vm1972, %v1940
      %1974 = vst.msk [vmem:[%s180 + $0x8] sm:$0xff] %vm1972, %v1941
      %1975 = vst.msk [vmem:[%s180 + $0x10] sm:$0xff] %vm1972, %v1942
      %1976 = vst.msk [vmem:[%s180 + $0x18] sm:$0xff] %vm1972, %v1943
      %1977 = vst.msk [vmem:[%s180 + $0x20] sm:$0xff] %vm1972, %v1944
      %1978 = vst.msk [vmem:[%s180 + $0x28] sm:$0xff] %vm1972, %v1945
      %1979 = vst.msk [vmem:[%s180 + $0x30] sm:$0xff] %vm1972, %v1946
      %1980 = vst.msk [vmem:[%s180 + $0x38] sm:$0xff] %vm1972, %v1947
      %1981 = vst.msk [vmem:[%s180 + $0x40] sm:$0xff] %vm1972, %v1948
      %1982 = vst.msk [vmem:[%s180 + $0x48] sm:$0xff] %vm1972, %v1949
      %1983 = vst.msk [vmem:[%s180 + $0x50] sm:$0xff] %vm1972, %v1950
      %1984 = vst.msk [vmem:[%s180 + $0x58] sm:$0xff] %vm1972, %v1951
      %1985 = vst.msk [vmem:[%s180 + $0x60] sm:$0xff] %vm1972, %v1952
      %1986 = vst.msk [vmem:[%s180 + $0x68] sm:$0xff] %vm1972, %v1953
      %1987 = vst.msk [vmem:[%s180 + $0x70] sm:$0xff] %vm1972, %v1954
      %1988 = vst.msk [vmem:[%s180 + $0x78] sm:$0xff] %vm1972, %v1955
      %1989 = vst.msk [vmem:[%s180 + $0x80] sm:$0xff] %vm1972, %v1956
      %1990 = vst.msk [vmem:[%s180 + $0x88] sm:$0xff] %vm1972, %v1957
      %1991 = vst.msk [vmem:[%s180 + $0x90] sm:$0xff] %vm1972, %v1958
      %1992 = vst.msk [vmem:[%s180 + $0x98] sm:$0xff] %vm1972, %v1959
      %1993 = vst.msk [vmem:[%s180 + $0xa0] sm:$0xff] %vm1972, %v1960
      %1994 = vst.msk [vmem:[%s180 + $0xa8] sm:$0xff] %vm1972, %v1961
      %1995 = vst.msk [vmem:[%s180 + $0xb0] sm:$0xff] %vm1972, %v1962
      %1996 = vst.msk [vmem:[%s180 + $0xb8] sm:$0xff] %vm1972, %v1963
      %1997 = vst.msk [vmem:[%s180 + $0xc0] sm:$0xff] %vm1972, %v1964
      %1998 = vst.msk [vmem:[%s180 + $0xc8] sm:$0xff] %vm1972, %v1965
      %1999 = vst.msk [vmem:[%s180 + $0xd0] sm:$0xff] %vm1972, %v1966
      %2000 = vst.msk [vmem:[%s180 + $0xd8] sm:$0xff] %vm1972, %v1967
      %2001 = vst.msk [vmem:[%s180 + $0xe0] sm:$0xff] %vm1972, %v1968
      %2002 = vst.msk [vmem:[%s180 + $0xe8] sm:$0xff] %vm1972, %v1969
      %2003 = vst.msk [vmem:[%s180 + $0xf0] sm:$0xff] %vm1972, %v1970
      %2004 = vst.msk [vmem:[%s180 + $0xf8] sm:$0xff] %vm1972, %v1971
      %v2005 = vsel %vm1972, %v1940, 0.0
      %v2006 = vsel %vm1972, %v1941, 0.0
      %v2007 = vadd.f32 %v2005, %v2006
      %v2008 = vsel %vm1972, %v1942, 0.0
      %v2009 = vadd.f32 %v2007, %v2008
      %v2010 = vsel %vm1972, %v1943, 0.0
      %v2011 = vadd.f32 %v2009, %v2010
      %v2012 = vsel %vm1972, %v1944, 0.0
      %v2013 = vadd.f32 %v2011, %v2012
      %v2014 = vsel %vm1972, %v1945, 0.0
      %v2015 = vadd.f32 %v2013, %v2014
      %v2016 = vsel %vm1972, %v1946, 0.0
      %v2017 = vadd.f32 %v2015, %v2016
      %v2018 = vsel %vm1972, %v1947, 0.0
      %v2019 = vadd.f32 %v2017, %v2018
      %v2020 = vsel %vm1972, %v1948, 0.0
      %v2021 = vadd.f32 %v2019, %v2020
      %v2022 = vsel %vm1972, %v1949, 0.0
      %v2023 = vadd.f32 %v2021, %v2022
      %v2024 = vsel %vm1972, %v1950, 0.0
      %v2025 = vadd.f32 %v2023, %v2024
      %v2026 = vsel %vm1972, %v1951, 0.0
      %v2027 = vadd.f32 %v2025, %v2026
      %v2028 = vsel %vm1972, %v1952, 0.0
      %v2029 = vadd.f32 %v2027, %v2028
      %v2030 = vsel %vm1972, %v1953, 0.0
      %v2031 = vadd.f32 %v2029, %v2030
      %v2032 = vsel %vm1972, %v1954, 0.0
      %v2033 = vadd.f32 %v2031, %v2032
      %v2034 = vsel %vm1972, %v1955, 0.0
      %v2035 = vadd.f32 %v2033, %v2034
      %v2036 = vsel %vm1972, %v1956, 0.0
      %v2037 = vadd.f32 %v2035, %v2036
      %v2038 = vsel %vm1972, %v1957, 0.0
      %v2039 = vadd.f32 %v2037, %v2038
      %v2040 = vsel %vm1972, %v1958, 0.0
      %v2041 = vadd.f32 %v2039, %v2040
      %v2042 = vsel %vm1972, %v1959, 0.0
      %v2043 = vadd.f32 %v2041, %v2042
      %v2044 = vsel %vm1972, %v1960, 0.0
      %v2045 = vadd.f32 %v2043, %v2044
      %v2046 = vsel %vm1972, %v1961, 0.0
      %v2047 = vadd.f32 %v2045, %v2046
      %v2048 = vsel %vm1972, %v1962, 0.0
      %v2049 = vadd.f32 %v2047, %v2048
      %v2050 = vsel %vm1972, %v1963, 0.0
      %v2051 = vadd.f32 %v2049, %v2050
      %v2052 = vsel %vm1972, %v1964, 0.0
      %v2053 = vadd.f32 %v2051, %v2052
      %v2054 = vsel %vm1972, %v1965, 0.0
      %v2055 = vadd.f32 %v2053, %v2054
      %v2056 = vsel %vm1972, %v1966, 0.0
      %v2057 = vadd.f32 %v2055, %v2056
      %v2058 = vsel %vm1972, %v1967, 0.0
      %v2059 = vadd.f32 %v2057, %v2058
      %v2060 = vsel %vm1972, %v1968, 0.0
      %v2061 = vadd.f32 %v2059, %v2060
      %v2062 = vsel %vm1972, %v1969, 0.0
      %v2063 = vadd.f32 %v2061, %v2062
      %v2064 = vsel %vm1972, %v1970, 0.0
      %v2065 = vadd.f32 %v2063, %v2064
      %v2066 = vsel %vm1972, %v1971, 0.0
      %v2067 = vadd.f32 %v2065, %v2066
      %v2068 = vrot.slane %v2067, 4
      %v2069 = vadd.f32 %v2067, %v2068
      %v2070 = vrot.slane %v2069, 2
      %v2071 = vadd.f32 %v2069, %v2070
      %v2072 = vrot.slane %v2071, 1
      %v2073 = vadd.f32 %v2071, %v2072
      %v2074 = vadd.f32 %v2073, 0.0
      %v2075 = vmul.f32 %v1940, %v1940
      %v2076 = vmul.f32 %v1941, %v1941
      %v2077 = vmul.f32 %v1942, %v1942
      %v2078 = vmul.f32 %v1943, %v1943
      %v2079 = vmul.f32 %v1944, %v1944
      %v2080 = vmul.f32 %v1945, %v1945
      %v2081 = vmul.f32 %v1946, %v1946
      %v2082 = vmul.f32 %v1947, %v1947
      %v2083 = vmul.f32 %v1948, %v1948
      %v2084 = vmul.f32 %v1949, %v1949
      %v2085 = vmul.f32 %v1950, %v1950
      %v2086 = vmul.f32 %v1951, %v1951
      %v2087 = vmul.f32 %v1952, %v1952
      %v2088 = vmul.f32 %v1953, %v1953
      %v2089 = vmul.f32 %v1954, %v1954
      %v2090 = vmul.f32 %v1955, %v1955
      %v2091 = vmul.f32 %v1956, %v1956
      %v2092 = vmul.f32 %v1957, %v1957
      %v2093 = vmul.f32 %v1958, %v1958
      %v2094 = vmul.f32 %v1959, %v1959
      %v2095 = vmul.f32 %v1960, %v1960
      %v2096 = vmul.f32 %v1961, %v1961
      %v2097 = vmul.f32 %v1962, %v1962
      %v2098 = vmul.f32 %v1963, %v1963
      %v2099 = vmul.f32 %v1964, %v1964
      %v2100 = vmul.f32 %v1965, %v1965
      %v2101 = vmul.f32 %v1966, %v1966
      %v2102 = vmul.f32 %v1967, %v1967
      %v2103 = vmul.f32 %v1968, %v1968
      %v2104 = vmul.f32 %v1969, %v1969
      %v2105 = vmul.f32 %v1970, %v1970
      %v2106 = vmul.f32 %v1971, %v1971
      %v2107 = vsel %vm1972, %v2075, 0.0
      %v2108 = vsel %vm1972, %v2076, 0.0
      %v2109 = vadd.f32 %v2107, %v2108
      %v2110 = vsel %vm1972, %v2077, 0.0
      %v2111 = vadd.f32 %v2109, %v2110
      %v2112 = vsel %vm1972, %v2078, 0.0
      %v2113 = vadd.f32 %v2111, %v2112
      %v2114 = vsel %vm1972, %v2079, 0.0
      %v2115 = vadd.f32 %v2113, %v2114
      %v2116 = vsel %vm1972, %v2080, 0.0
      %v2117 = vadd.f32 %v2115, %v2116
      %v2118 = vsel %vm1972, %v2081, 0.0
      %v2119 = vadd.f32 %v2117, %v2118
      %v2120 = vsel %vm1972, %v2082, 0.0
      %v2121 = vadd.f32 %v2119, %v2120
      %v2122 = vsel %vm1972, %v2083, 0.0
      %v2123 = vadd.f32 %v2121, %v2122
      %v2124 = vsel %vm1972, %v2084, 0.0
      %v2125 = vadd.f32 %v2123, %v2124
      %v2126 = vsel %vm1972, %v2085, 0.0
      %v2127 = vadd.f32 %v2125, %v2126
      %v2128 = vsel %vm1972, %v2086, 0.0
      %v2129 = vadd.f32 %v2127, %v2128
      %v2130 = vsel %vm1972, %v2087, 0.0
      %v2131 = vadd.f32 %v2129, %v2130
      %v2132 = vsel %vm1972, %v2088, 0.0
      %v2133 = vadd.f32 %v2131, %v2132
      %v2134 = vsel %vm1972, %v2089, 0.0
      %v2135 = vadd.f32 %v2133, %v2134
      %v2136 = vsel %vm1972, %v2090, 0.0
      %v2137 = vadd.f32 %v2135, %v2136
      %v2138 = vsel %vm1972, %v2091, 0.0
      %v2139 = vadd.f32 %v2137, %v2138
      %v2140 = vsel %vm1972, %v2092, 0.0
      %v2141 = vadd.f32 %v2139, %v2140
      %v2142 = vsel %vm1972, %v2093, 0.0
      %v2143 = vadd.f32 %v2141, %v2142
      %v2144 = vsel %vm1972, %v2094, 0.0
      %v2145 = vadd.f32 %v2143, %v2144
      %v2146 = vsel %vm1972, %v2095, 0.0
      %v2147 = vadd.f32 %v2145, %v2146
      %v2148 = vsel %vm1972, %v2096, 0.0
      %v2149 = vadd.f32 %v2147, %v2148
      %v2150 = vsel %vm1972, %v2097, 0.0
      %v2151 = vadd.f32 %v2149, %v2150
      %v2152 = vsel %vm1972, %v2098, 0.0
      %v2153 = vadd.f32 %v2151, %v2152
      %v2154 = vsel %vm1972, %v2099, 0.0
      %v2155 = vadd.f32 %v2153, %v2154
      %v2156 = vsel %vm1972, %v2100, 0.0
      %v2157 = vadd.f32 %v2155, %v2156
      %v2158 = vsel %vm1972, %v2101, 0.0
      %v2159 = vadd.f32 %v2157, %v2158
      %v2160 = vsel %vm1972, %v2102, 0.0
      %v2161 = vadd.f32 %v2159, %v2160
      %v2162 = vsel %vm1972, %v2103, 0.0
      %v2163 = vadd.f32 %v2161, %v2162
      %v2164 = vsel %vm1972, %v2104, 0.0
      %v2165 = vadd.f32 %v2163, %v2164
      %v2166 = vsel %vm1972, %v2105, 0.0
      %v2167 = vadd.f32 %v2165, %v2166
      %v2168 = vsel %vm1972, %v2106, 0.0
      %v2169 = vadd.f32 %v2167, %v2168
      %v2170 = vrot.slane %v2169, 4
      %v2171 = vadd.f32 %v2169, %v2170
      %v2172 = vrot.slane %v2171, 2
      %v2173 = vadd.f32 %v2171, %v2172
      %v2174 = vrot.slane %v2173, 1
      %v2175 = vadd.f32 %v2173, %v2174
      %v2176 = vadd.f32 %v2175, 0.0
      %v2177 = vld [vmem:[%s182] sm:$0xe]
      %v2178 = vld [vmem:[%s182 + $0x4] sm:$0xf]
      %v2179 = vld [vmem:[%s182 + $0x8] sm:$0x1]
      %v2180 = vld [vmem:[%s182 + $0xc] sm:$0xe]
      %v2181 = vld [vmem:[%s182 + $0x10] sm:$0xf]
      %v2182 = vld [vmem:[%s182 + $0x14] sm:$0x1]
      %v2183 = vld [vmem:[%s182 + $0x18] sm:$0xe]
      %v2184 = vld [vmem:[%s182 + $0x1c] sm:$0xf]
      %v2185 = vld [vmem:[%s182 + $0x20] sm:$0x1]
      %v2186 = vld [vmem:[%s182 + $0x24] sm:$0xe]
      %v2187 = vld [vmem:[%s182 + $0x28] sm:$0xf]
      %v2188 = vld [vmem:[%s182 + $0x2c] sm:$0x1]
      %v2189 = vld [vmem:[%s182 + $0x30] sm:$0xe]
      %v2190 = vld [vmem:[%s182 + $0x34] sm:$0xf]
      %v2191 = vld [vmem:[%s182 + $0x38] sm:$0x1]
      %v2192 = vld [vmem:[%s182 + $0x3c] sm:$0xe]
      %v2193 = vld [vmem:[%s182 + $0x40] sm:$0xf]
      %v2194 = vld [vmem:[%s182 + $0x44] sm:$0x1]
      %v2195 = vld [vmem:[%s182 + $0x48] sm:$0xe]
      %v2196 = vld [vmem:[%s182 + $0x4c] sm:$0xf]
      %v2197 = vld [vmem:[%s182 + $0x50] sm:$0x1]
      %v2198 = vld [vmem:[%s182 + $0x54] sm:$0xe]
      %v2199 = vld [vmem:[%s182 + $0x58] sm:$0xf]
      %v2200 = vld [vmem:[%s182 + $0x5c] sm:$0x1]
      %v2201 = vld [vmem:[%s182 + $0x60] sm:$0xe]
      %v2202 = vld [vmem:[%s182 + $0x64] sm:$0xf]
      %v2203 = vld [vmem:[%s182 + $0x68] sm:$0x1]
      %v2204 = vld [vmem:[%s182 + $0x6c] sm:$0xe]
      %v2205 = vld [vmem:[%s182 + $0x70] sm:$0xf]
      %v2206 = vld [vmem:[%s182 + $0x74] sm:$0x1]
      %v2207 = vld [vmem:[%s182 + $0x78] sm:$0xe]
      %v2208 = vld [vmem:[%s182 + $0x7c] sm:$0xf]
      %v2209 = vld [vmem:[%s182 + $0x80] sm:$0x1]
      %v2210 = vld [vmem:[%s182 + $0x84] sm:$0xe]
      %v2211 = vld [vmem:[%s182 + $0x88] sm:$0xf]
      %v2212 = vld [vmem:[%s182 + $0x8c] sm:$0x1]
      %v2213 = vld [vmem:[%s182 + $0x90] sm:$0xe]
      %v2214 = vld [vmem:[%s182 + $0x94] sm:$0xf]
      %v2215 = vld [vmem:[%s182 + $0x98] sm:$0x1]
      %v2216 = vld [vmem:[%s182 + $0x9c] sm:$0xe]
      %v2217 = vld [vmem:[%s182 + $0xa0] sm:$0xf]
      %v2218 = vld [vmem:[%s182 + $0xa4] sm:$0x1]
      %v2219 = vld [vmem:[%s182 + $0xa8] sm:$0xe]
      %v2220 = vld [vmem:[%s182 + $0xac] sm:$0xf]
      %v2221 = vld [vmem:[%s182 + $0xb0] sm:$0x1]
      %v2222 = vld [vmem:[%s182 + $0xb4] sm:$0xe]
      %v2223 = vld [vmem:[%s182 + $0xb8] sm:$0xf]
      %v2224 = vld [vmem:[%s182 + $0xbc] sm:$0x1]
      %vm2273 = vcmask 1042432
      %vm2274 = vcmask 1046532
      %vm2275 = vmor %vm2273, %vm2274
      %v2276 = vrot.slane %v2177, 5
      %v2277 = vrot.slane %v2276, 4
      %v2278 = vrot.slane %v2178, 5
      %v2279 = vsel %vm2275, %v2277, %v2278
      %v2280 = vrot.slane %v2278, 4
      %v2281 = vrot.slane %v2179, 5
      %v2282 = vsel %vm2275, %v2280, %v2281
      %v2283 = vrot.slane %v2180, 5
      %v2284 = vrot.slane %v2283, 4
      %v2285 = vrot.slane %v2181, 5
      %v2286 = vsel %vm2275, %v2284, %v2285
      %v2287 = vrot.slane %v2285, 4
      %v2288 = vrot.slane %v2182, 5
      %v2289 = vsel %vm2275, %v2287, %v2288
      %v2290 = vrot.slane %v2183, 5
      %v2291 = vrot.slane %v2290, 4
      %v2292 = vrot.slane %v2184, 5
      %v2293 = vsel %vm2275, %v2291, %v2292
      %v2294 = vrot.slane %v2292, 4
      %v2295 = vrot.slane %v2185, 5
      %v2296 = vsel %vm2275, %v2294, %v2295
      %v2297 = vrot.slane %v2186, 5
      %v2298 = vrot.slane %v2297, 4
      %v2299 = vrot.slane %v2187, 5
      %v2300 = vsel %vm2275, %v2298, %v2299
      %v2301 = vrot.slane %v2299, 4
      %v2302 = vrot.slane %v2188, 5
      %v2303 = vsel %vm2275, %v2301, %v2302
      %v2304 = vrot.slane %v2189, 5
      %v2305 = vrot.slane %v2304, 4
      %v2306 = vrot.slane %v2190, 5
      %v2307 = vsel %vm2275, %v2305, %v2306
      %v2308 = vrot.slane %v2306, 4
      %v2309 = vrot.slane %v2191, 5
      %v2310 = vsel %vm2275, %v2308, %v2309
      %v2311 = vrot.slane %v2192, 5
      %v2312 = vrot.slane %v2311, 4
      %v2313 = vrot.slane %v2193, 5
      %v2314 = vsel %vm2275, %v2312, %v2313
      %v2315 = vrot.slane %v2313, 4
      %v2316 = vrot.slane %v2194, 5
      %v2317 = vsel %vm2275, %v2315, %v2316
      %v2318 = vrot.slane %v2195, 5
      %v2319 = vrot.slane %v2318, 4
      %v2320 = vrot.slane %v2196, 5
      %v2321 = vsel %vm2275, %v2319, %v2320
      %v2322 = vrot.slane %v2320, 4
      %v2323 = vrot.slane %v2197, 5
      %v2324 = vsel %vm2275, %v2322, %v2323
      %v2325 = vrot.slane %v2198, 5
      %v2326 = vrot.slane %v2325, 4
      %v2327 = vrot.slane %v2199, 5
      %v2328 = vsel %vm2275, %v2326, %v2327
      %v2329 = vrot.slane %v2327, 4
      %v2330 = vrot.slane %v2200, 5
      %v2331 = vsel %vm2275, %v2329, %v2330
      %v2332 = vrot.slane %v2201, 5
      %v2333 = vrot.slane %v2332, 4
      %v2334 = vrot.slane %v2202, 5
      %v2335 = vsel %vm2275, %v2333, %v2334
      %v2336 = vrot.slane %v2334, 4
      %v2337 = vrot.slane %v2203, 5
      %v2338 = vsel %vm2275, %v2336, %v2337
      %v2339 = vrot.slane %v2204, 5
      %v2340 = vrot.slane %v2339, 4
      %v2341 = vrot.slane %v2205, 5
      %v2342 = vsel %vm2275, %v2340, %v2341
      %v2343 = vrot.slane %v2341, 4
      %v2344 = vrot.slane %v2206, 5
      %v2345 = vsel %vm2275, %v2343, %v2344
      %v2346 = vrot.slane %v2207, 5
      %v2347 = vrot.slane %v2346, 4
      %v2348 = vrot.slane %v2208, 5
      %v2349 = vsel %vm2275, %v2347, %v2348
      %v2350 = vrot.slane %v2348, 4
      %v2351 = vrot.slane %v2209, 5
      %v2352 = vsel %vm2275, %v2350, %v2351
      %v2353 = vrot.slane %v2210, 5
      %v2354 = vrot.slane %v2353, 4
      %v2355 = vrot.slane %v2211, 5
      %v2356 = vsel %vm2275, %v2354, %v2355
      %v2357 = vrot.slane %v2355, 4
      %v2358 = vrot.slane %v2212, 5
      %v2359 = vsel %vm2275, %v2357, %v2358
      %v2360 = vrot.slane %v2213, 5
      %v2361 = vrot.slane %v2360, 4
      %v2362 = vrot.slane %v2214, 5
      %v2363 = vsel %vm2275, %v2361, %v2362
      %v2364 = vrot.slane %v2362, 4
      %v2365 = vrot.slane %v2215, 5
      %v2366 = vsel %vm2275, %v2364, %v2365
      %v2367 = vrot.slane %v2216, 5
      %v2368 = vrot.slane %v2367, 4
      %v2369 = vrot.slane %v2217, 5
      %v2370 = vsel %vm2275, %v2368, %v2369
      %v2371 = vrot.slane %v2369, 4
      %v2372 = vrot.slane %v2218, 5
      %v2373 = vsel %vm2275, %v2371, %v2372
      %v2374 = vrot.slane %v2219, 5
      %v2375 = vrot.slane %v2374, 4
      %v2376 = vrot.slane %v2220, 5
      %v2377 = vsel %vm2275, %v2375, %v2376
      %v2378 = vrot.slane %v2376, 4
      %v2379 = vrot.slane %v2221, 5
      %v2380 = vsel %vm2275, %v2378, %v2379
      %v2381 = vrot.slane %v2222, 5
      %v2382 = vrot.slane %v2381, 4
      %v2383 = vrot.slane %v2223, 5
      %v2384 = vsel %vm2275, %v2382, %v2383
      %v2385 = vrot.slane %v2383, 4
      %v2386 = vrot.slane %v2224, 5
      %v2387 = vsel %vm2275, %v2385, %v2386
      %s2388 = scalar_lea.vmem %s172, 16
      %v2389 = vld [vmem:[%s2388] sm:$0xf]
      %v2390 = vld [vmem:[%s182] sm:$0xf]
      %v2391 = vld [vmem:[%s182 + $0xc] sm:$0xf]
      %v2392 = vld [vmem:[%s182 + $0x18] sm:$0xf]
      %v2393 = vld [vmem:[%s182 + $0x24] sm:$0xf]
      %v2394 = vld [vmem:[%s182 + $0x30] sm:$0xf]
      %v2395 = vld [vmem:[%s182 + $0x3c] sm:$0xf]
      %v2396 = vld [vmem:[%s182 + $0x48] sm:$0xf]
      %v2397 = vld [vmem:[%s182 + $0x54] sm:$0xf]
      %v2398 = vld [vmem:[%s182 + $0x60] sm:$0xf]
      %v2399 = vld [vmem:[%s182 + $0x6c] sm:$0xf]
      %v2400 = vld [vmem:[%s182 + $0x78] sm:$0xf]
      %v2401 = vld [vmem:[%s182 + $0x84] sm:$0xf]
      %v2402 = vld [vmem:[%s182 + $0x90] sm:$0xf]
      %v2403 = vld [vmem:[%s182 + $0x9c] sm:$0xf]
      %v2404 = vld [vmem:[%s182 + $0xa8] sm:$0xf]
      %v2405 = vld [vmem:[%s182 + $0xb4] sm:$0xf]
      %v2407 = vshrl.u32 %v2390, 16
      %v2409 = vrot.slane %v2407, 4
      %v2410 = vshll.u32 %v2390, 16
      %v2412 = vrot.slane %v2410, 5
      %v2413 = vor.u32 %v2409, %v2412
      %v2414 = vrot.slane %v2413, 4
      %v2416 = vshll.u32 %v2178, 16
      %v2418 = vrot.slane %v2416, 5
      %v2419 = vsel %vm233, %v2414, %v2418
      %v2420 = vshrl.u32 %v2178, 16
      %v2422 = vrot.slane %v2420, 4
      %v2423 = vor.u32 %v2422, %v2418
      %v2424 = vrot.slane %v2423, 4
      %v2426 = vshll.u32 %v2179, 16
      %v2428 = vrot.slane %v2426, 5
      %v2429 = vsel %vm233, %v2424, %v2428
      %v2431 = vshrl.u32 %v2391, 16
      %v2433 = vrot.slane %v2431, 4
      %v2434 = vshll.u32 %v2391, 16
      %v2436 = vrot.slane %v2434, 5
      %v2437 = vor.u32 %v2433, %v2436
      %v2438 = vrot.slane %v2437, 4
      %v2440 = vshll.u32 %v2181, 16
      %v2442 = vrot.slane %v2440, 5
      %v2443 = vsel %vm233, %v2438, %v2442
      %v2444 = vshrl.u32 %v2181, 16
      %v2446 = vrot.slane %v2444, 4
      %v2447 = vor.u32 %v2446, %v2442
      %v2448 = vrot.slane %v2447, 4
      %v2450 = vshll.u32 %v2182, 16
      %v2452 = vrot.slane %v2450, 5
      %v2453 = vsel %vm233, %v2448, %v2452
      %v2455 = vshrl.u32 %v2392, 16
      %v2457 = vrot.slane %v2455, 4
      %v2458 = vshll.u32 %v2392, 16
      %v2460 = vrot.slane %v2458, 5
      %v2461 = vor.u32 %v2457, %v2460
      %v2462 = vrot.slane %v2461, 4
      %v2464 = vshll.u32 %v2184, 16
      %v2466 = vrot.slane %v2464, 5
      %v2467 = vsel %vm233, %v2462, %v2466
      %v2468 = vshrl.u32 %v2184, 16
      %v2470 = vrot.slane %v2468, 4
      %v2471 = vor.u32 %v2470, %v2466
      %v2472 = vrot.slane %v2471, 4
      %v2474 = vshll.u32 %v2185, 16
      %v2476 = vrot.slane %v2474, 5
      %v2477 = vsel %vm233, %v2472, %v2476
      %v2479 = vshrl.u32 %v2393, 16
      %v2481 = vrot.slane %v2479, 4
      %v2482 = vshll.u32 %v2393, 16
      %v2484 = vrot.slane %v2482, 5
      %v2485 = vor.u32 %v2481, %v2484
      %v2486 = vrot.slane %v2485, 4
      %v2488 = vshll.u32 %v2187, 16
      %v2490 = vrot.slane %v2488, 5
      %v2491 = vsel %vm233, %v2486, %v2490
      %v2492 = vshrl.u32 %v2187, 16
      %v2494 = vrot.slane %v2492, 4
      %v2495 = vor.u32 %v2494, %v2490
      %v2496 = vrot.slane %v2495, 4
      %v2498 = vshll.u32 %v2188, 16
      %v2500 = vrot.slane %v2498, 5
      %v2501 = vsel %vm233, %v2496, %v2500
      %v2503 = vshrl.u32 %v2394, 16
      %v2505 = vrot.slane %v2503, 4
      %v2506 = vshll.u32 %v2394, 16
      %v2508 = vrot.slane %v2506, 5
      %v2509 = vor.u32 %v2505, %v2508
      %v2510 = vrot.slane %v2509, 4
      %v2512 = vshll.u32 %v2190, 16
      %v2514 = vrot.slane %v2512, 5
      %v2515 = vsel %vm233, %v2510, %v2514
      %v2516 = vshrl.u32 %v2190, 16
      %v2518 = vrot.slane %v2516, 4
      %v2519 = vor.u32 %v2518, %v2514
      %v2520 = vrot.slane %v2519, 4
      %v2522 = vshll.u32 %v2191, 16
      %v2524 = vrot.slane %v2522, 5
      %v2525 = vsel %vm233, %v2520, %v2524
      %v2527 = vshrl.u32 %v2395, 16
      %v2529 = vrot.slane %v2527, 4
      %v2530 = vshll.u32 %v2395, 16
      %v2532 = vrot.slane %v2530, 5
      %v2533 = vor.u32 %v2529, %v2532
      %v2534 = vrot.slane %v2533, 4
      %v2536 = vshll.u32 %v2193, 16
      %v2538 = vrot.slane %v2536, 5
      %v2539 = vsel %vm233, %v2534, %v2538
      %v2540 = vshrl.u32 %v2193, 16
      %v2542 = vrot.slane %v2540, 4
      %v2543 = vor.u32 %v2542, %v2538
      %v2544 = vrot.slane %v2543, 4
      %v2546 = vshll.u32 %v2194, 16
      %v2548 = vrot.slane %v2546, 5
      %v2549 = vsel %vm233, %v2544, %v2548
      %v2551 = vshrl.u32 %v2396, 16
      %v2553 = vrot.slane %v2551, 4
      %v2554 = vshll.u32 %v2396, 16
      %v2556 = vrot.slane %v2554, 5
      %v2557 = vor.u32 %v2553, %v2556
      %v2558 = vrot.slane %v2557, 4
      %v2560 = vshll.u32 %v2196, 16
      %v2562 = vrot.slane %v2560, 5
      %v2563 = vsel %vm233, %v2558, %v2562
      %v2564 = vshrl.u32 %v2196, 16
      %v2566 = vrot.slane %v2564, 4
      %v2567 = vor.u32 %v2566, %v2562
      %v2568 = vrot.slane %v2567, 4
      %v2570 = vshll.u32 %v2197, 16
      %v2572 = vrot.slane %v2570, 5
      %v2573 = vsel %vm233, %v2568, %v2572
      %v2575 = vshrl.u32 %v2397, 16
      %v2577 = vrot.slane %v2575, 4
      %v2578 = vshll.u32 %v2397, 16
      %v2580 = vrot.slane %v2578, 5
      %v2581 = vor.u32 %v2577, %v2580
      %v2582 = vrot.slane %v2581, 4
      %v2584 = vshll.u32 %v2199, 16
      %v2586 = vrot.slane %v2584, 5
      %v2587 = vsel %vm233, %v2582, %v2586
      %v2588 = vshrl.u32 %v2199, 16
      %v2590 = vrot.slane %v2588, 4
      %v2591 = vor.u32 %v2590, %v2586
      %v2592 = vrot.slane %v2591, 4
      %v2594 = vshll.u32 %v2200, 16
      %v2596 = vrot.slane %v2594, 5
      %v2597 = vsel %vm233, %v2592, %v2596
      %v2599 = vshrl.u32 %v2398, 16
      %v2601 = vrot.slane %v2599, 4
      %v2602 = vshll.u32 %v2398, 16
      %v2604 = vrot.slane %v2602, 5
      %v2605 = vor.u32 %v2601, %v2604
      %v2606 = vrot.slane %v2605, 4
      %v2608 = vshll.u32 %v2202, 16
      %v2610 = vrot.slane %v2608, 5
      %v2611 = vsel %vm233, %v2606, %v2610
      %v2612 = vshrl.u32 %v2202, 16
      %v2614 = vrot.slane %v2612, 4
      %v2615 = vor.u32 %v2614, %v2610
      %v2616 = vrot.slane %v2615, 4
      %v2618 = vshll.u32 %v2203, 16
      %v2620 = vrot.slane %v2618, 5
      %v2621 = vsel %vm233, %v2616, %v2620
      %v2623 = vshrl.u32 %v2399, 16
      %v2625 = vrot.slane %v2623, 4
      %v2626 = vshll.u32 %v2399, 16
      %v2628 = vrot.slane %v2626, 5
      %v2629 = vor.u32 %v2625, %v2628
      %v2630 = vrot.slane %v2629, 4
      %v2632 = vshll.u32 %v2205, 16
      %v2634 = vrot.slane %v2632, 5
      %v2635 = vsel %vm233, %v2630, %v2634
      %v2636 = vshrl.u32 %v2205, 16
      %v2638 = vrot.slane %v2636, 4
      %v2639 = vor.u32 %v2638, %v2634
      %v2640 = vrot.slane %v2639, 4
      %v2642 = vshll.u32 %v2206, 16
      %v2644 = vrot.slane %v2642, 5
      %v2645 = vsel %vm233, %v2640, %v2644
      %v2647 = vshrl.u32 %v2400, 16
      %v2649 = vrot.slane %v2647, 4
      %v2650 = vshll.u32 %v2400, 16
      %v2652 = vrot.slane %v2650, 5
      %v2653 = vor.u32 %v2649, %v2652
      %v2654 = vrot.slane %v2653, 4
      %v2656 = vshll.u32 %v2208, 16
      %v2658 = vrot.slane %v2656, 5
      %v2659 = vsel %vm233, %v2654, %v2658
      %v2660 = vshrl.u32 %v2208, 16
      %v2662 = vrot.slane %v2660, 4
      %v2663 = vor.u32 %v2662, %v2658
      %v2664 = vrot.slane %v2663, 4
      %v2666 = vshll.u32 %v2209, 16
      %v2668 = vrot.slane %v2666, 5
      %v2669 = vsel %vm233, %v2664, %v2668
      %v2671 = vshrl.u32 %v2401, 16
      %v2673 = vrot.slane %v2671, 4
      %v2674 = vshll.u32 %v2401, 16
      %v2676 = vrot.slane %v2674, 5
      %v2677 = vor.u32 %v2673, %v2676
      %v2678 = vrot.slane %v2677, 4
      %v2680 = vshll.u32 %v2211, 16
      %v2682 = vrot.slane %v2680, 5
      %v2683 = vsel %vm233, %v2678, %v2682
      %v2684 = vshrl.u32 %v2211, 16
      %v2686 = vrot.slane %v2684, 4
      %v2687 = vor.u32 %v2686, %v2682
      %v2688 = vrot.slane %v2687, 4
      %v2690 = vshll.u32 %v2212, 16
      %v2692 = vrot.slane %v2690, 5
      %v2693 = vsel %vm233, %v2688, %v2692
      %v2695 = vshrl.u32 %v2402, 16
      %v2697 = vrot.slane %v2695, 4
      %v2698 = vshll.u32 %v2402, 16
      %v2700 = vrot.slane %v2698, 5
      %v2701 = vor.u32 %v2697, %v2700
      %v2702 = vrot.slane %v2701, 4
      %v2704 = vshll.u32 %v2214, 16
      %v2706 = vrot.slane %v2704, 5
      %v2707 = vsel %vm233, %v2702, %v2706
      %v2708 = vshrl.u32 %v2214, 16
      %v2710 = vrot.slane %v2708, 4
      %v2711 = vor.u32 %v2710, %v2706
      %v2712 = vrot.slane %v2711, 4
      %v2714 = vshll.u32 %v2215, 16
      %v2716 = vrot.slane %v2714, 5
      %v2717 = vsel %vm233, %v2712, %v2716
      %v2719 = vshrl.u32 %v2403, 16
      %v2721 = vrot.slane %v2719, 4
      %v2722 = vshll.u32 %v2403, 16
      %v2724 = vrot.slane %v2722, 5
      %v2725 = vor.u32 %v2721, %v2724
      %v2726 = vrot.slane %v2725, 4
      %v2728 = vshll.u32 %v2217, 16
      %v2730 = vrot.slane %v2728, 5
      %v2731 = vsel %vm233, %v2726, %v2730
      %v2732 = vshrl.u32 %v2217, 16
      %v2734 = vrot.slane %v2732, 4
      %v2735 = vor.u32 %v2734, %v2730
      %v2736 = vrot.slane %v2735, 4
      %v2738 = vshll.u32 %v2218, 16
      %v2740 = vrot.slane %v2738, 5
      %v2741 = vsel %vm233, %v2736, %v2740
      %v2743 = vshrl.u32 %v2404, 16
      %v2745 = vrot.slane %v2743, 4
      %v2746 = vshll.u32 %v2404, 16
      %v2748 = vrot.slane %v2746, 5
      %v2749 = vor.u32 %v2745, %v2748
      %v2750 = vrot.slane %v2749, 4
      %v2752 = vshll.u32 %v2220, 16
      %v2754 = vrot.slane %v2752, 5
      %v2755 = vsel %vm233, %v2750, %v2754
      %v2756 = vshrl.u32 %v2220, 16
      %v2758 = vrot.slane %v2756, 4
      %v2759 = vor.u32 %v2758, %v2754
      %v2760 = vrot.slane %v2759, 4
      %v2762 = vshll.u32 %v2221, 16
      %v2764 = vrot.slane %v2762, 5
      %v2765 = vsel %vm233, %v2760, %v2764
      %v2767 = vshrl.u32 %v2405, 16
      %v2769 = vrot.slane %v2767, 4
      %v2770 = vshll.u32 %v2405, 16
      %v2772 = vrot.slane %v2770, 5
      %v2773 = vor.u32 %v2769, %v2772
      %v2774 = vrot.slane %v2773, 4
      %v2776 = vshll.u32 %v2223, 16
      %v2778 = vrot.slane %v2776, 5
      %v2779 = vsel %vm233, %v2774, %v2778
      %v2780 = vshrl.u32 %v2223, 16
      %v2782 = vrot.slane %v2780, 4
      %v2783 = vor.u32 %v2782, %v2778
      %v2784 = vrot.slane %v2783, 4
      %v2786 = vshll.u32 %v2224, 16
      %v2788 = vrot.slane %v2786, 5
      %v2789 = vsel %vm233, %v2784, %v2788
      %s2790 = scalar_lea.vmem %s172, 24
      %v2791 = vld [vmem:[%s2790] sm:$0xf]
      %v2792 = vunpack.c.l.b16 %v2419
      %v2793 = vunpack.c.l.b16 %v2429
      %v2794 = vunpack.c.l.b16 %v2443
      %v2795 = vunpack.c.l.b16 %v2453
      %v2796 = vunpack.c.l.b16 %v2467
      %v2797 = vunpack.c.l.b16 %v2477
      %v2798 = vunpack.c.l.b16 %v2491
      %v2799 = vunpack.c.l.b16 %v2501
      %v2800 = vunpack.c.l.b16 %v2515
      %v2801 = vunpack.c.l.b16 %v2525
      %v2802 = vunpack.c.l.b16 %v2539
      %v2803 = vunpack.c.l.b16 %v2549
      %v2804 = vunpack.c.l.b16 %v2563
      %v2805 = vunpack.c.l.b16 %v2573
      %v2806 = vunpack.c.l.b16 %v2587
      %v2807 = vunpack.c.l.b16 %v2597
      %v2808 = vunpack.c.l.b16 %v2611
      %v2809 = vunpack.c.l.b16 %v2621
      %v2810 = vunpack.c.l.b16 %v2635
      %v2811 = vunpack.c.l.b16 %v2645
      %v2812 = vunpack.c.l.b16 %v2659
      %v2813 = vunpack.c.l.b16 %v2669
      %v2814 = vunpack.c.l.b16 %v2683
      %v2815 = vunpack.c.l.b16 %v2693
      %v2816 = vunpack.c.l.b16 %v2707
      %v2817 = vunpack.c.l.b16 %v2717
      %v2818 = vunpack.c.l.b16 %v2731
      %v2819 = vunpack.c.l.b16 %v2741
      %v2820 = vunpack.c.l.b16 %v2755
      %v2821 = vunpack.c.l.b16 %v2765
      %v2822 = vunpack.c.l.b16 %v2779
      %v2823 = vunpack.c.l.b16 %v2789
      %v2824 = vpack.c.b16 %v2793, %v2792
      %v2825 = vpack.c.b16 %v2795, %v2794
      %v2826 = vpack.c.b16 %v2797, %v2796
      %v2827 = vpack.c.b16 %v2799, %v2798
      %v2828 = vpack.c.b16 %v2801, %v2800
      %v2829 = vpack.c.b16 %v2803, %v2802
      %v2830 = vpack.c.b16 %v2805, %v2804
      %v2831 = vpack.c.b16 %v2807, %v2806
      %v2832 = vpack.c.b16 %v2809, %v2808
      %v2833 = vpack.c.b16 %v2811, %v2810
      %v2834 = vpack.c.b16 %v2813, %v2812
      %v2835 = vpack.c.b16 %v2815, %v2814
      %v2836 = vpack.c.b16 %v2817, %v2816
      %v2837 = vpack.c.b16 %v2819, %v2818
      %v2838 = vpack.c.b16 %v2821, %v2820
      %v2839 = vpack.c.b16 %v2823, %v2822
      %v2841 = vsel %vm702, %v2824, 0
      %v2844 = vsel %vm702, %v2825, 0
      %v2847 = vsel %vm702, %v2826, 0
      %v2850 = vsel %vm702, %v2827, 0
      %v2853 = vsel %vm702, %v2828, 0
      %v2856 = vsel %vm702, %v2829, 0
      %v2859 = vsel %vm702, %v2830, 0
      %v2862 = vsel %vm702, %v2831, 0
      %v2865 = vsel %vm702, %v2832, 0
      %v2868 = vsel %vm702, %v2833, 0
      %v2871 = vsel %vm702, %v2834, 0
      %v2874 = vsel %vm702, %v2835, 0
      %v2877 = vsel %vm702, %v2836, 0
      %v2880 = vsel %vm702, %v2837, 0
      %v2883 = vsel %vm702, %v2838, 0
      %v2886 = vsel %vm702, %v2839, 0
      %v2889 = vsel %vm751, %v2791, 0
      %2891 = vmatpush.bf16.msra.mxu0 0
      %2892 = vmatpush.bf16.msra.mxu0 0
      %2893 = vmatpush.bf16.msra.mxu0 0
      %2894 = vmatpush.bf16.msra.mxu0 0
      %2895 = vmatpush.bf16.msra.mxu0 0
      %2896 = vmatpush.bf16.msra.mxu0 0
      %2897 = vmatpush.bf16.msra.mxu0 0
      %2898 = vmatpush.bf16.msra.mxu0 %v2889
      %2899 = vmatmul.bf16.gmra.mxu0 %v2841
      %v2900 = vpop.f32.mrf.mxu0
      %v2901 = vadd.f32 0.0, %v2900
      %v2902 = vpop.f32.mrf.mxu0
      %v2903 = vadd.f32 0.0, %v2902
      %2904 = vmatmul.bf16.gmra.mxu0 %v2844
      %v2905 = vpop.f32.mrf.mxu0
      %v2906 = vadd.f32 0.0, %v2905
      %v2907 = vpop.f32.mrf.mxu0
      %v2908 = vadd.f32 0.0, %v2907
      %2909 = vmatmul.bf16.gmra.mxu0 %v2847
      %v2910 = vpop.f32.mrf.mxu0
      %v2911 = vadd.f32 0.0, %v2910
      %v2912 = vpop.f32.mrf.mxu0
      %v2913 = vadd.f32 0.0, %v2912
      %2914 = vmatmul.bf16.gmra.mxu0 %v2850
      %v2915 = vpop.f32.mrf.mxu0
      %v2916 = vadd.f32 0.0, %v2915
      %v2917 = vpop.f32.mrf.mxu0
      %v2918 = vadd.f32 0.0, %v2917
      %2919 = vmatmul.bf16.gmra.mxu0 %v2853
      %v2920 = vpop.f32.mrf.mxu0
      %v2921 = vadd.f32 0.0, %v2920
      %v2922 = vpop.f32.mrf.mxu0
      %v2923 = vadd.f32 0.0, %v2922
      %2924 = vmatmul.bf16.gmra.mxu0 %v2856
      %v2925 = vpop.f32.mrf.mxu0
      %v2926 = vadd.f32 0.0, %v2925
      %v2927 = vpop.f32.mrf.mxu0
      %v2928 = vadd.f32 0.0, %v2927
      %2929 = vmatmul.bf16.gmra.mxu0 %v2859
      %v2930 = vpop.f32.mrf.mxu0
      %v2931 = vadd.f32 0.0, %v2930
      %v2932 = vpop.f32.mrf.mxu0
      %v2933 = vadd.f32 0.0, %v2932
      %2934 = vmatmul.bf16.gmra.mxu0 %v2862
      %v2935 = vpop.f32.mrf.mxu0
      %v2936 = vadd.f32 0.0, %v2935
      %v2937 = vpop.f32.mrf.mxu0
      %v2938 = vadd.f32 0.0, %v2937
      %2939 = vmatmul.bf16.gmra.mxu0 %v2865
      %v2940 = vpop.f32.mrf.mxu0
      %v2941 = vadd.f32 0.0, %v2940
      %v2942 = vpop.f32.mrf.mxu0
      %v2943 = vadd.f32 0.0, %v2942
      %2944 = vmatmul.bf16.gmra.mxu0 %v2868
      %v2945 = vpop.f32.mrf.mxu0
      %v2946 = vadd.f32 0.0, %v2945
      %v2947 = vpop.f32.mrf.mxu0
      %v2948 = vadd.f32 0.0, %v2947
      %2949 = vmatmul.bf16.gmra.mxu0 %v2871
      %v2950 = vpop.f32.mrf.mxu0
      %v2951 = vadd.f32 0.0, %v2950
      %v2952 = vpop.f32.mrf.mxu0
      %v2953 = vadd.f32 0.0, %v2952
      %2954 = vmatmul.bf16.gmra.mxu0 %v2874
      %v2955 = vpop.f32.mrf.mxu0
      %v2956 = vadd.f32 0.0, %v2955
      %v2957 = vpop.f32.mrf.mxu0
      %v2958 = vadd.f32 0.0, %v2957
      %2959 = vmatmul.bf16.gmra.mxu0 %v2877
      %v2960 = vpop.f32.mrf.mxu0
      %v2961 = vadd.f32 0.0, %v2960
      %v2962 = vpop.f32.mrf.mxu0
      %v2963 = vadd.f32 0.0, %v2962
      %2964 = vmatmul.bf16.gmra.mxu0 %v2880
      %v2965 = vpop.f32.mrf.mxu0
      %v2966 = vadd.f32 0.0, %v2965
      %v2967 = vpop.f32.mrf.mxu0
      %v2968 = vadd.f32 0.0, %v2967
      %2969 = vmatmul.bf16.gmra.mxu0 %v2883
      %v2970 = vpop.f32.mrf.mxu0
      %v2971 = vadd.f32 0.0, %v2970
      %v2972 = vpop.f32.mrf.mxu0
      %v2973 = vadd.f32 0.0, %v2972
      %2974 = vmatmul.bf16.gmra.mxu0 %v2886
      %v2975 = vpop.f32.mrf.mxu0
      %v2976 = vadd.f32 0.0, %v2975
      %v2977 = vpop.f32.mrf.mxu0
      %v2978 = vadd.f32 0.0, %v2977
      %2979 = vdwg.mxu0
      %v2980 = vunpack.c.l.b16 %v2279
      %v2981 = vunpack.c.l.b16 %v2282
      %v2982 = vunpack.c.l.b16 %v2286
      %v2983 = vunpack.c.l.b16 %v2289
      %v2984 = vunpack.c.l.b16 %v2293
      %v2985 = vunpack.c.l.b16 %v2296
      %v2986 = vunpack.c.l.b16 %v2300
      %v2987 = vunpack.c.l.b16 %v2303
      %v2988 = vunpack.c.l.b16 %v2307
      %v2989 = vunpack.c.l.b16 %v2310
      %v2990 = vunpack.c.l.b16 %v2314
      %v2991 = vunpack.c.l.b16 %v2317
      %v2992 = vunpack.c.l.b16 %v2321
      %v2993 = vunpack.c.l.b16 %v2324
      %v2994 = vunpack.c.l.b16 %v2328
      %v2995 = vunpack.c.l.b16 %v2331
      %v2996 = vunpack.c.l.b16 %v2335
      %v2997 = vunpack.c.l.b16 %v2338
      %v2998 = vunpack.c.l.b16 %v2342
      %v2999 = vunpack.c.l.b16 %v2345
      %v3000 = vunpack.c.l.b16 %v2349
      %v3001 = vunpack.c.l.b16 %v2352
      %v3002 = vunpack.c.l.b16 %v2356
      %v3003 = vunpack.c.l.b16 %v2359
      %v3004 = vunpack.c.l.b16 %v2363
      %v3005 = vunpack.c.l.b16 %v2366
      %v3006 = vunpack.c.l.b16 %v2370
      %v3007 = vunpack.c.l.b16 %v2373
      %v3008 = vunpack.c.l.b16 %v2377
      %v3009 = vunpack.c.l.b16 %v2380
      %v3010 = vunpack.c.l.b16 %v2384
      %v3011 = vunpack.c.l.b16 %v2387
      %v3012 = vpack.c.b16 %v2981, %v2980
      %v3013 = vpack.c.b16 %v2983, %v2982
      %v3014 = vpack.c.b16 %v2985, %v2984
      %v3015 = vpack.c.b16 %v2987, %v2986
      %v3016 = vpack.c.b16 %v2989, %v2988
      %v3017 = vpack.c.b16 %v2991, %v2990
      %v3018 = vpack.c.b16 %v2993, %v2992
      %v3019 = vpack.c.b16 %v2995, %v2994
      %v3020 = vpack.c.b16 %v2997, %v2996
      %v3021 = vpack.c.b16 %v2999, %v2998
      %v3022 = vpack.c.b16 %v3001, %v3000
      %v3023 = vpack.c.b16 %v3003, %v3002
      %v3024 = vpack.c.b16 %v3005, %v3004
      %v3025 = vpack.c.b16 %v3007, %v3006
      %v3026 = vpack.c.b16 %v3009, %v3008
      %v3027 = vpack.c.b16 %v3011, %v3010
      %v3029 = vsel %vm702, %v3012, 0
      %v3032 = vsel %vm702, %v3013, 0
      %v3035 = vsel %vm702, %v3014, 0
      %v3038 = vsel %vm702, %v3015, 0
      %v3041 = vsel %vm702, %v3016, 0
      %v3044 = vsel %vm702, %v3017, 0
      %v3047 = vsel %vm702, %v3018, 0
      %v3050 = vsel %vm702, %v3019, 0
      %v3053 = vsel %vm702, %v3020, 0
      %v3056 = vsel %vm702, %v3021, 0
      %v3059 = vsel %vm702, %v3022, 0
      %v3062 = vsel %vm702, %v3023, 0
      %v3065 = vsel %vm702, %v3024, 0
      %v3068 = vsel %vm702, %v3025, 0
      %v3071 = vsel %vm702, %v3026, 0
      %v3074 = vsel %vm702, %v3027, 0
      %v3077 = vsel %vm751, %v2389, 0
      %3079 = vmatpush.bf16.msra.mxu0 0
      %3080 = vmatpush.bf16.msra.mxu0 0
      %3081 = vmatpush.bf16.msra.mxu0 0
      %3082 = vmatpush.bf16.msra.mxu0 0
      %3083 = vmatpush.bf16.msra.mxu0 0
      %3084 = vmatpush.bf16.msra.mxu0 0
      %3085 = vmatpush.bf16.msra.mxu0 0
      %3086 = vmatpush.bf16.msra.mxu0 %v3077
      %3087 = vmatmul.bf16.gmra.mxu0 %v3029
      %v3088 = vpop.f32.mrf.mxu0
      %v3089 = vadd.f32 %v2901, %v3088
      %v3090 = vpop.f32.mrf.mxu0
      %v3091 = vadd.f32 %v2903, %v3090
      %3092 = vmatmul.bf16.gmra.mxu0 %v3032
      %v3093 = vpop.f32.mrf.mxu0
      %v3094 = vadd.f32 %v2906, %v3093
      %v3095 = vpop.f32.mrf.mxu0
      %v3096 = vadd.f32 %v2908, %v3095
      %3097 = vmatmul.bf16.gmra.mxu0 %v3035
      %v3098 = vpop.f32.mrf.mxu0
      %v3099 = vadd.f32 %v2911, %v3098
      %v3100 = vpop.f32.mrf.mxu0
      %v3101 = vadd.f32 %v2913, %v3100
      %3102 = vmatmul.bf16.gmra.mxu0 %v3038
      %v3103 = vpop.f32.mrf.mxu0
      %v3104 = vadd.f32 %v2916, %v3103
      %v3105 = vpop.f32.mrf.mxu0
      %v3106 = vadd.f32 %v2918, %v3105
      %3107 = vmatmul.bf16.gmra.mxu0 %v3041
      %v3108 = vpop.f32.mrf.mxu0
      %v3109 = vadd.f32 %v2921, %v3108
      %v3110 = vpop.f32.mrf.mxu0
      %v3111 = vadd.f32 %v2923, %v3110
      %3112 = vmatmul.bf16.gmra.mxu0 %v3044
      %v3113 = vpop.f32.mrf.mxu0
      %v3114 = vadd.f32 %v2926, %v3113
      %v3115 = vpop.f32.mrf.mxu0
      %v3116 = vadd.f32 %v2928, %v3115
      %3117 = vmatmul.bf16.gmra.mxu0 %v3047
      %v3118 = vpop.f32.mrf.mxu0
      %v3119 = vadd.f32 %v2931, %v3118
      %v3120 = vpop.f32.mrf.mxu0
      %v3121 = vadd.f32 %v2933, %v3120
      %3122 = vmatmul.bf16.gmra.mxu0 %v3050
      %v3123 = vpop.f32.mrf.mxu0
      %v3124 = vadd.f32 %v2936, %v3123
      %v3125 = vpop.f32.mrf.mxu0
      %v3126 = vadd.f32 %v2938, %v3125
      %3127 = vmatmul.bf16.gmra.mxu0 %v3053
      %v3128 = vpop.f32.mrf.mxu0
      %v3129 = vadd.f32 %v2941, %v3128
      %v3130 = vpop.f32.mrf.mxu0
      %v3131 = vadd.f32 %v2943, %v3130
      %3132 = vmatmul.bf16.gmra.mxu0 %v3056
      %v3133 = vpop.f32.mrf.mxu0
      %v3134 = vadd.f32 %v2946, %v3133
      %v3135 = vpop.f32.mrf.mxu0
      %v3136 = vadd.f32 %v2948, %v3135
      %3137 = vmatmul.bf16.gmra.mxu0 %v3059
      %v3138 = vpop.f32.mrf.mxu0
      %v3139 = vadd.f32 %v2951, %v3138
      %v3140 = vpop.f32.mrf.mxu0
      %v3141 = vadd.f32 %v2953, %v3140
      %3142 = vmatmul.bf16.gmra.mxu0 %v3062
      %v3143 = vpop.f32.mrf.mxu0
      %v3144 = vadd.f32 %v2956, %v3143
      %v3145 = vpop.f32.mrf.mxu0
      %v3146 = vadd.f32 %v2958, %v3145
      %3147 = vmatmul.bf16.gmra.mxu0 %v3065
      %v3148 = vpop.f32.mrf.mxu0
      %v3149 = vadd.f32 %v2961, %v3148
      %v3150 = vpop.f32.mrf.mxu0
      %v3151 = vadd.f32 %v2963, %v3150
      %3152 = vmatmul.bf16.gmra.mxu0 %v3068
      %v3153 = vpop.f32.mrf.mxu0
      %v3154 = vadd.f32 %v2966, %v3153
      %v3155 = vpop.f32.mrf.mxu0
      %v3156 = vadd.f32 %v2968, %v3155
      %3157 = vmatmul.bf16.gmra.mxu0 %v3071
      %v3158 = vpop.f32.mrf.mxu0
      %v3159 = vadd.f32 %v2971, %v3158
      %v3160 = vpop.f32.mrf.mxu0
      %v3161 = vadd.f32 %v2973, %v3160
      %3162 = vmatmul.bf16.gmra.mxu0 %v3074
      %v3163 = vpop.f32.mrf.mxu0
      %v3164 = vadd.f32 %v2976, %v3163
      %v3165 = vpop.f32.mrf.mxu0
      %v3166 = vadd.f32 %v2978, %v3165
      %3167 = vdwg.mxu0
      %v3168 = vld [vmem:[%s168] sm:$0xe]
      %v3169 = vld [vmem:[%s168 + $0x4] sm:$0xf]
      %v3170 = vld [vmem:[%s168 + $0x8] sm:$0x1]
      %v3171 = vld [vmem:[%s168 + $0xc] sm:$0xe]
      %v3172 = vld [vmem:[%s168 + $0x10] sm:$0xf]
      %v3173 = vld [vmem:[%s168 + $0x14] sm:$0x1]
      %v3174 = vld [vmem:[%s168 + $0x18] sm:$0xe]
      %v3175 = vld [vmem:[%s168 + $0x1c] sm:$0xf]
      %v3176 = vld [vmem:[%s168 + $0x20] sm:$0x1]
      %v3177 = vld [vmem:[%s168 + $0x24] sm:$0xe]
      %v3178 = vld [vmem:[%s168 + $0x28] sm:$0xf]
      %v3179 = vld [vmem:[%s168 + $0x2c] sm:$0x1]
      %v3180 = vld [vmem:[%s168 + $0x30] sm:$0xe]
      %v3181 = vld [vmem:[%s168 + $0x34] sm:$0xf]
      %v3182 = vld [vmem:[%s168 + $0x38] sm:$0x1]
      %v3183 = vld [vmem:[%s168 + $0x3c] sm:$0xe]
      %v3184 = vld [vmem:[%s168 + $0x40] sm:$0xf]
      %v3185 = vld [vmem:[%s168 + $0x44] sm:$0x1]
      %v3186 = vld [vmem:[%s168 + $0x48] sm:$0xe]
      %v3187 = vld [vmem:[%s168 + $0x4c] sm:$0xf]
      %v3188 = vld [vmem:[%s168 + $0x50] sm:$0x1]
      %v3189 = vld [vmem:[%s168 + $0x54] sm:$0xe]
      %v3190 = vld [vmem:[%s168 + $0x58] sm:$0xf]
      %v3191 = vld [vmem:[%s168 + $0x5c] sm:$0x1]
      %v3192 = vld [vmem:[%s168 + $0x60] sm:$0xe]
      %v3193 = vld [vmem:[%s168 + $0x64] sm:$0xf]
      %v3194 = vld [vmem:[%s168 + $0x68] sm:$0x1]
      %v3195 = vld [vmem:[%s168 + $0x6c] sm:$0xe]
      %v3196 = vld [vmem:[%s168 + $0x70] sm:$0xf]
      %v3197 = vld [vmem:[%s168 + $0x74] sm:$0x1]
      %v3198 = vld [vmem:[%s168 + $0x78] sm:$0xe]
      %v3199 = vld [vmem:[%s168 + $0x7c] sm:$0xf]
      %v3200 = vld [vmem:[%s168 + $0x80] sm:$0x1]
      %v3201 = vld [vmem:[%s168 + $0x84] sm:$0xe]
      %v3202 = vld [vmem:[%s168 + $0x88] sm:$0xf]
      %v3203 = vld [vmem:[%s168 + $0x8c] sm:$0x1]
      %v3204 = vld [vmem:[%s168 + $0x90] sm:$0xe]
      %v3205 = vld [vmem:[%s168 + $0x94] sm:$0xf]
      %v3206 = vld [vmem:[%s168 + $0x98] sm:$0x1]
      %v3207 = vld [vmem:[%s168 + $0x9c] sm:$0xe]
      %v3208 = vld [vmem:[%s168 + $0xa0] sm:$0xf]
      %v3209 = vld [vmem:[%s168 + $0xa4] sm:$0x1]
      %v3210 = vld [vmem:[%s168 + $0xa8] sm:$0xe]
      %v3211 = vld [vmem:[%s168 + $0xac] sm:$0xf]
      %v3212 = vld [vmem:[%s168 + $0xb0] sm:$0x1]
      %v3213 = vld [vmem:[%s168 + $0xb4] sm:$0xe]
      %v3214 = vld [vmem:[%s168 + $0xb8] sm:$0xf]
      %v3215 = vld [vmem:[%s168 + $0xbc] sm:$0x1]
      %v3264 = vrot.slane %v3168, 5
      %v3265 = vrot.slane %v3264, 4
      %v3266 = vrot.slane %v3169, 5
      %v3267 = vsel %vm2275, %v3265, %v3266
      %v3268 = vrot.slane %v3266, 4
      %v3269 = vrot.slane %v3170, 5
      %v3270 = vsel %vm2275, %v3268, %v3269
      %v3271 = vrot.slane %v3171, 5
      %v3272 = vrot.slane %v3271, 4
      %v3273 = vrot.slane %v3172, 5
      %v3274 = vsel %vm2275, %v3272, %v3273
      %v3275 = vrot.slane %v3273, 4
      %v3276 = vrot.slane %v3173, 5
      %v3277 = vsel %vm2275, %v3275, %v3276
      %v3278 = vrot.slane %v3174, 5
      %v3279 = vrot.slane %v3278, 4
      %v3280 = vrot.slane %v3175, 5
      %v3281 = vsel %vm2275, %v3279, %v3280
      %v3282 = vrot.slane %v3280, 4
      %v3283 = vrot.slane %v3176, 5
      %v3284 = vsel %vm2275, %v3282, %v3283
      %v3285 = vrot.slane %v3177, 5
      %v3286 = vrot.slane %v3285, 4
      %v3287 = vrot.slane %v3178, 5
      %v3288 = vsel %vm2275, %v3286, %v3287
      %v3289 = vrot.slane %v3287, 4
      %v3290 = vrot.slane %v3179, 5
      %v3291 = vsel %vm2275, %v3289, %v3290
      %v3292 = vrot.slane %v3180, 5
      %v3293 = vrot.slane %v3292, 4
      %v3294 = vrot.slane %v3181, 5
      %v3295 = vsel %vm2275, %v3293, %v3294
      %v3296 = vrot.slane %v3294, 4
      %v3297 = vrot.slane %v3182, 5
      %v3298 = vsel %vm2275, %v3296, %v3297
      %v3299 = vrot.slane %v3183, 5
      %v3300 = vrot.slane %v3299, 4
      %v3301 = vrot.slane %v3184, 5
      %v3302 = vsel %vm2275, %v3300, %v3301
      %v3303 = vrot.slane %v3301, 4
      %v3304 = vrot.slane %v3185, 5
      %v3305 = vsel %vm2275, %v3303, %v3304
      %v3306 = vrot.slane %v3186, 5
      %v3307 = vrot.slane %v3306, 4
      %v3308 = vrot.slane %v3187, 5
      %v3309 = vsel %vm2275, %v3307, %v3308
      %v3310 = vrot.slane %v3308, 4
      %v3311 = vrot.slane %v3188, 5
      %v3312 = vsel %vm2275, %v3310, %v3311
      %v3313 = vrot.slane %v3189, 5
      %v3314 = vrot.slane %v3313, 4
      %v3315 = vrot.slane %v3190, 5
      %v3316 = vsel %vm2275, %v3314, %v3315
      %v3317 = vrot.slane %v3315, 4
      %v3318 = vrot.slane %v3191, 5
      %v3319 = vsel %vm2275, %v3317, %v3318
      %v3320 = vrot.slane %v3192, 5
      %v3321 = vrot.slane %v3320, 4
      %v3322 = vrot.slane %v3193, 5
      %v3323 = vsel %vm2275, %v3321, %v3322
      %v3324 = vrot.slane %v3322, 4
      %v3325 = vrot.slane %v3194, 5
      %v3326 = vsel %vm2275, %v3324, %v3325
      %v3327 = vrot.slane %v3195, 5
      %v3328 = vrot.slane %v3327, 4
      %v3329 = vrot.slane %v3196, 5
      %v3330 = vsel %vm2275, %v3328, %v3329
      %v3331 = vrot.slane %v3329, 4
      %v3332 = vrot.slane %v3197, 5
      %v3333 = vsel %vm2275, %v3331, %v3332
      %v3334 = vrot.slane %v3198, 5
      %v3335 = vrot.slane %v3334, 4
      %v3336 = vrot.slane %v3199, 5
      %v3337 = vsel %vm2275, %v3335, %v3336
      %v3338 = vrot.slane %v3336, 4
      %v3339 = vrot.slane %v3200, 5
      %v3340 = vsel %vm2275, %v3338, %v3339
      %v3341 = vrot.slane %v3201, 5
      %v3342 = vrot.slane %v3341, 4
      %v3343 = vrot.slane %v3202, 5
      %v3344 = vsel %vm2275, %v3342, %v3343
      %v3345 = vrot.slane %v3343, 4
      %v3346 = vrot.slane %v3203, 5
      %v3347 = vsel %vm2275, %v3345, %v3346
      %v3348 = vrot.slane %v3204, 5
      %v3349 = vrot.slane %v3348, 4
      %v3350 = vrot.slane %v3205, 5
      %v3351 = vsel %vm2275, %v3349, %v3350
      %v3352 = vrot.slane %v3350, 4
      %v3353 = vrot.slane %v3206, 5
      %v3354 = vsel %vm2275, %v3352, %v3353
      %v3355 = vrot.slane %v3207, 5
      %v3356 = vrot.slane %v3355, 4
      %v3357 = vrot.slane %v3208, 5
      %v3358 = vsel %vm2275, %v3356, %v3357
      %v3359 = vrot.slane %v3357, 4
      %v3360 = vrot.slane %v3209, 5
      %v3361 = vsel %vm2275, %v3359, %v3360
      %v3362 = vrot.slane %v3210, 5
      %v3363 = vrot.slane %v3362, 4
      %v3364 = vrot.slane %v3211, 5
      %v3365 = vsel %vm2275, %v3363, %v3364
      %v3366 = vrot.slane %v3364, 4
      %v3367 = vrot.slane %v3212, 5
      %v3368 = vsel %vm2275, %v3366, %v3367
      %v3369 = vrot.slane %v3213, 5
      %v3370 = vrot.slane %v3369, 4
      %v3371 = vrot.slane %v3214, 5
      %v3372 = vsel %vm2275, %v3370, %v3371
      %v3373 = vrot.slane %v3371, 4
      %v3374 = vrot.slane %v3215, 5
      %v3375 = vsel %vm2275, %v3373, %v3374
      %s3376 = scalar_lea.vmem %s172, 48
      %v3377 = vld [vmem:[%s3376] sm:$0xf]
      %v3378 = vunpack.c.l.b16 %v3267
      %v3379 = vunpack.c.l.b16 %v3270
      %v3380 = vunpack.c.l.b16 %v3274
      %v3381 = vunpack.c.l.b16 %v3277
      %v3382 = vunpack.c.l.b16 %v3281
      %v3383 = vunpack.c.l.b16 %v3284
      %v3384 = vunpack.c.l.b16 %v3288
      %v3385 = vunpack.c.l.b16 %v3291
      %v3386 = vunpack.c.l.b16 %v3295
      %v3387 = vunpack.c.l.b16 %v3298
      %v3388 = vunpack.c.l.b16 %v3302
      %v3389 = vunpack.c.l.b16 %v3305
      %v3390 = vunpack.c.l.b16 %v3309
      %v3391 = vunpack.c.l.b16 %v3312
      %v3392 = vunpack.c.l.b16 %v3316
      %v3393 = vunpack.c.l.b16 %v3319
      %v3394 = vunpack.c.l.b16 %v3323
      %v3395 = vunpack.c.l.b16 %v3326
      %v3396 = vunpack.c.l.b16 %v3330
      %v3397 = vunpack.c.l.b16 %v3333
      %v3398 = vunpack.c.l.b16 %v3337
      %v3399 = vunpack.c.l.b16 %v3340
      %v3400 = vunpack.c.l.b16 %v3344
      %v3401 = vunpack.c.l.b16 %v3347
      %v3402 = vunpack.c.l.b16 %v3351
      %v3403 = vunpack.c.l.b16 %v3354
      %v3404 = vunpack.c.l.b16 %v3358
      %v3405 = vunpack.c.l.b16 %v3361
      %v3406 = vunpack.c.l.b16 %v3365
      %v3407 = vunpack.c.l.b16 %v3368
      %v3408 = vunpack.c.l.b16 %v3372
      %v3409 = vunpack.c.l.b16 %v3375
      %v3410 = vpack.c.b16 %v3379, %v3378
      %v3411 = vpack.c.b16 %v3381, %v3380
      %v3412 = vpack.c.b16 %v3383, %v3382
      %v3413 = vpack.c.b16 %v3385, %v3384
      %v3414 = vpack.c.b16 %v3387, %v3386
      %v3415 = vpack.c.b16 %v3389, %v3388
      %v3416 = vpack.c.b16 %v3391, %v3390
      %v3417 = vpack.c.b16 %v3393, %v3392
      %v3418 = vpack.c.b16 %v3395, %v3394
      %v3419 = vpack.c.b16 %v3397, %v3396
      %v3420 = vpack.c.b16 %v3399, %v3398
      %v3421 = vpack.c.b16 %v3401, %v3400
      %v3422 = vpack.c.b16 %v3403, %v3402
      %v3423 = vpack.c.b16 %v3405, %v3404
      %v3424 = vpack.c.b16 %v3407, %v3406
      %v3425 = vpack.c.b16 %v3409, %v3408
      %v3427 = vsel %vm702, %v3410, 0
      %v3430 = vsel %vm702, %v3411, 0
      %v3433 = vsel %vm702, %v3412, 0
      %v3436 = vsel %vm702, %v3413, 0
      %v3439 = vsel %vm702, %v3414, 0
      %v3442 = vsel %vm702, %v3415, 0
      %v3445 = vsel %vm702, %v3416, 0
      %v3448 = vsel %vm702, %v3417, 0
      %v3451 = vsel %vm702, %v3418, 0
      %v3454 = vsel %vm702, %v3419, 0
      %v3457 = vsel %vm702, %v3420, 0
      %v3460 = vsel %vm702, %v3421, 0
      %v3463 = vsel %vm702, %v3422, 0
      %v3466 = vsel %vm702, %v3423, 0
      %v3469 = vsel %vm702, %v3424, 0
      %v3472 = vsel %vm702, %v3425, 0
      %v3475 = vsel %vm751, %v3377, 0
      %3477 = vmatpush.bf16.msra.mxu0 0
      %3478 = vmatpush.bf16.msra.mxu0 0
      %3479 = vmatpush.bf16.msra.mxu0 0
      %3480 = vmatpush.bf16.msra.mxu0 0
      %3481 = vmatpush.bf16.msra.mxu0 0
      %3482 = vmatpush.bf16.msra.mxu0 0
      %3483 = vmatpush.bf16.msra.mxu0 0
      %3484 = vmatpush.bf16.msra.mxu0 %v3475
      %3485 = vmatmul.bf16.gmra.mxu0 %v3427
      %v3486 = vpop.f32.mrf.mxu0
      %v3487 = vadd.f32 0.0, %v3486
      %v3488 = vpop.f32.mrf.mxu0
      %v3489 = vadd.f32 0.0, %v3488
      %3490 = vmatmul.bf16.gmra.mxu0 %v3430
      %v3491 = vpop.f32.mrf.mxu0
      %v3492 = vadd.f32 0.0, %v3491
      %v3493 = vpop.f32.mrf.mxu0
      %v3494 = vadd.f32 0.0, %v3493
      %3495 = vmatmul.bf16.gmra.mxu0 %v3433
      %v3496 = vpop.f32.mrf.mxu0
      %v3497 = vadd.f32 0.0, %v3496
      %v3498 = vpop.f32.mrf.mxu0
      %v3499 = vadd.f32 0.0, %v3498
      %3500 = vmatmul.bf16.gmra.mxu0 %v3436
      %v3501 = vpop.f32.mrf.mxu0
      %v3502 = vadd.f32 0.0, %v3501
      %v3503 = vpop.f32.mrf.mxu0
      %v3504 = vadd.f32 0.0, %v3503
      %3505 = vmatmul.bf16.gmra.mxu0 %v3439
      %v3506 = vpop.f32.mrf.mxu0
      %v3507 = vadd.f32 0.0, %v3506
      %v3508 = vpop.f32.mrf.mxu0
      %v3509 = vadd.f32 0.0, %v3508
      %3510 = vmatmul.bf16.gmra.mxu0 %v3442
      %v3511 = vpop.f32.mrf.mxu0
      %v3512 = vadd.f32 0.0, %v3511
      %v3513 = vpop.f32.mrf.mxu0
      %v3514 = vadd.f32 0.0, %v3513
      %3515 = vmatmul.bf16.gmra.mxu0 %v3445
      %v3516 = vpop.f32.mrf.mxu0
      %v3517 = vadd.f32 0.0, %v3516
      %v3518 = vpop.f32.mrf.mxu0
      %v3519 = vadd.f32 0.0, %v3518
      %3520 = vmatmul.bf16.gmra.mxu0 %v3448
      %v3521 = vpop.f32.mrf.mxu0
      %v3522 = vadd.f32 0.0, %v3521
      %v3523 = vpop.f32.mrf.mxu0
      %v3524 = vadd.f32 0.0, %v3523
      %3525 = vmatmul.bf16.gmra.mxu0 %v3451
      %v3526 = vpop.f32.mrf.mxu0
      %v3527 = vadd.f32 0.0, %v3526
      %v3528 = vpop.f32.mrf.mxu0
      %v3529 = vadd.f32 0.0, %v3528
      %3530 = vmatmul.bf16.gmra.mxu0 %v3454
      %v3531 = vpop.f32.mrf.mxu0
      %v3532 = vadd.f32 0.0, %v3531
      %v3533 = vpop.f32.mrf.mxu0
      %v3534 = vadd.f32 0.0, %v3533
      %3535 = vmatmul.bf16.gmra.mxu0 %v3457
      %v3536 = vpop.f32.mrf.mxu0
      %v3537 = vadd.f32 0.0, %v3536
      %v3538 = vpop.f32.mrf.mxu0
      %v3539 = vadd.f32 0.0, %v3538
      %3540 = vmatmul.bf16.gmra.mxu0 %v3460
      %v3541 = vpop.f32.mrf.mxu0
      %v3542 = vadd.f32 0.0, %v3541
      %v3543 = vpop.f32.mrf.mxu0
      %v3544 = vadd.f32 0.0, %v3543
      %3545 = vmatmul.bf16.gmra.mxu0 %v3463
      %v3546 = vpop.f32.mrf.mxu0
      %v3547 = vadd.f32 0.0, %v3546
      %v3548 = vpop.f32.mrf.mxu0
      %v3549 = vadd.f32 0.0, %v3548
      %3550 = vmatmul.bf16.gmra.mxu0 %v3466
      %v3551 = vpop.f32.mrf.mxu0
      %v3552 = vadd.f32 0.0, %v3551
      %v3553 = vpop.f32.mrf.mxu0
      %v3554 = vadd.f32 0.0, %v3553
      %3555 = vmatmul.bf16.gmra.mxu0 %v3469
      %v3556 = vpop.f32.mrf.mxu0
      %v3557 = vadd.f32 0.0, %v3556
      %v3558 = vpop.f32.mrf.mxu0
      %v3559 = vadd.f32 0.0, %v3558
      %3560 = vmatmul.bf16.gmra.mxu0 %v3472
      %v3561 = vpop.f32.mrf.mxu0
      %v3562 = vadd.f32 0.0, %v3561
      %v3563 = vpop.f32.mrf.mxu0
      %v3564 = vadd.f32 0.0, %v3563
      %3565 = vdwg.mxu0
      %v3566 = vadd.f32 %v3089, %v3487
      %v3567 = vadd.f32 %v3091, %v3489
      %v3568 = vadd.f32 %v3094, %v3492
      %v3569 = vadd.f32 %v3096, %v3494
      %v3570 = vadd.f32 %v3099, %v3497
      %v3571 = vadd.f32 %v3101, %v3499
      %v3572 = vadd.f32 %v3104, %v3502
      %v3573 = vadd.f32 %v3106, %v3504
      %v3574 = vadd.f32 %v3109, %v3507
      %v3575 = vadd.f32 %v3111, %v3509
      %v3576 = vadd.f32 %v3114, %v3512
      %v3577 = vadd.f32 %v3116, %v3514
      %v3578 = vadd.f32 %v3119, %v3517
      %v3579 = vadd.f32 %v3121, %v3519
      %v3580 = vadd.f32 %v3124, %v3522
      %v3581 = vadd.f32 %v3126, %v3524
      %v3582 = vadd.f32 %v3129, %v3527
      %v3583 = vadd.f32 %v3131, %v3529
      %v3584 = vadd.f32 %v3134, %v3532
      %v3585 = vadd.f32 %v3136, %v3534
      %v3586 = vadd.f32 %v3139, %v3537
      %v3587 = vadd.f32 %v3141, %v3539
      %v3588 = vadd.f32 %v3144, %v3542
      %v3589 = vadd.f32 %v3146, %v3544
      %v3590 = vadd.f32 %v3149, %v3547
      %v3591 = vadd.f32 %v3151, %v3549
      %v3592 = vadd.f32 %v3154, %v3552
      %v3593 = vadd.f32 %v3156, %v3554
      %v3594 = vadd.f32 %v3159, %v3557
      %v3595 = vadd.f32 %v3161, %v3559
      %v3596 = vadd.f32 %v3164, %v3562
      %v3597 = vadd.f32 %v3166, %v3564
      %v3598 = vld [vmem:[%s168] sm:$0xf]
      %v3599 = vld [vmem:[%s168 + $0xc] sm:$0xf]
      %v3600 = vld [vmem:[%s168 + $0x18] sm:$0xf]
      %v3601 = vld [vmem:[%s168 + $0x24] sm:$0xf]
      %v3602 = vld [vmem:[%s168 + $0x30] sm:$0xf]
      %v3603 = vld [vmem:[%s168 + $0x3c] sm:$0xf]
      %v3604 = vld [vmem:[%s168 + $0x48] sm:$0xf]
      %v3605 = vld [vmem:[%s168 + $0x54] sm:$0xf]
      %v3606 = vld [vmem:[%s168 + $0x60] sm:$0xf]
      %v3607 = vld [vmem:[%s168 + $0x6c] sm:$0xf]
      %v3608 = vld [vmem:[%s168 + $0x78] sm:$0xf]
      %v3609 = vld [vmem:[%s168 + $0x84] sm:$0xf]
      %v3610 = vld [vmem:[%s168 + $0x90] sm:$0xf]
      %v3611 = vld [vmem:[%s168 + $0x9c] sm:$0xf]
      %v3612 = vld [vmem:[%s168 + $0xa8] sm:$0xf]
      %v3613 = vld [vmem:[%s168 + $0xb4] sm:$0xf]
      %v3615 = vshrl.u32 %v3598, 16
      %v3617 = vrot.slane %v3615, 4
      %v3618 = vshll.u32 %v3598, 16
      %v3620 = vrot.slane %v3618, 5
      %v3621 = vor.u32 %v3617, %v3620
      %v3622 = vrot.slane %v3621, 4
      %v3624 = vshll.u32 %v3169, 16
      %v3626 = vrot.slane %v3624, 5
      %v3627 = vsel %vm233, %v3622, %v3626
      %v3628 = vshrl.u32 %v3169, 16
      %v3630 = vrot.slane %v3628, 4
      %v3631 = vor.u32 %v3630, %v3626
      %v3632 = vrot.slane %v3631, 4
      %v3634 = vshll.u32 %v3170, 16
      %v3636 = vrot.slane %v3634, 5
      %v3637 = vsel %vm233, %v3632, %v3636
      %v3639 = vshrl.u32 %v3599, 16
      %v3641 = vrot.slane %v3639, 4
      %v3642 = vshll.u32 %v3599, 16
      %v3644 = vrot.slane %v3642, 5
      %v3645 = vor.u32 %v3641, %v3644
      %v3646 = vrot.slane %v3645, 4
      %v3648 = vshll.u32 %v3172, 16
      %v3650 = vrot.slane %v3648, 5
      %v3651 = vsel %vm233, %v3646, %v3650
      %v3652 = vshrl.u32 %v3172, 16
      %v3654 = vrot.slane %v3652, 4
      %v3655 = vor.u32 %v3654, %v3650
      %v3656 = vrot.slane %v3655, 4
      %v3658 = vshll.u32 %v3173, 16
      %v3660 = vrot.slane %v3658, 5
      %v3661 = vsel %vm233, %v3656, %v3660
      %v3663 = vshrl.u32 %v3600, 16
      %v3665 = vrot.slane %v3663, 4
      %v3666 = vshll.u32 %v3600, 16
      %v3668 = vrot.slane %v3666, 5
      %v3669 = vor.u32 %v3665, %v3668
      %v3670 = vrot.slane %v3669, 4
      %v3672 = vshll.u32 %v3175, 16
      %v3674 = vrot.slane %v3672, 5
      %v3675 = vsel %vm233, %v3670, %v3674
      %v3676 = vshrl.u32 %v3175, 16
      %v3678 = vrot.slane %v3676, 4
      %v3679 = vor.u32 %v3678, %v3674
      %v3680 = vrot.slane %v3679, 4
      %v3682 = vshll.u32 %v3176, 16
      %v3684 = vrot.slane %v3682, 5
      %v3685 = vsel %vm233, %v3680, %v3684
      %v3687 = vshrl.u32 %v3601, 16
      %v3689 = vrot.slane %v3687, 4
      %v3690 = vshll.u32 %v3601, 16
      %v3692 = vrot.slane %v3690, 5
      %v3693 = vor.u32 %v3689, %v3692
      %v3694 = vrot.slane %v3693, 4
      %v3696 = vshll.u32 %v3178, 16
      %v3698 = vrot.slane %v3696, 5
      %v3699 = vsel %vm233, %v3694, %v3698
      %v3700 = vshrl.u32 %v3178, 16
      %v3702 = vrot.slane %v3700, 4
      %v3703 = vor.u32 %v3702, %v3698
      %v3704 = vrot.slane %v3703, 4
      %v3706 = vshll.u32 %v3179, 16
      %v3708 = vrot.slane %v3706, 5
      %v3709 = vsel %vm233, %v3704, %v3708
      %v3711 = vshrl.u32 %v3602, 16
      %v3713 = vrot.slane %v3711, 4
      %v3714 = vshll.u32 %v3602, 16
      %v3716 = vrot.slane %v3714, 5
      %v3717 = vor.u32 %v3713, %v3716
      %v3718 = vrot.slane %v3717, 4
      %v3720 = vshll.u32 %v3181, 16
      %v3722 = vrot.slane %v3720, 5
      %v3723 = vsel %vm233, %v3718, %v3722
      %v3724 = vshrl.u32 %v3181, 16
      %v3726 = vrot.slane %v3724, 4
      %v3727 = vor.u32 %v3726, %v3722
      %v3728 = vrot.slane %v3727, 4
      %v3730 = vshll.u32 %v3182, 16
      %v3732 = vrot.slane %v3730, 5
      %v3733 = vsel %vm233, %v3728, %v3732
      %v3735 = vshrl.u32 %v3603, 16
      %v3737 = vrot.slane %v3735, 4
      %v3738 = vshll.u32 %v3603, 16
      %v3740 = vrot.slane %v3738, 5
      %v3741 = vor.u32 %v3737, %v3740
      %v3742 = vrot.slane %v3741, 4
      %v3744 = vshll.u32 %v3184, 16
      %v3746 = vrot.slane %v3744, 5
      %v3747 = vsel %vm233, %v3742, %v3746
      %v3748 = vshrl.u32 %v3184, 16
      %v3750 = vrot.slane %v3748, 4
      %v3751 = vor.u32 %v3750, %v3746
      %v3752 = vrot.slane %v3751, 4
      %v3754 = vshll.u32 %v3185, 16
      %v3756 = vrot.slane %v3754, 5
      %v3757 = vsel %vm233, %v3752, %v3756
      %v3759 = vshrl.u32 %v3604, 16
      %v3761 = vrot.slane %v3759, 4
      %v3762 = vshll.u32 %v3604, 16
      %v3764 = vrot.slane %v3762, 5
      %v3765 = vor.u32 %v3761, %v3764
      %v3766 = vrot.slane %v3765, 4
      %v3768 = vshll.u32 %v3187, 16
      %v3770 = vrot.slane %v3768, 5
      %v3771 = vsel %vm233, %v3766, %v3770
      %v3772 = vshrl.u32 %v3187, 16
      %v3774 = vrot.slane %v3772, 4
      %v3775 = vor.u32 %v3774, %v3770
      %v3776 = vrot.slane %v3775, 4
      %v3778 = vshll.u32 %v3188, 16
      %v3780 = vrot.slane %v3778, 5
      %v3781 = vsel %vm233, %v3776, %v3780
      %v3783 = vshrl.u32 %v3605, 16
      %v3785 = vrot.slane %v3783, 4
      %v3786 = vshll.u32 %v3605, 16
      %v3788 = vrot.slane %v3786, 5
      %v3789 = vor.u32 %v3785, %v3788
      %v3790 = vrot.slane %v3789, 4
      %v3792 = vshll.u32 %v3190, 16
      %v3794 = vrot.slane %v3792, 5
      %v3795 = vsel %vm233, %v3790, %v3794
      %v3796 = vshrl.u32 %v3190, 16
      %v3798 = vrot.slane %v3796, 4
      %v3799 = vor.u32 %v3798, %v3794
      %v3800 = vrot.slane %v3799, 4
      %v3802 = vshll.u32 %v3191, 16
      %v3804 = vrot.slane %v3802, 5
      %v3805 = vsel %vm233, %v3800, %v3804
      %v3807 = vshrl.u32 %v3606, 16
      %v3809 = vrot.slane %v3807, 4
      %v3810 = vshll.u32 %v3606, 16
      %v3812 = vrot.slane %v3810, 5
      %v3813 = vor.u32 %v3809, %v3812
      %v3814 = vrot.slane %v3813, 4
      %v3816 = vshll.u32 %v3193, 16
      %v3818 = vrot.slane %v3816, 5
      %v3819 = vsel %vm233, %v3814, %v3818
      %v3820 = vshrl.u32 %v3193, 16
      %v3822 = vrot.slane %v3820, 4
      %v3823 = vor.u32 %v3822, %v3818
      %v3824 = vrot.slane %v3823, 4
      %v3826 = vshll.u32 %v3194, 16
      %v3828 = vrot.slane %v3826, 5
      %v3829 = vsel %vm233, %v3824, %v3828
      %v3831 = vshrl.u32 %v3607, 16
      %v3833 = vrot.slane %v3831, 4
      %v3834 = vshll.u32 %v3607, 16
      %v3836 = vrot.slane %v3834, 5
      %v3837 = vor.u32 %v3833, %v3836
      %v3838 = vrot.slane %v3837, 4
      %v3840 = vshll.u32 %v3196, 16
      %v3842 = vrot.slane %v3840, 5
      %v3843 = vsel %vm233, %v3838, %v3842
      %v3844 = vshrl.u32 %v3196, 16
      %v3846 = vrot.slane %v3844, 4
      %v3847 = vor.u32 %v3846, %v3842
      %v3848 = vrot.slane %v3847, 4
      %v3850 = vshll.u32 %v3197, 16
      %v3852 = vrot.slane %v3850, 5
      %v3853 = vsel %vm233, %v3848, %v3852
      %v3855 = vshrl.u32 %v3608, 16
      %v3857 = vrot.slane %v3855, 4
      %v3858 = vshll.u32 %v3608, 16
      %v3860 = vrot.slane %v3858, 5
      %v3861 = vor.u32 %v3857, %v3860
      %v3862 = vrot.slane %v3861, 4
      %v3864 = vshll.u32 %v3199, 16
      %v3866 = vrot.slane %v3864, 5
      %v3867 = vsel %vm233, %v3862, %v3866
      %v3868 = vshrl.u32 %v3199, 16
      %v3870 = vrot.slane %v3868, 4
      %v3871 = vor.u32 %v3870, %v3866
      %v3872 = vrot.slane %v3871, 4
      %v3874 = vshll.u32 %v3200, 16
      %v3876 = vrot.slane %v3874, 5
      %v3877 = vsel %vm233, %v3872, %v3876
      %v3879 = vshrl.u32 %v3609, 16
      %v3881 = vrot.slane %v3879, 4
      %v3882 = vshll.u32 %v3609, 16
      %v3884 = vrot.slane %v3882, 5
      %v3885 = vor.u32 %v3881, %v3884
      %v3886 = vrot.slane %v3885, 4
      %v3888 = vshll.u32 %v3202, 16
      %v3890 = vrot.slane %v3888, 5
      %v3891 = vsel %vm233, %v3886, %v3890
      %v3892 = vshrl.u32 %v3202, 16
      %v3894 = vrot.slane %v3892, 4
      %v3895 = vor.u32 %v3894, %v3890
      %v3896 = vrot.slane %v3895, 4
      %v3898 = vshll.u32 %v3203, 16
      %v3900 = vrot.slane %v3898, 5
      %v3901 = vsel %vm233, %v3896, %v3900
      %v3903 = vshrl.u32 %v3610, 16
      %v3905 = vrot.slane %v3903, 4
      %v3906 = vshll.u32 %v3610, 16
      %v3908 = vrot.slane %v3906, 5
      %v3909 = vor.u32 %v3905, %v3908
      %v3910 = vrot.slane %v3909, 4
      %v3912 = vshll.u32 %v3205, 16
      %v3914 = vrot.slane %v3912, 5
      %v3915 = vsel %vm233, %v3910, %v3914
      %v3916 = vshrl.u32 %v3205, 16
      %v3918 = vrot.slane %v3916, 4
      %v3919 = vor.u32 %v3918, %v3914
      %v3920 = vrot.slane %v3919, 4
      %v3922 = vshll.u32 %v3206, 16
      %v3924 = vrot.slane %v3922, 5
      %v3925 = vsel %vm233, %v3920, %v3924
      %v3927 = vshrl.u32 %v3611, 16
      %v3929 = vrot.slane %v3927, 4
      %v3930 = vshll.u32 %v3611, 16
      %v3932 = vrot.slane %v3930, 5
      %v3933 = vor.u32 %v3929, %v3932
      %v3934 = vrot.slane %v3933, 4
      %v3936 = vshll.u32 %v3208, 16
      %v3938 = vrot.slane %v3936, 5
      %v3939 = vsel %vm233, %v3934, %v3938
      %v3940 = vshrl.u32 %v3208, 16
      %v3942 = vrot.slane %v3940, 4
      %v3943 = vor.u32 %v3942, %v3938
      %v3944 = vrot.slane %v3943, 4
      %v3946 = vshll.u32 %v3209, 16
      %v3948 = vrot.slane %v3946, 5
      %v3949 = vsel %vm233, %v3944, %v3948
      %v3951 = vshrl.u32 %v3612, 16
      %v3953 = vrot.slane %v3951, 4
      %v3954 = vshll.u32 %v3612, 16
      %v3956 = vrot.slane %v3954, 5
      %v3957 = vor.u32 %v3953, %v3956
      %v3958 = vrot.slane %v3957, 4
      %v3960 = vshll.u32 %v3211, 16
      %v3962 = vrot.slane %v3960, 5
      %v3963 = vsel %vm233, %v3958, %v3962
      %v3964 = vshrl.u32 %v3211, 16
      %v3966 = vrot.slane %v3964, 4
      %v3967 = vor.u32 %v3966, %v3962
      %v3968 = vrot.slane %v3967, 4
      %v3970 = vshll.u32 %v3212, 16
      %v3972 = vrot.slane %v3970, 5
      %v3973 = vsel %vm233, %v3968, %v3972
      %v3975 = vshrl.u32 %v3613, 16
      %v3977 = vrot.slane %v3975, 4
      %v3978 = vshll.u32 %v3613, 16
      %v3980 = vrot.slane %v3978, 5
      %v3981 = vor.u32 %v3977, %v3980
      %v3982 = vrot.slane %v3981, 4
      %v3984 = vshll.u32 %v3214, 16
      %v3986 = vrot.slane %v3984, 5
      %v3987 = vsel %vm233, %v3982, %v3986
      %v3988 = vshrl.u32 %v3214, 16
      %v3990 = vrot.slane %v3988, 4
      %v3991 = vor.u32 %v3990, %v3986
      %v3992 = vrot.slane %v3991, 4
      %v3994 = vshll.u32 %v3215, 16
      %v3996 = vrot.slane %v3994, 5
      %v3997 = vsel %vm233, %v3992, %v3996
      %s3998 = scalar_lea.vmem %s172, 56
      %v3999 = vld [vmem:[%s3998] sm:$0xf]
      %v4000 = vunpack.c.l.b16 %v3627
      %v4001 = vunpack.c.l.b16 %v3637
      %v4002 = vunpack.c.l.b16 %v3651
      %v4003 = vunpack.c.l.b16 %v3661
      %v4004 = vunpack.c.l.b16 %v3675
      %v4005 = vunpack.c.l.b16 %v3685
      %v4006 = vunpack.c.l.b16 %v3699
      %v4007 = vunpack.c.l.b16 %v3709
      %v4008 = vunpack.c.l.b16 %v3723
      %v4009 = vunpack.c.l.b16 %v3733
      %v4010 = vunpack.c.l.b16 %v3747
      %v4011 = vunpack.c.l.b16 %v3757
      %v4012 = vunpack.c.l.b16 %v3771
      %v4013 = vunpack.c.l.b16 %v3781
      %v4014 = vunpack.c.l.b16 %v3795
      %v4015 = vunpack.c.l.b16 %v3805
      %v4016 = vunpack.c.l.b16 %v3819
      %v4017 = vunpack.c.l.b16 %v3829
      %v4018 = vunpack.c.l.b16 %v3843
      %v4019 = vunpack.c.l.b16 %v3853
      %v4020 = vunpack.c.l.b16 %v3867
      %v4021 = vunpack.c.l.b16 %v3877
      %v4022 = vunpack.c.l.b16 %v3891
      %v4023 = vunpack.c.l.b16 %v3901
      %v4024 = vunpack.c.l.b16 %v3915
      %v4025 = vunpack.c.l.b16 %v3925
      %v4026 = vunpack.c.l.b16 %v3939
      %v4027 = vunpack.c.l.b16 %v3949
      %v4028 = vunpack.c.l.b16 %v3963
      %v4029 = vunpack.c.l.b16 %v3973
      %v4030 = vunpack.c.l.b16 %v3987
      %v4031 = vunpack.c.l.b16 %v3997
      %v4032 = vpack.c.b16 %v4001, %v4000
      %v4033 = vpack.c.b16 %v4003, %v4002
      %v4034 = vpack.c.b16 %v4005, %v4004
      %v4035 = vpack.c.b16 %v4007, %v4006
      %v4036 = vpack.c.b16 %v4009, %v4008
      %v4037 = vpack.c.b16 %v4011, %v4010
      %v4038 = vpack.c.b16 %v4013, %v4012
      %v4039 = vpack.c.b16 %v4015, %v4014
      %v4040 = vpack.c.b16 %v4017, %v4016
      %v4041 = vpack.c.b16 %v4019, %v4018
      %v4042 = vpack.c.b16 %v4021, %v4020
      %v4043 = vpack.c.b16 %v4023, %v4022
      %v4044 = vpack.c.b16 %v4025, %v4024
      %v4045 = vpack.c.b16 %v4027, %v4026
      %v4046 = vpack.c.b16 %v4029, %v4028
      %v4047 = vpack.c.b16 %v4031, %v4030
      %v4049 = vsel %vm702, %v4032, 0
      %v4052 = vsel %vm702, %v4033, 0
      %v4055 = vsel %vm702, %v4034, 0
      %v4058 = vsel %vm702, %v4035, 0
      %v4061 = vsel %vm702, %v4036, 0
      %v4064 = vsel %vm702, %v4037, 0
      %v4067 = vsel %vm702, %v4038, 0
      %v4070 = vsel %vm702, %v4039, 0
      %v4073 = vsel %vm702, %v4040, 0
      %v4076 = vsel %vm702, %v4041, 0
      %v4079 = vsel %vm702, %v4042, 0
      %v4082 = vsel %vm702, %v4043, 0
      %v4085 = vsel %vm702, %v4044, 0
      %v4088 = vsel %vm702, %v4045, 0
      %v4091 = vsel %vm702, %v4046, 0
      %v4094 = vsel %vm702, %v4047, 0
      %v4097 = vsel %vm751, %v3999, 0
      %4099 = vmatpush.bf16.msra.mxu0 0
      %4100 = vmatpush.bf16.msra.mxu0 0
      %4101 = vmatpush.bf16.msra.mxu0 0
      %4102 = vmatpush.bf16.msra.mxu0 0
      %4103 = vmatpush.bf16.msra.mxu0 0
      %4104 = vmatpush.bf16.msra.mxu0 0
      %4105 = vmatpush.bf16.msra.mxu0 0
      %4106 = vmatpush.bf16.msra.mxu0 %v4097
      %4107 = vmatmul.bf16.gmra.mxu0 %v4049
      %v4108 = vpop.f32.mrf.mxu0
      %v4109 = vadd.f32 0.0, %v4108
      %v4110 = vpop.f32.mrf.mxu0
      %v4111 = vadd.f32 0.0, %v4110
      %4112 = vmatmul.bf16.gmra.mxu0 %v4052
      %v4113 = vpop.f32.mrf.mxu0
      %v4114 = vadd.f32 0.0, %v4113
      %v4115 = vpop.f32.mrf.mxu0
      %v4116 = vadd.f32 0.0, %v4115
      %4117 = vmatmul.bf16.gmra.mxu0 %v4055
      %v4118 = vpop.f32.mrf.mxu0
      %v4119 = vadd.f32 0.0, %v4118
      %v4120 = vpop.f32.mrf.mxu0
      %v4121 = vadd.f32 0.0, %v4120
      %4122 = vmatmul.bf16.gmra.mxu0 %v4058
      %v4123 = vpop.f32.mrf.mxu0
      %v4124 = vadd.f32 0.0, %v4123
      %v4125 = vpop.f32.mrf.mxu0
      %v4126 = vadd.f32 0.0, %v4125
      %4127 = vmatmul.bf16.gmra.mxu0 %v4061
      %v4128 = vpop.f32.mrf.mxu0
      %v4129 = vadd.f32 0.0, %v4128
      %v4130 = vpop.f32.mrf.mxu0
      %v4131 = vadd.f32 0.0, %v4130
      %4132 = vmatmul.bf16.gmra.mxu0 %v4064
      %v4133 = vpop.f32.mrf.mxu0
      %v4134 = vadd.f32 0.0, %v4133
      %v4135 = vpop.f32.mrf.mxu0
      %v4136 = vadd.f32 0.0, %v4135
      %4137 = vmatmul.bf16.gmra.mxu0 %v4067
      %v4138 = vpop.f32.mrf.mxu0
      %v4139 = vadd.f32 0.0, %v4138
      %v4140 = vpop.f32.mrf.mxu0
      %v4141 = vadd.f32 0.0, %v4140
      %4142 = vmatmul.bf16.gmra.mxu0 %v4070
      %v4143 = vpop.f32.mrf.mxu0
      %v4144 = vadd.f32 0.0, %v4143
      %v4145 = vpop.f32.mrf.mxu0
      %v4146 = vadd.f32 0.0, %v4145
      %4147 = vmatmul.bf16.gmra.mxu0 %v4073
      %v4148 = vpop.f32.mrf.mxu0
      %v4149 = vadd.f32 0.0, %v4148
      %v4150 = vpop.f32.mrf.mxu0
      %v4151 = vadd.f32 0.0, %v4150
      %4152 = vmatmul.bf16.gmra.mxu0 %v4076
      %v4153 = vpop.f32.mrf.mxu0
      %v4154 = vadd.f32 0.0, %v4153
      %v4155 = vpop.f32.mrf.mxu0
      %v4156 = vadd.f32 0.0, %v4155
      %4157 = vmatmul.bf16.gmra.mxu0 %v4079
      %v4158 = vpop.f32.mrf.mxu0
      %v4159 = vadd.f32 0.0, %v4158
      %v4160 = vpop.f32.mrf.mxu0
      %v4161 = vadd.f32 0.0, %v4160
      %4162 = vmatmul.bf16.gmra.mxu0 %v4082
      %v4163 = vpop.f32.mrf.mxu0
      %v4164 = vadd.f32 0.0, %v4163
      %v4165 = vpop.f32.mrf.mxu0
      %v4166 = vadd.f32 0.0, %v4165
      %4167 = vmatmul.bf16.gmra.mxu0 %v4085
      %v4168 = vpop.f32.mrf.mxu0
      %v4169 = vadd.f32 0.0, %v4168
      %v4170 = vpop.f32.mrf.mxu0
      %v4171 = vadd.f32 0.0, %v4170
      %4172 = vmatmul.bf16.gmra.mxu0 %v4088
      %v4173 = vpop.f32.mrf.mxu0
      %v4174 = vadd.f32 0.0, %v4173
      %v4175 = vpop.f32.mrf.mxu0
      %v4176 = vadd.f32 0.0, %v4175
      %4177 = vmatmul.bf16.gmra.mxu0 %v4091
      %v4178 = vpop.f32.mrf.mxu0
      %v4179 = vadd.f32 0.0, %v4178
      %v4180 = vpop.f32.mrf.mxu0
      %v4181 = vadd.f32 0.0, %v4180
      %4182 = vmatmul.bf16.gmra.mxu0 %v4094
      %v4183 = vpop.f32.mrf.mxu0
      %v4184 = vadd.f32 0.0, %v4183
      %v4185 = vpop.f32.mrf.mxu0
      %v4186 = vadd.f32 0.0, %v4185
      %4187 = vdwg.mxu0
      %v4188 = vadd.f32 %v3566, %v4109
      %v4189 = vadd.f32 %v3567, %v4111
      %v4190 = vadd.f32 %v3568, %v4114
      %v4191 = vadd.f32 %v3569, %v4116
      %v4192 = vadd.f32 %v3570, %v4119
      %v4193 = vadd.f32 %v3571, %v4121
      %v4194 = vadd.f32 %v3572, %v4124
      %v4195 = vadd.f32 %v3573, %v4126
      %v4196 = vadd.f32 %v3574, %v4129
      %v4197 = vadd.f32 %v3575, %v4131
      %v4198 = vadd.f32 %v3576, %v4134
      %v4199 = vadd.f32 %v3577, %v4136
      %v4200 = vadd.f32 %v3578, %v4139
      %v4201 = vadd.f32 %v3579, %v4141
      %v4202 = vadd.f32 %v3580, %v4144
      %v4203 = vadd.f32 %v3581, %v4146
      %v4204 = vadd.f32 %v3582, %v4149
      %v4205 = vadd.f32 %v3583, %v4151
      %v4206 = vadd.f32 %v3584, %v4154
      %v4207 = vadd.f32 %v3585, %v4156
      %v4208 = vadd.f32 %v3586, %v4159
      %v4209 = vadd.f32 %v3587, %v4161
      %v4210 = vadd.f32 %v3588, %v4164
      %v4211 = vadd.f32 %v3589, %v4166
      %v4212 = vadd.f32 %v3590, %v4169
      %v4213 = vadd.f32 %v3591, %v4171
      %v4214 = vadd.f32 %v3592, %v4174
      %v4215 = vadd.f32 %v3593, %v4176
      %v4216 = vadd.f32 %v3594, %v4179
      %v4217 = vadd.f32 %v3595, %v4181
      %v4218 = vadd.f32 %v3596, %v4184
      %v4219 = vadd.f32 %v3597, %v4186
      %s4220 = scalar_lea.vmem %s180, 256
      %4221 = vst.msk [vmem:[%s4220] sm:$0xff] %vm1972, %v4188
      %4222 = vst.msk [vmem:[%s4220 + $0x8] sm:$0xff] %vm1972, %v4189
      %4223 = vst.msk [vmem:[%s4220 + $0x10] sm:$0xff] %vm1972, %v4190
      %4224 = vst.msk [vmem:[%s4220 + $0x18] sm:$0xff] %vm1972, %v4191
      %4225 = vst.msk [vmem:[%s4220 + $0x20] sm:$0xff] %vm1972, %v4192
      %4226 = vst.msk [vmem:[%s4220 + $0x28] sm:$0xff] %vm1972, %v4193
      %4227 = vst.msk [vmem:[%s4220 + $0x30] sm:$0xff] %vm1972, %v4194
      %4228 = vst.msk [vmem:[%s4220 + $0x38] sm:$0xff] %vm1972, %v4195
      %4229 = vst.msk [vmem:[%s4220 + $0x40] sm:$0xff] %vm1972, %v4196
      %4230 = vst.msk [vmem:[%s4220 + $0x48] sm:$0xff] %vm1972, %v4197
      %4231 = vst.msk [vmem:[%s4220 + $0x50] sm:$0xff] %vm1972, %v4198
      %4232 = vst.msk [vmem:[%s4220 + $0x58] sm:$0xff] %vm1972, %v4199
      %4233 = vst.msk [vmem:[%s4220 + $0x60] sm:$0xff] %vm1972, %v4200
      %4234 = vst.msk [vmem:[%s4220 + $0x68] sm:$0xff] %vm1972, %v4201
      %4235 = vst.msk [vmem:[%s4220 + $0x70] sm:$0xff] %vm1972, %v4202
      %4236 = vst.msk [vmem:[%s4220 + $0x78] sm:$0xff] %vm1972, %v4203
      %4237 = vst.msk [vmem:[%s4220 + $0x80] sm:$0xff] %vm1972, %v4204
      %4238 = vst.msk [vmem:[%s4220 + $0x88] sm:$0xff] %vm1972, %v4205
      %4239 = vst.msk [vmem:[%s4220 + $0x90] sm:$0xff] %vm1972, %v4206
      %4240 = vst.msk [vmem:[%s4220 + $0x98] sm:$0xff] %vm1972, %v4207
      %4241 = vst.msk [vmem:[%s4220 + $0xa0] sm:$0xff] %vm1972, %v4208
      %4242 = vst.msk [vmem:[%s4220 + $0xa8] sm:$0xff] %vm1972, %v4209
      %4243 = vst.msk [vmem:[%s4220 + $0xb0] sm:$0xff] %vm1972, %v4210
      %4244 = vst.msk [vmem:[%s4220 + $0xb8] sm:$0xff] %vm1972, %v4211
      %4245 = vst.msk [vmem:[%s4220 + $0xc0] sm:$0xff] %vm1972, %v4212
      %4246 = vst.msk [vmem:[%s4220 + $0xc8] sm:$0xff] %vm1972, %v4213
      %4247 = vst.msk [vmem:[%s4220 + $0xd0] sm:$0xff] %vm1972, %v4214
      %4248 = vst.msk [vmem:[%s4220 + $0xd8] sm:$0xff] %vm1972, %v4215
      %4249 = vst.msk [vmem:[%s4220 + $0xe0] sm:$0xff] %vm1972, %v4216
      %4250 = vst.msk [vmem:[%s4220 + $0xe8] sm:$0xff] %vm1972, %v4217
      %4251 = vst.msk [vmem:[%s4220 + $0xf0] sm:$0xff] %vm1972, %v4218
      %4252 = vst.msk [vmem:[%s4220 + $0xf8] sm:$0xff] %vm1972, %v4219
      %v4253 = vsel %vm1972, %v4188, 0.0
      %v4254 = vsel %vm1972, %v4189, 0.0
      %v4255 = vadd.f32 %v4253, %v4254
      %v4256 = vsel %vm1972, %v4190, 0.0
      %v4257 = vadd.f32 %v4255, %v4256
      %v4258 = vsel %vm1972, %v4191, 0.0
      %v4259 = vadd.f32 %v4257, %v4258
      %v4260 = vsel %vm1972, %v4192, 0.0
      %v4261 = vadd.f32 %v4259, %v4260
      %v4262 = vsel %vm1972, %v4193, 0.0
      %v4263 = vadd.f32 %v4261, %v4262
      %v4264 = vsel %vm1972, %v4194, 0.0
      %v4265 = vadd.f32 %v4263, %v4264
      %v4266 = vsel %vm1972, %v4195, 0.0
      %v4267 = vadd.f32 %v4265, %v4266
      %v4268 = vsel %vm1972, %v4196, 0.0
      %v4269 = vadd.f32 %v4267, %v4268
      %v4270 = vsel %vm1972, %v4197, 0.0
      %v4271 = vadd.f32 %v4269, %v4270
      %v4272 = vsel %vm1972, %v4198, 0.0
      %v4273 = vadd.f32 %v4271, %v4272
      %v4274 = vsel %vm1972, %v4199, 0.0
      %v4275 = vadd.f32 %v4273, %v4274
      %v4276 = vsel %vm1972, %v4200, 0.0
      %v4277 = vadd.f32 %v4275, %v4276
      %v4278 = vsel %vm1972, %v4201, 0.0
      %v4279 = vadd.f32 %v4277, %v4278
      %v4280 = vsel %vm1972, %v4202, 0.0
      %v4281 = vadd.f32 %v4279, %v4280
      %v4282 = vsel %vm1972, %v4203, 0.0
      %v4283 = vadd.f32 %v4281, %v4282
      %v4284 = vsel %vm1972, %v4204, 0.0
      %v4285 = vadd.f32 %v4283, %v4284
      %v4286 = vsel %vm1972, %v4205, 0.0
      %v4287 = vadd.f32 %v4285, %v4286
      %v4288 = vsel %vm1972, %v4206, 0.0
      %v4289 = vadd.f32 %v4287, %v4288
      %v4290 = vsel %vm1972, %v4207, 0.0
      %v4291 = vadd.f32 %v4289, %v4290
      %v4292 = vsel %vm1972, %v4208, 0.0
      %v4293 = vadd.f32 %v4291, %v4292
      %v4294 = vsel %vm1972, %v4209, 0.0
      %v4295 = vadd.f32 %v4293, %v4294
      %v4296 = vsel %vm1972, %v4210, 0.0
      %v4297 = vadd.f32 %v4295, %v4296
      %v4298 = vsel %vm1972, %v4211, 0.0
      %v4299 = vadd.f32 %v4297, %v4298
      %v4300 = vsel %vm1972, %v4212, 0.0
      %v4301 = vadd.f32 %v4299, %v4300
      %v4302 = vsel %vm1972, %v4213, 0.0
      %v4303 = vadd.f32 %v4301, %v4302
      %v4304 = vsel %vm1972, %v4214, 0.0
      %v4305 = vadd.f32 %v4303, %v4304
      %v4306 = vsel %vm1972, %v4215, 0.0
      %v4307 = vadd.f32 %v4305, %v4306
      %v4308 = vsel %vm1972, %v4216, 0.0
      %v4309 = vadd.f32 %v4307, %v4308
      %v4310 = vsel %vm1972, %v4217, 0.0
      %v4311 = vadd.f32 %v4309, %v4310
      %v4312 = vsel %vm1972, %v4218, 0.0
      %v4313 = vadd.f32 %v4311, %v4312
      %v4314 = vsel %vm1972, %v4219, 0.0
      %v4315 = vadd.f32 %v4313, %v4314
      %v4316 = vrot.slane %v4315, 4
      %v4317 = vadd.f32 %v4315, %v4316
      %v4318 = vrot.slane %v4317, 2
      %v4319 = vadd.f32 %v4317, %v4318
      %v4320 = vrot.slane %v4319, 1
      %v4321 = vadd.f32 %v4319, %v4320
      %v4322 = vadd.f32 %v2074, %v4321
      %v4323 = vmul.f32 %v4188, %v4188
      %v4324 = vmul.f32 %v4189, %v4189
      %v4325 = vmul.f32 %v4190, %v4190
      %v4326 = vmul.f32 %v4191, %v4191
      %v4327 = vmul.f32 %v4192, %v4192
      %v4328 = vmul.f32 %v4193, %v4193
      %v4329 = vmul.f32 %v4194, %v4194
      %v4330 = vmul.f32 %v4195, %v4195
      %v4331 = vmul.f32 %v4196, %v4196
      %v4332 = vmul.f32 %v4197, %v4197
      %v4333 = vmul.f32 %v4198, %v4198
      %v4334 = vmul.f32 %v4199, %v4199
      %v4335 = vmul.f32 %v4200, %v4200
      %v4336 = vmul.f32 %v4201, %v4201
      %v4337 = vmul.f32 %v4202, %v4202
      %v4338 = vmul.f32 %v4203, %v4203
      %v4339 = vmul.f32 %v4204, %v4204
      %v4340 = vmul.f32 %v4205, %v4205
      %v4341 = vmul.f32 %v4206, %v4206
      %v4342 = vmul.f32 %v4207, %v4207
      %v4343 = vmul.f32 %v4208, %v4208
      %v4344 = vmul.f32 %v4209, %v4209
      %v4345 = vmul.f32 %v4210, %v4210
      %v4346 = vmul.f32 %v4211, %v4211
      %v4347 = vmul.f32 %v4212, %v4212
      %v4348 = vmul.f32 %v4213, %v4213
      %v4349 = vmul.f32 %v4214, %v4214
      %v4350 = vmul.f32 %v4215, %v4215
      %v4351 = vmul.f32 %v4216, %v4216
      %v4352 = vmul.f32 %v4217, %v4217
      %v4353 = vmul.f32 %v4218, %v4218
      %v4354 = vmul.f32 %v4219, %v4219
      %v4355 = vsel %vm1972, %v4323, 0.0
      %v4356 = vsel %vm1972, %v4324, 0.0
      %v4357 = vadd.f32 %v4355, %v4356
      %v4358 = vsel %vm1972, %v4325, 0.0
      %v4359 = vadd.f32 %v4357, %v4358
      %v4360 = vsel %vm1972, %v4326, 0.0
      %v4361 = vadd.f32 %v4359, %v4360
      %v4362 = vsel %vm1972, %v4327, 0.0
      %v4363 = vadd.f32 %v4361, %v4362
      %v4364 = vsel %vm1972, %v4328, 0.0
      %v4365 = vadd.f32 %v4363, %v4364
      %v4366 = vsel %vm1972, %v4329, 0.0
      %v4367 = vadd.f32 %v4365, %v4366
      %v4368 = vsel %vm1972, %v4330, 0.0
      %v4369 = vadd.f32 %v4367, %v4368
      %v4370 = vsel %vm1972, %v4331, 0.0
      %v4371 = vadd.f32 %v4369, %v4370
      %v4372 = vsel %vm1972, %v4332, 0.0
      %v4373 = vadd.f32 %v4371, %v4372
      %v4374 = vsel %vm1972, %v4333, 0.0
      %v4375 = vadd.f32 %v4373, %v4374
      %v4376 = vsel %vm1972, %v4334, 0.0
      %v4377 = vadd.f32 %v4375, %v4376
      %v4378 = vsel %vm1972, %v4335, 0.0
      %v4379 = vadd.f32 %v4377, %v4378
      %v4380 = vsel %vm1972, %v4336, 0.0
      %v4381 = vadd.f32 %v4379, %v4380
      %v4382 = vsel %vm1972, %v4337, 0.0
      %v4383 = vadd.f32 %v4381, %v4382
      %v4384 = vsel %vm1972, %v4338, 0.0
      %v4385 = vadd.f32 %v4383, %v4384
      %v4386 = vsel %vm1972, %v4339, 0.0
      %v4387 = vadd.f32 %v4385, %v4386
      %v4388 = vsel %vm1972, %v4340, 0.0
      %v4389 = vadd.f32 %v4387, %v4388
      %v4390 = vsel %vm1972, %v4341, 0.0
      %v4391 = vadd.f32 %v4389, %v4390
      %v4392 = vsel %vm1972, %v4342, 0.0
      %v4393 = vadd.f32 %v4391, %v4392
      %v4394 = vsel %vm1972, %v4343, 0.0
      %v4395 = vadd.f32 %v4393, %v4394
      %v4396 = vsel %vm1972, %v4344, 0.0
      %v4397 = vadd.f32 %v4395, %v4396
      %v4398 = vsel %vm1972, %v4345, 0.0
      %v4399 = vadd.f32 %v4397, %v4398
      %v4400 = vsel %vm1972, %v4346, 0.0
      %v4401 = vadd.f32 %v4399, %v4400
      %v4402 = vsel %vm1972, %v4347, 0.0
      %v4403 = vadd.f32 %v4401, %v4402
      %v4404 = vsel %vm1972, %v4348, 0.0
      %v4405 = vadd.f32 %v4403, %v4404
      %v4406 = vsel %vm1972, %v4349, 0.0
      %v4407 = vadd.f32 %v4405, %v4406
      %v4408 = vsel %vm1972, %v4350, 0.0
      %v4409 = vadd.f32 %v4407, %v4408
      %v4410 = vsel %vm1972, %v4351, 0.0
      %v4411 = vadd.f32 %v4409, %v4410
      %v4412 = vsel %vm1972, %v4352, 0.0
      %v4413 = vadd.f32 %v4411, %v4412
      %v4414 = vsel %vm1972, %v4353, 0.0
      %v4415 = vadd.f32 %v4413, %v4414
      %v4416 = vsel %vm1972, %v4354, 0.0
      %v4417 = vadd.f32 %v4415, %v4416
      %v4418 = vrot.slane %v4417, 4
      %v4419 = vadd.f32 %v4417, %v4418
      %v4420 = vrot.slane %v4419, 2
      %v4421 = vadd.f32 %v4419, %v4420
      %v4422 = vrot.slane %v4421, 1
      %v4423 = vadd.f32 %v4421, %v4422
      %v4424 = vadd.f32 %v2176, %v4423
      %s4425 = scalar_lea.vmem %s168, 24
      %v4426 = vld [vmem:[%s4425] sm:$0xf]
      %v4427 = vld [vmem:[%s4425 + $0x4] sm:$0xf]
      %v4428 = vld [vmem:[%s4425 + $0x8] sm:$0x1]
      %v4429 = vld [vmem:[%s4425 + $0xc] sm:$0xf]
      %v4430 = vld [vmem:[%s4425 + $0x10] sm:$0xf]
      %v4431 = vld [vmem:[%s4425 + $0x14] sm:$0x1]
      %v4432 = vld [vmem:[%s4425 + $0x18] sm:$0xf]
      %v4433 = vld [vmem:[%s4425 + $0x1c] sm:$0xf]
      %v4434 = vld [vmem:[%s4425 + $0x20] sm:$0x1]
      %v4435 = vld [vmem:[%s4425 + $0x24] sm:$0xf]
      %v4436 = vld [vmem:[%s4425 + $0x28] sm:$0xf]
      %v4437 = vld [vmem:[%s4425 + $0x2c] sm:$0x1]
      %v4438 = vld [vmem:[%s4425 + $0x30] sm:$0xf]
      %v4439 = vld [vmem:[%s4425 + $0x34] sm:$0xf]
      %v4440 = vld [vmem:[%s4425 + $0x38] sm:$0x1]
      %v4441 = vld [vmem:[%s4425 + $0x3c] sm:$0xf]
      %v4442 = vld [vmem:[%s4425 + $0x40] sm:$0xf]
      %v4443 = vld [vmem:[%s4425 + $0x44] sm:$0x1]
      %v4444 = vld [vmem:[%s4425 + $0x48] sm:$0xf]
      %v4445 = vld [vmem:[%s4425 + $0x4c] sm:$0xf]
      %v4446 = vld [vmem:[%s4425 + $0x50] sm:$0x1]
      %v4447 = vld [vmem:[%s4425 + $0x54] sm:$0xf]
      %v4448 = vld [vmem:[%s4425 + $0x58] sm:$0xf]
      %v4449 = vld [vmem:[%s4425 + $0x5c] sm:$0x1]
      %v4450 = vld [vmem:[%s4425 + $0x60] sm:$0xf]
      %v4451 = vld [vmem:[%s4425 + $0x64] sm:$0xf]
      %v4452 = vld [vmem:[%s4425 + $0x68] sm:$0x1]
      %v4453 = vld [vmem:[%s4425 + $0x6c] sm:$0xf]
      %v4454 = vld [vmem:[%s4425 + $0x70] sm:$0xf]
      %v4455 = vld [vmem:[%s4425 + $0x74] sm:$0x1]
      %v4456 = vld [vmem:[%s4425 + $0x78] sm:$0xf]
      %v4457 = vld [vmem:[%s4425 + $0x7c] sm:$0xf]
      %v4458 = vld [vmem:[%s4425 + $0x80] sm:$0x1]
      %v4459 = vld [vmem:[%s4425 + $0x84] sm:$0xf]
      %v4460 = vld [vmem:[%s4425 + $0x88] sm:$0xf]
      %v4461 = vld [vmem:[%s4425 + $0x8c] sm:$0x1]
      %v4462 = vld [vmem:[%s4425 + $0x90] sm:$0xf]
      %v4463 = vld [vmem:[%s4425 + $0x94] sm:$0xf]
      %v4464 = vld [vmem:[%s4425 + $0x98] sm:$0x1]
      %v4465 = vld [vmem:[%s4425 + $0x9c] sm:$0xf]
      %v4466 = vld [vmem:[%s4425 + $0xa0] sm:$0xf]
      %v4467 = vld [vmem:[%s4425 + $0xa4] sm:$0x1]
      %v4468 = vld [vmem:[%s4425 + $0xa8] sm:$0xf]
      %v4469 = vld [vmem:[%s4425 + $0xac] sm:$0xf]
      %v4470 = vld [vmem:[%s4425 + $0xb0] sm:$0x1]
      %v4471 = vld [vmem:[%s4425 + $0xb4] sm:$0xf]
      %v4472 = vld [vmem:[%s4425 + $0xb8] sm:$0xf]
      %v4473 = vld [vmem:[%s4425 + $0xbc] sm:$0x1]
      %v4475 = vshrl.u32 %v4426, 16
      %v4477 = vrot.slane %v4475, 4
      %v4478 = vshll.u32 %v4426, 16
      %v4480 = vrot.slane %v4478, 5
      %v4481 = vor.u32 %v4477, %v4480
      %v4482 = vrot.slane %v4481, 4
      %v4484 = vshll.u32 %v4427, 16
      %v4486 = vrot.slane %v4484, 5
      %v4487 = vsel %vm233, %v4482, %v4486
      %v4488 = vshrl.u32 %v4427, 16
      %v4490 = vrot.slane %v4488, 4
      %v4491 = vor.u32 %v4490, %v4486
      %v4492 = vrot.slane %v4491, 4
      %v4494 = vshll.u32 %v4428, 16
      %v4496 = vrot.slane %v4494, 5
      %v4497 = vsel %vm233, %v4492, %v4496
      %v4499 = vshrl.u32 %v4429, 16
      %v4501 = vrot.slane %v4499, 4
      %v4502 = vshll.u32 %v4429, 16
      %v4504 = vrot.slane %v4502, 5
      %v4505 = vor.u32 %v4501, %v4504
      %v4506 = vrot.slane %v4505, 4
      %v4508 = vshll.u32 %v4430, 16
      %v4510 = vrot.slane %v4508, 5
      %v4511 = vsel %vm233, %v4506, %v4510
      %v4512 = vshrl.u32 %v4430, 16
      %v4514 = vrot.slane %v4512, 4
      %v4515 = vor.u32 %v4514, %v4510
      %v4516 = vrot.slane %v4515, 4
      %v4518 = vshll.u32 %v4431, 16
      %v4520 = vrot.slane %v4518, 5
      %v4521 = vsel %vm233, %v4516, %v4520
      %v4523 = vshrl.u32 %v4432, 16
      %v4525 = vrot.slane %v4523, 4
      %v4526 = vshll.u32 %v4432, 16
      %v4528 = vrot.slane %v4526, 5
      %v4529 = vor.u32 %v4525, %v4528
      %v4530 = vrot.slane %v4529, 4
      %v4532 = vshll.u32 %v4433, 16
      %v4534 = vrot.slane %v4532, 5
      %v4535 = vsel %vm233, %v4530, %v4534
      %v4536 = vshrl.u32 %v4433, 16
      %v4538 = vrot.slane %v4536, 4
      %v4539 = vor.u32 %v4538, %v4534
      %v4540 = vrot.slane %v4539, 4
      %v4542 = vshll.u32 %v4434, 16
      %v4544 = vrot.slane %v4542, 5
      %v4545 = vsel %vm233, %v4540, %v4544
      %v4547 = vshrl.u32 %v4435, 16
      %v4549 = vrot.slane %v4547, 4
      %v4550 = vshll.u32 %v4435, 16
      %v4552 = vrot.slane %v4550, 5
      %v4553 = vor.u32 %v4549, %v4552
      %v4554 = vrot.slane %v4553, 4
      %v4556 = vshll.u32 %v4436, 16
      %v4558 = vrot.slane %v4556, 5
      %v4559 = vsel %vm233, %v4554, %v4558
      %v4560 = vshrl.u32 %v4436, 16
      %v4562 = vrot.slane %v4560, 4
      %v4563 = vor.u32 %v4562, %v4558
      %v4564 = vrot.slane %v4563, 4
      %v4566 = vshll.u32 %v4437, 16
      %v4568 = vrot.slane %v4566, 5
      %v4569 = vsel %vm233, %v4564, %v4568
      %v4571 = vshrl.u32 %v4438, 16
      %v4573 = vrot.slane %v4571, 4
      %v4574 = vshll.u32 %v4438, 16
      %v4576 = vrot.slane %v4574, 5
      %v4577 = vor.u32 %v4573, %v4576
      %v4578 = vrot.slane %v4577, 4
      %v4580 = vshll.u32 %v4439, 16
      %v4582 = vrot.slane %v4580, 5
      %v4583 = vsel %vm233, %v4578, %v4582
      %v4584 = vshrl.u32 %v4439, 16
      %v4586 = vrot.slane %v4584, 4
      %v4587 = vor.u32 %v4586, %v4582
      %v4588 = vrot.slane %v4587, 4
      %v4590 = vshll.u32 %v4440, 16
      %v4592 = vrot.slane %v4590, 5
      %v4593 = vsel %vm233, %v4588, %v4592
      %v4595 = vshrl.u32 %v4441, 16
      %v4597 = vrot.slane %v4595, 4
      %v4598 = vshll.u32 %v4441, 16
      %v4600 = vrot.slane %v4598, 5
      %v4601 = vor.u32 %v4597, %v4600
      %v4602 = vrot.slane %v4601, 4
      %v4604 = vshll.u32 %v4442, 16
      %v4606 = vrot.slane %v4604, 5
      %v4607 = vsel %vm233, %v4602, %v4606
      %v4608 = vshrl.u32 %v4442, 16
      %v4610 = vrot.slane %v4608, 4
      %v4611 = vor.u32 %v4610, %v4606
      %v4612 = vrot.slane %v4611, 4
      %v4614 = vshll.u32 %v4443, 16
      %v4616 = vrot.slane %v4614, 5
      %v4617 = vsel %vm233, %v4612, %v4616
      %v4619 = vshrl.u32 %v4444, 16
      %v4621 = vrot.slane %v4619, 4
      %v4622 = vshll.u32 %v4444, 16
      %v4624 = vrot.slane %v4622, 5
      %v4625 = vor.u32 %v4621, %v4624
      %v4626 = vrot.slane %v4625, 4
      %v4628 = vshll.u32 %v4445, 16
      %v4630 = vrot.slane %v4628, 5
      %v4631 = vsel %vm233, %v4626, %v4630
      %v4632 = vshrl.u32 %v4445, 16
      %v4634 = vrot.slane %v4632, 4
      %v4635 = vor.u32 %v4634, %v4630
      %v4636 = vrot.slane %v4635, 4
      %v4638 = vshll.u32 %v4446, 16
      %v4640 = vrot.slane %v4638, 5
      %v4641 = vsel %vm233, %v4636, %v4640
      %v4643 = vshrl.u32 %v4447, 16
      %v4645 = vrot.slane %v4643, 4
      %v4646 = vshll.u32 %v4447, 16
      %v4648 = vrot.slane %v4646, 5
      %v4649 = vor.u32 %v4645, %v4648
      %v4650 = vrot.slane %v4649, 4
      %v4652 = vshll.u32 %v4448, 16
      %v4654 = vrot.slane %v4652, 5
      %v4655 = vsel %vm233, %v4650, %v4654
      %v4656 = vshrl.u32 %v4448, 16
      %v4658 = vrot.slane %v4656, 4
      %v4659 = vor.u32 %v4658, %v4654
      %v4660 = vrot.slane %v4659, 4
      %v4662 = vshll.u32 %v4449, 16
      %v4664 = vrot.slane %v4662, 5
      %v4665 = vsel %vm233, %v4660, %v4664
      %v4667 = vshrl.u32 %v4450, 16
      %v4669 = vrot.slane %v4667, 4
      %v4670 = vshll.u32 %v4450, 16
      %v4672 = vrot.slane %v4670, 5
      %v4673 = vor.u32 %v4669, %v4672
      %v4674 = vrot.slane %v4673, 4
      %v4676 = vshll.u32 %v4451, 16
      %v4678 = vrot.slane %v4676, 5
      %v4679 = vsel %vm233, %v4674, %v4678
      %v4680 = vshrl.u32 %v4451, 16
      %v4682 = vrot.slane %v4680, 4
      %v4683 = vor.u32 %v4682, %v4678
      %v4684 = vrot.slane %v4683, 4
      %v4686 = vshll.u32 %v4452, 16
      %v4688 = vrot.slane %v4686, 5
      %v4689 = vsel %vm233, %v4684, %v4688
      %v4691 = vshrl.u32 %v4453, 16
      %v4693 = vrot.slane %v4691, 4
      %v4694 = vshll.u32 %v4453, 16
      %v4696 = vrot.slane %v4694, 5
      %v4697 = vor.u32 %v4693, %v4696
      %v4698 = vrot.slane %v4697, 4
      %v4700 = vshll.u32 %v4454, 16
      %v4702 = vrot.slane %v4700, 5
      %v4703 = vsel %vm233, %v4698, %v4702
      %v4704 = vshrl.u32 %v4454, 16
      %v4706 = vrot.slane %v4704, 4
      %v4707 = vor.u32 %v4706, %v4702
      %v4708 = vrot.slane %v4707, 4
      %v4710 = vshll.u32 %v4455, 16
      %v4712 = vrot.slane %v4710, 5
      %v4713 = vsel %vm233, %v4708, %v4712
      %v4715 = vshrl.u32 %v4456, 16
      %v4717 = vrot.slane %v4715, 4
      %v4718 = vshll.u32 %v4456, 16
      %v4720 = vrot.slane %v4718, 5
      %v4721 = vor.u32 %v4717, %v4720
      %v4722 = vrot.slane %v4721, 4
      %v4724 = vshll.u32 %v4457, 16
      %v4726 = vrot.slane %v4724, 5
      %v4727 = vsel %vm233, %v4722, %v4726
      %v4728 = vshrl.u32 %v4457, 16
      %v4730 = vrot.slane %v4728, 4
      %v4731 = vor.u32 %v4730, %v4726
      %v4732 = vrot.slane %v4731, 4
      %v4734 = vshll.u32 %v4458, 16
      %v4736 = vrot.slane %v4734, 5
      %v4737 = vsel %vm233, %v4732, %v4736
      %v4739 = vshrl.u32 %v4459, 16
      %v4741 = vrot.slane %v4739, 4
      %v4742 = vshll.u32 %v4459, 16
      %v4744 = vrot.slane %v4742, 5
      %v4745 = vor.u32 %v4741, %v4744
      %v4746 = vrot.slane %v4745, 4
      %v4748 = vshll.u32 %v4460, 16
      %v4750 = vrot.slane %v4748, 5
      %v4751 = vsel %vm233, %v4746, %v4750
      %v4752 = vshrl.u32 %v4460, 16
      %v4754 = vrot.slane %v4752, 4
      %v4755 = vor.u32 %v4754, %v4750
      %v4756 = vrot.slane %v4755, 4
      %v4758 = vshll.u32 %v4461, 16
      %v4760 = vrot.slane %v4758, 5
      %v4761 = vsel %vm233, %v4756, %v4760
      %v4763 = vshrl.u32 %v4462, 16
      %v4765 = vrot.slane %v4763, 4
      %v4766 = vshll.u32 %v4462, 16
      %v4768 = vrot.slane %v4766, 5
      %v4769 = vor.u32 %v4765, %v4768
      %v4770 = vrot.slane %v4769, 4
      %v4772 = vshll.u32 %v4463, 16
      %v4774 = vrot.slane %v4772, 5
      %v4775 = vsel %vm233, %v4770, %v4774
      %v4776 = vshrl.u32 %v4463, 16
      %v4778 = vrot.slane %v4776, 4
      %v4779 = vor.u32 %v4778, %v4774
      %v4780 = vrot.slane %v4779, 4
      %v4782 = vshll.u32 %v4464, 16
      %v4784 = vrot.slane %v4782, 5
      %v4785 = vsel %vm233, %v4780, %v4784
      %v4787 = vshrl.u32 %v4465, 16
      %v4789 = vrot.slane %v4787, 4
      %v4790 = vshll.u32 %v4465, 16
      %v4792 = vrot.slane %v4790, 5
      %v4793 = vor.u32 %v4789, %v4792
      %v4794 = vrot.slane %v4793, 4
      %v4796 = vshll.u32 %v4466, 16
      %v4798 = vrot.slane %v4796, 5
      %v4799 = vsel %vm233, %v4794, %v4798
      %v4800 = vshrl.u32 %v4466, 16
      %v4802 = vrot.slane %v4800, 4
      %v4803 = vor.u32 %v4802, %v4798
      %v4804 = vrot.slane %v4803, 4
      %v4806 = vshll.u32 %v4467, 16
      %v4808 = vrot.slane %v4806, 5
      %v4809 = vsel %vm233, %v4804, %v4808
      %v4811 = vshrl.u32 %v4468, 16
      %v4813 = vrot.slane %v4811, 4
      %v4814 = vshll.u32 %v4468, 16
      %v4816 = vrot.slane %v4814, 5
      %v4817 = vor.u32 %v4813, %v4816
      %v4818 = vrot.slane %v4817, 4
      %v4820 = vshll.u32 %v4469, 16
      %v4822 = vrot.slane %v4820, 5
      %v4823 = vsel %vm233, %v4818, %v4822
      %v4824 = vshrl.u32 %v4469, 16
      %v4826 = vrot.slane %v4824, 4
      %v4827 = vor.u32 %v4826, %v4822
      %v4828 = vrot.slane %v4827, 4
      %v4830 = vshll.u32 %v4470, 16
      %v4832 = vrot.slane %v4830, 5
      %v4833 = vsel %vm233, %v4828, %v4832
      %v4835 = vshrl.u32 %v4471, 16
      %v4837 = vrot.slane %v4835, 4
      %v4838 = vshll.u32 %v4471, 16
      %v4840 = vrot.slane %v4838, 5
      %v4841 = vor.u32 %v4837, %v4840
      %v4842 = vrot.slane %v4841, 4
      %v4844 = vshll.u32 %v4472, 16
      %v4846 = vrot.slane %v4844, 5
      %v4847 = vsel %vm233, %v4842, %v4846
      %v4848 = vshrl.u32 %v4472, 16
      %v4850 = vrot.slane %v4848, 4
      %v4851 = vor.u32 %v4850, %v4846
      %v4852 = vrot.slane %v4851, 4
      %v4854 = vshll.u32 %v4473, 16
      %v4856 = vrot.slane %v4854, 5
      %v4857 = vsel %vm233, %v4852, %v4856
      %s4858 = scalar_lea.vmem %s172, 4
      %v4859 = vld [vmem:[%s4858] sm:$0xf]
      %s4860 = scalar_lea.vmem %s172, 12
      %v4861 = vld [vmem:[%s4860] sm:$0xf]
      %v4894 = vunpack.c.l.b16 %v4426
      %v4895 = vunpack.c.l.b16 %v4427
      %v4896 = vunpack.c.l.b16 %v4429
      %v4897 = vunpack.c.l.b16 %v4430
      %v4898 = vunpack.c.l.b16 %v4432
      %v4899 = vunpack.c.l.b16 %v4433
      %v4900 = vunpack.c.l.b16 %v4435
      %v4901 = vunpack.c.l.b16 %v4436
      %v4902 = vunpack.c.l.b16 %v4438
      %v4903 = vunpack.c.l.b16 %v4439
      %v4904 = vunpack.c.l.b16 %v4441
      %v4905 = vunpack.c.l.b16 %v4442
      %v4906 = vunpack.c.l.b16 %v4444
      %v4907 = vunpack.c.l.b16 %v4445
      %v4908 = vunpack.c.l.b16 %v4447
      %v4909 = vunpack.c.l.b16 %v4448
      %v4910 = vunpack.c.l.b16 %v4450
      %v4911 = vunpack.c.l.b16 %v4451
      %v4912 = vunpack.c.l.b16 %v4453
      %v4913 = vunpack.c.l.b16 %v4454
      %v4914 = vunpack.c.l.b16 %v4456
      %v4915 = vunpack.c.l.b16 %v4457
      %v4916 = vunpack.c.l.b16 %v4459
      %v4917 = vunpack.c.l.b16 %v4460
      %v4918 = vunpack.c.l.b16 %v4462
      %v4919 = vunpack.c.l.b16 %v4463
      %v4920 = vunpack.c.l.b16 %v4465
      %v4921 = vunpack.c.l.b16 %v4466
      %v4922 = vunpack.c.l.b16 %v4468
      %v4923 = vunpack.c.l.b16 %v4469
      %v4924 = vunpack.c.l.b16 %v4471
      %v4925 = vunpack.c.l.b16 %v4472
      %v4926 = vpack.c.b16 %v4895, %v4894
      %v4927 = vpack.c.b16 %v4897, %v4896
      %v4928 = vpack.c.b16 %v4899, %v4898
      %v4929 = vpack.c.b16 %v4901, %v4900
      %v4930 = vpack.c.b16 %v4903, %v4902
      %v4931 = vpack.c.b16 %v4905, %v4904
      %v4932 = vpack.c.b16 %v4907, %v4906
      %v4933 = vpack.c.b16 %v4909, %v4908
      %v4934 = vpack.c.b16 %v4911, %v4910
      %v4935 = vpack.c.b16 %v4913, %v4912
      %v4936 = vpack.c.b16 %v4915, %v4914
      %v4937 = vpack.c.b16 %v4917, %v4916
      %v4938 = vpack.c.b16 %v4919, %v4918
      %v4939 = vpack.c.b16 %v4921, %v4920
      %v4940 = vpack.c.b16 %v4923, %v4922
      %v4941 = vpack.c.b16 %v4925, %v4924
      %v4943 = vsel %vm702, %v4926, 0
      %v4946 = vsel %vm702, %v4927, 0
      %v4949 = vsel %vm702, %v4928, 0
      %v4952 = vsel %vm702, %v4929, 0
      %v4955 = vsel %vm702, %v4930, 0
      %v4958 = vsel %vm702, %v4931, 0
      %v4961 = vsel %vm702, %v4932, 0
      %v4964 = vsel %vm702, %v4933, 0
      %v4967 = vsel %vm702, %v4934, 0
      %v4970 = vsel %vm702, %v4935, 0
      %v4973 = vsel %vm702, %v4936, 0
      %v4976 = vsel %vm702, %v4937, 0
      %v4979 = vsel %vm702, %v4938, 0
      %v4982 = vsel %vm702, %v4939, 0
      %v4985 = vsel %vm702, %v4940, 0
      %v4988 = vsel %vm702, %v4941, 0
      %v4991 = vsel %vm751, %v4861, 0
      %4993 = vmatpush.bf16.msra.mxu0 0
      %4994 = vmatpush.bf16.msra.mxu0 0
      %4995 = vmatpush.bf16.msra.mxu0 0
      %4996 = vmatpush.bf16.msra.mxu0 0
      %4997 = vmatpush.bf16.msra.mxu0 0
      %4998 = vmatpush.bf16.msra.mxu0 0
      %4999 = vmatpush.bf16.msra.mxu0 0
      %5000 = vmatpush.bf16.msra.mxu0 %v4991
      %5001 = vmatmul.bf16.gmra.mxu0 %v4943
      %v5002 = vpop.f32.mrf.mxu0
      %v5003 = vadd.f32 0.0, %v5002
      %v5004 = vpop.f32.mrf.mxu0
      %v5005 = vadd.f32 0.0, %v5004
      %5006 = vmatmul.bf16.gmra.mxu0 %v4946
      %v5007 = vpop.f32.mrf.mxu0
      %v5008 = vadd.f32 0.0, %v5007
      %v5009 = vpop.f32.mrf.mxu0
      %v5010 = vadd.f32 0.0, %v5009
      %5011 = vmatmul.bf16.gmra.mxu0 %v4949
      %v5012 = vpop.f32.mrf.mxu0
      %v5013 = vadd.f32 0.0, %v5012
      %v5014 = vpop.f32.mrf.mxu0
      %v5015 = vadd.f32 0.0, %v5014
      %5016 = vmatmul.bf16.gmra.mxu0 %v4952
      %v5017 = vpop.f32.mrf.mxu0
      %v5018 = vadd.f32 0.0, %v5017
      %v5019 = vpop.f32.mrf.mxu0
      %v5020 = vadd.f32 0.0, %v5019
      %5021 = vmatmul.bf16.gmra.mxu0 %v4955
      %v5022 = vpop.f32.mrf.mxu0
      %v5023 = vadd.f32 0.0, %v5022
      %v5024 = vpop.f32.mrf.mxu0
      %v5025 = vadd.f32 0.0, %v5024
      %5026 = vmatmul.bf16.gmra.mxu0 %v4958
      %v5027 = vpop.f32.mrf.mxu0
      %v5028 = vadd.f32 0.0, %v5027
      %v5029 = vpop.f32.mrf.mxu0
      %v5030 = vadd.f32 0.0, %v5029
      %5031 = vmatmul.bf16.gmra.mxu0 %v4961
      %v5032 = vpop.f32.mrf.mxu0
      %v5033 = vadd.f32 0.0, %v5032
      %v5034 = vpop.f32.mrf.mxu0
      %v5035 = vadd.f32 0.0, %v5034
      %5036 = vmatmul.bf16.gmra.mxu0 %v4964
      %v5037 = vpop.f32.mrf.mxu0
      %v5038 = vadd.f32 0.0, %v5037
      %v5039 = vpop.f32.mrf.mxu0
      %v5040 = vadd.f32 0.0, %v5039
      %5041 = vmatmul.bf16.gmra.mxu0 %v4967
      %v5042 = vpop.f32.mrf.mxu0
      %v5043 = vadd.f32 0.0, %v5042
      %v5044 = vpop.f32.mrf.mxu0
      %v5045 = vadd.f32 0.0, %v5044
      %5046 = vmatmul.bf16.gmra.mxu0 %v4970
      %v5047 = vpop.f32.mrf.mxu0
      %v5048 = vadd.f32 0.0, %v5047
      %v5049 = vpop.f32.mrf.mxu0
      %v5050 = vadd.f32 0.0, %v5049
      %5051 = vmatmul.bf16.gmra.mxu0 %v4973
      %v5052 = vpop.f32.mrf.mxu0
      %v5053 = vadd.f32 0.0, %v5052
      %v5054 = vpop.f32.mrf.mxu0
      %v5055 = vadd.f32 0.0, %v5054
      %5056 = vmatmul.bf16.gmra.mxu0 %v4976
      %v5057 = vpop.f32.mrf.mxu0
      %v5058 = vadd.f32 0.0, %v5057
      %v5059 = vpop.f32.mrf.mxu0
      %v5060 = vadd.f32 0.0, %v5059
      %5061 = vmatmul.bf16.gmra.mxu0 %v4979
      %v5062 = vpop.f32.mrf.mxu0
      %v5063 = vadd.f32 0.0, %v5062
      %v5064 = vpop.f32.mrf.mxu0
      %v5065 = vadd.f32 0.0, %v5064
      %5066 = vmatmul.bf16.gmra.mxu0 %v4982
      %v5067 = vpop.f32.mrf.mxu0
      %v5068 = vadd.f32 0.0, %v5067
      %v5069 = vpop.f32.mrf.mxu0
      %v5070 = vadd.f32 0.0, %v5069
      %5071 = vmatmul.bf16.gmra.mxu0 %v4985
      %v5072 = vpop.f32.mrf.mxu0
      %v5073 = vadd.f32 0.0, %v5072
      %v5074 = vpop.f32.mrf.mxu0
      %v5075 = vadd.f32 0.0, %v5074
      %5076 = vmatmul.bf16.gmra.mxu0 %v4988
      %v5077 = vpop.f32.mrf.mxu0
      %v5078 = vadd.f32 0.0, %v5077
      %v5079 = vpop.f32.mrf.mxu0
      %v5080 = vadd.f32 0.0, %v5079
      %5081 = vdwg.mxu0
      %v5082 = vunpack.c.l.b16 %v4487
      %v5083 = vunpack.c.l.b16 %v4497
      %v5084 = vunpack.c.l.b16 %v4511
      %v5085 = vunpack.c.l.b16 %v4521
      %v5086 = vunpack.c.l.b16 %v4535
      %v5087 = vunpack.c.l.b16 %v4545
      %v5088 = vunpack.c.l.b16 %v4559
      %v5089 = vunpack.c.l.b16 %v4569
      %v5090 = vunpack.c.l.b16 %v4583
      %v5091 = vunpack.c.l.b16 %v4593
      %v5092 = vunpack.c.l.b16 %v4607
      %v5093 = vunpack.c.l.b16 %v4617
      %v5094 = vunpack.c.l.b16 %v4631
      %v5095 = vunpack.c.l.b16 %v4641
      %v5096 = vunpack.c.l.b16 %v4655
      %v5097 = vunpack.c.l.b16 %v4665
      %v5098 = vunpack.c.l.b16 %v4679
      %v5099 = vunpack.c.l.b16 %v4689
      %v5100 = vunpack.c.l.b16 %v4703
      %v5101 = vunpack.c.l.b16 %v4713
      %v5102 = vunpack.c.l.b16 %v4727
      %v5103 = vunpack.c.l.b16 %v4737
      %v5104 = vunpack.c.l.b16 %v4751
      %v5105 = vunpack.c.l.b16 %v4761
      %v5106 = vunpack.c.l.b16 %v4775
      %v5107 = vunpack.c.l.b16 %v4785
      %v5108 = vunpack.c.l.b16 %v4799
      %v5109 = vunpack.c.l.b16 %v4809
      %v5110 = vunpack.c.l.b16 %v4823
      %v5111 = vunpack.c.l.b16 %v4833
      %v5112 = vunpack.c.l.b16 %v4847
      %v5113 = vunpack.c.l.b16 %v4857
      %v5114 = vpack.c.b16 %v5083, %v5082
      %v5115 = vpack.c.b16 %v5085, %v5084
      %v5116 = vpack.c.b16 %v5087, %v5086
      %v5117 = vpack.c.b16 %v5089, %v5088
      %v5118 = vpack.c.b16 %v5091, %v5090
      %v5119 = vpack.c.b16 %v5093, %v5092
      %v5120 = vpack.c.b16 %v5095, %v5094
      %v5121 = vpack.c.b16 %v5097, %v5096
      %v5122 = vpack.c.b16 %v5099, %v5098
      %v5123 = vpack.c.b16 %v5101, %v5100
      %v5124 = vpack.c.b16 %v5103, %v5102
      %v5125 = vpack.c.b16 %v5105, %v5104
      %v5126 = vpack.c.b16 %v5107, %v5106
      %v5127 = vpack.c.b16 %v5109, %v5108
      %v5128 = vpack.c.b16 %v5111, %v5110
      %v5129 = vpack.c.b16 %v5113, %v5112
      %v5131 = vsel %vm702, %v5114, 0
      %v5134 = vsel %vm702, %v5115, 0
      %v5137 = vsel %vm702, %v5116, 0
      %v5140 = vsel %vm702, %v5117, 0
      %v5143 = vsel %vm702, %v5118, 0
      %v5146 = vsel %vm702, %v5119, 0
      %v5149 = vsel %vm702, %v5120, 0
      %v5152 = vsel %vm702, %v5121, 0
      %v5155 = vsel %vm702, %v5122, 0
      %v5158 = vsel %vm702, %v5123, 0
      %v5161 = vsel %vm702, %v5124, 0
      %v5164 = vsel %vm702, %v5125, 0
      %v5167 = vsel %vm702, %v5126, 0
      %v5170 = vsel %vm702, %v5127, 0
      %v5173 = vsel %vm702, %v5128, 0
      %v5176 = vsel %vm702, %v5129, 0
      %v5179 = vsel %vm751, %v4859, 0
      %5181 = vmatpush.bf16.msra.mxu0 0
      %5182 = vmatpush.bf16.msra.mxu0 0
      %5183 = vmatpush.bf16.msra.mxu0 0
      %5184 = vmatpush.bf16.msra.mxu0 0
      %5185 = vmatpush.bf16.msra.mxu0 0
      %5186 = vmatpush.bf16.msra.mxu0 0
      %5187 = vmatpush.bf16.msra.mxu0 0
      %5188 = vmatpush.bf16.msra.mxu0 %v5179
      %5189 = vmatmul.bf16.gmra.mxu0 %v5131
      %v5190 = vpop.f32.mrf.mxu0
      %v5191 = vadd.f32 %v5003, %v5190
      %v5192 = vpop.f32.mrf.mxu0
      %v5193 = vadd.f32 %v5005, %v5192
      %5194 = vmatmul.bf16.gmra.mxu0 %v5134
      %v5195 = vpop.f32.mrf.mxu0
      %v5196 = vadd.f32 %v5008, %v5195
      %v5197 = vpop.f32.mrf.mxu0
      %v5198 = vadd.f32 %v5010, %v5197
      %5199 = vmatmul.bf16.gmra.mxu0 %v5137
      %v5200 = vpop.f32.mrf.mxu0
      %v5201 = vadd.f32 %v5013, %v5200
      %v5202 = vpop.f32.mrf.mxu0
      %v5203 = vadd.f32 %v5015, %v5202
      %5204 = vmatmul.bf16.gmra.mxu0 %v5140
      %v5205 = vpop.f32.mrf.mxu0
      %v5206 = vadd.f32 %v5018, %v5205
      %v5207 = vpop.f32.mrf.mxu0
      %v5208 = vadd.f32 %v5020, %v5207
      %5209 = vmatmul.bf16.gmra.mxu0 %v5143
      %v5210 = vpop.f32.mrf.mxu0
      %v5211 = vadd.f32 %v5023, %v5210
      %v5212 = vpop.f32.mrf.mxu0
      %v5213 = vadd.f32 %v5025, %v5212
      %5214 = vmatmul.bf16.gmra.mxu0 %v5146
      %v5215 = vpop.f32.mrf.mxu0
      %v5216 = vadd.f32 %v5028, %v5215
      %v5217 = vpop.f32.mrf.mxu0
      %v5218 = vadd.f32 %v5030, %v5217
      %5219 = vmatmul.bf16.gmra.mxu0 %v5149
      %v5220 = vpop.f32.mrf.mxu0
      %v5221 = vadd.f32 %v5033, %v5220
      %v5222 = vpop.f32.mrf.mxu0
      %v5223 = vadd.f32 %v5035, %v5222
      %5224 = vmatmul.bf16.gmra.mxu0 %v5152
      %v5225 = vpop.f32.mrf.mxu0
      %v5226 = vadd.f32 %v5038, %v5225
      %v5227 = vpop.f32.mrf.mxu0
      %v5228 = vadd.f32 %v5040, %v5227
      %5229 = vmatmul.bf16.gmra.mxu0 %v5155
      %v5230 = vpop.f32.mrf.mxu0
      %v5231 = vadd.f32 %v5043, %v5230
      %v5232 = vpop.f32.mrf.mxu0
      %v5233 = vadd.f32 %v5045, %v5232
      %5234 = vmatmul.bf16.gmra.mxu0 %v5158
      %v5235 = vpop.f32.mrf.mxu0
      %v5236 = vadd.f32 %v5048, %v5235
      %v5237 = vpop.f32.mrf.mxu0
      %v5238 = vadd.f32 %v5050, %v5237
      %5239 = vmatmul.bf16.gmra.mxu0 %v5161
      %v5240 = vpop.f32.mrf.mxu0
      %v5241 = vadd.f32 %v5053, %v5240
      %v5242 = vpop.f32.mrf.mxu0
      %v5243 = vadd.f32 %v5055, %v5242
      %5244 = vmatmul.bf16.gmra.mxu0 %v5164
      %v5245 = vpop.f32.mrf.mxu0
      %v5246 = vadd.f32 %v5058, %v5245
      %v5247 = vpop.f32.mrf.mxu0
      %v5248 = vadd.f32 %v5060, %v5247
      %5249 = vmatmul.bf16.gmra.mxu0 %v5167
      %v5250 = vpop.f32.mrf.mxu0
      %v5251 = vadd.f32 %v5063, %v5250
      %v5252 = vpop.f32.mrf.mxu0
      %v5253 = vadd.f32 %v5065, %v5252
      %5254 = vmatmul.bf16.gmra.mxu0 %v5170
      %v5255 = vpop.f32.mrf.mxu0
      %v5256 = vadd.f32 %v5068, %v5255
      %v5257 = vpop.f32.mrf.mxu0
      %v5258 = vadd.f32 %v5070, %v5257
      %5259 = vmatmul.bf16.gmra.mxu0 %v5173
      %v5260 = vpop.f32.mrf.mxu0
      %v5261 = vadd.f32 %v5073, %v5260
      %v5262 = vpop.f32.mrf.mxu0
      %v5263 = vadd.f32 %v5075, %v5262
      %5264 = vmatmul.bf16.gmra.mxu0 %v5176
      %v5265 = vpop.f32.mrf.mxu0
      %v5266 = vadd.f32 %v5078, %v5265
      %v5267 = vpop.f32.mrf.mxu0
      %v5268 = vadd.f32 %v5080, %v5267
      %5269 = vdwg.mxu0
      %v5270 = vld [vmem:[%s182] sm:$0xf]
      %v5271 = vld [vmem:[%s182 + $0x4] sm:$0xf]
      %v5272 = vld [vmem:[%s182 + $0x8] sm:$0x1]
      %v5273 = vld [vmem:[%s182 + $0xc] sm:$0xf]
      %v5274 = vld [vmem:[%s182 + $0x10] sm:$0xf]
      %v5275 = vld [vmem:[%s182 + $0x14] sm:$0x1]
      %v5276 = vld [vmem:[%s182 + $0x18] sm:$0xf]
      %v5277 = vld [vmem:[%s182 + $0x1c] sm:$0xf]
      %v5278 = vld [vmem:[%s182 + $0x20] sm:$0x1]
      %v5279 = vld [vmem:[%s182 + $0x24] sm:$0xf]
      %v5280 = vld [vmem:[%s182 + $0x28] sm:$0xf]
      %v5281 = vld [vmem:[%s182 + $0x2c] sm:$0x1]
      %v5282 = vld [vmem:[%s182 + $0x30] sm:$0xf]
      %v5283 = vld [vmem:[%s182 + $0x34] sm:$0xf]
      %v5284 = vld [vmem:[%s182 + $0x38] sm:$0x1]
      %v5285 = vld [vmem:[%s182 + $0x3c] sm:$0xf]
      %v5286 = vld [vmem:[%s182 + $0x40] sm:$0xf]
      %v5287 = vld [vmem:[%s182 + $0x44] sm:$0x1]
      %v5288 = vld [vmem:[%s182 + $0x48] sm:$0xf]
      %v5289 = vld [vmem:[%s182 + $0x4c] sm:$0xf]
      %v5290 = vld [vmem:[%s182 + $0x50] sm:$0x1]
      %v5291 = vld [vmem:[%s182 + $0x54] sm:$0xf]
      %v5292 = vld [vmem:[%s182 + $0x58] sm:$0xf]
      %v5293 = vld [vmem:[%s182 + $0x5c] sm:$0x1]
      %v5294 = vld [vmem:[%s182 + $0x60] sm:$0xf]
      %v5295 = vld [vmem:[%s182 + $0x64] sm:$0xf]
      %v5296 = vld [vmem:[%s182 + $0x68] sm:$0x1]
      %v5297 = vld [vmem:[%s182 + $0x6c] sm:$0xf]
      %v5298 = vld [vmem:[%s182 + $0x70] sm:$0xf]
      %v5299 = vld [vmem:[%s182 + $0x74] sm:$0x1]
      %v5300 = vld [vmem:[%s182 + $0x78] sm:$0xf]
      %v5301 = vld [vmem:[%s182 + $0x7c] sm:$0xf]
      %v5302 = vld [vmem:[%s182 + $0x80] sm:$0x1]
      %v5303 = vld [vmem:[%s182 + $0x84] sm:$0xf]
      %v5304 = vld [vmem:[%s182 + $0x88] sm:$0xf]
      %v5305 = vld [vmem:[%s182 + $0x8c] sm:$0x1]
      %v5306 = vld [vmem:[%s182 + $0x90] sm:$0xf]
      %v5307 = vld [vmem:[%s182 + $0x94] sm:$0xf]
      %v5308 = vld [vmem:[%s182 + $0x98] sm:$0x1]
      %v5309 = vld [vmem:[%s182 + $0x9c] sm:$0xf]
      %v5310 = vld [vmem:[%s182 + $0xa0] sm:$0xf]
      %v5311 = vld [vmem:[%s182 + $0xa4] sm:$0x1]
      %v5312 = vld [vmem:[%s182 + $0xa8] sm:$0xf]
      %v5313 = vld [vmem:[%s182 + $0xac] sm:$0xf]
      %v5314 = vld [vmem:[%s182 + $0xb0] sm:$0x1]
      %v5315 = vld [vmem:[%s182 + $0xb4] sm:$0xf]
      %v5316 = vld [vmem:[%s182 + $0xb8] sm:$0xf]
      %v5317 = vld [vmem:[%s182 + $0xbc] sm:$0x1]
      %v5319 = vshrl.u32 %v5270, 16
      %v5321 = vrot.slane %v5319, 4
      %v5322 = vshll.u32 %v5270, 16
      %v5324 = vrot.slane %v5322, 5
      %v5325 = vor.u32 %v5321, %v5324
      %v5326 = vrot.slane %v5325, 4
      %v5328 = vshll.u32 %v5271, 16
      %v5330 = vrot.slane %v5328, 5
      %v5331 = vsel %vm233, %v5326, %v5330
      %v5332 = vshrl.u32 %v5271, 16
      %v5334 = vrot.slane %v5332, 4
      %v5335 = vor.u32 %v5334, %v5330
      %v5336 = vrot.slane %v5335, 4
      %v5338 = vshll.u32 %v5272, 16
      %v5340 = vrot.slane %v5338, 5
      %v5341 = vsel %vm233, %v5336, %v5340
      %v5343 = vshrl.u32 %v5273, 16
      %v5345 = vrot.slane %v5343, 4
      %v5346 = vshll.u32 %v5273, 16
      %v5348 = vrot.slane %v5346, 5
      %v5349 = vor.u32 %v5345, %v5348
      %v5350 = vrot.slane %v5349, 4
      %v5352 = vshll.u32 %v5274, 16
      %v5354 = vrot.slane %v5352, 5
      %v5355 = vsel %vm233, %v5350, %v5354
      %v5356 = vshrl.u32 %v5274, 16
      %v5358 = vrot.slane %v5356, 4
      %v5359 = vor.u32 %v5358, %v5354
      %v5360 = vrot.slane %v5359, 4
      %v5362 = vshll.u32 %v5275, 16
      %v5364 = vrot.slane %v5362, 5
      %v5365 = vsel %vm233, %v5360, %v5364
      %v5367 = vshrl.u32 %v5276, 16
      %v5369 = vrot.slane %v5367, 4
      %v5370 = vshll.u32 %v5276, 16
      %v5372 = vrot.slane %v5370, 5
      %v5373 = vor.u32 %v5369, %v5372
      %v5374 = vrot.slane %v5373, 4
      %v5376 = vshll.u32 %v5277, 16
      %v5378 = vrot.slane %v5376, 5
      %v5379 = vsel %vm233, %v5374, %v5378
      %v5380 = vshrl.u32 %v5277, 16
      %v5382 = vrot.slane %v5380, 4
      %v5383 = vor.u32 %v5382, %v5378
      %v5384 = vrot.slane %v5383, 4
      %v5386 = vshll.u32 %v5278, 16
      %v5388 = vrot.slane %v5386, 5
      %v5389 = vsel %vm233, %v5384, %v5388
      %v5391 = vshrl.u32 %v5279, 16
      %v5393 = vrot.slane %v5391, 4
      %v5394 = vshll.u32 %v5279, 16
      %v5396 = vrot.slane %v5394, 5
      %v5397 = vor.u32 %v5393, %v5396
      %v5398 = vrot.slane %v5397, 4
      %v5400 = vshll.u32 %v5280, 16
      %v5402 = vrot.slane %v5400, 5
      %v5403 = vsel %vm233, %v5398, %v5402
      %v5404 = vshrl.u32 %v5280, 16
      %v5406 = vrot.slane %v5404, 4
      %v5407 = vor.u32 %v5406, %v5402
      %v5408 = vrot.slane %v5407, 4
      %v5410 = vshll.u32 %v5281, 16
      %v5412 = vrot.slane %v5410, 5
      %v5413 = vsel %vm233, %v5408, %v5412
      %v5415 = vshrl.u32 %v5282, 16
      %v5417 = vrot.slane %v5415, 4
      %v5418 = vshll.u32 %v5282, 16
      %v5420 = vrot.slane %v5418, 5
      %v5421 = vor.u32 %v5417, %v5420
      %v5422 = vrot.slane %v5421, 4
      %v5424 = vshll.u32 %v5283, 16
      %v5426 = vrot.slane %v5424, 5
      %v5427 = vsel %vm233, %v5422, %v5426
      %v5428 = vshrl.u32 %v5283, 16
      %v5430 = vrot.slane %v5428, 4
      %v5431 = vor.u32 %v5430, %v5426
      %v5432 = vrot.slane %v5431, 4
      %v5434 = vshll.u32 %v5284, 16
      %v5436 = vrot.slane %v5434, 5
      %v5437 = vsel %vm233, %v5432, %v5436
      %v5439 = vshrl.u32 %v5285, 16
      %v5441 = vrot.slane %v5439, 4
      %v5442 = vshll.u32 %v5285, 16
      %v5444 = vrot.slane %v5442, 5
      %v5445 = vor.u32 %v5441, %v5444
      %v5446 = vrot.slane %v5445, 4
      %v5448 = vshll.u32 %v5286, 16
      %v5450 = vrot.slane %v5448, 5
      %v5451 = vsel %vm233, %v5446, %v5450
      %v5452 = vshrl.u32 %v5286, 16
      %v5454 = vrot.slane %v5452, 4
      %v5455 = vor.u32 %v5454, %v5450
      %v5456 = vrot.slane %v5455, 4
      %v5458 = vshll.u32 %v5287, 16
      %v5460 = vrot.slane %v5458, 5
      %v5461 = vsel %vm233, %v5456, %v5460
      %v5463 = vshrl.u32 %v5288, 16
      %v5465 = vrot.slane %v5463, 4
      %v5466 = vshll.u32 %v5288, 16
      %v5468 = vrot.slane %v5466, 5
      %v5469 = vor.u32 %v5465, %v5468
      %v5470 = vrot.slane %v5469, 4
      %v5472 = vshll.u32 %v5289, 16
      %v5474 = vrot.slane %v5472, 5
      %v5475 = vsel %vm233, %v5470, %v5474
      %v5476 = vshrl.u32 %v5289, 16
      %v5478 = vrot.slane %v5476, 4
      %v5479 = vor.u32 %v5478, %v5474
      %v5480 = vrot.slane %v5479, 4
      %v5482 = vshll.u32 %v5290, 16
      %v5484 = vrot.slane %v5482, 5
      %v5485 = vsel %vm233, %v5480, %v5484
      %v5487 = vshrl.u32 %v5291, 16
      %v5489 = vrot.slane %v5487, 4
      %v5490 = vshll.u32 %v5291, 16
      %v5492 = vrot.slane %v5490, 5
      %v5493 = vor.u32 %v5489, %v5492
      %v5494 = vrot.slane %v5493, 4
      %v5496 = vshll.u32 %v5292, 16
      %v5498 = vrot.slane %v5496, 5
      %v5499 = vsel %vm233, %v5494, %v5498
      %v5500 = vshrl.u32 %v5292, 16
      %v5502 = vrot.slane %v5500, 4
      %v5503 = vor.u32 %v5502, %v5498
      %v5504 = vrot.slane %v5503, 4
      %v5506 = vshll.u32 %v5293, 16
      %v5508 = vrot.slane %v5506, 5
      %v5509 = vsel %vm233, %v5504, %v5508
      %v5511 = vshrl.u32 %v5294, 16
      %v5513 = vrot.slane %v5511, 4
      %v5514 = vshll.u32 %v5294, 16
      %v5516 = vrot.slane %v5514, 5
      %v5517 = vor.u32 %v5513, %v5516
      %v5518 = vrot.slane %v5517, 4
      %v5520 = vshll.u32 %v5295, 16
      %v5522 = vrot.slane %v5520, 5
      %v5523 = vsel %vm233, %v5518, %v5522
      %v5524 = vshrl.u32 %v5295, 16
      %v5526 = vrot.slane %v5524, 4
      %v5527 = vor.u32 %v5526, %v5522
      %v5528 = vrot.slane %v5527, 4
      %v5530 = vshll.u32 %v5296, 16
      %v5532 = vrot.slane %v5530, 5
      %v5533 = vsel %vm233, %v5528, %v5532
      %v5535 = vshrl.u32 %v5297, 16
      %v5537 = vrot.slane %v5535, 4
      %v5538 = vshll.u32 %v5297, 16
      %v5540 = vrot.slane %v5538, 5
      %v5541 = vor.u32 %v5537, %v5540
      %v5542 = vrot.slane %v5541, 4
      %v5544 = vshll.u32 %v5298, 16
      %v5546 = vrot.slane %v5544, 5
      %v5547 = vsel %vm233, %v5542, %v5546
      %v5548 = vshrl.u32 %v5298, 16
      %v5550 = vrot.slane %v5548, 4
      %v5551 = vor.u32 %v5550, %v5546
      %v5552 = vrot.slane %v5551, 4
      %v5554 = vshll.u32 %v5299, 16
      %v5556 = vrot.slane %v5554, 5
      %v5557 = vsel %vm233, %v5552, %v5556
      %v5559 = vshrl.u32 %v5300, 16
      %v5561 = vrot.slane %v5559, 4
      %v5562 = vshll.u32 %v5300, 16
      %v5564 = vrot.slane %v5562, 5
      %v5565 = vor.u32 %v5561, %v5564
      %v5566 = vrot.slane %v5565, 4
      %v5568 = vshll.u32 %v5301, 16
      %v5570 = vrot.slane %v5568, 5
      %v5571 = vsel %vm233, %v5566, %v5570
      %v5572 = vshrl.u32 %v5301, 16
      %v5574 = vrot.slane %v5572, 4
      %v5575 = vor.u32 %v5574, %v5570
      %v5576 = vrot.slane %v5575, 4
      %v5578 = vshll.u32 %v5302, 16
      %v5580 = vrot.slane %v5578, 5
      %v5581 = vsel %vm233, %v5576, %v5580
      %v5583 = vshrl.u32 %v5303, 16
      %v5585 = vrot.slane %v5583, 4
      %v5586 = vshll.u32 %v5303, 16
      %v5588 = vrot.slane %v5586, 5
      %v5589 = vor.u32 %v5585, %v5588
      %v5590 = vrot.slane %v5589, 4
      %v5592 = vshll.u32 %v5304, 16
      %v5594 = vrot.slane %v5592, 5
      %v5595 = vsel %vm233, %v5590, %v5594
      %v5596 = vshrl.u32 %v5304, 16
      %v5598 = vrot.slane %v5596, 4
      %v5599 = vor.u32 %v5598, %v5594
      %v5600 = vrot.slane %v5599, 4
      %v5602 = vshll.u32 %v5305, 16
      %v5604 = vrot.slane %v5602, 5
      %v5605 = vsel %vm233, %v5600, %v5604
      %v5607 = vshrl.u32 %v5306, 16
      %v5609 = vrot.slane %v5607, 4
      %v5610 = vshll.u32 %v5306, 16
      %v5612 = vrot.slane %v5610, 5
      %v5613 = vor.u32 %v5609, %v5612
      %v5614 = vrot.slane %v5613, 4
      %v5616 = vshll.u32 %v5307, 16
      %v5618 = vrot.slane %v5616, 5
      %v5619 = vsel %vm233, %v5614, %v5618
      %v5620 = vshrl.u32 %v5307, 16
      %v5622 = vrot.slane %v5620, 4
      %v5623 = vor.u32 %v5622, %v5618
      %v5624 = vrot.slane %v5623, 4
      %v5626 = vshll.u32 %v5308, 16
      %v5628 = vrot.slane %v5626, 5
      %v5629 = vsel %vm233, %v5624, %v5628
      %v5631 = vshrl.u32 %v5309, 16
      %v5633 = vrot.slane %v5631, 4
      %v5634 = vshll.u32 %v5309, 16
      %v5636 = vrot.slane %v5634, 5
      %v5637 = vor.u32 %v5633, %v5636
      %v5638 = vrot.slane %v5637, 4
      %v5640 = vshll.u32 %v5310, 16
      %v5642 = vrot.slane %v5640, 5
      %v5643 = vsel %vm233, %v5638, %v5642
      %v5644 = vshrl.u32 %v5310, 16
      %v5646 = vrot.slane %v5644, 4
      %v5647 = vor.u32 %v5646, %v5642
      %v5648 = vrot.slane %v5647, 4
      %v5650 = vshll.u32 %v5311, 16
      %v5652 = vrot.slane %v5650, 5
      %v5653 = vsel %vm233, %v5648, %v5652
      %v5655 = vshrl.u32 %v5312, 16
      %v5657 = vrot.slane %v5655, 4
      %v5658 = vshll.u32 %v5312, 16
      %v5660 = vrot.slane %v5658, 5
      %v5661 = vor.u32 %v5657, %v5660
      %v5662 = vrot.slane %v5661, 4
      %v5664 = vshll.u32 %v5313, 16
      %v5666 = vrot.slane %v5664, 5
      %v5667 = vsel %vm233, %v5662, %v5666
      %v5668 = vshrl.u32 %v5313, 16
      %v5670 = vrot.slane %v5668, 4
      %v5671 = vor.u32 %v5670, %v5666
      %v5672 = vrot.slane %v5671, 4
      %v5674 = vshll.u32 %v5314, 16
      %v5676 = vrot.slane %v5674, 5
      %v5677 = vsel %vm233, %v5672, %v5676
      %v5679 = vshrl.u32 %v5315, 16
      %v5681 = vrot.slane %v5679, 4
      %v5682 = vshll.u32 %v5315, 16
      %v5684 = vrot.slane %v5682, 5
      %v5685 = vor.u32 %v5681, %v5684
      %v5686 = vrot.slane %v5685, 4
      %v5688 = vshll.u32 %v5316, 16
      %v5690 = vrot.slane %v5688, 5
      %v5691 = vsel %vm233, %v5686, %v5690
      %v5692 = vshrl.u32 %v5316, 16
      %v5694 = vrot.slane %v5692, 4
      %v5695 = vor.u32 %v5694, %v5690
      %v5696 = vrot.slane %v5695, 4
      %v5698 = vshll.u32 %v5317, 16
      %v5700 = vrot.slane %v5698, 5
      %v5701 = vsel %vm233, %v5696, %v5700
      %s5702 = scalar_lea.vmem %s172, 36
      %v5703 = vld [vmem:[%s5702] sm:$0xf]
      %v5704 = vunpack.c.l.b16 %v5331
      %v5705 = vunpack.c.l.b16 %v5341
      %v5706 = vunpack.c.l.b16 %v5355
      %v5707 = vunpack.c.l.b16 %v5365
      %v5708 = vunpack.c.l.b16 %v5379
      %v5709 = vunpack.c.l.b16 %v5389
      %v5710 = vunpack.c.l.b16 %v5403
      %v5711 = vunpack.c.l.b16 %v5413
      %v5712 = vunpack.c.l.b16 %v5427
      %v5713 = vunpack.c.l.b16 %v5437
      %v5714 = vunpack.c.l.b16 %v5451
      %v5715 = vunpack.c.l.b16 %v5461
      %v5716 = vunpack.c.l.b16 %v5475
      %v5717 = vunpack.c.l.b16 %v5485
      %v5718 = vunpack.c.l.b16 %v5499
      %v5719 = vunpack.c.l.b16 %v5509
      %v5720 = vunpack.c.l.b16 %v5523
      %v5721 = vunpack.c.l.b16 %v5533
      %v5722 = vunpack.c.l.b16 %v5547
      %v5723 = vunpack.c.l.b16 %v5557
      %v5724 = vunpack.c.l.b16 %v5571
      %v5725 = vunpack.c.l.b16 %v5581
      %v5726 = vunpack.c.l.b16 %v5595
      %v5727 = vunpack.c.l.b16 %v5605
      %v5728 = vunpack.c.l.b16 %v5619
      %v5729 = vunpack.c.l.b16 %v5629
      %v5730 = vunpack.c.l.b16 %v5643
      %v5731 = vunpack.c.l.b16 %v5653
      %v5732 = vunpack.c.l.b16 %v5667
      %v5733 = vunpack.c.l.b16 %v5677
      %v5734 = vunpack.c.l.b16 %v5691
      %v5735 = vunpack.c.l.b16 %v5701
      %v5736 = vpack.c.b16 %v5705, %v5704
      %v5737 = vpack.c.b16 %v5707, %v5706
      %v5738 = vpack.c.b16 %v5709, %v5708
      %v5739 = vpack.c.b16 %v5711, %v5710
      %v5740 = vpack.c.b16 %v5713, %v5712
      %v5741 = vpack.c.b16 %v5715, %v5714
      %v5742 = vpack.c.b16 %v5717, %v5716
      %v5743 = vpack.c.b16 %v5719, %v5718
      %v5744 = vpack.c.b16 %v5721, %v5720
      %v5745 = vpack.c.b16 %v5723, %v5722
      %v5746 = vpack.c.b16 %v5725, %v5724
      %v5747 = vpack.c.b16 %v5727, %v5726
      %v5748 = vpack.c.b16 %v5729, %v5728
      %v5749 = vpack.c.b16 %v5731, %v5730
      %v5750 = vpack.c.b16 %v5733, %v5732
      %v5751 = vpack.c.b16 %v5735, %v5734
      %v5753 = vsel %vm702, %v5736, 0
      %v5756 = vsel %vm702, %v5737, 0
      %v5759 = vsel %vm702, %v5738, 0
      %v5762 = vsel %vm702, %v5739, 0
      %v5765 = vsel %vm702, %v5740, 0
      %v5768 = vsel %vm702, %v5741, 0
      %v5771 = vsel %vm702, %v5742, 0
      %v5774 = vsel %vm702, %v5743, 0
      %v5777 = vsel %vm702, %v5744, 0
      %v5780 = vsel %vm702, %v5745, 0
      %v5783 = vsel %vm702, %v5746, 0
      %v5786 = vsel %vm702, %v5747, 0
      %v5789 = vsel %vm702, %v5748, 0
      %v5792 = vsel %vm702, %v5749, 0
      %v5795 = vsel %vm702, %v5750, 0
      %v5798 = vsel %vm702, %v5751, 0
      %v5801 = vsel %vm751, %v5703, 0
      %5803 = vmatpush.bf16.msra.mxu0 0
      %5804 = vmatpush.bf16.msra.mxu0 0
      %5805 = vmatpush.bf16.msra.mxu0 0
      %5806 = vmatpush.bf16.msra.mxu0 0
      %5807 = vmatpush.bf16.msra.mxu0 0
      %5808 = vmatpush.bf16.msra.mxu0 0
      %5809 = vmatpush.bf16.msra.mxu0 0
      %5810 = vmatpush.bf16.msra.mxu0 %v5801
      %5811 = vmatmul.bf16.gmra.mxu0 %v5753
      %v5812 = vpop.f32.mrf.mxu0
      %v5813 = vadd.f32 0.0, %v5812
      %v5814 = vpop.f32.mrf.mxu0
      %v5815 = vadd.f32 0.0, %v5814
      %5816 = vmatmul.bf16.gmra.mxu0 %v5756
      %v5817 = vpop.f32.mrf.mxu0
      %v5818 = vadd.f32 0.0, %v5817
      %v5819 = vpop.f32.mrf.mxu0
      %v5820 = vadd.f32 0.0, %v5819
      %5821 = vmatmul.bf16.gmra.mxu0 %v5759
      %v5822 = vpop.f32.mrf.mxu0
      %v5823 = vadd.f32 0.0, %v5822
      %v5824 = vpop.f32.mrf.mxu0
      %v5825 = vadd.f32 0.0, %v5824
      %5826 = vmatmul.bf16.gmra.mxu0 %v5762
      %v5827 = vpop.f32.mrf.mxu0
      %v5828 = vadd.f32 0.0, %v5827
      %v5829 = vpop.f32.mrf.mxu0
      %v5830 = vadd.f32 0.0, %v5829
      %5831 = vmatmul.bf16.gmra.mxu0 %v5765
      %v5832 = vpop.f32.mrf.mxu0
      %v5833 = vadd.f32 0.0, %v5832
      %v5834 = vpop.f32.mrf.mxu0
      %v5835 = vadd.f32 0.0, %v5834
      %5836 = vmatmul.bf16.gmra.mxu0 %v5768
      %v5837 = vpop.f32.mrf.mxu0
      %v5838 = vadd.f32 0.0, %v5837
      %v5839 = vpop.f32.mrf.mxu0
      %v5840 = vadd.f32 0.0, %v5839
      %5841 = vmatmul.bf16.gmra.mxu0 %v5771
      %v5842 = vpop.f32.mrf.mxu0
      %v5843 = vadd.f32 0.0, %v5842
      %v5844 = vpop.f32.mrf.mxu0
      %v5845 = vadd.f32 0.0, %v5844
      %5846 = vmatmul.bf16.gmra.mxu0 %v5774
      %v5847 = vpop.f32.mrf.mxu0
      %v5848 = vadd.f32 0.0, %v5847
      %v5849 = vpop.f32.mrf.mxu0
      %v5850 = vadd.f32 0.0, %v5849
      %5851 = vmatmul.bf16.gmra.mxu0 %v5777
      %v5852 = vpop.f32.mrf.mxu0
      %v5853 = vadd.f32 0.0, %v5852
      %v5854 = vpop.f32.mrf.mxu0
      %v5855 = vadd.f32 0.0, %v5854
      %5856 = vmatmul.bf16.gmra.mxu0 %v5780
      %v5857 = vpop.f32.mrf.mxu0
      %v5858 = vadd.f32 0.0, %v5857
      %v5859 = vpop.f32.mrf.mxu0
      %v5860 = vadd.f32 0.0, %v5859
      %5861 = vmatmul.bf16.gmra.mxu0 %v5783
      %v5862 = vpop.f32.mrf.mxu0
      %v5863 = vadd.f32 0.0, %v5862
      %v5864 = vpop.f32.mrf.mxu0
      %v5865 = vadd.f32 0.0, %v5864
      %5866 = vmatmul.bf16.gmra.mxu0 %v5786
      %v5867 = vpop.f32.mrf.mxu0
      %v5868 = vadd.f32 0.0, %v5867
      %v5869 = vpop.f32.mrf.mxu0
      %v5870 = vadd.f32 0.0, %v5869
      %5871 = vmatmul.bf16.gmra.mxu0 %v5789
      %v5872 = vpop.f32.mrf.mxu0
      %v5873 = vadd.f32 0.0, %v5872
      %v5874 = vpop.f32.mrf.mxu0
      %v5875 = vadd.f32 0.0, %v5874
      %5876 = vmatmul.bf16.gmra.mxu0 %v5792
      %v5877 = vpop.f32.mrf.mxu0
      %v5878 = vadd.f32 0.0, %v5877
      %v5879 = vpop.f32.mrf.mxu0
      %v5880 = vadd.f32 0.0, %v5879
      %5881 = vmatmul.bf16.gmra.mxu0 %v5795
      %v5882 = vpop.f32.mrf.mxu0
      %v5883 = vadd.f32 0.0, %v5882
      %v5884 = vpop.f32.mrf.mxu0
      %v5885 = vadd.f32 0.0, %v5884
      %5886 = vmatmul.bf16.gmra.mxu0 %v5798
      %v5887 = vpop.f32.mrf.mxu0
      %v5888 = vadd.f32 0.0, %v5887
      %v5889 = vpop.f32.mrf.mxu0
      %v5890 = vadd.f32 0.0, %v5889
      %5891 = vdwg.mxu0
      %v5892 = vadd.f32 %v5191, %v5813
      %v5893 = vadd.f32 %v5193, %v5815
      %v5894 = vadd.f32 %v5196, %v5818
      %v5895 = vadd.f32 %v5198, %v5820
      %v5896 = vadd.f32 %v5201, %v5823
      %v5897 = vadd.f32 %v5203, %v5825
      %v5898 = vadd.f32 %v5206, %v5828
      %v5899 = vadd.f32 %v5208, %v5830
      %v5900 = vadd.f32 %v5211, %v5833
      %v5901 = vadd.f32 %v5213, %v5835
      %v5902 = vadd.f32 %v5216, %v5838
      %v5903 = vadd.f32 %v5218, %v5840
      %v5904 = vadd.f32 %v5221, %v5843
      %v5905 = vadd.f32 %v5223, %v5845
      %v5906 = vadd.f32 %v5226, %v5848
      %v5907 = vadd.f32 %v5228, %v5850
      %v5908 = vadd.f32 %v5231, %v5853
      %v5909 = vadd.f32 %v5233, %v5855
      %v5910 = vadd.f32 %v5236, %v5858
      %v5911 = vadd.f32 %v5238, %v5860
      %v5912 = vadd.f32 %v5241, %v5863
      %v5913 = vadd.f32 %v5243, %v5865
      %v5914 = vadd.f32 %v5246, %v5868
      %v5915 = vadd.f32 %v5248, %v5870
      %v5916 = vadd.f32 %v5251, %v5873
      %v5917 = vadd.f32 %v5253, %v5875
      %v5918 = vadd.f32 %v5256, %v5878
      %v5919 = vadd.f32 %v5258, %v5880
      %v5920 = vadd.f32 %v5261, %v5883
      %v5921 = vadd.f32 %v5263, %v5885
      %v5922 = vadd.f32 %v5266, %v5888
      %v5923 = vadd.f32 %v5268, %v5890
      %v5924 = vld [vmem:[%s182] sm:$0xf]
      %v5925 = vld [vmem:[%s182 + $0x4] sm:$0xf]
      %v5926 = vld [vmem:[%s182 + $0xc] sm:$0xf]
      %v5927 = vld [vmem:[%s182 + $0x10] sm:$0xf]
      %v5928 = vld [vmem:[%s182 + $0x18] sm:$0xf]
      %v5929 = vld [vmem:[%s182 + $0x1c] sm:$0xf]
      %v5930 = vld [vmem:[%s182 + $0x24] sm:$0xf]
      %v5931 = vld [vmem:[%s182 + $0x28] sm:$0xf]
      %v5932 = vld [vmem:[%s182 + $0x30] sm:$0xf]
      %v5933 = vld [vmem:[%s182 + $0x34] sm:$0xf]
      %v5934 = vld [vmem:[%s182 + $0x3c] sm:$0xf]
      %v5935 = vld [vmem:[%s182 + $0x40] sm:$0xf]
      %v5936 = vld [vmem:[%s182 + $0x48] sm:$0xf]
      %v5937 = vld [vmem:[%s182 + $0x4c] sm:$0xf]
      %v5938 = vld [vmem:[%s182 + $0x54] sm:$0xf]
      %v5939 = vld [vmem:[%s182 + $0x58] sm:$0xf]
      %v5940 = vld [vmem:[%s182 + $0x60] sm:$0xf]
      %v5941 = vld [vmem:[%s182 + $0x64] sm:$0xf]
      %v5942 = vld [vmem:[%s182 + $0x6c] sm:$0xf]
      %v5943 = vld [vmem:[%s182 + $0x70] sm:$0xf]
      %v5944 = vld [vmem:[%s182 + $0x78] sm:$0xf]
      %v5945 = vld [vmem:[%s182 + $0x7c] sm:$0xf]
      %v5946 = vld [vmem:[%s182 + $0x84] sm:$0xf]
      %v5947 = vld [vmem:[%s182 + $0x88] sm:$0xf]
      %v5948 = vld [vmem:[%s182 + $0x90] sm:$0xf]
      %v5949 = vld [vmem:[%s182 + $0x94] sm:$0xf]
      %v5950 = vld [vmem:[%s182 + $0x9c] sm:$0xf]
      %v5951 = vld [vmem:[%s182 + $0xa0] sm:$0xf]
      %v5952 = vld [vmem:[%s182 + $0xa8] sm:$0xf]
      %v5953 = vld [vmem:[%s182 + $0xac] sm:$0xf]
      %v5954 = vld [vmem:[%s182 + $0xb4] sm:$0xf]
      %v5955 = vld [vmem:[%s182 + $0xb8] sm:$0xf]
      %s5956 = scalar_lea.vmem %s172, 44
      %v5957 = vld [vmem:[%s5956] sm:$0xf]
      %v5990 = vunpack.c.l.b16 %v5924
      %v5991 = vunpack.c.l.b16 %v5925
      %v5992 = vunpack.c.l.b16 %v5926
      %v5993 = vunpack.c.l.b16 %v5927
      %v5994 = vunpack.c.l.b16 %v5928
      %v5995 = vunpack.c.l.b16 %v5929
      %v5996 = vunpack.c.l.b16 %v5930
      %v5997 = vunpack.c.l.b16 %v5931
      %v5998 = vunpack.c.l.b16 %v5932
      %v5999 = vunpack.c.l.b16 %v5933
      %v6000 = vunpack.c.l.b16 %v5934
      %v6001 = vunpack.c.l.b16 %v5935
      %v6002 = vunpack.c.l.b16 %v5936
      %v6003 = vunpack.c.l.b16 %v5937
      %v6004 = vunpack.c.l.b16 %v5938
      %v6005 = vunpack.c.l.b16 %v5939
      %v6006 = vunpack.c.l.b16 %v5940
      %v6007 = vunpack.c.l.b16 %v5941
      %v6008 = vunpack.c.l.b16 %v5942
      %v6009 = vunpack.c.l.b16 %v5943
      %v6010 = vunpack.c.l.b16 %v5944
      %v6011 = vunpack.c.l.b16 %v5945
      %v6012 = vunpack.c.l.b16 %v5946
      %v6013 = vunpack.c.l.b16 %v5947
      %v6014 = vunpack.c.l.b16 %v5948
      %v6015 = vunpack.c.l.b16 %v5949
      %v6016 = vunpack.c.l.b16 %v5950
      %v6017 = vunpack.c.l.b16 %v5951
      %v6018 = vunpack.c.l.b16 %v5952
      %v6019 = vunpack.c.l.b16 %v5953
      %v6020 = vunpack.c.l.b16 %v5954
      %v6021 = vunpack.c.l.b16 %v5955
      %v6022 = vpack.c.b16 %v5991, %v5990
      %v6023 = vpack.c.b16 %v5993, %v5992
      %v6024 = vpack.c.b16 %v5995, %v5994
      %v6025 = vpack.c.b16 %v5997, %v5996
      %v6026 = vpack.c.b16 %v5999, %v5998
      %v6027 = vpack.c.b16 %v6001, %v6000
      %v6028 = vpack.c.b16 %v6003, %v6002
      %v6029 = vpack.c.b16 %v6005, %v6004
      %v6030 = vpack.c.b16 %v6007, %v6006
      %v6031 = vpack.c.b16 %v6009, %v6008
      %v6032 = vpack.c.b16 %v6011, %v6010
      %v6033 = vpack.c.b16 %v6013, %v6012
      %v6034 = vpack.c.b16 %v6015, %v6014
      %v6035 = vpack.c.b16 %v6017, %v6016
      %v6036 = vpack.c.b16 %v6019, %v6018
      %v6037 = vpack.c.b16 %v6021, %v6020
      %v6039 = vsel %vm702, %v6022, 0
      %v6042 = vsel %vm702, %v6023, 0
      %v6045 = vsel %vm702, %v6024, 0
      %v6048 = vsel %vm702, %v6025, 0
      %v6051 = vsel %vm702, %v6026, 0
      %v6054 = vsel %vm702, %v6027, 0
      %v6057 = vsel %vm702, %v6028, 0
      %v6060 = vsel %vm702, %v6029, 0
      %v6063 = vsel %vm702, %v6030, 0
      %v6066 = vsel %vm702, %v6031, 0
      %v6069 = vsel %vm702, %v6032, 0
      %v6072 = vsel %vm702, %v6033, 0
      %v6075 = vsel %vm702, %v6034, 0
      %v6078 = vsel %vm702, %v6035, 0
      %v6081 = vsel %vm702, %v6036, 0
      %v6084 = vsel %vm702, %v6037, 0
      %v6087 = vsel %vm751, %v5957, 0
      %6089 = vmatpush.bf16.msra.mxu0 0
      %6090 = vmatpush.bf16.msra.mxu0 0
      %6091 = vmatpush.bf16.msra.mxu0 0
      %6092 = vmatpush.bf16.msra.mxu0 0
      %6093 = vmatpush.bf16.msra.mxu0 0
      %6094 = vmatpush.bf16.msra.mxu0 0
      %6095 = vmatpush.bf16.msra.mxu0 0
      %6096 = vmatpush.bf16.msra.mxu0 %v6087
      %6097 = vmatmul.bf16.gmra.mxu0 %v6039
      %v6098 = vpop.f32.mrf.mxu0
      %v6099 = vadd.f32 0.0, %v6098
      %v6100 = vpop.f32.mrf.mxu0
      %v6101 = vadd.f32 0.0, %v6100
      %6102 = vmatmul.bf16.gmra.mxu0 %v6042
      %v6103 = vpop.f32.mrf.mxu0
      %v6104 = vadd.f32 0.0, %v6103
      %v6105 = vpop.f32.mrf.mxu0
      %v6106 = vadd.f32 0.0, %v6105
      %6107 = vmatmul.bf16.gmra.mxu0 %v6045
      %v6108 = vpop.f32.mrf.mxu0
      %v6109 = vadd.f32 0.0, %v6108
      %v6110 = vpop.f32.mrf.mxu0
      %v6111 = vadd.f32 0.0, %v6110
      %6112 = vmatmul.bf16.gmra.mxu0 %v6048
      %v6113 = vpop.f32.mrf.mxu0
      %v6114 = vadd.f32 0.0, %v6113
      %v6115 = vpop.f32.mrf.mxu0
      %v6116 = vadd.f32 0.0, %v6115
      %6117 = vmatmul.bf16.gmra.mxu0 %v6051
      %v6118 = vpop.f32.mrf.mxu0
      %v6119 = vadd.f32 0.0, %v6118
      %v6120 = vpop.f32.mrf.mxu0
      %v6121 = vadd.f32 0.0, %v6120
      %6122 = vmatmul.bf16.gmra.mxu0 %v6054
      %v6123 = vpop.f32.mrf.mxu0
      %v6124 = vadd.f32 0.0, %v6123
      %v6125 = vpop.f32.mrf.mxu0
      %v6126 = vadd.f32 0.0, %v6125
      %6127 = vmatmul.bf16.gmra.mxu0 %v6057
      %v6128 = vpop.f32.mrf.mxu0
      %v6129 = vadd.f32 0.0, %v6128
      %v6130 = vpop.f32.mrf.mxu0
      %v6131 = vadd.f32 0.0, %v6130
      %6132 = vmatmul.bf16.gmra.mxu0 %v6060
      %v6133 = vpop.f32.mrf.mxu0
      %v6134 = vadd.f32 0.0, %v6133
      %v6135 = vpop.f32.mrf.mxu0
      %v6136 = vadd.f32 0.0, %v6135
      %6137 = vmatmul.bf16.gmra.mxu0 %v6063
      %v6138 = vpop.f32.mrf.mxu0
      %v6139 = vadd.f32 0.0, %v6138
      %v6140 = vpop.f32.mrf.mxu0
      %v6141 = vadd.f32 0.0, %v6140
      %6142 = vmatmul.bf16.gmra.mxu0 %v6066
      %v6143 = vpop.f32.mrf.mxu0
      %v6144 = vadd.f32 0.0, %v6143
      %v6145 = vpop.f32.mrf.mxu0
      %v6146 = vadd.f32 0.0, %v6145
      %6147 = vmatmul.bf16.gmra.mxu0 %v6069
      %v6148 = vpop.f32.mrf.mxu0
      %v6149 = vadd.f32 0.0, %v6148
      %v6150 = vpop.f32.mrf.mxu0
      %v6151 = vadd.f32 0.0, %v6150
      %6152 = vmatmul.bf16.gmra.mxu0 %v6072
      %v6153 = vpop.f32.mrf.mxu0
      %v6154 = vadd.f32 0.0, %v6153
      %v6155 = vpop.f32.mrf.mxu0
      %v6156 = vadd.f32 0.0, %v6155
      %6157 = vmatmul.bf16.gmra.mxu0 %v6075
      %v6158 = vpop.f32.mrf.mxu0
      %v6159 = vadd.f32 0.0, %v6158
      %v6160 = vpop.f32.mrf.mxu0
      %v6161 = vadd.f32 0.0, %v6160
      %6162 = vmatmul.bf16.gmra.mxu0 %v6078
      %v6163 = vpop.f32.mrf.mxu0
      %v6164 = vadd.f32 0.0, %v6163
      %v6165 = vpop.f32.mrf.mxu0
      %v6166 = vadd.f32 0.0, %v6165
      %6167 = vmatmul.bf16.gmra.mxu0 %v6081
      %v6168 = vpop.f32.mrf.mxu0
      %v6169 = vadd.f32 0.0, %v6168
      %v6170 = vpop.f32.mrf.mxu0
      %v6171 = vadd.f32 0.0, %v6170
      %6172 = vmatmul.bf16.gmra.mxu0 %v6084
      %v6173 = vpop.f32.mrf.mxu0
      %v6174 = vadd.f32 0.0, %v6173
      %v6175 = vpop.f32.mrf.mxu0
      %v6176 = vadd.f32 0.0, %v6175
      %6177 = vdwg.mxu0
      %v6178 = vadd.f32 %v5892, %v6099
      %v6179 = vadd.f32 %v5893, %v6101
      %v6180 = vadd.f32 %v5894, %v6104
      %v6181 = vadd.f32 %v5895, %v6106
      %v6182 = vadd.f32 %v5896, %v6109
      %v6183 = vadd.f32 %v5897, %v6111
      %v6184 = vadd.f32 %v5898, %v6114
      %v6185 = vadd.f32 %v5899, %v6116
      %v6186 = vadd.f32 %v5900, %v6119
      %v6187 = vadd.f32 %v5901, %v6121
      %v6188 = vadd.f32 %v5902, %v6124
      %v6189 = vadd.f32 %v5903, %v6126
      %v6190 = vadd.f32 %v5904, %v6129
      %v6191 = vadd.f32 %v5905, %v6131
      %v6192 = vadd.f32 %v5906, %v6134
      %v6193 = vadd.f32 %v5907, %v6136
      %v6194 = vadd.f32 %v5908, %v6139
      %v6195 = vadd.f32 %v5909, %v6141
      %v6196 = vadd.f32 %v5910, %v6144
      %v6197 = vadd.f32 %v5911, %v6146
      %v6198 = vadd.f32 %v5912, %v6149
      %v6199 = vadd.f32 %v5913, %v6151
      %v6200 = vadd.f32 %v5914, %v6154
      %v6201 = vadd.f32 %v5915, %v6156
      %v6202 = vadd.f32 %v5916, %v6159
      %v6203 = vadd.f32 %v5917, %v6161
      %v6204 = vadd.f32 %v5918, %v6164
      %v6205 = vadd.f32 %v5919, %v6166
      %v6206 = vadd.f32 %v5920, %v6169
      %v6207 = vadd.f32 %v5921, %v6171
      %v6208 = vadd.f32 %v5922, %v6174
      %v6209 = vadd.f32 %v5923, %v6176
      %s6210 = scalar_lea.vmem %s180, 512
      %6211 = vst.msk [vmem:[%s6210] sm:$0xff] %vm1972, %v6178
      %6212 = vst.msk [vmem:[%s6210 + $0x8] sm:$0xff] %vm1972, %v6179
      %6213 = vst.msk [vmem:[%s6210 + $0x10] sm:$0xff] %vm1972, %v6180
      %6214 = vst.msk [vmem:[%s6210 + $0x18] sm:$0xff] %vm1972, %v6181
      %6215 = vst.msk [vmem:[%s6210 + $0x20] sm:$0xff] %vm1972, %v6182
      %6216 = vst.msk [vmem:[%s6210 + $0x28] sm:$0xff] %vm1972, %v6183
      %6217 = vst.msk [vmem:[%s6210 + $0x30] sm:$0xff] %vm1972, %v6184
      %6218 = vst.msk [vmem:[%s6210 + $0x38] sm:$0xff] %vm1972, %v6185
      %6219 = vst.msk [vmem:[%s6210 + $0x40] sm:$0xff] %vm1972, %v6186
      %6220 = vst.msk [vmem:[%s6210 + $0x48] sm:$0xff] %vm1972, %v6187
      %6221 = vst.msk [vmem:[%s6210 + $0x50] sm:$0xff] %vm1972, %v6188
      %6222 = vst.msk [vmem:[%s6210 + $0x58] sm:$0xff] %vm1972, %v6189
      %6223 = vst.msk [vmem:[%s6210 + $0x60] sm:$0xff] %vm1972, %v6190
      %6224 = vst.msk [vmem:[%s6210 + $0x68] sm:$0xff] %vm1972, %v6191
      %6225 = vst.msk [vmem:[%s6210 + $0x70] sm:$0xff] %vm1972, %v6192
      %6226 = vst.msk [vmem:[%s6210 + $0x78] sm:$0xff] %vm1972, %v6193
      %6227 = vst.msk [vmem:[%s6210 + $0x80] sm:$0xff] %vm1972, %v6194
      %6228 = vst.msk [vmem:[%s6210 + $0x88] sm:$0xff] %vm1972, %v6195
      %6229 = vst.msk [vmem:[%s6210 + $0x90] sm:$0xff] %vm1972, %v6196
      %6230 = vst.msk [vmem:[%s6210 + $0x98] sm:$0xff] %vm1972, %v6197
      %6231 = vst.msk [vmem:[%s6210 + $0xa0] sm:$0xff] %vm1972, %v6198
      %6232 = vst.msk [vmem:[%s6210 + $0xa8] sm:$0xff] %vm1972, %v6199
      %6233 = vst.msk [vmem:[%s6210 + $0xb0] sm:$0xff] %vm1972, %v6200
      %6234 = vst.msk [vmem:[%s6210 + $0xb8] sm:$0xff] %vm1972, %v6201
      %6235 = vst.msk [vmem:[%s6210 + $0xc0] sm:$0xff] %vm1972, %v6202
      %6236 = vst.msk [vmem:[%s6210 + $0xc8] sm:$0xff] %vm1972, %v6203
      %6237 = vst.msk [vmem:[%s6210 + $0xd0] sm:$0xff] %vm1972, %v6204
      %6238 = vst.msk [vmem:[%s6210 + $0xd8] sm:$0xff] %vm1972, %v6205
      %6239 = vst.msk [vmem:[%s6210 + $0xe0] sm:$0xff] %vm1972, %v6206
      %6240 = vst.msk [vmem:[%s6210 + $0xe8] sm:$0xff] %vm1972, %v6207
      %6241 = vst.msk [vmem:[%s6210 + $0xf0] sm:$0xff] %vm1972, %v6208
      %6242 = vst.msk [vmem:[%s6210 + $0xf8] sm:$0xff] %vm1972, %v6209
      %v6243 = vsel %vm1972, %v6178, 0.0
      %v6244 = vsel %vm1972, %v6179, 0.0
      %v6245 = vadd.f32 %v6243, %v6244
      %v6246 = vsel %vm1972, %v6180, 0.0
      %v6247 = vadd.f32 %v6245, %v6246
      %v6248 = vsel %vm1972, %v6181, 0.0
      %v6249 = vadd.f32 %v6247, %v6248
      %v6250 = vsel %vm1972, %v6182, 0.0
      %v6251 = vadd.f32 %v6249, %v6250
      %v6252 = vsel %vm1972, %v6183, 0.0
      %v6253 = vadd.f32 %v6251, %v6252
      %v6254 = vsel %vm1972, %v6184, 0.0
      %v6255 = vadd.f32 %v6253, %v6254
      %v6256 = vsel %vm1972, %v6185, 0.0
      %v6257 = vadd.f32 %v6255, %v6256
      %v6258 = vsel %vm1972, %v6186, 0.0
      %v6259 = vadd.f32 %v6257, %v6258
      %v6260 = vsel %vm1972, %v6187, 0.0
      %v6261 = vadd.f32 %v6259, %v6260
      %v6262 = vsel %vm1972, %v6188, 0.0
      %v6263 = vadd.f32 %v6261, %v6262
      %v6264 = vsel %vm1972, %v6189, 0.0
      %v6265 = vadd.f32 %v6263, %v6264
      %v6266 = vsel %vm1972, %v6190, 0.0
      %v6267 = vadd.f32 %v6265, %v6266
      %v6268 = vsel %vm1972, %v6191, 0.0
      %v6269 = vadd.f32 %v6267, %v6268
      %v6270 = vsel %vm1972, %v6192, 0.0
      %v6271 = vadd.f32 %v6269, %v6270
      %v6272 = vsel %vm1972, %v6193, 0.0
      %v6273 = vadd.f32 %v6271, %v6272
      %v6274 = vsel %vm1972, %v6194, 0.0
      %v6275 = vadd.f32 %v6273, %v6274
      %v6276 = vsel %vm1972, %v6195, 0.0
      %v6277 = vadd.f32 %v6275, %v6276
      %v6278 = vsel %vm1972, %v6196, 0.0
      %v6279 = vadd.f32 %v6277, %v6278
      %v6280 = vsel %vm1972, %v6197, 0.0
      %v6281 = vadd.f32 %v6279, %v6280
      %v6282 = vsel %vm1972, %v6198, 0.0
      %v6283 = vadd.f32 %v6281, %v6282
      %v6284 = vsel %vm1972, %v6199, 0.0
      %v6285 = vadd.f32 %v6283, %v6284
      %v6286 = vsel %vm1972, %v6200, 0.0
      %v6287 = vadd.f32 %v6285, %v6286
      %v6288 = vsel %vm1972, %v6201, 0.0
      %v6289 = vadd.f32 %v6287, %v6288
      %v6290 = vsel %vm1972, %v6202, 0.0
      %v6291 = vadd.f32 %v6289, %v6290
      %v6292 = vsel %vm1972, %v6203, 0.0
      %v6293 = vadd.f32 %v6291, %v6292
      %v6294 = vsel %vm1972, %v6204, 0.0
      %v6295 = vadd.f32 %v6293, %v6294
      %v6296 = vsel %vm1972, %v6205, 0.0
      %v6297 = vadd.f32 %v6295, %v6296
      %v6298 = vsel %vm1972, %v6206, 0.0
      %v6299 = vadd.f32 %v6297, %v6298
      %v6300 = vsel %vm1972, %v6207, 0.0
      %v6301 = vadd.f32 %v6299, %v6300
      %v6302 = vsel %vm1972, %v6208, 0.0
      %v6303 = vadd.f32 %v6301, %v6302
      %v6304 = vsel %vm1972, %v6209, 0.0
      %v6305 = vadd.f32 %v6303, %v6304
      %v6306 = vrot.slane %v6305, 4
      %v6307 = vadd.f32 %v6305, %v6306
      %v6308 = vrot.slane %v6307, 2
      %v6309 = vadd.f32 %v6307, %v6308
      %v6310 = vrot.slane %v6309, 1
      %v6311 = vadd.f32 %v6309, %v6310
      %v6312 = vadd.f32 %v4322, %v6311
      %v6313 = vmul.f32 %v6178, %v6178
      %v6314 = vmul.f32 %v6179, %v6179
      %v6315 = vmul.f32 %v6180, %v6180
      %v6316 = vmul.f32 %v6181, %v6181
      %v6317 = vmul.f32 %v6182, %v6182
      %v6318 = vmul.f32 %v6183, %v6183
      %v6319 = vmul.f32 %v6184, %v6184
      %v6320 = vmul.f32 %v6185, %v6185
      %v6321 = vmul.f32 %v6186, %v6186
      %v6322 = vmul.f32 %v6187, %v6187
      %v6323 = vmul.f32 %v6188, %v6188
      %v6324 = vmul.f32 %v6189, %v6189
      %v6325 = vmul.f32 %v6190, %v6190
      %v6326 = vmul.f32 %v6191, %v6191
      %v6327 = vmul.f32 %v6192, %v6192
      %v6328 = vmul.f32 %v6193, %v6193
      %v6329 = vmul.f32 %v6194, %v6194
      %v6330 = vmul.f32 %v6195, %v6195
      %v6331 = vmul.f32 %v6196, %v6196
      %v6332 = vmul.f32 %v6197, %v6197
      %v6333 = vmul.f32 %v6198, %v6198
      %v6334 = vmul.f32 %v6199, %v6199
      %v6335 = vmul.f32 %v6200, %v6200
      %v6336 = vmul.f32 %v6201, %v6201
      %v6337 = vmul.f32 %v6202, %v6202
      %v6338 = vmul.f32 %v6203, %v6203
      %v6339 = vmul.f32 %v6204, %v6204
      %v6340 = vmul.f32 %v6205, %v6205
      %v6341 = vmul.f32 %v6206, %v6206
      %v6342 = vmul.f32 %v6207, %v6207
      %v6343 = vmul.f32 %v6208, %v6208
      %v6344 = vmul.f32 %v6209, %v6209
      %v6345 = vsel %vm1972, %v6313, 0.0
      %v6346 = vsel %vm1972, %v6314, 0.0
      %v6347 = vadd.f32 %v6345, %v6346
      %v6348 = vsel %vm1972, %v6315, 0.0
      %v6349 = vadd.f32 %v6347, %v6348
      %v6350 = vsel %vm1972, %v6316, 0.0
      %v6351 = vadd.f32 %v6349, %v6350
      %v6352 = vsel %vm1972, %v6317, 0.0
      %v6353 = vadd.f32 %v6351, %v6352
      %v6354 = vsel %vm1972, %v6318, 0.0
      %v6355 = vadd.f32 %v6353, %v6354
      %v6356 = vsel %vm1972, %v6319, 0.0
      %v6357 = vadd.f32 %v6355, %v6356
      %v6358 = vsel %vm1972, %v6320, 0.0
      %v6359 = vadd.f32 %v6357, %v6358
      %v6360 = vsel %vm1972, %v6321, 0.0
      %v6361 = vadd.f32 %v6359, %v6360
      %v6362 = vsel %vm1972, %v6322, 0.0
      %v6363 = vadd.f32 %v6361, %v6362
      %v6364 = vsel %vm1972, %v6323, 0.0
      %v6365 = vadd.f32 %v6363, %v6364
      %v6366 = vsel %vm1972, %v6324, 0.0
      %v6367 = vadd.f32 %v6365, %v6366
      %v6368 = vsel %vm1972, %v6325, 0.0
      %v6369 = vadd.f32 %v6367, %v6368
      %v6370 = vsel %vm1972, %v6326, 0.0
      %v6371 = vadd.f32 %v6369, %v6370
      %v6372 = vsel %vm1972, %v6327, 0.0
      %v6373 = vadd.f32 %v6371, %v6372
      %v6374 = vsel %vm1972, %v6328, 0.0
      %v6375 = vadd.f32 %v6373, %v6374
      %v6376 = vsel %vm1972, %v6329, 0.0
      %v6377 = vadd.f32 %v6375, %v6376
      %v6378 = vsel %vm1972, %v6330, 0.0
      %v6379 = vadd.f32 %v6377, %v6378
      %v6380 = vsel %vm1972, %v6331, 0.0
      %v6381 = vadd.f32 %v6379, %v6380
      %v6382 = vsel %vm1972, %v6332, 0.0
      %v6383 = vadd.f32 %v6381, %v6382
      %v6384 = vsel %vm1972, %v6333, 0.0
      %v6385 = vadd.f32 %v6383, %v6384
      %v6386 = vsel %vm1972, %v6334, 0.0
      %v6387 = vadd.f32 %v6385, %v6386
      %v6388 = vsel %vm1972, %v6335, 0.0
      %v6389 = vadd.f32 %v6387, %v6388
      %v6390 = vsel %vm1972, %v6336, 0.0
      %v6391 = vadd.f32 %v6389, %v6390
      %v6392 = vsel %vm1972, %v6337, 0.0
      %v6393 = vadd.f32 %v6391, %v6392
      %v6394 = vsel %vm1972, %v6338, 0.0
      %v6395 = vadd.f32 %v6393, %v6394
      %v6396 = vsel %vm1972, %v6339, 0.0
      %v6397 = vadd.f32 %v6395, %v6396
      %v6398 = vsel %vm1972, %v6340, 0.0
      %v6399 = vadd.f32 %v6397, %v6398
      %v6400 = vsel %vm1972, %v6341, 0.0
      %v6401 = vadd.f32 %v6399, %v6400
      %v6402 = vsel %vm1972, %v6342, 0.0
      %v6403 = vadd.f32 %v6401, %v6402
      %v6404 = vsel %vm1972, %v6343, 0.0
      %v6405 = vadd.f32 %v6403, %v6404
      %v6406 = vsel %vm1972, %v6344, 0.0
      %v6407 = vadd.f32 %v6405, %v6406
      %v6408 = vrot.slane %v6407, 4
      %v6409 = vadd.f32 %v6407, %v6408
      %v6410 = vrot.slane %v6409, 2
      %v6411 = vadd.f32 %v6409, %v6410
      %v6412 = vrot.slane %v6411, 1
      %v6413 = vadd.f32 %v6411, %v6412
      %v6414 = vadd.f32 %v4424, %v6413
      %v6415 = vld [vmem:[%s4425] sm:$0xe]
      %v6416 = vld [vmem:[%s4425 + $0x4] sm:$0xf]
      %v6417 = vld [vmem:[%s4425 + $0x8] sm:$0x1]
      %v6418 = vld [vmem:[%s4425 + $0xc] sm:$0xe]
      %v6419 = vld [vmem:[%s4425 + $0x10] sm:$0xf]
      %v6420 = vld [vmem:[%s4425 + $0x14] sm:$0x1]
      %v6421 = vld [vmem:[%s4425 + $0x18] sm:$0xe]
      %v6422 = vld [vmem:[%s4425 + $0x1c] sm:$0xf]
      %v6423 = vld [vmem:[%s4425 + $0x20] sm:$0x1]
      %v6424 = vld [vmem:[%s4425 + $0x24] sm:$0xe]
      %v6425 = vld [vmem:[%s4425 + $0x28] sm:$0xf]
      %v6426 = vld [vmem:[%s4425 + $0x2c] sm:$0x1]
      %v6427 = vld [vmem:[%s4425 + $0x30] sm:$0xe]
      %v6428 = vld [vmem:[%s4425 + $0x34] sm:$0xf]
      %v6429 = vld [vmem:[%s4425 + $0x38] sm:$0x1]
      %v6430 = vld [vmem:[%s4425 + $0x3c] sm:$0xe]
      %v6431 = vld [vmem:[%s4425 + $0x40] sm:$0xf]
      %v6432 = vld [vmem:[%s4425 + $0x44] sm:$0x1]
      %v6433 = vld [vmem:[%s4425 + $0x48] sm:$0xe]
      %v6434 = vld [vmem:[%s4425 + $0x4c] sm:$0xf]
      %v6435 = vld [vmem:[%s4425 + $0x50] sm:$0x1]
      %v6436 = vld [vmem:[%s4425 + $0x54] sm:$0xe]
      %v6437 = vld [vmem:[%s4425 + $0x58] sm:$0xf]
      %v6438 = vld [vmem:[%s4425 + $0x5c] sm:$0x1]
      %v6439 = vld [vmem:[%s4425 + $0x60] sm:$0xe]
      %v6440 = vld [vmem:[%s4425 + $0x64] sm:$0xf]
      %v6441 = vld [vmem:[%s4425 + $0x68] sm:$0x1]
      %v6442 = vld [vmem:[%s4425 + $0x6c] sm:$0xe]
      %v6443 = vld [vmem:[%s4425 + $0x70] sm:$0xf]
      %v6444 = vld [vmem:[%s4425 + $0x74] sm:$0x1]
      %v6445 = vld [vmem:[%s4425 + $0x78] sm:$0xe]
      %v6446 = vld [vmem:[%s4425 + $0x7c] sm:$0xf]
      %v6447 = vld [vmem:[%s4425 + $0x80] sm:$0x1]
      %v6448 = vld [vmem:[%s4425 + $0x84] sm:$0xe]
      %v6449 = vld [vmem:[%s4425 + $0x88] sm:$0xf]
      %v6450 = vld [vmem:[%s4425 + $0x8c] sm:$0x1]
      %v6451 = vld [vmem:[%s4425 + $0x90] sm:$0xe]
      %v6452 = vld [vmem:[%s4425 + $0x94] sm:$0xf]
      %v6453 = vld [vmem:[%s4425 + $0x98] sm:$0x1]
      %v6454 = vld [vmem:[%s4425 + $0x9c] sm:$0xe]
      %v6455 = vld [vmem:[%s4425 + $0xa0] sm:$0xf]
      %v6456 = vld [vmem:[%s4425 + $0xa4] sm:$0x1]
      %v6457 = vld [vmem:[%s4425 + $0xa8] sm:$0xe]
      %v6458 = vld [vmem:[%s4425 + $0xac] sm:$0xf]
      %v6459 = vld [vmem:[%s4425 + $0xb0] sm:$0x1]
      %v6460 = vld [vmem:[%s4425 + $0xb4] sm:$0xe]
      %v6461 = vld [vmem:[%s4425 + $0xb8] sm:$0xf]
      %v6462 = vld [vmem:[%s4425 + $0xbc] sm:$0x1]
      %v6511 = vrot.slane %v6415, 5
      %v6512 = vrot.slane %v6511, 4
      %v6513 = vrot.slane %v6416, 5
      %v6514 = vsel %vm2275, %v6512, %v6513
      %v6515 = vrot.slane %v6513, 4
      %v6516 = vrot.slane %v6417, 5
      %v6517 = vsel %vm2275, %v6515, %v6516
      %v6518 = vrot.slane %v6418, 5
      %v6519 = vrot.slane %v6518, 4
      %v6520 = vrot.slane %v6419, 5
      %v6521 = vsel %vm2275, %v6519, %v6520
      %v6522 = vrot.slane %v6520, 4
      %v6523 = vrot.slane %v6420, 5
      %v6524 = vsel %vm2275, %v6522, %v6523
      %v6525 = vrot.slane %v6421, 5
      %v6526 = vrot.slane %v6525, 4
      %v6527 = vrot.slane %v6422, 5
      %v6528 = vsel %vm2275, %v6526, %v6527
      %v6529 = vrot.slane %v6527, 4
      %v6530 = vrot.slane %v6423, 5
      %v6531 = vsel %vm2275, %v6529, %v6530
      %v6532 = vrot.slane %v6424, 5
      %v6533 = vrot.slane %v6532, 4
      %v6534 = vrot.slane %v6425, 5
      %v6535 = vsel %vm2275, %v6533, %v6534
      %v6536 = vrot.slane %v6534, 4
      %v6537 = vrot.slane %v6426, 5
      %v6538 = vsel %vm2275, %v6536, %v6537
      %v6539 = vrot.slane %v6427, 5
      %v6540 = vrot.slane %v6539, 4
      %v6541 = vrot.slane %v6428, 5
      %v6542 = vsel %vm2275, %v6540, %v6541
      %v6543 = vrot.slane %v6541, 4
      %v6544 = vrot.slane %v6429, 5
      %v6545 = vsel %vm2275, %v6543, %v6544
      %v6546 = vrot.slane %v6430, 5
      %v6547 = vrot.slane %v6546, 4
      %v6548 = vrot.slane %v6431, 5
      %v6549 = vsel %vm2275, %v6547, %v6548
      %v6550 = vrot.slane %v6548, 4
      %v6551 = vrot.slane %v6432, 5
      %v6552 = vsel %vm2275, %v6550, %v6551
      %v6553 = vrot.slane %v6433, 5
      %v6554 = vrot.slane %v6553, 4
      %v6555 = vrot.slane %v6434, 5
      %v6556 = vsel %vm2275, %v6554, %v6555
      %v6557 = vrot.slane %v6555, 4
      %v6558 = vrot.slane %v6435, 5
      %v6559 = vsel %vm2275, %v6557, %v6558
      %v6560 = vrot.slane %v6436, 5
      %v6561 = vrot.slane %v6560, 4
      %v6562 = vrot.slane %v6437, 5
      %v6563 = vsel %vm2275, %v6561, %v6562
      %v6564 = vrot.slane %v6562, 4
      %v6565 = vrot.slane %v6438, 5
      %v6566 = vsel %vm2275, %v6564, %v6565
      %v6567 = vrot.slane %v6439, 5
      %v6568 = vrot.slane %v6567, 4
      %v6569 = vrot.slane %v6440, 5
      %v6570 = vsel %vm2275, %v6568, %v6569
      %v6571 = vrot.slane %v6569, 4
      %v6572 = vrot.slane %v6441, 5
      %v6573 = vsel %vm2275, %v6571, %v6572
      %v6574 = vrot.slane %v6442, 5
      %v6575 = vrot.slane %v6574, 4
      %v6576 = vrot.slane %v6443, 5
      %v6577 = vsel %vm2275, %v6575, %v6576
      %v6578 = vrot.slane %v6576, 4
      %v6579 = vrot.slane %v6444, 5
      %v6580 = vsel %vm2275, %v6578, %v6579
      %v6581 = vrot.slane %v6445, 5
      %v6582 = vrot.slane %v6581, 4
      %v6583 = vrot.slane %v6446, 5
      %v6584 = vsel %vm2275, %v6582, %v6583
      %v6585 = vrot.slane %v6583, 4
      %v6586 = vrot.slane %v6447, 5
      %v6587 = vsel %vm2275, %v6585, %v6586
      %v6588 = vrot.slane %v6448, 5
      %v6589 = vrot.slane %v6588, 4
      %v6590 = vrot.slane %v6449, 5
      %v6591 = vsel %vm2275, %v6589, %v6590
      %v6592 = vrot.slane %v6590, 4
      %v6593 = vrot.slane %v6450, 5
      %v6594 = vsel %vm2275, %v6592, %v6593
      %v6595 = vrot.slane %v6451, 5
      %v6596 = vrot.slane %v6595, 4
      %v6597 = vrot.slane %v6452, 5
      %v6598 = vsel %vm2275, %v6596, %v6597
      %v6599 = vrot.slane %v6597, 4
      %v6600 = vrot.slane %v6453, 5
      %v6601 = vsel %vm2275, %v6599, %v6600
      %v6602 = vrot.slane %v6454, 5
      %v6603 = vrot.slane %v6602, 4
      %v6604 = vrot.slane %v6455, 5
      %v6605 = vsel %vm2275, %v6603, %v6604
      %v6606 = vrot.slane %v6604, 4
      %v6607 = vrot.slane %v6456, 5
      %v6608 = vsel %vm2275, %v6606, %v6607
      %v6609 = vrot.slane %v6457, 5
      %v6610 = vrot.slane %v6609, 4
      %v6611 = vrot.slane %v6458, 5
      %v6612 = vsel %vm2275, %v6610, %v6611
      %v6613 = vrot.slane %v6611, 4
      %v6614 = vrot.slane %v6459, 5
      %v6615 = vsel %vm2275, %v6613, %v6614
      %v6616 = vrot.slane %v6460, 5
      %v6617 = vrot.slane %v6616, 4
      %v6618 = vrot.slane %v6461, 5
      %v6619 = vsel %vm2275, %v6617, %v6618
      %v6620 = vrot.slane %v6618, 4
      %v6621 = vrot.slane %v6462, 5
      %v6622 = vsel %vm2275, %v6620, %v6621
      %v6623 = vld [vmem:[%s172] sm:$0xf]
      %v6624 = vld [vmem:[%s4425] sm:$0xf]
      %v6625 = vld [vmem:[%s4425 + $0xc] sm:$0xf]
      %v6626 = vld [vmem:[%s4425 + $0x18] sm:$0xf]
      %v6627 = vld [vmem:[%s4425 + $0x24] sm:$0xf]
      %v6628 = vld [vmem:[%s4425 + $0x30] sm:$0xf]
      %v6629 = vld [vmem:[%s4425 + $0x3c] sm:$0xf]
      %v6630 = vld [vmem:[%s4425 + $0x48] sm:$0xf]
      %v6631 = vld [vmem:[%s4425 + $0x54] sm:$0xf]
      %v6632 = vld [vmem:[%s4425 + $0x60] sm:$0xf]
      %v6633 = vld [vmem:[%s4425 + $0x6c] sm:$0xf]
      %v6634 = vld [vmem:[%s4425 + $0x78] sm:$0xf]
      %v6635 = vld [vmem:[%s4425 + $0x84] sm:$0xf]
      %v6636 = vld [vmem:[%s4425 + $0x90] sm:$0xf]
      %v6637 = vld [vmem:[%s4425 + $0x9c] sm:$0xf]
      %v6638 = vld [vmem:[%s4425 + $0xa8] sm:$0xf]
      %v6639 = vld [vmem:[%s4425 + $0xb4] sm:$0xf]
      %v6641 = vshrl.u32 %v6624, 16
      %v6643 = vrot.slane %v6641, 4
      %v6644 = vshll.u32 %v6624, 16
      %v6646 = vrot.slane %v6644, 5
      %v6647 = vor.u32 %v6643, %v6646
      %v6648 = vrot.slane %v6647, 4
      %v6650 = vshll.u32 %v6416, 16
      %v6652 = vrot.slane %v6650, 5
      %v6653 = vsel %vm233, %v6648, %v6652
      %v6654 = vshrl.u32 %v6416, 16
      %v6656 = vrot.slane %v6654, 4
      %v6657 = vor.u32 %v6656, %v6652
      %v6658 = vrot.slane %v6657, 4
      %v6660 = vshll.u32 %v6417, 16
      %v6662 = vrot.slane %v6660, 5
      %v6663 = vsel %vm233, %v6658, %v6662
      %v6665 = vshrl.u32 %v6625, 16
      %v6667 = vrot.slane %v6665, 4
      %v6668 = vshll.u32 %v6625, 16
      %v6670 = vrot.slane %v6668, 5
      %v6671 = vor.u32 %v6667, %v6670
      %v6672 = vrot.slane %v6671, 4
      %v6674 = vshll.u32 %v6419, 16
      %v6676 = vrot.slane %v6674, 5
      %v6677 = vsel %vm233, %v6672, %v6676
      %v6678 = vshrl.u32 %v6419, 16
      %v6680 = vrot.slane %v6678, 4
      %v6681 = vor.u32 %v6680, %v6676
      %v6682 = vrot.slane %v6681, 4
      %v6684 = vshll.u32 %v6420, 16
      %v6686 = vrot.slane %v6684, 5
      %v6687 = vsel %vm233, %v6682, %v6686
      %v6689 = vshrl.u32 %v6626, 16
      %v6691 = vrot.slane %v6689, 4
      %v6692 = vshll.u32 %v6626, 16
      %v6694 = vrot.slane %v6692, 5
      %v6695 = vor.u32 %v6691, %v6694
      %v6696 = vrot.slane %v6695, 4
      %v6698 = vshll.u32 %v6422, 16
      %v6700 = vrot.slane %v6698, 5
      %v6701 = vsel %vm233, %v6696, %v6700
      %v6702 = vshrl.u32 %v6422, 16
      %v6704 = vrot.slane %v6702, 4
      %v6705 = vor.u32 %v6704, %v6700
      %v6706 = vrot.slane %v6705, 4
      %v6708 = vshll.u32 %v6423, 16
      %v6710 = vrot.slane %v6708, 5
      %v6711 = vsel %vm233, %v6706, %v6710
      %v6713 = vshrl.u32 %v6627, 16
      %v6715 = vrot.slane %v6713, 4
      %v6716 = vshll.u32 %v6627, 16
      %v6718 = vrot.slane %v6716, 5
      %v6719 = vor.u32 %v6715, %v6718
      %v6720 = vrot.slane %v6719, 4
      %v6722 = vshll.u32 %v6425, 16
      %v6724 = vrot.slane %v6722, 5
      %v6725 = vsel %vm233, %v6720, %v6724
      %v6726 = vshrl.u32 %v6425, 16
      %v6728 = vrot.slane %v6726, 4
      %v6729 = vor.u32 %v6728, %v6724
      %v6730 = vrot.slane %v6729, 4
      %v6732 = vshll.u32 %v6426, 16
      %v6734 = vrot.slane %v6732, 5
      %v6735 = vsel %vm233, %v6730, %v6734
      %v6737 = vshrl.u32 %v6628, 16
      %v6739 = vrot.slane %v6737, 4
      %v6740 = vshll.u32 %v6628, 16
      %v6742 = vrot.slane %v6740, 5
      %v6743 = vor.u32 %v6739, %v6742
      %v6744 = vrot.slane %v6743, 4
      %v6746 = vshll.u32 %v6428, 16
      %v6748 = vrot.slane %v6746, 5
      %v6749 = vsel %vm233, %v6744, %v6748
      %v6750 = vshrl.u32 %v6428, 16
      %v6752 = vrot.slane %v6750, 4
      %v6753 = vor.u32 %v6752, %v6748
      %v6754 = vrot.slane %v6753, 4
      %v6756 = vshll.u32 %v6429, 16
      %v6758 = vrot.slane %v6756, 5
      %v6759 = vsel %vm233, %v6754, %v6758
      %v6761 = vshrl.u32 %v6629, 16
      %v6763 = vrot.slane %v6761, 4
      %v6764 = vshll.u32 %v6629, 16
      %v6766 = vrot.slane %v6764, 5
      %v6767 = vor.u32 %v6763, %v6766
      %v6768 = vrot.slane %v6767, 4
      %v6770 = vshll.u32 %v6431, 16
      %v6772 = vrot.slane %v6770, 5
      %v6773 = vsel %vm233, %v6768, %v6772
      %v6774 = vshrl.u32 %v6431, 16
      %v6776 = vrot.slane %v6774, 4
      %v6777 = vor.u32 %v6776, %v6772
      %v6778 = vrot.slane %v6777, 4
      %v6780 = vshll.u32 %v6432, 16
      %v6782 = vrot.slane %v6780, 5
      %v6783 = vsel %vm233, %v6778, %v6782
      %v6785 = vshrl.u32 %v6630, 16
      %v6787 = vrot.slane %v6785, 4
      %v6788 = vshll.u32 %v6630, 16
      %v6790 = vrot.slane %v6788, 5
      %v6791 = vor.u32 %v6787, %v6790
      %v6792 = vrot.slane %v6791, 4
      %v6794 = vshll.u32 %v6434, 16
      %v6796 = vrot.slane %v6794, 5
      %v6797 = vsel %vm233, %v6792, %v6796
      %v6798 = vshrl.u32 %v6434, 16
      %v6800 = vrot.slane %v6798, 4
      %v6801 = vor.u32 %v6800, %v6796
      %v6802 = vrot.slane %v6801, 4
      %v6804 = vshll.u32 %v6435, 16
      %v6806 = vrot.slane %v6804, 5
      %v6807 = vsel %vm233, %v6802, %v6806
      %v6809 = vshrl.u32 %v6631, 16
      %v6811 = vrot.slane %v6809, 4
      %v6812 = vshll.u32 %v6631, 16
      %v6814 = vrot.slane %v6812, 5
      %v6815 = vor.u32 %v6811, %v6814
      %v6816 = vrot.slane %v6815, 4
      %v6818 = vshll.u32 %v6437, 16
      %v6820 = vrot.slane %v6818, 5
      %v6821 = vsel %vm233, %v6816, %v6820
      %v6822 = vshrl.u32 %v6437, 16
      %v6824 = vrot.slane %v6822, 4
      %v6825 = vor.u32 %v6824, %v6820
      %v6826 = vrot.slane %v6825, 4
      %v6828 = vshll.u32 %v6438, 16
      %v6830 = vrot.slane %v6828, 5
      %v6831 = vsel %vm233, %v6826, %v6830
      %v6833 = vshrl.u32 %v6632, 16
      %v6835 = vrot.slane %v6833, 4
      %v6836 = vshll.u32 %v6632, 16
      %v6838 = vrot.slane %v6836, 5
      %v6839 = vor.u32 %v6835, %v6838
      %v6840 = vrot.slane %v6839, 4
      %v6842 = vshll.u32 %v6440, 16
      %v6844 = vrot.slane %v6842, 5
      %v6845 = vsel %vm233, %v6840, %v6844
      %v6846 = vshrl.u32 %v6440, 16
      %v6848 = vrot.slane %v6846, 4
      %v6849 = vor.u32 %v6848, %v6844
      %v6850 = vrot.slane %v6849, 4
      %v6852 = vshll.u32 %v6441, 16
      %v6854 = vrot.slane %v6852, 5
      %v6855 = vsel %vm233, %v6850, %v6854
      %v6857 = vshrl.u32 %v6633, 16
      %v6859 = vrot.slane %v6857, 4
      %v6860 = vshll.u32 %v6633, 16
      %v6862 = vrot.slane %v6860, 5
      %v6863 = vor.u32 %v6859, %v6862
      %v6864 = vrot.slane %v6863, 4
      %v6866 = vshll.u32 %v6443, 16
      %v6868 = vrot.slane %v6866, 5
      %v6869 = vsel %vm233, %v6864, %v6868
      %v6870 = vshrl.u32 %v6443, 16
      %v6872 = vrot.slane %v6870, 4
      %v6873 = vor.u32 %v6872, %v6868
      %v6874 = vrot.slane %v6873, 4
      %v6876 = vshll.u32 %v6444, 16
      %v6878 = vrot.slane %v6876, 5
      %v6879 = vsel %vm233, %v6874, %v6878
      %v6881 = vshrl.u32 %v6634, 16
      %v6883 = vrot.slane %v6881, 4
      %v6884 = vshll.u32 %v6634, 16
      %v6886 = vrot.slane %v6884, 5
      %v6887 = vor.u32 %v6883, %v6886
      %v6888 = vrot.slane %v6887, 4
      %v6890 = vshll.u32 %v6446, 16
      %v6892 = vrot.slane %v6890, 5
      %v6893 = vsel %vm233, %v6888, %v6892
      %v6894 = vshrl.u32 %v6446, 16
      %v6896 = vrot.slane %v6894, 4
      %v6897 = vor.u32 %v6896, %v6892
      %v6898 = vrot.slane %v6897, 4
      %v6900 = vshll.u32 %v6447, 16
      %v6902 = vrot.slane %v6900, 5
      %v6903 = vsel %vm233, %v6898, %v6902
      %v6905 = vshrl.u32 %v6635, 16
      %v6907 = vrot.slane %v6905, 4
      %v6908 = vshll.u32 %v6635, 16
      %v6910 = vrot.slane %v6908, 5
      %v6911 = vor.u32 %v6907, %v6910
      %v6912 = vrot.slane %v6911, 4
      %v6914 = vshll.u32 %v6449, 16
      %v6916 = vrot.slane %v6914, 5
      %v6917 = vsel %vm233, %v6912, %v6916
      %v6918 = vshrl.u32 %v6449, 16
      %v6920 = vrot.slane %v6918, 4
      %v6921 = vor.u32 %v6920, %v6916
      %v6922 = vrot.slane %v6921, 4
      %v6924 = vshll.u32 %v6450, 16
      %v6926 = vrot.slane %v6924, 5
      %v6927 = vsel %vm233, %v6922, %v6926
      %v6929 = vshrl.u32 %v6636, 16
      %v6931 = vrot.slane %v6929, 4
      %v6932 = vshll.u32 %v6636, 16
      %v6934 = vrot.slane %v6932, 5
      %v6935 = vor.u32 %v6931, %v6934
      %v6936 = vrot.slane %v6935, 4
      %v6938 = vshll.u32 %v6452, 16
      %v6940 = vrot.slane %v6938, 5
      %v6941 = vsel %vm233, %v6936, %v6940
      %v6942 = vshrl.u32 %v6452, 16
      %v6944 = vrot.slane %v6942, 4
      %v6945 = vor.u32 %v6944, %v6940
      %v6946 = vrot.slane %v6945, 4
      %v6948 = vshll.u32 %v6453, 16
      %v6950 = vrot.slane %v6948, 5
      %v6951 = vsel %vm233, %v6946, %v6950
      %v6953 = vshrl.u32 %v6637, 16
      %v6955 = vrot.slane %v6953, 4
      %v6956 = vshll.u32 %v6637, 16
      %v6958 = vrot.slane %v6956, 5
      %v6959 = vor.u32 %v6955, %v6958
      %v6960 = vrot.slane %v6959, 4
      %v6962 = vshll.u32 %v6455, 16
      %v6964 = vrot.slane %v6962, 5
      %v6965 = vsel %vm233, %v6960, %v6964
      %v6966 = vshrl.u32 %v6455, 16
      %v6968 = vrot.slane %v6966, 4
      %v6969 = vor.u32 %v6968, %v6964
      %v6970 = vrot.slane %v6969, 4
      %v6972 = vshll.u32 %v6456, 16
      %v6974 = vrot.slane %v6972, 5
      %v6975 = vsel %vm233, %v6970, %v6974
      %v6977 = vshrl.u32 %v6638, 16
      %v6979 = vrot.slane %v6977, 4
      %v6980 = vshll.u32 %v6638, 16
      %v6982 = vrot.slane %v6980, 5
      %v6983 = vor.u32 %v6979, %v6982
      %v6984 = vrot.slane %v6983, 4
      %v6986 = vshll.u32 %v6458, 16
      %v6988 = vrot.slane %v6986, 5
      %v6989 = vsel %vm233, %v6984, %v6988
      %v6990 = vshrl.u32 %v6458, 16
      %v6992 = vrot.slane %v6990, 4
      %v6993 = vor.u32 %v6992, %v6988
      %v6994 = vrot.slane %v6993, 4
      %v6996 = vshll.u32 %v6459, 16
      %v6998 = vrot.slane %v6996, 5
      %v6999 = vsel %vm233, %v6994, %v6998
      %v7001 = vshrl.u32 %v6639, 16
      %v7003 = vrot.slane %v7001, 4
      %v7004 = vshll.u32 %v6639, 16
      %v7006 = vrot.slane %v7004, 5
      %v7007 = vor.u32 %v7003, %v7006
      %v7008 = vrot.slane %v7007, 4
      %v7010 = vshll.u32 %v6461, 16
      %v7012 = vrot.slane %v7010, 5
      %v7013 = vsel %vm233, %v7008, %v7012
      %v7014 = vshrl.u32 %v6461, 16
      %v7016 = vrot.slane %v7014, 4
      %v7017 = vor.u32 %v7016, %v7012
      %v7018 = vrot.slane %v7017, 4
      %v7020 = vshll.u32 %v6462, 16
      %v7022 = vrot.slane %v7020, 5
      %v7023 = vsel %vm233, %v7018, %v7022
      %s7024 = scalar_lea.vmem %s172, 8
      %v7025 = vld [vmem:[%s7024] sm:$0xf]
      %v7026 = vunpack.c.l.b16 %v6653
      %v7027 = vunpack.c.l.b16 %v6663
      %v7028 = vunpack.c.l.b16 %v6677
      %v7029 = vunpack.c.l.b16 %v6687
      %v7030 = vunpack.c.l.b16 %v6701
      %v7031 = vunpack.c.l.b16 %v6711
      %v7032 = vunpack.c.l.b16 %v6725
      %v7033 = vunpack.c.l.b16 %v6735
      %v7034 = vunpack.c.l.b16 %v6749
      %v7035 = vunpack.c.l.b16 %v6759
      %v7036 = vunpack.c.l.b16 %v6773
      %v7037 = vunpack.c.l.b16 %v6783
      %v7038 = vunpack.c.l.b16 %v6797
      %v7039 = vunpack.c.l.b16 %v6807
      %v7040 = vunpack.c.l.b16 %v6821
      %v7041 = vunpack.c.l.b16 %v6831
      %v7042 = vunpack.c.l.b16 %v6845
      %v7043 = vunpack.c.l.b16 %v6855
      %v7044 = vunpack.c.l.b16 %v6869
      %v7045 = vunpack.c.l.b16 %v6879
      %v7046 = vunpack.c.l.b16 %v6893
      %v7047 = vunpack.c.l.b16 %v6903
      %v7048 = vunpack.c.l.b16 %v6917
      %v7049 = vunpack.c.l.b16 %v6927
      %v7050 = vunpack.c.l.b16 %v6941
      %v7051 = vunpack.c.l.b16 %v6951
      %v7052 = vunpack.c.l.b16 %v6965
      %v7053 = vunpack.c.l.b16 %v6975
      %v7054 = vunpack.c.l.b16 %v6989
      %v7055 = vunpack.c.l.b16 %v6999
      %v7056 = vunpack.c.l.b16 %v7013
      %v7057 = vunpack.c.l.b16 %v7023
      %v7058 = vpack.c.b16 %v7027, %v7026
      %v7059 = vpack.c.b16 %v7029, %v7028
      %v7060 = vpack.c.b16 %v7031, %v7030
      %v7061 = vpack.c.b16 %v7033, %v7032
      %v7062 = vpack.c.b16 %v7035, %v7034
      %v7063 = vpack.c.b16 %v7037, %v7036
      %v7064 = vpack.c.b16 %v7039, %v7038
      %v7065 = vpack.c.b16 %v7041, %v7040
      %v7066 = vpack.c.b16 %v7043, %v7042
      %v7067 = vpack.c.b16 %v7045, %v7044
      %v7068 = vpack.c.b16 %v7047, %v7046
      %v7069 = vpack.c.b16 %v7049, %v7048
      %v7070 = vpack.c.b16 %v7051, %v7050
      %v7071 = vpack.c.b16 %v7053, %v7052
      %v7072 = vpack.c.b16 %v7055, %v7054
      %v7073 = vpack.c.b16 %v7057, %v7056
      %v7075 = vsel %vm702, %v7058, 0
      %v7078 = vsel %vm702, %v7059, 0
      %v7081 = vsel %vm702, %v7060, 0
      %v7084 = vsel %vm702, %v7061, 0
      %v7087 = vsel %vm702, %v7062, 0
      %v7090 = vsel %vm702, %v7063, 0
      %v7093 = vsel %vm702, %v7064, 0
      %v7096 = vsel %vm702, %v7065, 0
      %v7099 = vsel %vm702, %v7066, 0
      %v7102 = vsel %vm702, %v7067, 0
      %v7105 = vsel %vm702, %v7068, 0
      %v7108 = vsel %vm702, %v7069, 0
      %v7111 = vsel %vm702, %v7070, 0
      %v7114 = vsel %vm702, %v7071, 0
      %v7117 = vsel %vm702, %v7072, 0
      %v7120 = vsel %vm702, %v7073, 0
      %v7123 = vsel %vm751, %v7025, 0
      %7125 = vmatpush.bf16.msra.mxu0 0
      %7126 = vmatpush.bf16.msra.mxu0 0
      %7127 = vmatpush.bf16.msra.mxu0 0
      %7128 = vmatpush.bf16.msra.mxu0 0
      %7129 = vmatpush.bf16.msra.mxu0 0
      %7130 = vmatpush.bf16.msra.mxu0 0
      %7131 = vmatpush.bf16.msra.mxu0 0
      %7132 = vmatpush.bf16.msra.mxu0 %v7123
      %7133 = vmatmul.bf16.gmra.mxu0 %v7075
      %v7134 = vpop.f32.mrf.mxu0
      %v7135 = vadd.f32 0.0, %v7134
      %v7136 = vpop.f32.mrf.mxu0
      %v7137 = vadd.f32 0.0, %v7136
      %7138 = vmatmul.bf16.gmra.mxu0 %v7078
      %v7139 = vpop.f32.mrf.mxu0
      %v7140 = vadd.f32 0.0, %v7139
      %v7141 = vpop.f32.mrf.mxu0
      %v7142 = vadd.f32 0.0, %v7141
      %7143 = vmatmul.bf16.gmra.mxu0 %v7081
      %v7144 = vpop.f32.mrf.mxu0
      %v7145 = vadd.f32 0.0, %v7144
      %v7146 = vpop.f32.mrf.mxu0
      %v7147 = vadd.f32 0.0, %v7146
      %7148 = vmatmul.bf16.gmra.mxu0 %v7084
      %v7149 = vpop.f32.mrf.mxu0
      %v7150 = vadd.f32 0.0, %v7149
      %v7151 = vpop.f32.mrf.mxu0
      %v7152 = vadd.f32 0.0, %v7151
      %7153 = vmatmul.bf16.gmra.mxu0 %v7087
      %v7154 = vpop.f32.mrf.mxu0
      %v7155 = vadd.f32 0.0, %v7154
      %v7156 = vpop.f32.mrf.mxu0
      %v7157 = vadd.f32 0.0, %v7156
      %7158 = vmatmul.bf16.gmra.mxu0 %v7090
      %v7159 = vpop.f32.mrf.mxu0
      %v7160 = vadd.f32 0.0, %v7159
      %v7161 = vpop.f32.mrf.mxu0
      %v7162 = vadd.f32 0.0, %v7161
      %7163 = vmatmul.bf16.gmra.mxu0 %v7093
      %v7164 = vpop.f32.mrf.mxu0
      %v7165 = vadd.f32 0.0, %v7164
      %v7166 = vpop.f32.mrf.mxu0
      %v7167 = vadd.f32 0.0, %v7166
      %7168 = vmatmul.bf16.gmra.mxu0 %v7096
      %v7169 = vpop.f32.mrf.mxu0
      %v7170 = vadd.f32 0.0, %v7169
      %v7171 = vpop.f32.mrf.mxu0
      %v7172 = vadd.f32 0.0, %v7171
      %7173 = vmatmul.bf16.gmra.mxu0 %v7099
      %v7174 = vpop.f32.mrf.mxu0
      %v7175 = vadd.f32 0.0, %v7174
      %v7176 = vpop.f32.mrf.mxu0
      %v7177 = vadd.f32 0.0, %v7176
      %7178 = vmatmul.bf16.gmra.mxu0 %v7102
      %v7179 = vpop.f32.mrf.mxu0
      %v7180 = vadd.f32 0.0, %v7179
      %v7181 = vpop.f32.mrf.mxu0
      %v7182 = vadd.f32 0.0, %v7181
      %7183 = vmatmul.bf16.gmra.mxu0 %v7105
      %v7184 = vpop.f32.mrf.mxu0
      %v7185 = vadd.f32 0.0, %v7184
      %v7186 = vpop.f32.mrf.mxu0
      %v7187 = vadd.f32 0.0, %v7186
      %7188 = vmatmul.bf16.gmra.mxu0 %v7108
      %v7189 = vpop.f32.mrf.mxu0
      %v7190 = vadd.f32 0.0, %v7189
      %v7191 = vpop.f32.mrf.mxu0
      %v7192 = vadd.f32 0.0, %v7191
      %7193 = vmatmul.bf16.gmra.mxu0 %v7111
      %v7194 = vpop.f32.mrf.mxu0
      %v7195 = vadd.f32 0.0, %v7194
      %v7196 = vpop.f32.mrf.mxu0
      %v7197 = vadd.f32 0.0, %v7196
      %7198 = vmatmul.bf16.gmra.mxu0 %v7114
      %v7199 = vpop.f32.mrf.mxu0
      %v7200 = vadd.f32 0.0, %v7199
      %v7201 = vpop.f32.mrf.mxu0
      %v7202 = vadd.f32 0.0, %v7201
      %7203 = vmatmul.bf16.gmra.mxu0 %v7117
      %v7204 = vpop.f32.mrf.mxu0
      %v7205 = vadd.f32 0.0, %v7204
      %v7206 = vpop.f32.mrf.mxu0
      %v7207 = vadd.f32 0.0, %v7206
      %7208 = vmatmul.bf16.gmra.mxu0 %v7120
      %v7209 = vpop.f32.mrf.mxu0
      %v7210 = vadd.f32 0.0, %v7209
      %v7211 = vpop.f32.mrf.mxu0
      %v7212 = vadd.f32 0.0, %v7211
      %7213 = vdwg.mxu0
      %v7214 = vunpack.c.l.b16 %v6514
      %v7215 = vunpack.c.l.b16 %v6517
      %v7216 = vunpack.c.l.b16 %v6521
      %v7217 = vunpack.c.l.b16 %v6524
      %v7218 = vunpack.c.l.b16 %v6528
      %v7219 = vunpack.c.l.b16 %v6531
      %v7220 = vunpack.c.l.b16 %v6535
      %v7221 = vunpack.c.l.b16 %v6538
      %v7222 = vunpack.c.l.b16 %v6542
      %v7223 = vunpack.c.l.b16 %v6545
      %v7224 = vunpack.c.l.b16 %v6549
      %v7225 = vunpack.c.l.b16 %v6552
      %v7226 = vunpack.c.l.b16 %v6556
      %v7227 = vunpack.c.l.b16 %v6559
      %v7228 = vunpack.c.l.b16 %v6563
      %v7229 = vunpack.c.l.b16 %v6566
      %v7230 = vunpack.c.l.b16 %v6570
      %v7231 = vunpack.c.l.b16 %v6573
      %v7232 = vunpack.c.l.b16 %v6577
      %v7233 = vunpack.c.l.b16 %v6580
      %v7234 = vunpack.c.l.b16 %v6584
      %v7235 = vunpack.c.l.b16 %v6587
      %v7236 = vunpack.c.l.b16 %v6591
      %v7237 = vunpack.c.l.b16 %v6594
      %v7238 = vunpack.c.l.b16 %v6598
      %v7239 = vunpack.c.l.b16 %v6601
      %v7240 = vunpack.c.l.b16 %v6605
      %v7241 = vunpack.c.l.b16 %v6608
      %v7242 = vunpack.c.l.b16 %v6612
      %v7243 = vunpack.c.l.b16 %v6615
      %v7244 = vunpack.c.l.b16 %v6619
      %v7245 = vunpack.c.l.b16 %v6622
      %v7246 = vpack.c.b16 %v7215, %v7214
      %v7247 = vpack.c.b16 %v7217, %v7216
      %v7248 = vpack.c.b16 %v7219, %v7218
      %v7249 = vpack.c.b16 %v7221, %v7220
      %v7250 = vpack.c.b16 %v7223, %v7222
      %v7251 = vpack.c.b16 %v7225, %v7224
      %v7252 = vpack.c.b16 %v7227, %v7226
      %v7253 = vpack.c.b16 %v7229, %v7228
      %v7254 = vpack.c.b16 %v7231, %v7230
      %v7255 = vpack.c.b16 %v7233, %v7232
      %v7256 = vpack.c.b16 %v7235, %v7234
      %v7257 = vpack.c.b16 %v7237, %v7236
      %v7258 = vpack.c.b16 %v7239, %v7238
      %v7259 = vpack.c.b16 %v7241, %v7240
      %v7260 = vpack.c.b16 %v7243, %v7242
      %v7261 = vpack.c.b16 %v7245, %v7244
      %v7263 = vsel %vm702, %v7246, 0
      %v7266 = vsel %vm702, %v7247, 0
      %v7269 = vsel %vm702, %v7248, 0
      %v7272 = vsel %vm702, %v7249, 0
      %v7275 = vsel %vm702, %v7250, 0
      %v7278 = vsel %vm702, %v7251, 0
      %v7281 = vsel %vm702, %v7252, 0
      %v7284 = vsel %vm702, %v7253, 0
      %v7287 = vsel %vm702, %v7254, 0
      %v7290 = vsel %vm702, %v7255, 0
      %v7293 = vsel %vm702, %v7256, 0
      %v7296 = vsel %vm702, %v7257, 0
      %v7299 = vsel %vm702, %v7258, 0
      %v7302 = vsel %vm702, %v7259, 0
      %v7305 = vsel %vm702, %v7260, 0
      %v7308 = vsel %vm702, %v7261, 0
      %v7311 = vsel %vm751, %v6623, 0
      %7313 = vmatpush.bf16.msra.mxu0 0
      %7314 = vmatpush.bf16.msra.mxu0 0
      %7315 = vmatpush.bf16.msra.mxu0 0
      %7316 = vmatpush.bf16.msra.mxu0 0
      %7317 = vmatpush.bf16.msra.mxu0 0
      %7318 = vmatpush.bf16.msra.mxu0 0
      %7319 = vmatpush.bf16.msra.mxu0 0
      %7320 = vmatpush.bf16.msra.mxu0 %v7311
      %7321 = vmatmul.bf16.gmra.mxu0 %v7263
      %v7322 = vpop.f32.mrf.mxu0
      %v7323 = vadd.f32 %v7135, %v7322
      %v7324 = vpop.f32.mrf.mxu0
      %v7325 = vadd.f32 %v7137, %v7324
      %7326 = vmatmul.bf16.gmra.mxu0 %v7266
      %v7327 = vpop.f32.mrf.mxu0
      %v7328 = vadd.f32 %v7140, %v7327
      %v7329 = vpop.f32.mrf.mxu0
      %v7330 = vadd.f32 %v7142, %v7329
      %7331 = vmatmul.bf16.gmra.mxu0 %v7269
      %v7332 = vpop.f32.mrf.mxu0
      %v7333 = vadd.f32 %v7145, %v7332
      %v7334 = vpop.f32.mrf.mxu0
      %v7335 = vadd.f32 %v7147, %v7334
      %7336 = vmatmul.bf16.gmra.mxu0 %v7272
      %v7337 = vpop.f32.mrf.mxu0
      %v7338 = vadd.f32 %v7150, %v7337
      %v7339 = vpop.f32.mrf.mxu0
      %v7340 = vadd.f32 %v7152, %v7339
      %7341 = vmatmul.bf16.gmra.mxu0 %v7275
      %v7342 = vpop.f32.mrf.mxu0
      %v7343 = vadd.f32 %v7155, %v7342
      %v7344 = vpop.f32.mrf.mxu0
      %v7345 = vadd.f32 %v7157, %v7344
      %7346 = vmatmul.bf16.gmra.mxu0 %v7278
      %v7347 = vpop.f32.mrf.mxu0
      %v7348 = vadd.f32 %v7160, %v7347
      %v7349 = vpop.f32.mrf.mxu0
      %v7350 = vadd.f32 %v7162, %v7349
      %7351 = vmatmul.bf16.gmra.mxu0 %v7281
      %v7352 = vpop.f32.mrf.mxu0
      %v7353 = vadd.f32 %v7165, %v7352
      %v7354 = vpop.f32.mrf.mxu0
      %v7355 = vadd.f32 %v7167, %v7354
      %7356 = vmatmul.bf16.gmra.mxu0 %v7284
      %v7357 = vpop.f32.mrf.mxu0
      %v7358 = vadd.f32 %v7170, %v7357
      %v7359 = vpop.f32.mrf.mxu0
      %v7360 = vadd.f32 %v7172, %v7359
      %7361 = vmatmul.bf16.gmra.mxu0 %v7287
      %v7362 = vpop.f32.mrf.mxu0
      %v7363 = vadd.f32 %v7175, %v7362
      %v7364 = vpop.f32.mrf.mxu0
      %v7365 = vadd.f32 %v7177, %v7364
      %7366 = vmatmul.bf16.gmra.mxu0 %v7290
      %v7367 = vpop.f32.mrf.mxu0
      %v7368 = vadd.f32 %v7180, %v7367
      %v7369 = vpop.f32.mrf.mxu0
      %v7370 = vadd.f32 %v7182, %v7369
      %7371 = vmatmul.bf16.gmra.mxu0 %v7293
      %v7372 = vpop.f32.mrf.mxu0
      %v7373 = vadd.f32 %v7185, %v7372
      %v7374 = vpop.f32.mrf.mxu0
      %v7375 = vadd.f32 %v7187, %v7374
      %7376 = vmatmul.bf16.gmra.mxu0 %v7296
      %v7377 = vpop.f32.mrf.mxu0
      %v7378 = vadd.f32 %v7190, %v7377
      %v7379 = vpop.f32.mrf.mxu0
      %v7380 = vadd.f32 %v7192, %v7379
      %7381 = vmatmul.bf16.gmra.mxu0 %v7299
      %v7382 = vpop.f32.mrf.mxu0
      %v7383 = vadd.f32 %v7195, %v7382
      %v7384 = vpop.f32.mrf.mxu0
      %v7385 = vadd.f32 %v7197, %v7384
      %7386 = vmatmul.bf16.gmra.mxu0 %v7302
      %v7387 = vpop.f32.mrf.mxu0
      %v7388 = vadd.f32 %v7200, %v7387
      %v7389 = vpop.f32.mrf.mxu0
      %v7390 = vadd.f32 %v7202, %v7389
      %7391 = vmatmul.bf16.gmra.mxu0 %v7305
      %v7392 = vpop.f32.mrf.mxu0
      %v7393 = vadd.f32 %v7205, %v7392
      %v7394 = vpop.f32.mrf.mxu0
      %v7395 = vadd.f32 %v7207, %v7394
      %7396 = vmatmul.bf16.gmra.mxu0 %v7308
      %v7397 = vpop.f32.mrf.mxu0
      %v7398 = vadd.f32 %v7210, %v7397
      %v7399 = vpop.f32.mrf.mxu0
      %v7400 = vadd.f32 %v7212, %v7399
      %7401 = vdwg.mxu0
      %v7402 = vld [vmem:[%s182] sm:$0xe]
      %v7403 = vld [vmem:[%s182 + $0x4] sm:$0xf]
      %v7404 = vld [vmem:[%s182 + $0x8] sm:$0x1]
      %v7405 = vld [vmem:[%s182 + $0xc] sm:$0xe]
      %v7406 = vld [vmem:[%s182 + $0x10] sm:$0xf]
      %v7407 = vld [vmem:[%s182 + $0x14] sm:$0x1]
      %v7408 = vld [vmem:[%s182 + $0x18] sm:$0xe]
      %v7409 = vld [vmem:[%s182 + $0x1c] sm:$0xf]
      %v7410 = vld [vmem:[%s182 + $0x20] sm:$0x1]
      %v7411 = vld [vmem:[%s182 + $0x24] sm:$0xe]
      %v7412 = vld [vmem:[%s182 + $0x28] sm:$0xf]
      %v7413 = vld [vmem:[%s182 + $0x2c] sm:$0x1]
      %v7414 = vld [vmem:[%s182 + $0x30] sm:$0xe]
      %v7415 = vld [vmem:[%s182 + $0x34] sm:$0xf]
      %v7416 = vld [vmem:[%s182 + $0x38] sm:$0x1]
      %v7417 = vld [vmem:[%s182 + $0x3c] sm:$0xe]
      %v7418 = vld [vmem:[%s182 + $0x40] sm:$0xf]
      %v7419 = vld [vmem:[%s182 + $0x44] sm:$0x1]
      %v7420 = vld [vmem:[%s182 + $0x48] sm:$0xe]
      %v7421 = vld [vmem:[%s182 + $0x4c] sm:$0xf]
      %v7422 = vld [vmem:[%s182 + $0x50] sm:$0x1]
      %v7423 = vld [vmem:[%s182 + $0x54] sm:$0xe]
      %v7424 = vld [vmem:[%s182 + $0x58] sm:$0xf]
      %v7425 = vld [vmem:[%s182 + $0x5c] sm:$0x1]
      %v7426 = vld [vmem:[%s182 + $0x60] sm:$0xe]
      %v7427 = vld [vmem:[%s182 + $0x64] sm:$0xf]
      %v7428 = vld [vmem:[%s182 + $0x68] sm:$0x1]
      %v7429 = vld [vmem:[%s182 + $0x6c] sm:$0xe]
      %v7430 = vld [vmem:[%s182 + $0x70] sm:$0xf]
      %v7431 = vld [vmem:[%s182 + $0x74] sm:$0x1]
      %v7432 = vld [vmem:[%s182 + $0x78] sm:$0xe]
      %v7433 = vld [vmem:[%s182 + $0x7c] sm:$0xf]
      %v7434 = vld [vmem:[%s182 + $0x80] sm:$0x1]
      %v7435 = vld [vmem:[%s182 + $0x84] sm:$0xe]
      %v7436 = vld [vmem:[%s182 + $0x88] sm:$0xf]
      %v7437 = vld [vmem:[%s182 + $0x8c] sm:$0x1]
      %v7438 = vld [vmem:[%s182 + $0x90] sm:$0xe]
      %v7439 = vld [vmem:[%s182 + $0x94] sm:$0xf]
      %v7440 = vld [vmem:[%s182 + $0x98] sm:$0x1]
      %v7441 = vld [vmem:[%s182 + $0x9c] sm:$0xe]
      %v7442 = vld [vmem:[%s182 + $0xa0] sm:$0xf]
      %v7443 = vld [vmem:[%s182 + $0xa4] sm:$0x1]
      %v7444 = vld [vmem:[%s182 + $0xa8] sm:$0xe]
      %v7445 = vld [vmem:[%s182 + $0xac] sm:$0xf]
      %v7446 = vld [vmem:[%s182 + $0xb0] sm:$0x1]
      %v7447 = vld [vmem:[%s182 + $0xb4] sm:$0xe]
      %v7448 = vld [vmem:[%s182 + $0xb8] sm:$0xf]
      %v7449 = vld [vmem:[%s182 + $0xbc] sm:$0x1]
      %v7498 = vrot.slane %v7402, 5
      %v7499 = vrot.slane %v7498, 4
      %v7500 = vrot.slane %v7403, 5
      %v7501 = vsel %vm2275, %v7499, %v7500
      %v7502 = vrot.slane %v7500, 4
      %v7503 = vrot.slane %v7404, 5
      %v7504 = vsel %vm2275, %v7502, %v7503
      %v7505 = vrot.slane %v7405, 5
      %v7506 = vrot.slane %v7505, 4
      %v7507 = vrot.slane %v7406, 5
      %v7508 = vsel %vm2275, %v7506, %v7507
      %v7509 = vrot.slane %v7507, 4
      %v7510 = vrot.slane %v7407, 5
      %v7511 = vsel %vm2275, %v7509, %v7510
      %v7512 = vrot.slane %v7408, 5
      %v7513 = vrot.slane %v7512, 4
      %v7514 = vrot.slane %v7409, 5
      %v7515 = vsel %vm2275, %v7513, %v7514
      %v7516 = vrot.slane %v7514, 4
      %v7517 = vrot.slane %v7410, 5
      %v7518 = vsel %vm2275, %v7516, %v7517
      %v7519 = vrot.slane %v7411, 5
      %v7520 = vrot.slane %v7519, 4
      %v7521 = vrot.slane %v7412, 5
      %v7522 = vsel %vm2275, %v7520, %v7521
      %v7523 = vrot.slane %v7521, 4
      %v7524 = vrot.slane %v7413, 5
      %v7525 = vsel %vm2275, %v7523, %v7524
      %v7526 = vrot.slane %v7414, 5
      %v7527 = vrot.slane %v7526, 4
      %v7528 = vrot.slane %v7415, 5
      %v7529 = vsel %vm2275, %v7527, %v7528
      %v7530 = vrot.slane %v7528, 4
      %v7531 = vrot.slane %v7416, 5
      %v7532 = vsel %vm2275, %v7530, %v7531
      %v7533 = vrot.slane %v7417, 5
      %v7534 = vrot.slane %v7533, 4
      %v7535 = vrot.slane %v7418, 5
      %v7536 = vsel %vm2275, %v7534, %v7535
      %v7537 = vrot.slane %v7535, 4
      %v7538 = vrot.slane %v7419, 5
      %v7539 = vsel %vm2275, %v7537, %v7538
      %v7540 = vrot.slane %v7420, 5
      %v7541 = vrot.slane %v7540, 4
      %v7542 = vrot.slane %v7421, 5
      %v7543 = vsel %vm2275, %v7541, %v7542
      %v7544 = vrot.slane %v7542, 4
      %v7545 = vrot.slane %v7422, 5
      %v7546 = vsel %vm2275, %v7544, %v7545
      %v7547 = vrot.slane %v7423, 5
      %v7548 = vrot.slane %v7547, 4
      %v7549 = vrot.slane %v7424, 5
      %v7550 = vsel %vm2275, %v7548, %v7549
      %v7551 = vrot.slane %v7549, 4
      %v7552 = vrot.slane %v7425, 5
      %v7553 = vsel %vm2275, %v7551, %v7552
      %v7554 = vrot.slane %v7426, 5
      %v7555 = vrot.slane %v7554, 4
      %v7556 = vrot.slane %v7427, 5
      %v7557 = vsel %vm2275, %v7555, %v7556
      %v7558 = vrot.slane %v7556, 4
      %v7559 = vrot.slane %v7428, 5
      %v7560 = vsel %vm2275, %v7558, %v7559
      %v7561 = vrot.slane %v7429, 5
      %v7562 = vrot.slane %v7561, 4
      %v7563 = vrot.slane %v7430, 5
      %v7564 = vsel %vm2275, %v7562, %v7563
      %v7565 = vrot.slane %v7563, 4
      %v7566 = vrot.slane %v7431, 5
      %v7567 = vsel %vm2275, %v7565, %v7566
      %v7568 = vrot.slane %v7432, 5
      %v7569 = vrot.slane %v7568, 4
      %v7570 = vrot.slane %v7433, 5
      %v7571 = vsel %vm2275, %v7569, %v7570
      %v7572 = vrot.slane %v7570, 4
      %v7573 = vrot.slane %v7434, 5
      %v7574 = vsel %vm2275, %v7572, %v7573
      %v7575 = vrot.slane %v7435, 5
      %v7576 = vrot.slane %v7575, 4
      %v7577 = vrot.slane %v7436, 5
      %v7578 = vsel %vm2275, %v7576, %v7577
      %v7579 = vrot.slane %v7577, 4
      %v7580 = vrot.slane %v7437, 5
      %v7581 = vsel %vm2275, %v7579, %v7580
      %v7582 = vrot.slane %v7438, 5
      %v7583 = vrot.slane %v7582, 4
      %v7584 = vrot.slane %v7439, 5
      %v7585 = vsel %vm2275, %v7583, %v7584
      %v7586 = vrot.slane %v7584, 4
      %v7587 = vrot.slane %v7440, 5
      %v7588 = vsel %vm2275, %v7586, %v7587
      %v7589 = vrot.slane %v7441, 5
      %v7590 = vrot.slane %v7589, 4
      %v7591 = vrot.slane %v7442, 5
      %v7592 = vsel %vm2275, %v7590, %v7591
      %v7593 = vrot.slane %v7591, 4
      %v7594 = vrot.slane %v7443, 5
      %v7595 = vsel %vm2275, %v7593, %v7594
      %v7596 = vrot.slane %v7444, 5
      %v7597 = vrot.slane %v7596, 4
      %v7598 = vrot.slane %v7445, 5
      %v7599 = vsel %vm2275, %v7597, %v7598
      %v7600 = vrot.slane %v7598, 4
      %v7601 = vrot.slane %v7446, 5
      %v7602 = vsel %vm2275, %v7600, %v7601
      %v7603 = vrot.slane %v7447, 5
      %v7604 = vrot.slane %v7603, 4
      %v7605 = vrot.slane %v7448, 5
      %v7606 = vsel %vm2275, %v7604, %v7605
      %v7607 = vrot.slane %v7605, 4
      %v7608 = vrot.slane %v7449, 5
      %v7609 = vsel %vm2275, %v7607, %v7608
      %s7610 = scalar_lea.vmem %s172, 32
      %v7611 = vld [vmem:[%s7610] sm:$0xf]
      %v7612 = vunpack.c.l.b16 %v7501
      %v7613 = vunpack.c.l.b16 %v7504
      %v7614 = vunpack.c.l.b16 %v7508
      %v7615 = vunpack.c.l.b16 %v7511
      %v7616 = vunpack.c.l.b16 %v7515
      %v7617 = vunpack.c.l.b16 %v7518
      %v7618 = vunpack.c.l.b16 %v7522
      %v7619 = vunpack.c.l.b16 %v7525
      %v7620 = vunpack.c.l.b16 %v7529
      %v7621 = vunpack.c.l.b16 %v7532
      %v7622 = vunpack.c.l.b16 %v7536
      %v7623 = vunpack.c.l.b16 %v7539
      %v7624 = vunpack.c.l.b16 %v7543
      %v7625 = vunpack.c.l.b16 %v7546
      %v7626 = vunpack.c.l.b16 %v7550
      %v7627 = vunpack.c.l.b16 %v7553
      %v7628 = vunpack.c.l.b16 %v7557
      %v7629 = vunpack.c.l.b16 %v7560
      %v7630 = vunpack.c.l.b16 %v7564
      %v7631 = vunpack.c.l.b16 %v7567
      %v7632 = vunpack.c.l.b16 %v7571
      %v7633 = vunpack.c.l.b16 %v7574
      %v7634 = vunpack.c.l.b16 %v7578
      %v7635 = vunpack.c.l.b16 %v7581
      %v7636 = vunpack.c.l.b16 %v7585
      %v7637 = vunpack.c.l.b16 %v7588
      %v7638 = vunpack.c.l.b16 %v7592
      %v7639 = vunpack.c.l.b16 %v7595
      %v7640 = vunpack.c.l.b16 %v7599
      %v7641 = vunpack.c.l.b16 %v7602
      %v7642 = vunpack.c.l.b16 %v7606
      %v7643 = vunpack.c.l.b16 %v7609
      %v7644 = vpack.c.b16 %v7613, %v7612
      %v7645 = vpack.c.b16 %v7615, %v7614
      %v7646 = vpack.c.b16 %v7617, %v7616
      %v7647 = vpack.c.b16 %v7619, %v7618
      %v7648 = vpack.c.b16 %v7621, %v7620
      %v7649 = vpack.c.b16 %v7623, %v7622
      %v7650 = vpack.c.b16 %v7625, %v7624
      %v7651 = vpack.c.b16 %v7627, %v7626
      %v7652 = vpack.c.b16 %v7629, %v7628
      %v7653 = vpack.c.b16 %v7631, %v7630
      %v7654 = vpack.c.b16 %v7633, %v7632
      %v7655 = vpack.c.b16 %v7635, %v7634
      %v7656 = vpack.c.b16 %v7637, %v7636
      %v7657 = vpack.c.b16 %v7639, %v7638
      %v7658 = vpack.c.b16 %v7641, %v7640
      %v7659 = vpack.c.b16 %v7643, %v7642
      %v7661 = vsel %vm702, %v7644, 0
      %v7664 = vsel %vm702, %v7645, 0
      %v7667 = vsel %vm702, %v7646, 0
      %v7670 = vsel %vm702, %v7647, 0
      %v7673 = vsel %vm702, %v7648, 0
      %v7676 = vsel %vm702, %v7649, 0
      %v7679 = vsel %vm702, %v7650, 0
      %v7682 = vsel %vm702, %v7651, 0
      %v7685 = vsel %vm702, %v7652, 0
      %v7688 = vsel %vm702, %v7653, 0
      %v7691 = vsel %vm702, %v7654, 0
      %v7694 = vsel %vm702, %v7655, 0
      %v7697 = vsel %vm702, %v7656, 0
      %v7700 = vsel %vm702, %v7657, 0
      %v7703 = vsel %vm702, %v7658, 0
      %v7706 = vsel %vm702, %v7659, 0
      %v7709 = vsel %vm751, %v7611, 0
      %7711 = vmatpush.bf16.msra.mxu0 0
      %7712 = vmatpush.bf16.msra.mxu0 0
      %7713 = vmatpush.bf16.msra.mxu0 0
      %7714 = vmatpush.bf16.msra.mxu0 0
      %7715 = vmatpush.bf16.msra.mxu0 0
      %7716 = vmatpush.bf16.msra.mxu0 0
      %7717 = vmatpush.bf16.msra.mxu0 0
      %7718 = vmatpush.bf16.msra.mxu0 %v7709
      %7719 = vmatmul.bf16.gmra.mxu0 %v7661
      %v7720 = vpop.f32.mrf.mxu0
      %v7721 = vadd.f32 0.0, %v7720
      %v7722 = vpop.f32.mrf.mxu0
      %v7723 = vadd.f32 0.0, %v7722
      %7724 = vmatmul.bf16.gmra.mxu0 %v7664
      %v7725 = vpop.f32.mrf.mxu0
      %v7726 = vadd.f32 0.0, %v7725
      %v7727 = vpop.f32.mrf.mxu0
      %v7728 = vadd.f32 0.0, %v7727
      %7729 = vmatmul.bf16.gmra.mxu0 %v7667
      %v7730 = vpop.f32.mrf.mxu0
      %v7731 = vadd.f32 0.0, %v7730
      %v7732 = vpop.f32.mrf.mxu0
      %v7733 = vadd.f32 0.0, %v7732
      %7734 = vmatmul.bf16.gmra.mxu0 %v7670
      %v7735 = vpop.f32.mrf.mxu0
      %v7736 = vadd.f32 0.0, %v7735
      %v7737 = vpop.f32.mrf.mxu0
      %v7738 = vadd.f32 0.0, %v7737
      %7739 = vmatmul.bf16.gmra.mxu0 %v7673
      %v7740 = vpop.f32.mrf.mxu0
      %v7741 = vadd.f32 0.0, %v7740
      %v7742 = vpop.f32.mrf.mxu0
      %v7743 = vadd.f32 0.0, %v7742
      %7744 = vmatmul.bf16.gmra.mxu0 %v7676
      %v7745 = vpop.f32.mrf.mxu0
      %v7746 = vadd.f32 0.0, %v7745
      %v7747 = vpop.f32.mrf.mxu0
      %v7748 = vadd.f32 0.0, %v7747
      %7749 = vmatmul.bf16.gmra.mxu0 %v7679
      %v7750 = vpop.f32.mrf.mxu0
      %v7751 = vadd.f32 0.0, %v7750
      %v7752 = vpop.f32.mrf.mxu0
      %v7753 = vadd.f32 0.0, %v7752
      %7754 = vmatmul.bf16.gmra.mxu0 %v7682
      %v7755 = vpop.f32.mrf.mxu0
      %v7756 = vadd.f32 0.0, %v7755
      %v7757 = vpop.f32.mrf.mxu0
      %v7758 = vadd.f32 0.0, %v7757
      %7759 = vmatmul.bf16.gmra.mxu0 %v7685
      %v7760 = vpop.f32.mrf.mxu0
      %v7761 = vadd.f32 0.0, %v7760
      %v7762 = vpop.f32.mrf.mxu0
      %v7763 = vadd.f32 0.0, %v7762
      %7764 = vmatmul.bf16.gmra.mxu0 %v7688
      %v7765 = vpop.f32.mrf.mxu0
      %v7766 = vadd.f32 0.0, %v7765
      %v7767 = vpop.f32.mrf.mxu0
      %v7768 = vadd.f32 0.0, %v7767
      %7769 = vmatmul.bf16.gmra.mxu0 %v7691
      %v7770 = vpop.f32.mrf.mxu0
      %v7771 = vadd.f32 0.0, %v7770
      %v7772 = vpop.f32.mrf.mxu0
      %v7773 = vadd.f32 0.0, %v7772
      %7774 = vmatmul.bf16.gmra.mxu0 %v7694
      %v7775 = vpop.f32.mrf.mxu0
      %v7776 = vadd.f32 0.0, %v7775
      %v7777 = vpop.f32.mrf.mxu0
      %v7778 = vadd.f32 0.0, %v7777
      %7779 = vmatmul.bf16.gmra.mxu0 %v7697
      %v7780 = vpop.f32.mrf.mxu0
      %v7781 = vadd.f32 0.0, %v7780
      %v7782 = vpop.f32.mrf.mxu0
      %v7783 = vadd.f32 0.0, %v7782
      %7784 = vmatmul.bf16.gmra.mxu0 %v7700
      %v7785 = vpop.f32.mrf.mxu0
      %v7786 = vadd.f32 0.0, %v7785
      %v7787 = vpop.f32.mrf.mxu0
      %v7788 = vadd.f32 0.0, %v7787
      %7789 = vmatmul.bf16.gmra.mxu0 %v7703
      %v7790 = vpop.f32.mrf.mxu0
      %v7791 = vadd.f32 0.0, %v7790
      %v7792 = vpop.f32.mrf.mxu0
      %v7793 = vadd.f32 0.0, %v7792
      %7794 = vmatmul.bf16.gmra.mxu0 %v7706
      %v7795 = vpop.f32.mrf.mxu0
      %v7796 = vadd.f32 0.0, %v7795
      %v7797 = vpop.f32.mrf.mxu0
      %v7798 = vadd.f32 0.0, %v7797
      %7799 = vdwg.mxu0
      %v7800 = vadd.f32 %v7323, %v7721
      %v7801 = vadd.f32 %v7325, %v7723
      %v7802 = vadd.f32 %v7328, %v7726
      %v7803 = vadd.f32 %v7330, %v7728
      %v7804 = vadd.f32 %v7333, %v7731
      %v7805 = vadd.f32 %v7335, %v7733
      %v7806 = vadd.f32 %v7338, %v7736
      %v7807 = vadd.f32 %v7340, %v7738
      %v7808 = vadd.f32 %v7343, %v7741
      %v7809 = vadd.f32 %v7345, %v7743
      %v7810 = vadd.f32 %v7348, %v7746
      %v7811 = vadd.f32 %v7350, %v7748
      %v7812 = vadd.f32 %v7353, %v7751
      %v7813 = vadd.f32 %v7355, %v7753
      %v7814 = vadd.f32 %v7358, %v7756
      %v7815 = vadd.f32 %v7360, %v7758
      %v7816 = vadd.f32 %v7363, %v7761
      %v7817 = vadd.f32 %v7365, %v7763
      %v7818 = vadd.f32 %v7368, %v7766
      %v7819 = vadd.f32 %v7370, %v7768
      %v7820 = vadd.f32 %v7373, %v7771
      %v7821 = vadd.f32 %v7375, %v7773
      %v7822 = vadd.f32 %v7378, %v7776
      %v7823 = vadd.f32 %v7380, %v7778
      %v7824 = vadd.f32 %v7383, %v7781
      %v7825 = vadd.f32 %v7385, %v7783
      %v7826 = vadd.f32 %v7388, %v7786
      %v7827 = vadd.f32 %v7390, %v7788
      %v7828 = vadd.f32 %v7393, %v7791
      %v7829 = vadd.f32 %v7395, %v7793
      %v7830 = vadd.f32 %v7398, %v7796
      %v7831 = vadd.f32 %v7400, %v7798
      %v7832 = vld [vmem:[%s182] sm:$0xf]
      %v7833 = vld [vmem:[%s182 + $0xc] sm:$0xf]
      %v7834 = vld [vmem:[%s182 + $0x18] sm:$0xf]
      %v7835 = vld [vmem:[%s182 + $0x24] sm:$0xf]
      %v7836 = vld [vmem:[%s182 + $0x30] sm:$0xf]
      %v7837 = vld [vmem:[%s182 + $0x3c] sm:$0xf]
      %v7838 = vld [vmem:[%s182 + $0x48] sm:$0xf]
      %v7839 = vld [vmem:[%s182 + $0x54] sm:$0xf]
      %v7840 = vld [vmem:[%s182 + $0x60] sm:$0xf]
      %v7841 = vld [vmem:[%s182 + $0x6c] sm:$0xf]
      %v7842 = vld [vmem:[%s182 + $0x78] sm:$0xf]
      %v7843 = vld [vmem:[%s182 + $0x84] sm:$0xf]
      %v7844 = vld [vmem:[%s182 + $0x90] sm:$0xf]
      %v7845 = vld [vmem:[%s182 + $0x9c] sm:$0xf]
      %v7846 = vld [vmem:[%s182 + $0xa8] sm:$0xf]
      %v7847 = vld [vmem:[%s182 + $0xb4] sm:$0xf]
      %v7849 = vshrl.u32 %v7832, 16
      %v7851 = vrot.slane %v7849, 4
      %v7852 = vshll.u32 %v7832, 16
      %v7854 = vrot.slane %v7852, 5
      %v7855 = vor.u32 %v7851, %v7854
      %v7856 = vrot.slane %v7855, 4
      %v7858 = vshll.u32 %v7403, 16
      %v7860 = vrot.slane %v7858, 5
      %v7861 = vsel %vm233, %v7856, %v7860
      %v7862 = vshrl.u32 %v7403, 16
      %v7864 = vrot.slane %v7862, 4
      %v7865 = vor.u32 %v7864, %v7860
      %v7866 = vrot.slane %v7865, 4
      %v7868 = vshll.u32 %v7404, 16
      %v7870 = vrot.slane %v7868, 5
      %v7871 = vsel %vm233, %v7866, %v7870
      %v7873 = vshrl.u32 %v7833, 16
      %v7875 = vrot.slane %v7873, 4
      %v7876 = vshll.u32 %v7833, 16
      %v7878 = vrot.slane %v7876, 5
      %v7879 = vor.u32 %v7875, %v7878
      %v7880 = vrot.slane %v7879, 4
      %v7882 = vshll.u32 %v7406, 16
      %v7884 = vrot.slane %v7882, 5
      %v7885 = vsel %vm233, %v7880, %v7884
      %v7886 = vshrl.u32 %v7406, 16
      %v7888 = vrot.slane %v7886, 4
      %v7889 = vor.u32 %v7888, %v7884
      %v7890 = vrot.slane %v7889, 4
      %v7892 = vshll.u32 %v7407, 16
      %v7894 = vrot.slane %v7892, 5
      %v7895 = vsel %vm233, %v7890, %v7894
      %v7897 = vshrl.u32 %v7834, 16
      %v7899 = vrot.slane %v7897, 4
      %v7900 = vshll.u32 %v7834, 16
      %v7902 = vrot.slane %v7900, 5
      %v7903 = vor.u32 %v7899, %v7902
      %v7904 = vrot.slane %v7903, 4
      %v7906 = vshll.u32 %v7409, 16
      %v7908 = vrot.slane %v7906, 5
      %v7909 = vsel %vm233, %v7904, %v7908
      %v7910 = vshrl.u32 %v7409, 16
      %v7912 = vrot.slane %v7910, 4
      %v7913 = vor.u32 %v7912, %v7908
      %v7914 = vrot.slane %v7913, 4
      %v7916 = vshll.u32 %v7410, 16
      %v7918 = vrot.slane %v7916, 5
      %v7919 = vsel %vm233, %v7914, %v7918
      %v7921 = vshrl.u32 %v7835, 16
      %v7923 = vrot.slane %v7921, 4
      %v7924 = vshll.u32 %v7835, 16
      %v7926 = vrot.slane %v7924, 5
      %v7927 = vor.u32 %v7923, %v7926
      %v7928 = vrot.slane %v7927, 4
      %v7930 = vshll.u32 %v7412, 16
      %v7932 = vrot.slane %v7930, 5
      %v7933 = vsel %vm233, %v7928, %v7932
      %v7934 = vshrl.u32 %v7412, 16
      %v7936 = vrot.slane %v7934, 4
      %v7937 = vor.u32 %v7936, %v7932
      %v7938 = vrot.slane %v7937, 4
      %v7940 = vshll.u32 %v7413, 16
      %v7942 = vrot.slane %v7940, 5
      %v7943 = vsel %vm233, %v7938, %v7942
      %v7945 = vshrl.u32 %v7836, 16
      %v7947 = vrot.slane %v7945, 4
      %v7948 = vshll.u32 %v7836, 16
      %v7950 = vrot.slane %v7948, 5
      %v7951 = vor.u32 %v7947, %v7950
      %v7952 = vrot.slane %v7951, 4
      %v7954 = vshll.u32 %v7415, 16
      %v7956 = vrot.slane %v7954, 5
      %v7957 = vsel %vm233, %v7952, %v7956
      %v7958 = vshrl.u32 %v7415, 16
      %v7960 = vrot.slane %v7958, 4
      %v7961 = vor.u32 %v7960, %v7956
      %v7962 = vrot.slane %v7961, 4
      %v7964 = vshll.u32 %v7416, 16
      %v7966 = vrot.slane %v7964, 5
      %v7967 = vsel %vm233, %v7962, %v7966
      %v7969 = vshrl.u32 %v7837, 16
      %v7971 = vrot.slane %v7969, 4
      %v7972 = vshll.u32 %v7837, 16
      %v7974 = vrot.slane %v7972, 5
      %v7975 = vor.u32 %v7971, %v7974
      %v7976 = vrot.slane %v7975, 4
      %v7978 = vshll.u32 %v7418, 16
      %v7980 = vrot.slane %v7978, 5
      %v7981 = vsel %vm233, %v7976, %v7980
      %v7982 = vshrl.u32 %v7418, 16
      %v7984 = vrot.slane %v7982, 4
      %v7985 = vor.u32 %v7984, %v7980
      %v7986 = vrot.slane %v7985, 4
      %v7988 = vshll.u32 %v7419, 16
      %v7990 = vrot.slane %v7988, 5
      %v7991 = vsel %vm233, %v7986, %v7990
      %v7993 = vshrl.u32 %v7838, 16
      %v7995 = vrot.slane %v7993, 4
      %v7996 = vshll.u32 %v7838, 16
      %v7998 = vrot.slane %v7996, 5
      %v7999 = vor.u32 %v7995, %v7998
      %v8000 = vrot.slane %v7999, 4
      %v8002 = vshll.u32 %v7421, 16
      %v8004 = vrot.slane %v8002, 5
      %v8005 = vsel %vm233, %v8000, %v8004
      %v8006 = vshrl.u32 %v7421, 16
      %v8008 = vrot.slane %v8006, 4
      %v8009 = vor.u32 %v8008, %v8004
      %v8010 = vrot.slane %v8009, 4
      %v8012 = vshll.u32 %v7422, 16
      %v8014 = vrot.slane %v8012, 5
      %v8015 = vsel %vm233, %v8010, %v8014
      %v8017 = vshrl.u32 %v7839, 16
      %v8019 = vrot.slane %v8017, 4
      %v8020 = vshll.u32 %v7839, 16
      %v8022 = vrot.slane %v8020, 5
      %v8023 = vor.u32 %v8019, %v8022
      %v8024 = vrot.slane %v8023, 4
      %v8026 = vshll.u32 %v7424, 16
      %v8028 = vrot.slane %v8026, 5
      %v8029 = vsel %vm233, %v8024, %v8028
      %v8030 = vshrl.u32 %v7424, 16
      %v8032 = vrot.slane %v8030, 4
      %v8033 = vor.u32 %v8032, %v8028
      %v8034 = vrot.slane %v8033, 4
      %v8036 = vshll.u32 %v7425, 16
      %v8038 = vrot.slane %v8036, 5
      %v8039 = vsel %vm233, %v8034, %v8038
      %v8041 = vshrl.u32 %v7840, 16
      %v8043 = vrot.slane %v8041, 4
      %v8044 = vshll.u32 %v7840, 16
      %v8046 = vrot.slane %v8044, 5
      %v8047 = vor.u32 %v8043, %v8046
      %v8048 = vrot.slane %v8047, 4
      %v8050 = vshll.u32 %v7427, 16
      %v8052 = vrot.slane %v8050, 5
      %v8053 = vsel %vm233, %v8048, %v8052
      %v8054 = vshrl.u32 %v7427, 16
      %v8056 = vrot.slane %v8054, 4
      %v8057 = vor.u32 %v8056, %v8052
      %v8058 = vrot.slane %v8057, 4
      %v8060 = vshll.u32 %v7428, 16
      %v8062 = vrot.slane %v8060, 5
      %v8063 = vsel %vm233, %v8058, %v8062
      %v8065 = vshrl.u32 %v7841, 16
      %v8067 = vrot.slane %v8065, 4
      %v8068 = vshll.u32 %v7841, 16
      %v8070 = vrot.slane %v8068, 5
      %v8071 = vor.u32 %v8067, %v8070
      %v8072 = vrot.slane %v8071, 4
      %v8074 = vshll.u32 %v7430, 16
      %v8076 = vrot.slane %v8074, 5
      %v8077 = vsel %vm233, %v8072, %v8076
      %v8078 = vshrl.u32 %v7430, 16
      %v8080 = vrot.slane %v8078, 4
      %v8081 = vor.u32 %v8080, %v8076
      %v8082 = vrot.slane %v8081, 4
      %v8084 = vshll.u32 %v7431, 16
      %v8086 = vrot.slane %v8084, 5
      %v8087 = vsel %vm233, %v8082, %v8086
      %v8089 = vshrl.u32 %v7842, 16
      %v8091 = vrot.slane %v8089, 4
      %v8092 = vshll.u32 %v7842, 16
      %v8094 = vrot.slane %v8092, 5
      %v8095 = vor.u32 %v8091, %v8094
      %v8096 = vrot.slane %v8095, 4
      %v8098 = vshll.u32 %v7433, 16
      %v8100 = vrot.slane %v8098, 5
      %v8101 = vsel %vm233, %v8096, %v8100
      %v8102 = vshrl.u32 %v7433, 16
      %v8104 = vrot.slane %v8102, 4
      %v8105 = vor.u32 %v8104, %v8100
      %v8106 = vrot.slane %v8105, 4
      %v8108 = vshll.u32 %v7434, 16
      %v8110 = vrot.slane %v8108, 5
      %v8111 = vsel %vm233, %v8106, %v8110
      %v8113 = vshrl.u32 %v7843, 16
      %v8115 = vrot.slane %v8113, 4
      %v8116 = vshll.u32 %v7843, 16
      %v8118 = vrot.slane %v8116, 5
      %v8119 = vor.u32 %v8115, %v8118
      %v8120 = vrot.slane %v8119, 4
      %v8122 = vshll.u32 %v7436, 16
      %v8124 = vrot.slane %v8122, 5
      %v8125 = vsel %vm233, %v8120, %v8124
      %v8126 = vshrl.u32 %v7436, 16
      %v8128 = vrot.slane %v8126, 4
      %v8129 = vor.u32 %v8128, %v8124
      %v8130 = vrot.slane %v8129, 4
      %v8132 = vshll.u32 %v7437, 16
      %v8134 = vrot.slane %v8132, 5
      %v8135 = vsel %vm233, %v8130, %v8134
      %v8137 = vshrl.u32 %v7844, 16
      %v8139 = vrot.slane %v8137, 4
      %v8140 = vshll.u32 %v7844, 16
      %v8142 = vrot.slane %v8140, 5
      %v8143 = vor.u32 %v8139, %v8142
      %v8144 = vrot.slane %v8143, 4
      %v8146 = vshll.u32 %v7439, 16
      %v8148 = vrot.slane %v8146, 5
      %v8149 = vsel %vm233, %v8144, %v8148
      %v8150 = vshrl.u32 %v7439, 16
      %v8152 = vrot.slane %v8150, 4
      %v8153 = vor.u32 %v8152, %v8148
      %v8154 = vrot.slane %v8153, 4
      %v8156 = vshll.u32 %v7440, 16
      %v8158 = vrot.slane %v8156, 5
      %v8159 = vsel %vm233, %v8154, %v8158
      %v8161 = vshrl.u32 %v7845, 16
      %v8163 = vrot.slane %v8161, 4
      %v8164 = vshll.u32 %v7845, 16
      %v8166 = vrot.slane %v8164, 5
      %v8167 = vor.u32 %v8163, %v8166
      %v8168 = vrot.slane %v8167, 4
      %v8170 = vshll.u32 %v7442, 16
      %v8172 = vrot.slane %v8170, 5
      %v8173 = vsel %vm233, %v8168, %v8172
      %v8174 = vshrl.u32 %v7442, 16
      %v8176 = vrot.slane %v8174, 4
      %v8177 = vor.u32 %v8176, %v8172
      %v8178 = vrot.slane %v8177, 4
      %v8180 = vshll.u32 %v7443, 16
      %v8182 = vrot.slane %v8180, 5
      %v8183 = vsel %vm233, %v8178, %v8182
      %v8185 = vshrl.u32 %v7846, 16
      %v8187 = vrot.slane %v8185, 4
      %v8188 = vshll.u32 %v7846, 16
      %v8190 = vrot.slane %v8188, 5
      %v8191 = vor.u32 %v8187, %v8190
      %v8192 = vrot.slane %v8191, 4
      %v8194 = vshll.u32 %v7445, 16
      %v8196 = vrot.slane %v8194, 5
      %v8197 = vsel %vm233, %v8192, %v8196
      %v8198 = vshrl.u32 %v7445, 16
      %v8200 = vrot.slane %v8198, 4
      %v8201 = vor.u32 %v8200, %v8196
      %v8202 = vrot.slane %v8201, 4
      %v8204 = vshll.u32 %v7446, 16
      %v8206 = vrot.slane %v8204, 5
      %v8207 = vsel %vm233, %v8202, %v8206
      %v8209 = vshrl.u32 %v7847, 16
      %v8211 = vrot.slane %v8209, 4
      %v8212 = vshll.u32 %v7847, 16
      %v8214 = vrot.slane %v8212, 5
      %v8215 = vor.u32 %v8211, %v8214
      %v8216 = vrot.slane %v8215, 4
      %v8218 = vshll.u32 %v7448, 16
      %v8220 = vrot.slane %v8218, 5
      %v8221 = vsel %vm233, %v8216, %v8220
      %v8222 = vshrl.u32 %v7448, 16
      %v8224 = vrot.slane %v8222, 4
      %v8225 = vor.u32 %v8224, %v8220
      %v8226 = vrot.slane %v8225, 4
      %v8228 = vshll.u32 %v7449, 16
      %v8230 = vrot.slane %v8228, 5
      %v8231 = vsel %vm233, %v8226, %v8230
      %s8232 = scalar_lea.vmem %s172, 40
      %v8233 = vld [vmem:[%s8232] sm:$0xf]
      %v8234 = vunpack.c.l.b16 %v7861
      %v8235 = vunpack.c.l.b16 %v7871
      %v8236 = vunpack.c.l.b16 %v7885
      %v8237 = vunpack.c.l.b16 %v7895
      %v8238 = vunpack.c.l.b16 %v7909
      %v8239 = vunpack.c.l.b16 %v7919
      %v8240 = vunpack.c.l.b16 %v7933
      %v8241 = vunpack.c.l.b16 %v7943
      %v8242 = vunpack.c.l.b16 %v7957
      %v8243 = vunpack.c.l.b16 %v7967
      %v8244 = vunpack.c.l.b16 %v7981
      %v8245 = vunpack.c.l.b16 %v7991
      %v8246 = vunpack.c.l.b16 %v8005
      %v8247 = vunpack.c.l.b16 %v8015
      %v8248 = vunpack.c.l.b16 %v8029
      %v8249 = vunpack.c.l.b16 %v8039
      %v8250 = vunpack.c.l.b16 %v8053
      %v8251 = vunpack.c.l.b16 %v8063
      %v8252 = vunpack.c.l.b16 %v8077
      %v8253 = vunpack.c.l.b16 %v8087
      %v8254 = vunpack.c.l.b16 %v8101
      %v8255 = vunpack.c.l.b16 %v8111
      %v8256 = vunpack.c.l.b16 %v8125
      %v8257 = vunpack.c.l.b16 %v8135
      %v8258 = vunpack.c.l.b16 %v8149
      %v8259 = vunpack.c.l.b16 %v8159
      %v8260 = vunpack.c.l.b16 %v8173
      %v8261 = vunpack.c.l.b16 %v8183
      %v8262 = vunpack.c.l.b16 %v8197
      %v8263 = vunpack.c.l.b16 %v8207
      %v8264 = vunpack.c.l.b16 %v8221
      %v8265 = vunpack.c.l.b16 %v8231
      %v8266 = vpack.c.b16 %v8235, %v8234
      %v8267 = vpack.c.b16 %v8237, %v8236
      %v8268 = vpack.c.b16 %v8239, %v8238
      %v8269 = vpack.c.b16 %v8241, %v8240
      %v8270 = vpack.c.b16 %v8243, %v8242
      %v8271 = vpack.c.b16 %v8245, %v8244
      %v8272 = vpack.c.b16 %v8247, %v8246
      %v8273 = vpack.c.b16 %v8249, %v8248
      %v8274 = vpack.c.b16 %v8251, %v8250
      %v8275 = vpack.c.b16 %v8253, %v8252
      %v8276 = vpack.c.b16 %v8255, %v8254
      %v8277 = vpack.c.b16 %v8257, %v8256
      %v8278 = vpack.c.b16 %v8259, %v8258
      %v8279 = vpack.c.b16 %v8261, %v8260
      %v8280 = vpack.c.b16 %v8263, %v8262
      %v8281 = vpack.c.b16 %v8265, %v8264
      %v8283 = vsel %vm702, %v8266, 0
      %v8286 = vsel %vm702, %v8267, 0
      %v8289 = vsel %vm702, %v8268, 0
      %v8292 = vsel %vm702, %v8269, 0
      %v8295 = vsel %vm702, %v8270, 0
      %v8298 = vsel %vm702, %v8271, 0
      %v8301 = vsel %vm702, %v8272, 0
      %v8304 = vsel %vm702, %v8273, 0
      %v8307 = vsel %vm702, %v8274, 0
      %v8310 = vsel %vm702, %v8275, 0
      %v8313 = vsel %vm702, %v8276, 0
      %v8316 = vsel %vm702, %v8277, 0
      %v8319 = vsel %vm702, %v8278, 0
      %v8322 = vsel %vm702, %v8279, 0
      %v8325 = vsel %vm702, %v8280, 0
      %v8328 = vsel %vm702, %v8281, 0
      %v8331 = vsel %vm751, %v8233, 0
      %8333 = vmatpush.bf16.msra.mxu0 0
      %8334 = vmatpush.bf16.msra.mxu0 0
      %8335 = vmatpush.bf16.msra.mxu0 0
      %8336 = vmatpush.bf16.msra.mxu0 0
      %8337 = vmatpush.bf16.msra.mxu0 0
      %8338 = vmatpush.bf16.msra.mxu0 0
      %8339 = vmatpush.bf16.msra.mxu0 0
      %8340 = vmatpush.bf16.msra.mxu0 %v8331
      %8341 = vmatmul.bf16.gmra.mxu0 %v8283
      %v8342 = vpop.f32.mrf.mxu0
      %v8343 = vadd.f32 0.0, %v8342
      %v8344 = vpop.f32.mrf.mxu0
      %v8345 = vadd.f32 0.0, %v8344
      %8346 = vmatmul.bf16.gmra.mxu0 %v8286
      %v8347 = vpop.f32.mrf.mxu0
      %v8348 = vadd.f32 0.0, %v8347
      %v8349 = vpop.f32.mrf.mxu0
      %v8350 = vadd.f32 0.0, %v8349
      %8351 = vmatmul.bf16.gmra.mxu0 %v8289
      %v8352 = vpop.f32.mrf.mxu0
      %v8353 = vadd.f32 0.0, %v8352
      %v8354 = vpop.f32.mrf.mxu0
      %v8355 = vadd.f32 0.0, %v8354
      %8356 = vmatmul.bf16.gmra.mxu0 %v8292
      %v8357 = vpop.f32.mrf.mxu0
      %v8358 = vadd.f32 0.0, %v8357
      %v8359 = vpop.f32.mrf.mxu0
      %v8360 = vadd.f32 0.0, %v8359
      %8361 = vmatmul.bf16.gmra.mxu0 %v8295
      %v8362 = vpop.f32.mrf.mxu0
      %v8363 = vadd.f32 0.0, %v8362
      %v8364 = vpop.f32.mrf.mxu0
      %v8365 = vadd.f32 0.0, %v8364
      %8366 = vmatmul.bf16.gmra.mxu0 %v8298
      %v8367 = vpop.f32.mrf.mxu0
      %v8368 = vadd.f32 0.0, %v8367
      %v8369 = vpop.f32.mrf.mxu0
      %v8370 = vadd.f32 0.0, %v8369
      %8371 = vmatmul.bf16.gmra.mxu0 %v8301
      %v8372 = vpop.f32.mrf.mxu0
      %v8373 = vadd.f32 0.0, %v8372
      %v8374 = vpop.f32.mrf.mxu0
      %v8375 = vadd.f32 0.0, %v8374
      %8376 = vmatmul.bf16.gmra.mxu0 %v8304
      %v8377 = vpop.f32.mrf.mxu0
      %v8378 = vadd.f32 0.0, %v8377
      %v8379 = vpop.f32.mrf.mxu0
      %v8380 = vadd.f32 0.0, %v8379
      %8381 = vmatmul.bf16.gmra.mxu0 %v8307
      %v8382 = vpop.f32.mrf.mxu0
      %v8383 = vadd.f32 0.0, %v8382
      %v8384 = vpop.f32.mrf.mxu0
      %v8385 = vadd.f32 0.0, %v8384
      %8386 = vmatmul.bf16.gmra.mxu0 %v8310
      %v8387 = vpop.f32.mrf.mxu0
      %v8388 = vadd.f32 0.0, %v8387
      %v8389 = vpop.f32.mrf.mxu0
      %v8390 = vadd.f32 0.0, %v8389
      %8391 = vmatmul.bf16.gmra.mxu0 %v8313
      %v8392 = vpop.f32.mrf.mxu0
      %v8393 = vadd.f32 0.0, %v8392
      %v8394 = vpop.f32.mrf.mxu0
      %v8395 = vadd.f32 0.0, %v8394
      %8396 = vmatmul.bf16.gmra.mxu0 %v8316
      %v8397 = vpop.f32.mrf.mxu0
      %v8398 = vadd.f32 0.0, %v8397
      %v8399 = vpop.f32.mrf.mxu0
      %v8400 = vadd.f32 0.0, %v8399
      %8401 = vmatmul.bf16.gmra.mxu0 %v8319
      %v8402 = vpop.f32.mrf.mxu0
      %v8403 = vadd.f32 0.0, %v8402
      %v8404 = vpop.f32.mrf.mxu0
      %v8405 = vadd.f32 0.0, %v8404
      %8406 = vmatmul.bf16.gmra.mxu0 %v8322
      %v8407 = vpop.f32.mrf.mxu0
      %v8408 = vadd.f32 0.0, %v8407
      %v8409 = vpop.f32.mrf.mxu0
      %v8410 = vadd.f32 0.0, %v8409
      %8411 = vmatmul.bf16.gmra.mxu0 %v8325
      %v8412 = vpop.f32.mrf.mxu0
      %v8413 = vadd.f32 0.0, %v8412
      %v8414 = vpop.f32.mrf.mxu0
      %v8415 = vadd.f32 0.0, %v8414
      %8416 = vmatmul.bf16.gmra.mxu0 %v8328
      %v8417 = vpop.f32.mrf.mxu0
      %v8418 = vadd.f32 0.0, %v8417
      %v8419 = vpop.f32.mrf.mxu0
      %v8420 = vadd.f32 0.0, %v8419
      %8421 = vdwg.mxu0
      %v8422 = vadd.f32 %v7800, %v8343
      %v8423 = vadd.f32 %v7801, %v8345
      %v8424 = vadd.f32 %v7802, %v8348
      %v8425 = vadd.f32 %v7803, %v8350
      %v8426 = vadd.f32 %v7804, %v8353
      %v8427 = vadd.f32 %v7805, %v8355
      %v8428 = vadd.f32 %v7806, %v8358
      %v8429 = vadd.f32 %v7807, %v8360
      %v8430 = vadd.f32 %v7808, %v8363
      %v8431 = vadd.f32 %v7809, %v8365
      %v8432 = vadd.f32 %v7810, %v8368
      %v8433 = vadd.f32 %v7811, %v8370
      %v8434 = vadd.f32 %v7812, %v8373
      %v8435 = vadd.f32 %v7813, %v8375
      %v8436 = vadd.f32 %v7814, %v8378
      %v8437 = vadd.f32 %v7815, %v8380
      %v8438 = vadd.f32 %v7816, %v8383
      %v8439 = vadd.f32 %v7817, %v8385
      %v8440 = vadd.f32 %v7818, %v8388
      %v8441 = vadd.f32 %v7819, %v8390
      %v8442 = vadd.f32 %v7820, %v8393
      %v8443 = vadd.f32 %v7821, %v8395
      %v8444 = vadd.f32 %v7822, %v8398
      %v8445 = vadd.f32 %v7823, %v8400
      %v8446 = vadd.f32 %v7824, %v8403
      %v8447 = vadd.f32 %v7825, %v8405
      %v8448 = vadd.f32 %v7826, %v8408
      %v8449 = vadd.f32 %v7827, %v8410
      %v8450 = vadd.f32 %v7828, %v8413
      %v8451 = vadd.f32 %v7829, %v8415
      %v8452 = vadd.f32 %v7830, %v8418
      %v8453 = vadd.f32 %v7831, %v8420
      %s8454 = scalar_lea.vmem %s180, 768
      %8455 = vst.msk [vmem:[%s8454] sm:$0xff] %vm1972, %v8422
      %8456 = vst.msk [vmem:[%s8454 + $0x8] sm:$0xff] %vm1972, %v8423
      %8457 = vst.msk [vmem:[%s8454 + $0x10] sm:$0xff] %vm1972, %v8424
      %8458 = vst.msk [vmem:[%s8454 + $0x18] sm:$0xff] %vm1972, %v8425
      %8459 = vst.msk [vmem:[%s8454 + $0x20] sm:$0xff] %vm1972, %v8426
      %8460 = vst.msk [vmem:[%s8454 + $0x28] sm:$0xff] %vm1972, %v8427
      %8461 = vst.msk [vmem:[%s8454 + $0x30] sm:$0xff] %vm1972, %v8428
      %8462 = vst.msk [vmem:[%s8454 + $0x38] sm:$0xff] %vm1972, %v8429
      %8463 = vst.msk [vmem:[%s8454 + $0x40] sm:$0xff] %vm1972, %v8430
      %8464 = vst.msk [vmem:[%s8454 + $0x48] sm:$0xff] %vm1972, %v8431
      %8465 = vst.msk [vmem:[%s8454 + $0x50] sm:$0xff] %vm1972, %v8432
      %8466 = vst.msk [vmem:[%s8454 + $0x58] sm:$0xff] %vm1972, %v8433
      %8467 = vst.msk [vmem:[%s8454 + $0x60] sm:$0xff] %vm1972, %v8434
      %8468 = vst.msk [vmem:[%s8454 + $0x68] sm:$0xff] %vm1972, %v8435
      %8469 = vst.msk [vmem:[%s8454 + $0x70] sm:$0xff] %vm1972, %v8436
      %8470 = vst.msk [vmem:[%s8454 + $0x78] sm:$0xff] %vm1972, %v8437
      %8471 = vst.msk [vmem:[%s8454 + $0x80] sm:$0xff] %vm1972, %v8438
      %8472 = vst.msk [vmem:[%s8454 + $0x88] sm:$0xff] %vm1972, %v8439
      %8473 = vst.msk [vmem:[%s8454 + $0x90] sm:$0xff] %vm1972, %v8440
      %8474 = vst.msk [vmem:[%s8454 + $0x98] sm:$0xff] %vm1972, %v8441
      %8475 = vst.msk [vmem:[%s8454 + $0xa0] sm:$0xff] %vm1972, %v8442
      %8476 = vst.msk [vmem:[%s8454 + $0xa8] sm:$0xff] %vm1972, %v8443
      %8477 = vst.msk [vmem:[%s8454 + $0xb0] sm:$0xff] %vm1972, %v8444
      %8478 = vst.msk [vmem:[%s8454 + $0xb8] sm:$0xff] %vm1972, %v8445
      %8479 = vst.msk [vmem:[%s8454 + $0xc0] sm:$0xff] %vm1972, %v8446
      %8480 = vst.msk [vmem:[%s8454 + $0xc8] sm:$0xff] %vm1972, %v8447
      %8481 = vst.msk [vmem:[%s8454 + $0xd0] sm:$0xff] %vm1972, %v8448
      %8482 = vst.msk [vmem:[%s8454 + $0xd8] sm:$0xff] %vm1972, %v8449
      %8483 = vst.msk [vmem:[%s8454 + $0xe0] sm:$0xff] %vm1972, %v8450
      %8484 = vst.msk [vmem:[%s8454 + $0xe8] sm:$0xff] %vm1972, %v8451
      %8485 = vst.msk [vmem:[%s8454 + $0xf0] sm:$0xff] %vm1972, %v8452
      %8486 = vst.msk [vmem:[%s8454 + $0xf8] sm:$0xff] %vm1972, %v8453
      %v8487 = vsel %vm1972, %v8422, 0.0
      %v8488 = vsel %vm1972, %v8423, 0.0
      %v8489 = vadd.f32 %v8487, %v8488
      %v8490 = vsel %vm1972, %v8424, 0.0
      %v8491 = vadd.f32 %v8489, %v8490
      %v8492 = vsel %vm1972, %v8425, 0.0
      %v8493 = vadd.f32 %v8491, %v8492
      %v8494 = vsel %vm1972, %v8426, 0.0
      %v8495 = vadd.f32 %v8493, %v8494
      %v8496 = vsel %vm1972, %v8427, 0.0
      %v8497 = vadd.f32 %v8495, %v8496
      %v8498 = vsel %vm1972, %v8428, 0.0
      %v8499 = vadd.f32 %v8497, %v8498
      %v8500 = vsel %vm1972, %v8429, 0.0
      %v8501 = vadd.f32 %v8499, %v8500
      %v8502 = vsel %vm1972, %v8430, 0.0
      %v8503 = vadd.f32 %v8501, %v8502
      %v8504 = vsel %vm1972, %v8431, 0.0
      %v8505 = vadd.f32 %v8503, %v8504
      %v8506 = vsel %vm1972, %v8432, 0.0
      %v8507 = vadd.f32 %v8505, %v8506
      %v8508 = vsel %vm1972, %v8433, 0.0
      %v8509 = vadd.f32 %v8507, %v8508
      %v8510 = vsel %vm1972, %v8434, 0.0
      %v8511 = vadd.f32 %v8509, %v8510
      %v8512 = vsel %vm1972, %v8435, 0.0
      %v8513 = vadd.f32 %v8511, %v8512
      %v8514 = vsel %vm1972, %v8436, 0.0
      %v8515 = vadd.f32 %v8513, %v8514
      %v8516 = vsel %vm1972, %v8437, 0.0
      %v8517 = vadd.f32 %v8515, %v8516
      %v8518 = vsel %vm1972, %v8438, 0.0
      %v8519 = vadd.f32 %v8517, %v8518
      %v8520 = vsel %vm1972, %v8439, 0.0
      %v8521 = vadd.f32 %v8519, %v8520
      %v8522 = vsel %vm1972, %v8440, 0.0
      %v8523 = vadd.f32 %v8521, %v8522
      %v8524 = vsel %vm1972, %v8441, 0.0
      %v8525 = vadd.f32 %v8523, %v8524
      %v8526 = vsel %vm1972, %v8442, 0.0
      %v8527 = vadd.f32 %v8525, %v8526
      %v8528 = vsel %vm1972, %v8443, 0.0
      %v8529 = vadd.f32 %v8527, %v8528
      %v8530 = vsel %vm1972, %v8444, 0.0
      %v8531 = vadd.f32 %v8529, %v8530
      %v8532 = vsel %vm1972, %v8445, 0.0
      %v8533 = vadd.f32 %v8531, %v8532
      %v8534 = vsel %vm1972, %v8446, 0.0
      %v8535 = vadd.f32 %v8533, %v8534
      %v8536 = vsel %vm1972, %v8447, 0.0
      %v8537 = vadd.f32 %v8535, %v8536
      %v8538 = vsel %vm1972, %v8448, 0.0
      %v8539 = vadd.f32 %v8537, %v8538
      %v8540 = vsel %vm1972, %v8449, 0.0
      %v8541 = vadd.f32 %v8539, %v8540
      %v8542 = vsel %vm1972, %v8450, 0.0
      %v8543 = vadd.f32 %v8541, %v8542
      %v8544 = vsel %vm1972, %v8451, 0.0
      %v8545 = vadd.f32 %v8543, %v8544
      %v8546 = vsel %vm1972, %v8452, 0.0
      %v8547 = vadd.f32 %v8545, %v8546
      %v8548 = vsel %vm1972, %v8453, 0.0
      %v8549 = vadd.f32 %v8547, %v8548
      %v8550 = vrot.slane %v8549, 4
      %v8551 = vadd.f32 %v8549, %v8550
      %v8552 = vrot.slane %v8551, 2
      %v8553 = vadd.f32 %v8551, %v8552
      %v8554 = vrot.slane %v8553, 1
      %v8555 = vadd.f32 %v8553, %v8554
      %v8556 = vadd.f32 %v6312, %v8555
      %v8557 = vmul.f32 %v8422, %v8422
      %v8558 = vmul.f32 %v8423, %v8423
      %v8559 = vmul.f32 %v8424, %v8424
      %v8560 = vmul.f32 %v8425, %v8425
      %v8561 = vmul.f32 %v8426, %v8426
      %v8562 = vmul.f32 %v8427, %v8427
      %v8563 = vmul.f32 %v8428, %v8428
      %v8564 = vmul.f32 %v8429, %v8429
      %v8565 = vmul.f32 %v8430, %v8430
      %v8566 = vmul.f32 %v8431, %v8431
      %v8567 = vmul.f32 %v8432, %v8432
      %v8568 = vmul.f32 %v8433, %v8433
      %v8569 = vmul.f32 %v8434, %v8434
      %v8570 = vmul.f32 %v8435, %v8435
      %v8571 = vmul.f32 %v8436, %v8436
      %v8572 = vmul.f32 %v8437, %v8437
      %v8573 = vmul.f32 %v8438, %v8438
      %v8574 = vmul.f32 %v8439, %v8439
      %v8575 = vmul.f32 %v8440, %v8440
      %v8576 = vmul.f32 %v8441, %v8441
      %v8577 = vmul.f32 %v8442, %v8442
      %v8578 = vmul.f32 %v8443, %v8443
      %v8579 = vmul.f32 %v8444, %v8444
      %v8580 = vmul.f32 %v8445, %v8445
      %v8581 = vmul.f32 %v8446, %v8446
      %v8582 = vmul.f32 %v8447, %v8447
      %v8583 = vmul.f32 %v8448, %v8448
      %v8584 = vmul.f32 %v8449, %v8449
      %v8585 = vmul.f32 %v8450, %v8450
      %v8586 = vmul.f32 %v8451, %v8451
      %v8587 = vmul.f32 %v8452, %v8452
      %v8588 = vmul.f32 %v8453, %v8453
      %v8589 = vsel %vm1972, %v8557, 0.0
      %v8590 = vsel %vm1972, %v8558, 0.0
      %v8591 = vadd.f32 %v8589, %v8590
      %v8592 = vsel %vm1972, %v8559, 0.0
      %v8593 = vadd.f32 %v8591, %v8592
      %v8594 = vsel %vm1972, %v8560, 0.0
      %v8595 = vadd.f32 %v8593, %v8594
      %v8596 = vsel %vm1972, %v8561, 0.0
      %v8597 = vadd.f32 %v8595, %v8596
      %v8598 = vsel %vm1972, %v8562, 0.0
      %v8599 = vadd.f32 %v8597, %v8598
      %v8600 = vsel %vm1972, %v8563, 0.0
      %v8601 = vadd.f32 %v8599, %v8600
      %v8602 = vsel %vm1972, %v8564, 0.0
      %v8603 = vadd.f32 %v8601, %v8602
      %v8604 = vsel %vm1972, %v8565, 0.0
      %v8605 = vadd.f32 %v8603, %v8604
      %v8606 = vsel %vm1972, %v8566, 0.0
      %v8607 = vadd.f32 %v8605, %v8606
      %v8608 = vsel %vm1972, %v8567, 0.0
      %v8609 = vadd.f32 %v8607, %v8608
      %v8610 = vsel %vm1972, %v8568, 0.0
      %v8611 = vadd.f32 %v8609, %v8610
      %v8612 = vsel %vm1972, %v8569, 0.0
      %v8613 = vadd.f32 %v8611, %v8612
      %v8614 = vsel %vm1972, %v8570, 0.0
      %v8615 = vadd.f32 %v8613, %v8614
      %v8616 = vsel %vm1972, %v8571, 0.0
      %v8617 = vadd.f32 %v8615, %v8616
      %v8618 = vsel %vm1972, %v8572, 0.0
      %v8619 = vadd.f32 %v8617, %v8618
      %v8620 = vsel %vm1972, %v8573, 0.0
      %v8621 = vadd.f32 %v8619, %v8620
      %v8622 = vsel %vm1972, %v8574, 0.0
      %v8623 = vadd.f32 %v8621, %v8622
      %v8624 = vsel %vm1972, %v8575, 0.0
      %v8625 = vadd.f32 %v8623, %v8624
      %v8626 = vsel %vm1972, %v8576, 0.0
      %v8627 = vadd.f32 %v8625, %v8626
      %v8628 = vsel %vm1972, %v8577, 0.0
      %v8629 = vadd.f32 %v8627, %v8628
      %v8630 = vsel %vm1972, %v8578, 0.0
      %v8631 = vadd.f32 %v8629, %v8630
      %v8632 = vsel %vm1972, %v8579, 0.0
      %v8633 = vadd.f32 %v8631, %v8632
      %v8634 = vsel %vm1972, %v8580, 0.0
      %v8635 = vadd.f32 %v8633, %v8634
      %v8636 = vsel %vm1972, %v8581, 0.0
      %v8637 = vadd.f32 %v8635, %v8636
      %v8638 = vsel %vm1972, %v8582, 0.0
      %v8639 = vadd.f32 %v8637, %v8638
      %v8640 = vsel %vm1972, %v8583, 0.0
      %v8641 = vadd.f32 %v8639, %v8640
      %v8642 = vsel %vm1972, %v8584, 0.0
      %v8643 = vadd.f32 %v8641, %v8642
      %v8644 = vsel %vm1972, %v8585, 0.0
      %v8645 = vadd.f32 %v8643, %v8644
      %v8646 = vsel %vm1972, %v8586, 0.0
      %v8647 = vadd.f32 %v8645, %v8646
      %v8648 = vsel %vm1972, %v8587, 0.0
      %v8649 = vadd.f32 %v8647, %v8648
      %v8650 = vsel %vm1972, %v8588, 0.0
      %v8651 = vadd.f32 %v8649, %v8650
      %v8652 = vrot.slane %v8651, 4
      %v8653 = vadd.f32 %v8651, %v8652
      %v8654 = vrot.slane %v8653, 2
      %v8655 = vadd.f32 %v8653, %v8654
      %v8656 = vrot.slane %v8655, 1
      %v8657 = vadd.f32 %v8655, %v8656
      %v8658 = vadd.f32 %v6414, %v8657
      %v8659 = vmul.f32 %v8556, 0.0009765625
      %v8660 = vmul.f32 %v8658, 0.0009765625
      %v8661 = vmul.f32 %v8659, %v8659
      %v8662 = vsub.f32 %v8660, %v8661
      %v8663 = vmax.f32 %v8662, 0.0
      %v8664 = vadd.f32 %v8663, 1e-05
      %v8665 = vrsqrt.pop %v8664
      %v8666 = vmul.f32 %v8665, %v8664
      %v8667 = vmul.f32 %v8666, %v8665
      %v8668 = vmul.f32 0.5, %v8667
      %v8669 = vsub.f32 1.5, %v8668
      %v8670 = vmul.f32 %v8665, %v8669
      %vm8671 = vweird.f32 %v8664
      %vm8672 = vweird.f32 %v8665
      %vm8673 = vmor %vm8671, %vm8672
      %v8674 = vsel %vm8673, %v8665, %v8670
      %v8675 = vld [vmem:[%s180] sm:$0xff]
      %v8676 = vld [vmem:[%s180 + $0x8] sm:$0xff]
      %v8677 = vld [vmem:[%s180 + $0x10] sm:$0xff]
      %v8678 = vld [vmem:[%s180 + $0x18] sm:$0xff]
      %v8679 = vld [vmem:[%s180 + $0x20] sm:$0xff]
      %v8680 = vld [vmem:[%s180 + $0x28] sm:$0xff]
      %v8681 = vld [vmem:[%s180 + $0x30] sm:$0xff]
      %v8682 = vld [vmem:[%s180 + $0x38] sm:$0xff]
      %v8683 = vld [vmem:[%s180 + $0x40] sm:$0xff]
      %v8684 = vld [vmem:[%s180 + $0x48] sm:$0xff]
      %v8685 = vld [vmem:[%s180 + $0x50] sm:$0xff]
      %v8686 = vld [vmem:[%s180 + $0x58] sm:$0xff]
      %v8687 = vld [vmem:[%s180 + $0x60] sm:$0xff]
      %v8688 = vld [vmem:[%s180 + $0x68] sm:$0xff]
      %v8689 = vld [vmem:[%s180 + $0x70] sm:$0xff]
      %v8690 = vld [vmem:[%s180 + $0x78] sm:$0xff]
      %v8691 = vld [vmem:[%s180 + $0x80] sm:$0xff]
      %v8692 = vld [vmem:[%s180 + $0x88] sm:$0xff]
      %v8693 = vld [vmem:[%s180 + $0x90] sm:$0xff]
      %v8694 = vld [vmem:[%s180 + $0x98] sm:$0xff]
      %v8695 = vld [vmem:[%s180 + $0xa0] sm:$0xff]
      %v8696 = vld [vmem:[%s180 + $0xa8] sm:$0xff]
      %v8697 = vld [vmem:[%s180 + $0xb0] sm:$0xff]
      %v8698 = vld [vmem:[%s180 + $0xb8] sm:$0xff]
      %v8699 = vld [vmem:[%s180 + $0xc0] sm:$0xff]
      %v8700 = vld [vmem:[%s180 + $0xc8] sm:$0xff]
      %v8701 = vld [vmem:[%s180 + $0xd0] sm:$0xff]
      %v8702 = vld [vmem:[%s180 + $0xd8] sm:$0xff]
      %v8703 = vld [vmem:[%s180 + $0xe0] sm:$0xff]
      %v8704 = vld [vmem:[%s180 + $0xe8] sm:$0xff]
      %v8705 = vld [vmem:[%s180 + $0xf0] sm:$0xff]
      %v8706 = vld [vmem:[%s180 + $0xf8] sm:$0xff]
      %v8707 = vsub.f32 %v8675, %v8659
      %v8708 = vsub.f32 %v8676, %v8659
      %v8709 = vsub.f32 %v8677, %v8659
      %v8710 = vsub.f32 %v8678, %v8659
      %v8711 = vsub.f32 %v8679, %v8659
      %v8712 = vsub.f32 %v8680, %v8659
      %v8713 = vsub.f32 %v8681, %v8659
      %v8714 = vsub.f32 %v8682, %v8659
      %v8715 = vsub.f32 %v8683, %v8659
      %v8716 = vsub.f32 %v8684, %v8659
      %v8717 = vsub.f32 %v8685, %v8659
      %v8718 = vsub.f32 %v8686, %v8659
      %v8719 = vsub.f32 %v8687, %v8659
      %v8720 = vsub.f32 %v8688, %v8659
      %v8721 = vsub.f32 %v8689, %v8659
      %v8722 = vsub.f32 %v8690, %v8659
      %v8723 = vsub.f32 %v8691, %v8659
      %v8724 = vsub.f32 %v8692, %v8659
      %v8725 = vsub.f32 %v8693, %v8659
      %v8726 = vsub.f32 %v8694, %v8659
      %v8727 = vsub.f32 %v8695, %v8659
      %v8728 = vsub.f32 %v8696, %v8659
      %v8729 = vsub.f32 %v8697, %v8659
      %v8730 = vsub.f32 %v8698, %v8659
      %v8731 = vsub.f32 %v8699, %v8659
      %v8732 = vsub.f32 %v8700, %v8659
      %v8733 = vsub.f32 %v8701, %v8659
      %v8734 = vsub.f32 %v8702, %v8659
      %v8735 = vsub.f32 %v8703, %v8659
      %v8736 = vsub.f32 %v8704, %v8659
      %v8737 = vsub.f32 %v8705, %v8659
      %v8738 = vsub.f32 %v8706, %v8659
      %v8739 = vmul.f32 %v8707, %v8674
      %v8740 = vmul.f32 %v8708, %v8674
      %v8741 = vmul.f32 %v8709, %v8674
      %v8742 = vmul.f32 %v8710, %v8674
      %v8743 = vmul.f32 %v8711, %v8674
      %v8744 = vmul.f32 %v8712, %v8674
      %v8745 = vmul.f32 %v8713, %v8674
      %v8746 = vmul.f32 %v8714, %v8674
      %v8747 = vmul.f32 %v8715, %v8674
      %v8748 = vmul.f32 %v8716, %v8674
      %v8749 = vmul.f32 %v8717, %v8674
      %v8750 = vmul.f32 %v8718, %v8674
      %v8751 = vmul.f32 %v8719, %v8674
      %v8752 = vmul.f32 %v8720, %v8674
      %v8753 = vmul.f32 %v8721, %v8674
      %v8754 = vmul.f32 %v8722, %v8674
      %v8755 = vmul.f32 %v8723, %v8674
      %v8756 = vmul.f32 %v8724, %v8674
      %v8757 = vmul.f32 %v8725, %v8674
      %v8758 = vmul.f32 %v8726, %v8674
      %v8759 = vmul.f32 %v8727, %v8674
      %v8760 = vmul.f32 %v8728, %v8674
      %v8761 = vmul.f32 %v8729, %v8674
      %v8762 = vmul.f32 %v8730, %v8674
      %v8763 = vmul.f32 %v8731, %v8674
      %v8764 = vmul.f32 %v8732, %v8674
      %v8765 = vmul.f32 %v8733, %v8674
      %v8766 = vmul.f32 %v8734, %v8674
      %v8767 = vmul.f32 %v8735, %v8674
      %v8768 = vmul.f32 %v8736, %v8674
      %v8769 = vmul.f32 %v8737, %v8674
      %v8770 = vmul.f32 %v8738, %v8674
      %vm8771 = vcmp.ge.f32.partialorder %v8739, 0.0
      %vm8772 = vcmp.ge.f32.partialorder %v8740, 0.0
      %vm8773 = vcmp.ge.f32.partialorder %v8741, 0.0
      %vm8774 = vcmp.ge.f32.partialorder %v8742, 0.0
      %vm8775 = vcmp.ge.f32.partialorder %v8743, 0.0
      %vm8776 = vcmp.ge.f32.partialorder %v8744, 0.0
      %vm8777 = vcmp.ge.f32.partialorder %v8745, 0.0
      %vm8778 = vcmp.ge.f32.partialorder %v8746, 0.0
      %vm8779 = vcmp.ge.f32.partialorder %v8747, 0.0
      %vm8780 = vcmp.ge.f32.partialorder %v8748, 0.0
      %vm8781 = vcmp.ge.f32.partialorder %v8749, 0.0
      %vm8782 = vcmp.ge.f32.partialorder %v8750, 0.0
      %vm8783 = vcmp.ge.f32.partialorder %v8751, 0.0
      %vm8784 = vcmp.ge.f32.partialorder %v8752, 0.0
      %vm8785 = vcmp.ge.f32.partialorder %v8753, 0.0
      %vm8786 = vcmp.ge.f32.partialorder %v8754, 0.0
      %vm8787 = vcmp.ge.f32.partialorder %v8755, 0.0
      %vm8788 = vcmp.ge.f32.partialorder %v8756, 0.0
      %vm8789 = vcmp.ge.f32.partialorder %v8757, 0.0
      %vm8790 = vcmp.ge.f32.partialorder %v8758, 0.0
      %vm8791 = vcmp.ge.f32.partialorder %v8759, 0.0
      %vm8792 = vcmp.ge.f32.partialorder %v8760, 0.0
      %vm8793 = vcmp.ge.f32.partialorder %v8761, 0.0
      %vm8794 = vcmp.ge.f32.partialorder %v8762, 0.0
      %vm8795 = vcmp.ge.f32.partialorder %v8763, 0.0
      %vm8796 = vcmp.ge.f32.partialorder %v8764, 0.0
      %vm8797 = vcmp.ge.f32.partialorder %v8765, 0.0
      %vm8798 = vcmp.ge.f32.partialorder %v8766, 0.0
      %vm8799 = vcmp.ge.f32.partialorder %v8767, 0.0
      %vm8800 = vcmp.ge.f32.partialorder %v8768, 0.0
      %vm8801 = vcmp.ge.f32.partialorder %v8769, 0.0
      %vm8802 = vcmp.ge.f32.partialorder %v8770, 0.0
      %v8803 = vmul.f32 %v8739, 0.01
      %v8804 = vmul.f32 %v8740, 0.01
      %v8805 = vmul.f32 %v8741, 0.01
      %v8806 = vmul.f32 %v8742, 0.01
      %v8807 = vmul.f32 %v8743, 0.01
      %v8808 = vmul.f32 %v8744, 0.01
      %v8809 = vmul.f32 %v8745, 0.01
      %v8810 = vmul.f32 %v8746, 0.01
      %v8811 = vmul.f32 %v8747, 0.01
      %v8812 = vmul.f32 %v8748, 0.01
      %v8813 = vmul.f32 %v8749, 0.01
      %v8814 = vmul.f32 %v8750, 0.01
      %v8815 = vmul.f32 %v8751, 0.01
      %v8816 = vmul.f32 %v8752, 0.01
      %v8817 = vmul.f32 %v8753, 0.01
      %v8818 = vmul.f32 %v8754, 0.01
      %v8819 = vmul.f32 %v8755, 0.01
      %v8820 = vmul.f32 %v8756, 0.01
      %v8821 = vmul.f32 %v8757, 0.01
      %v8822 = vmul.f32 %v8758, 0.01
      %v8823 = vmul.f32 %v8759, 0.01
      %v8824 = vmul.f32 %v8760, 0.01
      %v8825 = vmul.f32 %v8761, 0.01
      %v8826 = vmul.f32 %v8762, 0.01
      %v8827 = vmul.f32 %v8763, 0.01
      %v8828 = vmul.f32 %v8764, 0.01
      %v8829 = vmul.f32 %v8765, 0.01
      %v8830 = vmul.f32 %v8766, 0.01
      %v8831 = vmul.f32 %v8767, 0.01
      %v8832 = vmul.f32 %v8768, 0.01
      %v8833 = vmul.f32 %v8769, 0.01
      %v8834 = vmul.f32 %v8770, 0.01
      %v8835 = vsel %vm8771, %v8739, %v8803
      %v8836 = vsel %vm8772, %v8740, %v8804
      %v8837 = vsel %vm8773, %v8741, %v8805
      %v8838 = vsel %vm8774, %v8742, %v8806
      %v8839 = vsel %vm8775, %v8743, %v8807
      %v8840 = vsel %vm8776, %v8744, %v8808
      %v8841 = vsel %vm8777, %v8745, %v8809
      %v8842 = vsel %vm8778, %v8746, %v8810
      %v8843 = vsel %vm8779, %v8747, %v8811
      %v8844 = vsel %vm8780, %v8748, %v8812
      %v8845 = vsel %vm8781, %v8749, %v8813
      %v8846 = vsel %vm8782, %v8750, %v8814
      %v8847 = vsel %vm8783, %v8751, %v8815
      %v8848 = vsel %vm8784, %v8752, %v8816
      %v8849 = vsel %vm8785, %v8753, %v8817
      %v8850 = vsel %vm8786, %v8754, %v8818
      %v8851 = vsel %vm8787, %v8755, %v8819
      %v8852 = vsel %vm8788, %v8756, %v8820
      %v8853 = vsel %vm8789, %v8757, %v8821
      %v8854 = vsel %vm8790, %v8758, %v8822
      %v8855 = vsel %vm8791, %v8759, %v8823
      %v8856 = vsel %vm8792, %v8760, %v8824
      %v8857 = vsel %vm8793, %v8761, %v8825
      %v8858 = vsel %vm8794, %v8762, %v8826
      %v8859 = vsel %vm8795, %v8763, %v8827
      %v8860 = vsel %vm8796, %v8764, %v8828
      %v8861 = vsel %vm8797, %v8765, %v8829
      %v8862 = vsel %vm8798, %v8766, %v8830
      %v8863 = vsel %vm8799, %v8767, %v8831
      %v8864 = vsel %vm8800, %v8768, %v8832
      %v8865 = vsel %vm8801, %v8769, %v8833
      %v8866 = vsel %vm8802, %v8770, %v8834
      %8867 = vst.msk [vmem:[%s180] sm:$0xff] %vm1972, %v8835
      %8868 = vst.msk [vmem:[%s180 + $0x8] sm:$0xff] %vm1972, %v8836
      %8869 = vst.msk [vmem:[%s180 + $0x10] sm:$0xff] %vm1972, %v8837
      %8870 = vst.msk [vmem:[%s180 + $0x18] sm:$0xff] %vm1972, %v8838
      %8871 = vst.msk [vmem:[%s180 + $0x20] sm:$0xff] %vm1972, %v8839
      %8872 = vst.msk [vmem:[%s180 + $0x28] sm:$0xff] %vm1972, %v8840
      %8873 = vst.msk [vmem:[%s180 + $0x30] sm:$0xff] %vm1972, %v8841
      %8874 = vst.msk [vmem:[%s180 + $0x38] sm:$0xff] %vm1972, %v8842
      %8875 = vst.msk [vmem:[%s180 + $0x40] sm:$0xff] %vm1972, %v8843
      %8876 = vst.msk [vmem:[%s180 + $0x48] sm:$0xff] %vm1972, %v8844
      %8877 = vst.msk [vmem:[%s180 + $0x50] sm:$0xff] %vm1972, %v8845
      %8878 = vst.msk [vmem:[%s180 + $0x58] sm:$0xff] %vm1972, %v8846
      %8879 = vst.msk [vmem:[%s180 + $0x60] sm:$0xff] %vm1972, %v8847
      %8880 = vst.msk [vmem:[%s180 + $0x68] sm:$0xff] %vm1972, %v8848
      %8881 = vst.msk [vmem:[%s180 + $0x70] sm:$0xff] %vm1972, %v8849
      %8882 = vst.msk [vmem:[%s180 + $0x78] sm:$0xff] %vm1972, %v8850
      %8883 = vst.msk [vmem:[%s180 + $0x80] sm:$0xff] %vm1972, %v8851
      %8884 = vst.msk [vmem:[%s180 + $0x88] sm:$0xff] %vm1972, %v8852
      %8885 = vst.msk [vmem:[%s180 + $0x90] sm:$0xff] %vm1972, %v8853
      %8886 = vst.msk [vmem:[%s180 + $0x98] sm:$0xff] %vm1972, %v8854
      %8887 = vst.msk [vmem:[%s180 + $0xa0] sm:$0xff] %vm1972, %v8855
      %8888 = vst.msk [vmem:[%s180 + $0xa8] sm:$0xff] %vm1972, %v8856
      %8889 = vst.msk [vmem:[%s180 + $0xb0] sm:$0xff] %vm1972, %v8857
      %8890 = vst.msk [vmem:[%s180 + $0xb8] sm:$0xff] %vm1972, %v8858
      %8891 = vst.msk [vmem:[%s180 + $0xc0] sm:$0xff] %vm1972, %v8859
      %8892 = vst.msk [vmem:[%s180 + $0xc8] sm:$0xff] %vm1972, %v8860
      %8893 = vst.msk [vmem:[%s180 + $0xd0] sm:$0xff] %vm1972, %v8861
      %8894 = vst.msk [vmem:[%s180 + $0xd8] sm:$0xff] %vm1972, %v8862
      %8895 = vst.msk [vmem:[%s180 + $0xe0] sm:$0xff] %vm1972, %v8863
      %8896 = vst.msk [vmem:[%s180 + $0xe8] sm:$0xff] %vm1972, %v8864
      %8897 = vst.msk [vmem:[%s180 + $0xf0] sm:$0xff] %vm1972, %v8865
      %8898 = vst.msk [vmem:[%s180 + $0xf8] sm:$0xff] %vm1972, %v8866
      %v8899 = vld [vmem:[%s4220] sm:$0xff]
      %v8900 = vld [vmem:[%s4220 + $0x8] sm:$0xff]
      %v8901 = vld [vmem:[%s4220 + $0x10] sm:$0xff]
      %v8902 = vld [vmem:[%s4220 + $0x18] sm:$0xff]
      %v8903 = vld [vmem:[%s4220 + $0x20] sm:$0xff]
      %v8904 = vld [vmem:[%s4220 + $0x28] sm:$0xff]
      %v8905 = vld [vmem:[%s4220 + $0x30] sm:$0xff]
      %v8906 = vld [vmem:[%s4220 + $0x38] sm:$0xff]
      %v8907 = vld [vmem:[%s4220 + $0x40] sm:$0xff]
      %v8908 = vld [vmem:[%s4220 + $0x48] sm:$0xff]
      %v8909 = vld [vmem:[%s4220 + $0x50] sm:$0xff]
      %v8910 = vld [vmem:[%s4220 + $0x58] sm:$0xff]
      %v8911 = vld [vmem:[%s4220 + $0x60] sm:$0xff]
      %v8912 = vld [vmem:[%s4220 + $0x68] sm:$0xff]
      %v8913 = vld [vmem:[%s4220 + $0x70] sm:$0xff]
      %v8914 = vld [vmem:[%s4220 + $0x78] sm:$0xff]
      %v8915 = vld [vmem:[%s4220 + $0x80] sm:$0xff]
      %v8916 = vld [vmem:[%s4220 + $0x88] sm:$0xff]
      %v8917 = vld [vmem:[%s4220 + $0x90] sm:$0xff]
      %v8918 = vld [vmem:[%s4220 + $0x98] sm:$0xff]
      %v8919 = vld [vmem:[%s4220 + $0xa0] sm:$0xff]
      %v8920 = vld [vmem:[%s4220 + $0xa8] sm:$0xff]
      %v8921 = vld [vmem:[%s4220 + $0xb0] sm:$0xff]
      %v8922 = vld [vmem:[%s4220 + $0xb8] sm:$0xff]
      %v8923 = vld [vmem:[%s4220 + $0xc0] sm:$0xff]
      %v8924 = vld [vmem:[%s4220 + $0xc8] sm:$0xff]
      %v8925 = vld [vmem:[%s4220 + $0xd0] sm:$0xff]
      %v8926 = vld [vmem:[%s4220 + $0xd8] sm:$0xff]
      %v8927 = vld [vmem:[%s4220 + $0xe0] sm:$0xff]
      %v8928 = vld [vmem:[%s4220 + $0xe8] sm:$0xff]
      %v8929 = vld [vmem:[%s4220 + $0xf0] sm:$0xff]
      %v8930 = vld [vmem:[%s4220 + $0xf8] sm:$0xff]
      %v8931 = vsub.f32 %v8899, %v8659
      %v8932 = vsub.f32 %v8900, %v8659
      %v8933 = vsub.f32 %v8901, %v8659
      %v8934 = vsub.f32 %v8902, %v8659
      %v8935 = vsub.f32 %v8903, %v8659
      %v8936 = vsub.f32 %v8904, %v8659
      %v8937 = vsub.f32 %v8905, %v8659
      %v8938 = vsub.f32 %v8906, %v8659
      %v8939 = vsub.f32 %v8907, %v8659
      %v8940 = vsub.f32 %v8908, %v8659
      %v8941 = vsub.f32 %v8909, %v8659
      %v8942 = vsub.f32 %v8910, %v8659
      %v8943 = vsub.f32 %v8911, %v8659
      %v8944 = vsub.f32 %v8912, %v8659
      %v8945 = vsub.f32 %v8913, %v8659
      %v8946 = vsub.f32 %v8914, %v8659
      %v8947 = vsub.f32 %v8915, %v8659
      %v8948 = vsub.f32 %v8916, %v8659
      %v8949 = vsub.f32 %v8917, %v8659
      %v8950 = vsub.f32 %v8918, %v8659
      %v8951 = vsub.f32 %v8919, %v8659
      %v8952 = vsub.f32 %v8920, %v8659
      %v8953 = vsub.f32 %v8921, %v8659
      %v8954 = vsub.f32 %v8922, %v8659
      %v8955 = vsub.f32 %v8923, %v8659
      %v8956 = vsub.f32 %v8924, %v8659
      %v8957 = vsub.f32 %v8925, %v8659
      %v8958 = vsub.f32 %v8926, %v8659
      %v8959 = vsub.f32 %v8927, %v8659
      %v8960 = vsub.f32 %v8928, %v8659
      %v8961 = vsub.f32 %v8929, %v8659
      %v8962 = vsub.f32 %v8930, %v8659
      %v8963 = vmul.f32 %v8931, %v8674
      %v8964 = vmul.f32 %v8932, %v8674
      %v8965 = vmul.f32 %v8933, %v8674
      %v8966 = vmul.f32 %v8934, %v8674
      %v8967 = vmul.f32 %v8935, %v8674
      %v8968 = vmul.f32 %v8936, %v8674
      %v8969 = vmul.f32 %v8937, %v8674
      %v8970 = vmul.f32 %v8938, %v8674
      %v8971 = vmul.f32 %v8939, %v8674
      %v8972 = vmul.f32 %v8940, %v8674
      %v8973 = vmul.f32 %v8941, %v8674
      %v8974 = vmul.f32 %v8942, %v8674
      %v8975 = vmul.f32 %v8943, %v8674
      %v8976 = vmul.f32 %v8944, %v8674
      %v8977 = vmul.f32 %v8945, %v8674
      %v8978 = vmul.f32 %v8946, %v8674
      %v8979 = vmul.f32 %v8947, %v8674
      %v8980 = vmul.f32 %v8948, %v8674
      %v8981 = vmul.f32 %v8949, %v8674
      %v8982 = vmul.f32 %v8950, %v8674
      %v8983 = vmul.f32 %v8951, %v8674
      %v8984 = vmul.f32 %v8952, %v8674
      %v8985 = vmul.f32 %v8953, %v8674
      %v8986 = vmul.f32 %v8954, %v8674
      %v8987 = vmul.f32 %v8955, %v8674
      %v8988 = vmul.f32 %v8956, %v8674
      %v8989 = vmul.f32 %v8957, %v8674
      %v8990 = vmul.f32 %v8958, %v8674
      %v8991 = vmul.f32 %v8959, %v8674
      %v8992 = vmul.f32 %v8960, %v8674
      %v8993 = vmul.f32 %v8961, %v8674
      %v8994 = vmul.f32 %v8962, %v8674
      %vm8995 = vcmp.ge.f32.partialorder %v8963, 0.0
      %vm8996 = vcmp.ge.f32.partialorder %v8964, 0.0
      %vm8997 = vcmp.ge.f32.partialorder %v8965, 0.0
      %vm8998 = vcmp.ge.f32.partialorder %v8966, 0.0
      %vm8999 = vcmp.ge.f32.partialorder %v8967, 0.0
      %vm9000 = vcmp.ge.f32.partialorder %v8968, 0.0
      %vm9001 = vcmp.ge.f32.partialorder %v8969, 0.0
      %vm9002 = vcmp.ge.f32.partialorder %v8970, 0.0
      %vm9003 = vcmp.ge.f32.partialorder %v8971, 0.0
      %vm9004 = vcmp.ge.f32.partialorder %v8972, 0.0
      %vm9005 = vcmp.ge.f32.partialorder %v8973, 0.0
      %vm9006 = vcmp.ge.f32.partialorder %v8974, 0.0
      %vm9007 = vcmp.ge.f32.partialorder %v8975, 0.0
      %vm9008 = vcmp.ge.f32.partialorder %v8976, 0.0
      %vm9009 = vcmp.ge.f32.partialorder %v8977, 0.0
      %vm9010 = vcmp.ge.f32.partialorder %v8978, 0.0
      %vm9011 = vcmp.ge.f32.partialorder %v8979, 0.0
      %vm9012 = vcmp.ge.f32.partialorder %v8980, 0.0
      %vm9013 = vcmp.ge.f32.partialorder %v8981, 0.0
      %vm9014 = vcmp.ge.f32.partialorder %v8982, 0.0
      %vm9015 = vcmp.ge.f32.partialorder %v8983, 0.0
      %vm9016 = vcmp.ge.f32.partialorder %v8984, 0.0
      %vm9017 = vcmp.ge.f32.partialorder %v8985, 0.0
      %vm9018 = vcmp.ge.f32.partialorder %v8986, 0.0
      %vm9019 = vcmp.ge.f32.partialorder %v8987, 0.0
      %vm9020 = vcmp.ge.f32.partialorder %v8988, 0.0
      %vm9021 = vcmp.ge.f32.partialorder %v8989, 0.0
      %vm9022 = vcmp.ge.f32.partialorder %v8990, 0.0
      %vm9023 = vcmp.ge.f32.partialorder %v8991, 0.0
      %vm9024 = vcmp.ge.f32.partialorder %v8992, 0.0
      %vm9025 = vcmp.ge.f32.partialorder %v8993, 0.0
      %vm9026 = vcmp.ge.f32.partialorder %v8994, 0.0
      %v9027 = vmul.f32 %v8963, 0.01
      %v9028 = vmul.f32 %v8964, 0.01
      %v9029 = vmul.f32 %v8965, 0.01
      %v9030 = vmul.f32 %v8966, 0.01
      %v9031 = vmul.f32 %v8967, 0.01
      %v9032 = vmul.f32 %v8968, 0.01
      %v9033 = vmul.f32 %v8969, 0.01
      %v9034 = vmul.f32 %v8970, 0.01
      %v9035 = vmul.f32 %v8971, 0.01
      %v9036 = vmul.f32 %v8972, 0.01
      %v9037 = vmul.f32 %v8973, 0.01
      %v9038 = vmul.f32 %v8974, 0.01
      %v9039 = vmul.f32 %v8975, 0.01
      %v9040 = vmul.f32 %v8976, 0.01
      %v9041 = vmul.f32 %v8977, 0.01
      %v9042 = vmul.f32 %v8978, 0.01
      %v9043 = vmul.f32 %v8979, 0.01
      %v9044 = vmul.f32 %v8980, 0.01
      %v9045 = vmul.f32 %v8981, 0.01
      %v9046 = vmul.f32 %v8982, 0.01
      %v9047 = vmul.f32 %v8983, 0.01
      %v9048 = vmul.f32 %v8984, 0.01
      %v9049 = vmul.f32 %v8985, 0.01
      %v9050 = vmul.f32 %v8986, 0.01
      %v9051 = vmul.f32 %v8987, 0.01
      %v9052 = vmul.f32 %v8988, 0.01
      %v9053 = vmul.f32 %v8989, 0.01
      %v9054 = vmul.f32 %v8990, 0.01
      %v9055 = vmul.f32 %v8991, 0.01
      %v9056 = vmul.f32 %v8992, 0.01
      %v9057 = vmul.f32 %v8993, 0.01
      %v9058 = vmul.f32 %v8994, 0.01
      %v9059 = vsel %vm8995, %v8963, %v9027
      %v9060 = vsel %vm8996, %v8964, %v9028
      %v9061 = vsel %vm8997, %v8965, %v9029
      %v9062 = vsel %vm8998, %v8966, %v9030
      %v9063 = vsel %vm8999, %v8967, %v9031
      %v9064 = vsel %vm9000, %v8968, %v9032
      %v9065 = vsel %vm9001, %v8969, %v9033
      %v9066 = vsel %vm9002, %v8970, %v9034
      %v9067 = vsel %vm9003, %v8971, %v9035
      %v9068 = vsel %vm9004, %v8972, %v9036
      %v9069 = vsel %vm9005, %v8973, %v9037
      %v9070 = vsel %vm9006, %v8974, %v9038
      %v9071 = vsel %vm9007, %v8975, %v9039
      %v9072 = vsel %vm9008, %v8976, %v9040
      %v9073 = vsel %vm9009, %v8977, %v9041
      %v9074 = vsel %vm9010, %v8978, %v9042
      %v9075 = vsel %vm9011, %v8979, %v9043
      %v9076 = vsel %vm9012, %v8980, %v9044
      %v9077 = vsel %vm9013, %v8981, %v9045
      %v9078 = vsel %vm9014, %v8982, %v9046
      %v9079 = vsel %vm9015, %v8983, %v9047
      %v9080 = vsel %vm9016, %v8984, %v9048
      %v9081 = vsel %vm9017, %v8985, %v9049
      %v9082 = vsel %vm9018, %v8986, %v9050
      %v9083 = vsel %vm9019, %v8987, %v9051
      %v9084 = vsel %vm9020, %v8988, %v9052
      %v9085 = vsel %vm9021, %v8989, %v9053
      %v9086 = vsel %vm9022, %v8990, %v9054
      %v9087 = vsel %vm9023, %v8991, %v9055
      %v9088 = vsel %vm9024, %v8992, %v9056
      %v9089 = vsel %vm9025, %v8993, %v9057
      %v9090 = vsel %vm9026, %v8994, %v9058
      %9091 = vst.msk [vmem:[%s4220] sm:$0xff] %vm1972, %v9059
      %9092 = vst.msk [vmem:[%s4220 + $0x8] sm:$0xff] %vm1972, %v9060
      %9093 = vst.msk [vmem:[%s4220 + $0x10] sm:$0xff] %vm1972, %v9061
      %9094 = vst.msk [vmem:[%s4220 + $0x18] sm:$0xff] %vm1972, %v9062
      %9095 = vst.msk [vmem:[%s4220 + $0x20] sm:$0xff] %vm1972, %v9063
      %9096 = vst.msk [vmem:[%s4220 + $0x28] sm:$0xff] %vm1972, %v9064
      %9097 = vst.msk [vmem:[%s4220 + $0x30] sm:$0xff] %vm1972, %v9065
      %9098 = vst.msk [vmem:[%s4220 + $0x38] sm:$0xff] %vm1972, %v9066
      %9099 = vst.msk [vmem:[%s4220 + $0x40] sm:$0xff] %vm1972, %v9067
      %9100 = vst.msk [vmem:[%s4220 + $0x48] sm:$0xff] %vm1972, %v9068
      %9101 = vst.msk [vmem:[%s4220 + $0x50] sm:$0xff] %vm1972, %v9069
      %9102 = vst.msk [vmem:[%s4220 + $0x58] sm:$0xff] %vm1972, %v9070
      %9103 = vst.msk [vmem:[%s4220 + $0x60] sm:$0xff] %vm1972, %v9071
      %9104 = vst.msk [vmem:[%s4220 + $0x68] sm:$0xff] %vm1972, %v9072
      %9105 = vst.msk [vmem:[%s4220 + $0x70] sm:$0xff] %vm1972, %v9073
      %9106 = vst.msk [vmem:[%s4220 + $0x78] sm:$0xff] %vm1972, %v9074
      %9107 = vst.msk [vmem:[%s4220 + $0x80] sm:$0xff] %vm1972, %v9075
      %9108 = vst.msk [vmem:[%s4220 + $0x88] sm:$0xff] %vm1972, %v9076
      %9109 = vst.msk [vmem:[%s4220 + $0x90] sm:$0xff] %vm1972, %v9077
      %9110 = vst.msk [vmem:[%s4220 + $0x98] sm:$0xff] %vm1972, %v9078
      %9111 = vst.msk [vmem:[%s4220 + $0xa0] sm:$0xff] %vm1972, %v9079
      %9112 = vst.msk [vmem:[%s4220 + $0xa8] sm:$0xff] %vm1972, %v9080
      %9113 = vst.msk [vmem:[%s4220 + $0xb0] sm:$0xff] %vm1972, %v9081
      %9114 = vst.msk [vmem:[%s4220 + $0xb8] sm:$0xff] %vm1972, %v9082
      %9115 = vst.msk [vmem:[%s4220 + $0xc0] sm:$0xff] %vm1972, %v9083
      %9116 = vst.msk [vmem:[%s4220 + $0xc8] sm:$0xff] %vm1972, %v9084
      %9117 = vst.msk [vmem:[%s4220 + $0xd0] sm:$0xff] %vm1972, %v9085
      %9118 = vst.msk [vmem:[%s4220 + $0xd8] sm:$0xff] %vm1972, %v9086
      %9119 = vst.msk [vmem:[%s4220 + $0xe0] sm:$0xff] %vm1972, %v9087
      %9120 = vst.msk [vmem:[%s4220 + $0xe8] sm:$0xff] %vm1972, %v9088
      %9121 = vst.msk [vmem:[%s4220 + $0xf0] sm:$0xff] %vm1972, %v9089
      %9122 = vst.msk [vmem:[%s4220 + $0xf8] sm:$0xff] %vm1972, %v9090
      %v9123 = vld [vmem:[%s6210] sm:$0xff]
      %v9124 = vld [vmem:[%s6210 + $0x8] sm:$0xff]
      %v9125 = vld [vmem:[%s6210 + $0x10] sm:$0xff]
      %v9126 = vld [vmem:[%s6210 + $0x18] sm:$0xff]
      %v9127 = vld [vmem:[%s6210 + $0x20] sm:$0xff]
      %v9128 = vld [vmem:[%s6210 + $0x28] sm:$0xff]
      %v9129 = vld [vmem:[%s6210 + $0x30] sm:$0xff]
      %v9130 = vld [vmem:[%s6210 + $0x38] sm:$0xff]
      %v9131 = vld [vmem:[%s6210 + $0x40] sm:$0xff]
      %v9132 = vld [vmem:[%s6210 + $0x48] sm:$0xff]
      %v9133 = vld [vmem:[%s6210 + $0x50] sm:$0xff]
      %v9134 = vld [vmem:[%s6210 + $0x58] sm:$0xff]
      %v9135 = vld [vmem:[%s6210 + $0x60] sm:$0xff]
      %v9136 = vld [vmem:[%s6210 + $0x68] sm:$0xff]
      %v9137 = vld [vmem:[%s6210 + $0x70] sm:$0xff]
      %v9138 = vld [vmem:[%s6210 + $0x78] sm:$0xff]
      %v9139 = vld [vmem:[%s6210 + $0x80] sm:$0xff]
      %v9140 = vld [vmem:[%s6210 + $0x88] sm:$0xff]
      %v9141 = vld [vmem:[%s6210 + $0x90] sm:$0xff]
      %v9142 = vld [vmem:[%s6210 + $0x98] sm:$0xff]
      %v9143 = vld [vmem:[%s6210 + $0xa0] sm:$0xff]
      %v9144 = vld [vmem:[%s6210 + $0xa8] sm:$0xff]
      %v9145 = vld [vmem:[%s6210 + $0xb0] sm:$0xff]
      %v9146 = vld [vmem:[%s6210 + $0xb8] sm:$0xff]
      %v9147 = vld [vmem:[%s6210 + $0xc0] sm:$0xff]
      %v9148 = vld [vmem:[%s6210 + $0xc8] sm:$0xff]
      %v9149 = vld [vmem:[%s6210 + $0xd0] sm:$0xff]
      %v9150 = vld [vmem:[%s6210 + $0xd8] sm:$0xff]
      %v9151 = vld [vmem:[%s6210 + $0xe0] sm:$0xff]
      %v9152 = vld [vmem:[%s6210 + $0xe8] sm:$0xff]
      %v9153 = vld [vmem:[%s6210 + $0xf0] sm:$0xff]
      %v9154 = vld [vmem:[%s6210 + $0xf8] sm:$0xff]
      %v9155 = vsub.f32 %v9123, %v8659
      %v9156 = vsub.f32 %v9124, %v8659
      %v9157 = vsub.f32 %v9125, %v8659
      %v9158 = vsub.f32 %v9126, %v8659
      %v9159 = vsub.f32 %v9127, %v8659
      %v9160 = vsub.f32 %v9128, %v8659
      %v9161 = vsub.f32 %v9129, %v8659
      %v9162 = vsub.f32 %v9130, %v8659
      %v9163 = vsub.f32 %v9131, %v8659
      %v9164 = vsub.f32 %v9132, %v8659
      %v9165 = vsub.f32 %v9133, %v8659
      %v9166 = vsub.f32 %v9134, %v8659
      %v9167 = vsub.f32 %v9135, %v8659
      %v9168 = vsub.f32 %v9136, %v8659
      %v9169 = vsub.f32 %v9137, %v8659
      %v9170 = vsub.f32 %v9138, %v8659
      %v9171 = vsub.f32 %v9139, %v8659
      %v9172 = vsub.f32 %v9140, %v8659
      %v9173 = vsub.f32 %v9141, %v8659
      %v9174 = vsub.f32 %v9142, %v8659
      %v9175 = vsub.f32 %v9143, %v8659
      %v9176 = vsub.f32 %v9144, %v8659
      %v9177 = vsub.f32 %v9145, %v8659
      %v9178 = vsub.f32 %v9146, %v8659
      %v9179 = vsub.f32 %v9147, %v8659
      %v9180 = vsub.f32 %v9148, %v8659
      %v9181 = vsub.f32 %v9149, %v8659
      %v9182 = vsub.f32 %v9150, %v8659
      %v9183 = vsub.f32 %v9151, %v8659
      %v9184 = vsub.f32 %v9152, %v8659
      %v9185 = vsub.f32 %v9153, %v8659
      %v9186 = vsub.f32 %v9154, %v8659
      %v9187 = vmul.f32 %v9155, %v8674
      %v9188 = vmul.f32 %v9156, %v8674
      %v9189 = vmul.f32 %v9157, %v8674
      %v9190 = vmul.f32 %v9158, %v8674
      %v9191 = vmul.f32 %v9159, %v8674
      %v9192 = vmul.f32 %v9160, %v8674
      %v9193 = vmul.f32 %v9161, %v8674
      %v9194 = vmul.f32 %v9162, %v8674
      %v9195 = vmul.f32 %v9163, %v8674
      %v9196 = vmul.f32 %v9164, %v8674
      %v9197 = vmul.f32 %v9165, %v8674
      %v9198 = vmul.f32 %v9166, %v8674
      %v9199 = vmul.f32 %v9167, %v8674
      %v9200 = vmul.f32 %v9168, %v8674
      %v9201 = vmul.f32 %v9169, %v8674
      %v9202 = vmul.f32 %v9170, %v8674
      %v9203 = vmul.f32 %v9171, %v8674
      %v9204 = vmul.f32 %v9172, %v8674
      %v9205 = vmul.f32 %v9173, %v8674
      %v9206 = vmul.f32 %v9174, %v8674
      %v9207 = vmul.f32 %v9175, %v8674
      %v9208 = vmul.f32 %v9176, %v8674
      %v9209 = vmul.f32 %v9177, %v8674
      %v9210 = vmul.f32 %v9178, %v8674
      %v9211 = vmul.f32 %v9179, %v8674
      %v9212 = vmul.f32 %v9180, %v8674
      %v9213 = vmul.f32 %v9181, %v8674
      %v9214 = vmul.f32 %v9182, %v8674
      %v9215 = vmul.f32 %v9183, %v8674
      %v9216 = vmul.f32 %v9184, %v8674
      %v9217 = vmul.f32 %v9185, %v8674
      %v9218 = vmul.f32 %v9186, %v8674
      %vm9219 = vcmp.ge.f32.partialorder %v9187, 0.0
      %vm9220 = vcmp.ge.f32.partialorder %v9188, 0.0
      %vm9221 = vcmp.ge.f32.partialorder %v9189, 0.0
      %vm9222 = vcmp.ge.f32.partialorder %v9190, 0.0
      %vm9223 = vcmp.ge.f32.partialorder %v9191, 0.0
      %vm9224 = vcmp.ge.f32.partialorder %v9192, 0.0
      %vm9225 = vcmp.ge.f32.partialorder %v9193, 0.0
      %vm9226 = vcmp.ge.f32.partialorder %v9194, 0.0
      %vm9227 = vcmp.ge.f32.partialorder %v9195, 0.0
      %vm9228 = vcmp.ge.f32.partialorder %v9196, 0.0
      %vm9229 = vcmp.ge.f32.partialorder %v9197, 0.0
      %vm9230 = vcmp.ge.f32.partialorder %v9198, 0.0
      %vm9231 = vcmp.ge.f32.partialorder %v9199, 0.0
      %vm9232 = vcmp.ge.f32.partialorder %v9200, 0.0
      %vm9233 = vcmp.ge.f32.partialorder %v9201, 0.0
      %vm9234 = vcmp.ge.f32.partialorder %v9202, 0.0
      %vm9235 = vcmp.ge.f32.partialorder %v9203, 0.0
      %vm9236 = vcmp.ge.f32.partialorder %v9204, 0.0
      %vm9237 = vcmp.ge.f32.partialorder %v9205, 0.0
      %vm9238 = vcmp.ge.f32.partialorder %v9206, 0.0
      %vm9239 = vcmp.ge.f32.partialorder %v9207, 0.0
      %vm9240 = vcmp.ge.f32.partialorder %v9208, 0.0
      %vm9241 = vcmp.ge.f32.partialorder %v9209, 0.0
      %vm9242 = vcmp.ge.f32.partialorder %v9210, 0.0
      %vm9243 = vcmp.ge.f32.partialorder %v9211, 0.0
      %vm9244 = vcmp.ge.f32.partialorder %v9212, 0.0
      %vm9245 = vcmp.ge.f32.partialorder %v9213, 0.0
      %vm9246 = vcmp.ge.f32.partialorder %v9214, 0.0
      %vm9247 = vcmp.ge.f32.partialorder %v9215, 0.0
      %vm9248 = vcmp.ge.f32.partialorder %v9216, 0.0
      %vm9249 = vcmp.ge.f32.partialorder %v9217, 0.0
      %vm9250 = vcmp.ge.f32.partialorder %v9218, 0.0
      %v9251 = vmul.f32 %v9187, 0.01
      %v9252 = vmul.f32 %v9188, 0.01
      %v9253 = vmul.f32 %v9189, 0.01
      %v9254 = vmul.f32 %v9190, 0.01
      %v9255 = vmul.f32 %v9191, 0.01
      %v9256 = vmul.f32 %v9192, 0.01
      %v9257 = vmul.f32 %v9193, 0.01
      %v9258 = vmul.f32 %v9194, 0.01
      %v9259 = vmul.f32 %v9195, 0.01
      %v9260 = vmul.f32 %v9196, 0.01
      %v9261 = vmul.f32 %v9197, 0.01
      %v9262 = vmul.f32 %v9198, 0.01
      %v9263 = vmul.f32 %v9199, 0.01
      %v9264 = vmul.f32 %v9200, 0.01
      %v9265 = vmul.f32 %v9201, 0.01
      %v9266 = vmul.f32 %v9202, 0.01
      %v9267 = vmul.f32 %v9203, 0.01
      %v9268 = vmul.f32 %v9204, 0.01
      %v9269 = vmul.f32 %v9205, 0.01
      %v9270 = vmul.f32 %v9206, 0.01
      %v9271 = vmul.f32 %v9207, 0.01
      %v9272 = vmul.f32 %v9208, 0.01
      %v9273 = vmul.f32 %v9209, 0.01
      %v9274 = vmul.f32 %v9210, 0.01
      %v9275 = vmul.f32 %v9211, 0.01
      %v9276 = vmul.f32 %v9212, 0.01
      %v9277 = vmul.f32 %v9213, 0.01
      %v9278 = vmul.f32 %v9214, 0.01
      %v9279 = vmul.f32 %v9215, 0.01
      %v9280 = vmul.f32 %v9216, 0.01
      %v9281 = vmul.f32 %v9217, 0.01
      %v9282 = vmul.f32 %v9218, 0.01
      %v9283 = vsel %vm9219, %v9187, %v9251
      %v9284 = vsel %vm9220, %v9188, %v9252
      %v9285 = vsel %vm9221, %v9189, %v9253
      %v9286 = vsel %vm9222, %v9190, %v9254
      %v9287 = vsel %vm9223, %v9191, %v9255
      %v9288 = vsel %vm9224, %v9192, %v9256
      %v9289 = vsel %vm9225, %v9193, %v9257
      %v9290 = vsel %vm9226, %v9194, %v9258
      %v9291 = vsel %vm9227, %v9195, %v9259
      %v9292 = vsel %vm9228, %v9196, %v9260
      %v9293 = vsel %vm9229, %v9197, %v9261
      %v9294 = vsel %vm9230, %v9198, %v9262
      %v9295 = vsel %vm9231, %v9199, %v9263
      %v9296 = vsel %vm9232, %v9200, %v9264
      %v9297 = vsel %vm9233, %v9201, %v9265
      %v9298 = vsel %vm9234, %v9202, %v9266
      %v9299 = vsel %vm9235, %v9203, %v9267
      %v9300 = vsel %vm9236, %v9204, %v9268
      %v9301 = vsel %vm9237, %v9205, %v9269
      %v9302 = vsel %vm9238, %v9206, %v9270
      %v9303 = vsel %vm9239, %v9207, %v9271
      %v9304 = vsel %vm9240, %v9208, %v9272
      %v9305 = vsel %vm9241, %v9209, %v9273
      %v9306 = vsel %vm9242, %v9210, %v9274
      %v9307 = vsel %vm9243, %v9211, %v9275
      %v9308 = vsel %vm9244, %v9212, %v9276
      %v9309 = vsel %vm9245, %v9213, %v9277
      %v9310 = vsel %vm9246, %v9214, %v9278
      %v9311 = vsel %vm9247, %v9215, %v9279
      %v9312 = vsel %vm9248, %v9216, %v9280
      %v9313 = vsel %vm9249, %v9217, %v9281
      %v9314 = vsel %vm9250, %v9218, %v9282
      %9315 = vst.msk [vmem:[%s6210] sm:$0xff] %vm1972, %v9283
      %9316 = vst.msk [vmem:[%s6210 + $0x8] sm:$0xff] %vm1972, %v9284
      %9317 = vst.msk [vmem:[%s6210 + $0x10] sm:$0xff] %vm1972, %v9285
      %9318 = vst.msk [vmem:[%s6210 + $0x18] sm:$0xff] %vm1972, %v9286
      %9319 = vst.msk [vmem:[%s6210 + $0x20] sm:$0xff] %vm1972, %v9287
      %9320 = vst.msk [vmem:[%s6210 + $0x28] sm:$0xff] %vm1972, %v9288
      %9321 = vst.msk [vmem:[%s6210 + $0x30] sm:$0xff] %vm1972, %v9289
      %9322 = vst.msk [vmem:[%s6210 + $0x38] sm:$0xff] %vm1972, %v9290
      %9323 = vst.msk [vmem:[%s6210 + $0x40] sm:$0xff] %vm1972, %v9291
      %9324 = vst.msk [vmem:[%s6210 + $0x48] sm:$0xff] %vm1972, %v9292
      %9325 = vst.msk [vmem:[%s6210 + $0x50] sm:$0xff] %vm1972, %v9293
      %9326 = vst.msk [vmem:[%s6210 + $0x58] sm:$0xff] %vm1972, %v9294
      %9327 = vst.msk [vmem:[%s6210 + $0x60] sm:$0xff] %vm1972, %v9295
      %9328 = vst.msk [vmem:[%s6210 + $0x68] sm:$0xff] %vm1972, %v9296
      %9329 = vst.msk [vmem:[%s6210 + $0x70] sm:$0xff] %vm1972, %v9297
      %9330 = vst.msk [vmem:[%s6210 + $0x78] sm:$0xff] %vm1972, %v9298
      %9331 = vst.msk [vmem:[%s6210 + $0x80] sm:$0xff] %vm1972, %v9299
      %9332 = vst.msk [vmem:[%s6210 + $0x88] sm:$0xff] %vm1972, %v9300
      %9333 = vst.msk [vmem:[%s6210 + $0x90] sm:$0xff] %vm1972, %v9301
      %9334 = vst.msk [vmem:[%s6210 + $0x98] sm:$0xff] %vm1972, %v9302
      %9335 = vst.msk [vmem:[%s6210 + $0xa0] sm:$0xff] %vm1972, %v9303
      %9336 = vst.msk [vmem:[%s6210 + $0xa8] sm:$0xff] %vm1972, %v9304
      %9337 = vst.msk [vmem:[%s6210 + $0xb0] sm:$0xff] %vm1972, %v9305
      %9338 = vst.msk [vmem:[%s6210 + $0xb8] sm:$0xff] %vm1972, %v9306
      %9339 = vst.msk [vmem:[%s6210 + $0xc0] sm:$0xff] %vm1972, %v9307
      %9340 = vst.msk [vmem:[%s6210 + $0xc8] sm:$0xff] %vm1972, %v9308
      %9341 = vst.msk [vmem:[%s6210 + $0xd0] sm:$0xff] %vm1972, %v9309
      %9342 = vst.msk [vmem:[%s6210 + $0xd8] sm:$0xff] %vm1972, %v9310
      %9343 = vst.msk [vmem:[%s6210 + $0xe0] sm:$0xff] %vm1972, %v9311
      %9344 = vst.msk [vmem:[%s6210 + $0xe8] sm:$0xff] %vm1972, %v9312
      %9345 = vst.msk [vmem:[%s6210 + $0xf0] sm:$0xff] %vm1972, %v9313
      %9346 = vst.msk [vmem:[%s6210 + $0xf8] sm:$0xff] %vm1972, %v9314
      %v9347 = vld [vmem:[%s8454] sm:$0xff]
      %v9348 = vld [vmem:[%s8454 + $0x8] sm:$0xff]
      %v9349 = vld [vmem:[%s8454 + $0x10] sm:$0xff]
      %v9350 = vld [vmem:[%s8454 + $0x18] sm:$0xff]
      %v9351 = vld [vmem:[%s8454 + $0x20] sm:$0xff]
      %v9352 = vld [vmem:[%s8454 + $0x28] sm:$0xff]
      %v9353 = vld [vmem:[%s8454 + $0x30] sm:$0xff]
      %v9354 = vld [vmem:[%s8454 + $0x38] sm:$0xff]
      %v9355 = vld [vmem:[%s8454 + $0x40] sm:$0xff]
      %v9356 = vld [vmem:[%s8454 + $0x48] sm:$0xff]
      %v9357 = vld [vmem:[%s8454 + $0x50] sm:$0xff]
      %v9358 = vld [vmem:[%s8454 + $0x58] sm:$0xff]
      %v9359 = vld [vmem:[%s8454 + $0x60] sm:$0xff]
      %v9360 = vld [vmem:[%s8454 + $0x68] sm:$0xff]
      %v9361 = vld [vmem:[%s8454 + $0x70] sm:$0xff]
      %v9362 = vld [vmem:[%s8454 + $0x78] sm:$0xff]
      %v9363 = vld [vmem:[%s8454 + $0x80] sm:$0xff]
      %v9364 = vld [vmem:[%s8454 + $0x88] sm:$0xff]
      %v9365 = vld [vmem:[%s8454 + $0x90] sm:$0xff]
      %v9366 = vld [vmem:[%s8454 + $0x98] sm:$0xff]
      %v9367 = vld [vmem:[%s8454 + $0xa0] sm:$0xff]
      %v9368 = vld [vmem:[%s8454 + $0xa8] sm:$0xff]
      %v9369 = vld [vmem:[%s8454 + $0xb0] sm:$0xff]
      %v9370 = vld [vmem:[%s8454 + $0xb8] sm:$0xff]
      %v9371 = vld [vmem:[%s8454 + $0xc0] sm:$0xff]
      %v9372 = vld [vmem:[%s8454 + $0xc8] sm:$0xff]
      %v9373 = vld [vmem:[%s8454 + $0xd0] sm:$0xff]
      %v9374 = vld [vmem:[%s8454 + $0xd8] sm:$0xff]
      %v9375 = vld [vmem:[%s8454 + $0xe0] sm:$0xff]
      %v9376 = vld [vmem:[%s8454 + $0xe8] sm:$0xff]
      %v9377 = vld [vmem:[%s8454 + $0xf0] sm:$0xff]
      %v9378 = vld [vmem:[%s8454 + $0xf8] sm:$0xff]
      %v9379 = vsub.f32 %v9347, %v8659
      %v9380 = vsub.f32 %v9348, %v8659
      %v9381 = vsub.f32 %v9349, %v8659
      %v9382 = vsub.f32 %v9350, %v8659
      %v9383 = vsub.f32 %v9351, %v8659
      %v9384 = vsub.f32 %v9352, %v8659
      %v9385 = vsub.f32 %v9353, %v8659
      %v9386 = vsub.f32 %v9354, %v8659
      %v9387 = vsub.f32 %v9355, %v8659
      %v9388 = vsub.f32 %v9356, %v8659
      %v9389 = vsub.f32 %v9357, %v8659
      %v9390 = vsub.f32 %v9358, %v8659
      %v9391 = vsub.f32 %v9359, %v8659
      %v9392 = vsub.f32 %v9360, %v8659
      %v9393 = vsub.f32 %v9361, %v8659
      %v9394 = vsub.f32 %v9362, %v8659
      %v9395 = vsub.f32 %v9363, %v8659
      %v9396 = vsub.f32 %v9364, %v8659
      %v9397 = vsub.f32 %v9365, %v8659
      %v9398 = vsub.f32 %v9366, %v8659
      %v9399 = vsub.f32 %v9367, %v8659
      %v9400 = vsub.f32 %v9368, %v8659
      %v9401 = vsub.f32 %v9369, %v8659
      %v9402 = vsub.f32 %v9370, %v8659
      %v9403 = vsub.f32 %v9371, %v8659
      %v9404 = vsub.f32 %v9372, %v8659
      %v9405 = vsub.f32 %v9373, %v8659
      %v9406 = vsub.f32 %v9374, %v8659
      %v9407 = vsub.f32 %v9375, %v8659
      %v9408 = vsub.f32 %v9376, %v8659
      %v9409 = vsub.f32 %v9377, %v8659
      %v9410 = vsub.f32 %v9378, %v8659
      %v9411 = vmul.f32 %v9379, %v8674
      %v9412 = vmul.f32 %v9380, %v8674
      %v9413 = vmul.f32 %v9381, %v8674
      %v9414 = vmul.f32 %v9382, %v8674
      %v9415 = vmul.f32 %v9383, %v8674
      %v9416 = vmul.f32 %v9384, %v8674
      %v9417 = vmul.f32 %v9385, %v8674
      %v9418 = vmul.f32 %v9386, %v8674
      %v9419 = vmul.f32 %v9387, %v8674
      %v9420 = vmul.f32 %v9388, %v8674
      %v9421 = vmul.f32 %v9389, %v8674
      %v9422 = vmul.f32 %v9390, %v8674
      %v9423 = vmul.f32 %v9391, %v8674
      %v9424 = vmul.f32 %v9392, %v8674
      %v9425 = vmul.f32 %v9393, %v8674
      %v9426 = vmul.f32 %v9394, %v8674
      %v9427 = vmul.f32 %v9395, %v8674
      %v9428 = vmul.f32 %v9396, %v8674
      %v9429 = vmul.f32 %v9397, %v8674
      %v9430 = vmul.f32 %v9398, %v8674
      %v9431 = vmul.f32 %v9399, %v8674
      %v9432 = vmul.f32 %v9400, %v8674
      %v9433 = vmul.f32 %v9401, %v8674
      %v9434 = vmul.f32 %v9402, %v8674
      %v9435 = vmul.f32 %v9403, %v8674
      %v9436 = vmul.f32 %v9404, %v8674
      %v9437 = vmul.f32 %v9405, %v8674
      %v9438 = vmul.f32 %v9406, %v8674
      %v9439 = vmul.f32 %v9407, %v8674
      %v9440 = vmul.f32 %v9408, %v8674
      %v9441 = vmul.f32 %v9409, %v8674
      %v9442 = vmul.f32 %v9410, %v8674
      %vm9443 = vcmp.ge.f32.partialorder %v9411, 0.0
      %vm9444 = vcmp.ge.f32.partialorder %v9412, 0.0
      %vm9445 = vcmp.ge.f32.partialorder %v9413, 0.0
      %vm9446 = vcmp.ge.f32.partialorder %v9414, 0.0
      %vm9447 = vcmp.ge.f32.partialorder %v9415, 0.0
      %vm9448 = vcmp.ge.f32.partialorder %v9416, 0.0
      %vm9449 = vcmp.ge.f32.partialorder %v9417, 0.0
      %vm9450 = vcmp.ge.f32.partialorder %v9418, 0.0
      %vm9451 = vcmp.ge.f32.partialorder %v9419, 0.0
      %vm9452 = vcmp.ge.f32.partialorder %v9420, 0.0
      %vm9453 = vcmp.ge.f32.partialorder %v9421, 0.0
      %vm9454 = vcmp.ge.f32.partialorder %v9422, 0.0
      %vm9455 = vcmp.ge.f32.partialorder %v9423, 0.0
      %vm9456 = vcmp.ge.f32.partialorder %v9424, 0.0
      %vm9457 = vcmp.ge.f32.partialorder %v9425, 0.0
      %vm9458 = vcmp.ge.f32.partialorder %v9426, 0.0
      %vm9459 = vcmp.ge.f32.partialorder %v9427, 0.0
      %vm9460 = vcmp.ge.f32.partialorder %v9428, 0.0
      %vm9461 = vcmp.ge.f32.partialorder %v9429, 0.0
      %vm9462 = vcmp.ge.f32.partialorder %v9430, 0.0
      %vm9463 = vcmp.ge.f32.partialorder %v9431, 0.0
      %vm9464 = vcmp.ge.f32.partialorder %v9432, 0.0
      %vm9465 = vcmp.ge.f32.partialorder %v9433, 0.0
      %vm9466 = vcmp.ge.f32.partialorder %v9434, 0.0
      %vm9467 = vcmp.ge.f32.partialorder %v9435, 0.0
      %vm9468 = vcmp.ge.f32.partialorder %v9436, 0.0
      %vm9469 = vcmp.ge.f32.partialorder %v9437, 0.0
      %vm9470 = vcmp.ge.f32.partialorder %v9438, 0.0
      %vm9471 = vcmp.ge.f32.partialorder %v9439, 0.0
      %vm9472 = vcmp.ge.f32.partialorder %v9440, 0.0
      %vm9473 = vcmp.ge.f32.partialorder %v9441, 0.0
      %vm9474 = vcmp.ge.f32.partialorder %v9442, 0.0
      %v9475 = vmul.f32 %v9411, 0.01
      %v9476 = vmul.f32 %v9412, 0.01
      %v9477 = vmul.f32 %v9413, 0.01
      %v9478 = vmul.f32 %v9414, 0.01
      %v9479 = vmul.f32 %v9415, 0.01
      %v9480 = vmul.f32 %v9416, 0.01
      %v9481 = vmul.f32 %v9417, 0.01
      %v9482 = vmul.f32 %v9418, 0.01
      %v9483 = vmul.f32 %v9419, 0.01
      %v9484 = vmul.f32 %v9420, 0.01
      %v9485 = vmul.f32 %v9421, 0.01
      %v9486 = vmul.f32 %v9422, 0.01
      %v9487 = vmul.f32 %v9423, 0.01
      %v9488 = vmul.f32 %v9424, 0.01
      %v9489 = vmul.f32 %v9425, 0.01
      %v9490 = vmul.f32 %v9426, 0.01
      %v9491 = vmul.f32 %v9427, 0.01
      %v9492 = vmul.f32 %v9428, 0.01
      %v9493 = vmul.f32 %v9429, 0.01
      %v9494 = vmul.f32 %v9430, 0.01
      %v9495 = vmul.f32 %v9431, 0.01
      %v9496 = vmul.f32 %v9432, 0.01
      %v9497 = vmul.f32 %v9433, 0.01
      %v9498 = vmul.f32 %v9434, 0.01
      %v9499 = vmul.f32 %v9435, 0.01
      %v9500 = vmul.f32 %v9436, 0.01
      %v9501 = vmul.f32 %v9437, 0.01
      %v9502 = vmul.f32 %v9438, 0.01
      %v9503 = vmul.f32 %v9439, 0.01
      %v9504 = vmul.f32 %v9440, 0.01
      %v9505 = vmul.f32 %v9441, 0.01
      %v9506 = vmul.f32 %v9442, 0.01
      %v9507 = vsel %vm9443, %v9411, %v9475
      %v9508 = vsel %vm9444, %v9412, %v9476
      %v9509 = vsel %vm9445, %v9413, %v9477
      %v9510 = vsel %vm9446, %v9414, %v9478
      %v9511 = vsel %vm9447, %v9415, %v9479
      %v9512 = vsel %vm9448, %v9416, %v9480
      %v9513 = vsel %vm9449, %v9417, %v9481
      %v9514 = vsel %vm9450, %v9418, %v9482
      %v9515 = vsel %vm9451, %v9419, %v9483
      %v9516 = vsel %vm9452, %v9420, %v9484
      %v9517 = vsel %vm9453, %v9421, %v9485
      %v9518 = vsel %vm9454, %v9422, %v9486
      %v9519 = vsel %vm9455, %v9423, %v9487
      %v9520 = vsel %vm9456, %v9424, %v9488
      %v9521 = vsel %vm9457, %v9425, %v9489
      %v9522 = vsel %vm9458, %v9426, %v9490
      %v9523 = vsel %vm9459, %v9427, %v9491
      %v9524 = vsel %vm9460, %v9428, %v9492
      %v9525 = vsel %vm9461, %v9429, %v9493
      %v9526 = vsel %vm9462, %v9430, %v9494
      %v9527 = vsel %vm9463, %v9431, %v9495
      %v9528 = vsel %vm9464, %v9432, %v9496
      %v9529 = vsel %vm9465, %v9433, %v9497
      %v9530 = vsel %vm9466, %v9434, %v9498
      %v9531 = vsel %vm9467, %v9435, %v9499
      %v9532 = vsel %vm9468, %v9436, %v9500
      %v9533 = vsel %vm9469, %v9437, %v9501
      %v9534 = vsel %vm9470, %v9438, %v9502
      %v9535 = vsel %vm9471, %v9439, %v9503
      %v9536 = vsel %vm9472, %v9440, %v9504
      %v9537 = vsel %vm9473, %v9441, %v9505
      %v9538 = vsel %vm9474, %v9442, %v9506
      %9539 = vst.msk [vmem:[%s8454] sm:$0xff] %vm1972, %v9507
      %9540 = vst.msk [vmem:[%s8454 + $0x8] sm:$0xff] %vm1972, %v9508
      %9541 = vst.msk [vmem:[%s8454 + $0x10] sm:$0xff] %vm1972, %v9509
      %9542 = vst.msk [vmem:[%s8454 + $0x18] sm:$0xff] %vm1972, %v9510
      %9543 = vst.msk [vmem:[%s8454 + $0x20] sm:$0xff] %vm1972, %v9511
      %9544 = vst.msk [vmem:[%s8454 + $0x28] sm:$0xff] %vm1972, %v9512
      %9545 = vst.msk [vmem:[%s8454 + $0x30] sm:$0xff] %vm1972, %v9513
      %9546 = vst.msk [vmem:[%s8454 + $0x38] sm:$0xff] %vm1972, %v9514
      %9547 = vst.msk [vmem:[%s8454 + $0x40] sm:$0xff] %vm1972, %v9515
      %9548 = vst.msk [vmem:[%s8454 + $0x48] sm:$0xff] %vm1972, %v9516
      %9549 = vst.msk [vmem:[%s8454 + $0x50] sm:$0xff] %vm1972, %v9517
      %9550 = vst.msk [vmem:[%s8454 + $0x58] sm:$0xff] %vm1972, %v9518
      %9551 = vst.msk [vmem:[%s8454 + $0x60] sm:$0xff] %vm1972, %v9519
      %9552 = vst.msk [vmem:[%s8454 + $0x68] sm:$0xff] %vm1972, %v9520
      %9553 = vst.msk [vmem:[%s8454 + $0x70] sm:$0xff] %vm1972, %v9521
      %9554 = vst.msk [vmem:[%s8454 + $0x78] sm:$0xff] %vm1972, %v9522
      %9555 = vst.msk [vmem:[%s8454 + $0x80] sm:$0xff] %vm1972, %v9523
      %9556 = vst.msk [vmem:[%s8454 + $0x88] sm:$0xff] %vm1972, %v9524
      %9557 = vst.msk [vmem:[%s8454 + $0x90] sm:$0xff] %vm1972, %v9525
      %9558 = vst.msk [vmem:[%s8454 + $0x98] sm:$0xff] %vm1972, %v9526
      %9559 = vst.msk [vmem:[%s8454 + $0xa0] sm:$0xff] %vm1972, %v9527
      %9560 = vst.msk [vmem:[%s8454 + $0xa8] sm:$0xff] %vm1972, %v9528
      %9561 = vst.msk [vmem:[%s8454 + $0xb0] sm:$0xff] %vm1972, %v9529
      %9562 = vst.msk [vmem:[%s8454 + $0xb8] sm:$0xff] %vm1972, %v9530
      %9563 = vst.msk [vmem:[%s8454 + $0xc0] sm:$0xff] %vm1972, %v9531
      %9564 = vst.msk [vmem:[%s8454 + $0xc8] sm:$0xff] %vm1972, %v9532
      %9565 = vst.msk [vmem:[%s8454 + $0xd0] sm:$0xff] %vm1972, %v9533
      %9566 = vst.msk [vmem:[%s8454 + $0xd8] sm:$0xff] %vm1972, %v9534
      %9567 = vst.msk [vmem:[%s8454 + $0xe0] sm:$0xff] %vm1972, %v9535
      %9568 = vst.msk [vmem:[%s8454 + $0xe8] sm:$0xff] %vm1972, %v9536
      %9569 = vst.msk [vmem:[%s8454 + $0xf0] sm:$0xff] %vm1972, %v9537
      %9570 = vst.msk [vmem:[%s8454 + $0xf8] sm:$0xff] %vm1972, %v9538
      %p9571 = scmp.lt.s32.totalorder %s17, 1
      %s9572 = scalar_select %p9571, %s17, 1
      %p9573 = scmp.lt.s32.totalorder %s18, 0
      %s9574 = scalar_select %p9573, %s18, 0
      %s9575 = smul.addr %s9572, 128
      %s9576 = sadd.s32 %s9574, %s9575
      %s9577 = smul.addr %s9576, 8
      %s9578 = scalar_lea.vmem %s2, %s9577
      // Predicated region
      $region29: #{tpu_custom_call.1} parent=27 // pred_check
        %p9579 = pneg %p97
      $region30: #{tpu_custom_call.1} parent=27 // pred_check_branch
        %9581 = sbr.rel (%p9579) target = $region32
      $region31: #{tpu_custom_call.1} parent=27 // pred_region
        _
      $region32: #{tpu_custom_call.1} parent=27 // pred_fallthru
        _
    $region28: #{tpu_custom_call.1} parent=5 // pred_fallthru
      _
    %p9582 = scmp.le.s32.totalorder 2, %s8
    // Predicated region
    $region33: #{tpu_custom_call.1} parent=5 // pred_check
      %p9583 = pneg %p9582
    $region34: #{tpu_custom_call.1} parent=5 // pred_check_branch
      %9585 = sbr.rel (%p9583) target = $region36
    $region35: #{tpu_custom_call.1} parent=5 // pred_region
      %s9586 = ssub.s32 %s8, 2
      // Predicated region
      $region37: #{tpu_custom_call.1} parent=35 // pred_check
        %p9587 = pneg %p103
      $region38: #{tpu_custom_call.1} parent=35 // pred_check_branch
        %9589 = sbr.rel (%p9587) target = $region40
      $region39: #{tpu_custom_call.1} parent=35 // pred_region
        %p9590 = scmp.lt.s32.totalorder %s19, 1
        %s9591 = scalar_select %p9590, %s19, 1
        %p9592 = scmp.lt.s32.totalorder %s20, 0
        %s9593 = scalar_select %p9592, %s20, 0
        %s9594 = smul.addr %s9591, 128
        %s9595 = sadd.s32 %s9593, %s9594
        %s9596 = smul.addr %s9595, 8
        %s9597 = scalar_lea.vmem %s2, %s9596
      $region40: #{tpu_custom_call.1} parent=35 // pred_fallthru
        _
    $region36: #{tpu_custom_call.1} parent=5 // pred_fallthru
      _
  $region6: #{tpu_custom_call.1} parent=0 // loop_footer
    %s12 = sadd.s32 1, %s8
  $region7: #{tpu_custom_call.1} parent=0 // loop_footer_branch
    %7 = sbr.rel target = $region3
  $region8: #{tpu_custom_call.1} parent=0 // loop_exit
    _

</llo_original>
